<compile_context>
chip_gen: v7x
topology: tpu7x:2x2x1
jax: 0.10.0
libtpu: 0.0.40
codegen_flags: <defaults>
</compile_context>

<pallas_src>
import jax
import jax.numpy as jnp
from jax import lax
from jax.experimental import pallas as pl
from jax.experimental.pallas import tpu as pltpu


_VMEM = pl.BlockSpec(memory_space=pltpu.MemorySpace.VMEM)


# ----------------------------- Pallas kernels -----------------------------

def conv_relu_pool_kernel(p_ref, w_ref, b_ref, o_ref):
    """Fused conv-as-matmul + bias + ReLU + 2x2 max-pool.

    p_ref: (4, M, K) bf16  im2col patches, split by 2x2 pool-window member q
    w_ref: (K, N)    bf16  flattened (kh*kw*Cin[,pad], Cout) conv weights
    b_ref: (1, N)    f32   bias
    o_ref: (M, N)    bf16  pooled activations, rows ordered (b, ph, pw)

    pool(relu(conv)) == relu(max_q(patches_q @ w) + b): ReLU is monotone and the bias is
    shared across the 4 window members, so the max can be taken on the raw matmul results.
    """
    w = w_ref[...]
    acc = jnp.dot(p_ref[0], w, preferred_element_type=jnp.float32)
    for q in range(1, 4):
        acc = jnp.maximum(acc, jnp.dot(p_ref[q], w, preferred_element_type=jnp.float32))
    o_ref[...] = jnp.maximum(acc + b_ref[...], 0.0).astype(o_ref.dtype)


def fc_head_kernel(x_ref, m_ref, w1_ref, b1_ref, w2_ref, b2_ref, w3_ref, b3_ref,
                   logits_ref, rep_ref):
    # fc1 + relu, fc2 + relu (homo_rep); fc3 applied to m_rep_small (logits)
    h1 = jnp.dot(x_ref[...], w1_ref[...], preferred_element_type=jnp.float32) + b1_ref[...]
    h1 = jnp.maximum(h1, 0.0).astype(jnp.bfloat16)
    h2 = jnp.dot(h1, w2_ref[...], preferred_element_type=jnp.float32) + b2_ref[...]
    rep_ref[...] = jnp.maximum(h2, 0.0).astype(rep_ref.dtype)
    lg = jnp.dot(m_ref[...], w3_ref[...], preferred_element_type=jnp.float32) + b3_ref[...]
    logits_ref[...] = lg.astype(logits_ref.dtype)


# ------------------------------- wrappers ---------------------------------

def pooled_im2col(x_nhwc, kh, kw, pool=2):
    """im2col with rows grouped by 2x2 pool-window member.

    Returns (pool*pool, B*Hp*Wp, kh*kw*C): entry q = dh*pool + dw holds the patches of the
    conv-output pixels (2*ph + dh, 2*pw + dw). Column order (ki, kj, c) matches an HWIO
    weight reshaped to (kh*kw*C, Cout).
    """
    # TODO(synk): patches could be built in-kernel via shift-and-accumulate matmuls to avoid
    # the wrapper-side im2col materialization entirely; kept in XLA here for lowering safety.
    B, H, W, C = x_nhwc.shape
    Ho, Wo = H - kh + 1, W - kw + 1
    Hp, Wp = Ho // pool, Wo // pool
    qs = []
    for dh in range(pool):
        for dw in range(pool):
            cols = []
            for ki in range(kh):
                for kj in range(kw):
                    sl = x_nhwc[:, dh + ki: dh + ki + pool * Hp - 1: pool,
                                   dw + kj: dw + kj + pool * Wp - 1: pool, :]
                    cols.append(sl)                         # (B, Hp, Wp, C)
            pq = jnp.stack(cols, axis=3)                    # (B, Hp, Wp, kh*kw, C)
            qs.append(pq.reshape(B * Hp * Wp, kh * kw * C))
    return jnp.stack(qs, axis=0), Hp, Wp                    # (4, B*Hp*Wp, kh*kw*C)


def conv_relu_pool(patches_q, w2d, b_row):
    nq, M, K = patches_q.shape
    N = w2d.shape[1]
    cost = pl.CostEstimate(
        flops=2 * nq * M * K * N,
        transcendentals=0,
        bytes_accessed=int(patches_q.size * patches_q.dtype.itemsize
                           + w2d.size * w2d.dtype.itemsize
                           + b_row.size * b_row.dtype.itemsize
                           + M * N * 2),
    )
    return pl.pallas_call(
        conv_relu_pool_kernel,
        out_shape=jax.ShapeDtypeStruct((M, N), jnp.bfloat16),
        in_specs=[_VMEM, _VMEM, _VMEM],
        out_specs=_VMEM,
        cost_estimate=cost,
    )(patches_q, w2d, b_row)


def fc_head(x_flat, m_rep, pp):
    B = x_flat.shape[0]
    w1, w2, w3 = pp['fc1_w'], pp['fc2_w'], pp['fc3_w']
    cost = pl.CostEstimate(
        flops=2 * B * (w1.shape[0] * w1.shape[1]
                       + w2.shape[0] * w2.shape[1]
                       + w3.shape[0] * w3.shape[1]),
        transcendentals=0,
        bytes_accessed=int(2 * (w1.size + w2.size + w3.size)
                           + 4 * (w1.shape[1] + w2.shape[1] + w3.shape[1])
                           + 2 * (x_flat.size + m_rep.size)
                           + 4 * B * (w2.shape[1] + w3.shape[1])),
    )
    logits, rep = pl.pallas_call(
        fc_head_kernel,
        out_shape=(jax.ShapeDtypeStruct((B, w3.shape[1]), jnp.float32),
                   jax.ShapeDtypeStruct((B, w2.shape[1]), jnp.float32)),
        in_specs=[_VMEM] * 8,
        out_specs=(_VMEM, _VMEM),
        cost_estimate=cost,
    )(x_flat, m_rep, w1, pp['fc1_b'], w2, pp['fc2_b'], w3, pp['fc3_b'])
    return logits, rep


def _pad_rows_to_multiple(w2d, m=128):
    k = w2d.shape[0]
    kp = ((k + m - 1) // m) * m
    if kp != k:
        w2d = jnp.pad(w2d, ((0, kp - k), (0, 0)))
    return w2d


def prepare_params(p):
    """One-time packing: bf16 matmul operands, flattened / lane-padded conv weights, row biases."""
    c1, c2 = p['conv1_w'], p['conv2_w']
    w1 = _pad_rows_to_multiple(c1.reshape(-1, c1.shape[3]), 128)   # K: 75 -> 128
    w2 = c2.reshape(-1, c2.shape[3])                               # K = 400, kept as-is
    return {
        'conv1_w': w1.astype(jnp.bfloat16),
        'conv1_b': p['conv1_b'].reshape(1, -1).astype(jnp.float32),
        'conv2_w': w2.astype(jnp.bfloat16),
        'conv2_b': p['conv2_b'].reshape(1, -1).astype(jnp.float32),
        'fc1_w': p['fc1_w'].astype(jnp.bfloat16),
        'fc1_b': p['fc1_b'].reshape(1, -1).astype(jnp.float32),
        'fc2_w': p['fc2_w'].astype(jnp.bfloat16),
        'fc2_b': p['fc2_b'].reshape(1, -1).astype(jnp.float32),
        'fc3_w': p['fc3_w'].astype(jnp.bfloat16),
        'fc3_b': p['fc3_b'].reshape(1, -1).astype(jnp.float32),
    }


def cnn1_small_forward(x_nchw, m_rep_small, pp):
    B = x_nchw.shape[0]
    x = jnp.transpose(x_nchw, (0, 2, 3, 1)).astype(jnp.bfloat16)     # NCHW -> NHWC, bf16

    # conv1 + relu + 2x2 max-pool : one fused Pallas call
    p1, Hp1, Wp1 = pooled_im2col(x, 5, 5)
    pad1 = pp['conv1_w'].shape[0] - p1.shape[-1]
    if pad1 > 0:
        p1 = jnp.pad(p1, ((0, 0), (0, 0), (0, pad1)))
    x1 = conv_relu_pool(p1, pp['conv1_w'], pp['conv1_b'])            # (B*Hp1*Wp1, 16)
    x1 = x1.reshape(B, Hp1, Wp1, -1)

    # conv2 + relu + 2x2 max-pool : one fused Pallas call
    p2, Hp2, Wp2 = pooled_im2col(x1, 5, 5)
    pad2 = pp['conv2_w'].shape[0] - p2.shape[-1]
    if pad2 > 0:
        p2 = jnp.pad(p2, ((0, 0), (0, 0), (0, pad2)))
    x2 = conv_relu_pool(p2, pp['conv2_w'], pp['conv2_b'])            # (B*Hp2*Wp2, 32)
    x2 = x2.reshape(B, Hp2, Wp2, -1)

    # flatten exactly like PyTorch's x.view(B, -1) on an NCHW tensor
    x_flat = jnp.transpose(x2, (0, 3, 1, 2)).reshape(B, -1)          # (B, 800) bf16

    return fc_head(x_flat, m_rep_small.astype(jnp.bfloat16), pp)


# ----------------------- pure-JAX reference (check) ------------------------

def reference_forward(x_nchw, m_rep_small, p):
    prec = lax.Precision.HIGHEST

    def conv(x, w, b):
        y = lax.conv_general_dilated(x, w, (1, 1), 'VALID',
                                     dimension_numbers=('NCHW', 'HWIO', 'NCHW'),
                                     precision=prec)
        return y + b[None, :, None, None]

    def pool(y):
        return lax.reduce_window(y, -jnp.inf, lax.max, (1, 1, 2, 2), (1, 1, 2, 2), 'VALID')

    y = pool(jax.nn.relu(conv(x_nchw, p['conv1_w'], p['conv1_b'])))
    y = pool(jax.nn.relu(conv(y, p['conv2_w'], p['conv2_b'])))
    xf = y.reshape(y.shape[0], -1)
    h1 = jax.nn.relu(jnp.dot(xf, p['fc1_w'], precision=prec) + p['fc1_b'])
    rep = jax.nn.relu(jnp.dot(h1, p['fc2_w'], precision=prec) + p['fc2_b'])
    logits = jnp.dot(m_rep_small, p['fc3_w'], precision=prec) + p['fc3_b']
    return logits, rep


if __name__ == "__main__":
    key = jax.random.PRNGKey(0)
    ks = jax.random.split(key, 12)
    in_channels, n_kernels, out_dim, small_rep_dim = 3, 16, 10, 250
    B = 2
    p = {
        'conv1_w': jax.random.normal(ks[0], (5, 5, in_channels, n_kernels), jnp.float32) * 0.05,
        'conv1_b': jax.random.normal(ks[1], (n_kernels,), jnp.float32) * 0.05,
        'conv2_w': jax.random.normal(ks[2], (5, 5, n_kernels, 2 * n_kernels), jnp.float32) * 0.05,
        'conv2_b': jax.random.normal(ks[3], (2 * n_kernels,), jnp.float32) * 0.05,
        'fc1_w': jax.random.normal(ks[4], (2 * n_kernels * 5 * 5, 2000), jnp.float32) * 0.03,
        'fc1_b': jax.random.normal(ks[5], (2000,), jnp.float32) * 0.03,
        'fc2_w': jax.random.normal(ks[6], (2000, small_rep_dim), jnp.float32) * 0.02,
        'fc2_b': jax.random.normal(ks[7], (small_rep_dim,), jnp.float32) * 0.02,
        'fc3_w': jax.random.normal(ks[8], (small_rep_dim, out_dim), jnp.float32) * 0.05,
        'fc3_b': jax.random.normal(ks[9], (out_dim,), jnp.float32) * 0.05,
    }
    x = jax.random.normal(ks[10], (B, in_channels, 32, 32), jnp.float32)
    m_rep_small = jax.random.normal(ks[11], (B, small_rep_dim), jnp.float32)

    pp = prepare_params(p)                      # one-time bf16 packing (outside the hot path)
    fwd = jax.jit(cnn1_small_forward)
    logits, homo_rep = jax.block_until_ready(fwd(x, m_rep_small, pp))
    assert logits.shape == (B, out_dim) and homo_rep.shape == (B, small_rep_dim)

    ref_logits, ref_rep = reference_forward(x, m_rep_small, p)
    # bf16 matmul operands (f32 accumulation) -> compare at 2e-2
    assert bool(jnp.allclose(logits.astype(jnp.float32), ref_logits, atol=2e-2, rtol=2e-2))
    assert bool(jnp.allclose(homo_rep.astype(jnp.float32), ref_rep, atol=2e-2, rtol=2e-2))
    print("KERNEL_OK")
</pallas_src>

<mosaic_0001>
module attributes {stable_mosaic.version = 11 : i64} {
  func.func @conv_relu_pool_kernel(%arg0: memref<4x392x128xbf16, #tpu.memory_space<vmem>>, %arg1: memref<128x16xbf16, #tpu.memory_space<vmem>>, %arg2: memref<1x16xf32, #tpu.memory_space<vmem>>, %arg3: memref<392x16xbf16, #tpu.memory_space<vmem>>) attributes {dimension_semantics = [], scalar_prefetch = 0 : i64, scratch_operands = 0 : i64, tpu.core_type = #tpu.core_type<tc>} {
    %c0 = arith.constant 0 : index
    %c0_0 = arith.constant 0 : index
    %0 = vector.load %arg1[%c0, %c0_0] : memref<128x16xbf16, #tpu.memory_space<vmem>>, vector<128x16xbf16>
    %c0_1 = arith.constant 0 : index
    %c0_2 = arith.constant 0 : index
    %c0_3 = arith.constant 0 : index
    %1 = vector.load %arg0[%c0_1, %c0_2, %c0_3] : memref<4x392x128xbf16, #tpu.memory_space<vmem>>, vector<1x392x128xbf16>
    %2 = vector.shape_cast %1 : vector<1x392x128xbf16> to vector<392x128xbf16>
    %cst = arith.constant dense<0.000000e+00> : vector<392x16xf32>
    %3 = tpu.matmul %2, %0, %cst {dimension_numbers = #tpu.dot_dimension_numbers<[1], [0], [0], [1], [0, 0, 1, 1], [], []>} : vector<392x128xbf16>, vector<128x16xbf16>, vector<392x16xf32> -> vector<392x16xf32>
    %c1 = arith.constant 1 : index
    %c0_4 = arith.constant 0 : index
    %c0_5 = arith.constant 0 : index
    %4 = vector.load %arg0[%c1, %c0_4, %c0_5] : memref<4x392x128xbf16, #tpu.memory_space<vmem>>, vector<1x392x128xbf16>
    %5 = vector.shape_cast %4 : vector<1x392x128xbf16> to vector<392x128xbf16>
    %cst_6 = arith.constant dense<0.000000e+00> : vector<392x16xf32>
    %6 = tpu.matmul %5, %0, %cst_6 {dimension_numbers = #tpu.dot_dimension_numbers<[1], [0], [0], [1], [0, 0, 1, 1], [], []>} : vector<392x128xbf16>, vector<128x16xbf16>, vector<392x16xf32> -> vector<392x16xf32>
    %7 = arith.maximumf %3, %6 : vector<392x16xf32>
    %c2 = arith.constant 2 : index
    %c0_7 = arith.constant 0 : index
    %c0_8 = arith.constant 0 : index
    %8 = vector.load %arg0[%c2, %c0_7, %c0_8] : memref<4x392x128xbf16, #tpu.memory_space<vmem>>, vector<1x392x128xbf16>
    %9 = vector.shape_cast %8 : vector<1x392x128xbf16> to vector<392x128xbf16>
    %cst_9 = arith.constant dense<0.000000e+00> : vector<392x16xf32>
    %10 = tpu.matmul %9, %0, %cst_9 {dimension_numbers = #tpu.dot_dimension_numbers<[1], [0], [0], [1], [0, 0, 1, 1], [], []>} : vector<392x128xbf16>, vector<128x16xbf16>, vector<392x16xf32> -> vector<392x16xf32>
    %11 = arith.maximumf %7, %10 : vector<392x16xf32>
    %c3 = arith.constant 3 : index
    %c0_10 = arith.constant 0 : index
    %c0_11 = arith.constant 0 : index
    %12 = vector.load %arg0[%c3, %c0_10, %c0_11] : memref<4x392x128xbf16, #tpu.memory_space<vmem>>, vector<1x392x128xbf16>
    %13 = vector.shape_cast %12 : vector<1x392x128xbf16> to vector<392x128xbf16>
    %cst_12 = arith.constant dense<0.000000e+00> : vector<392x16xf32>
    %14 = tpu.matmul %13, %0, %cst_12 {dimension_numbers = #tpu.dot_dimension_numbers<[1], [0], [0], [1], [0, 0, 1, 1], [], []>} : vector<392x128xbf16>, vector<128x16xbf16>, vector<392x16xf32> -> vector<392x16xf32>
    %15 = arith.maximumf %11, %14 : vector<392x16xf32>
    %c0_13 = arith.constant 0 : index
    %c0_14 = arith.constant 0 : index
    %16 = vector.load %arg2[%c0_13, %c0_14] : memref<1x16xf32, #tpu.memory_space<vmem>>, vector<1x16xf32>
    %17 = vector.broadcast %16 : vector<1x16xf32> to vector<392x16xf32>
    %18 = arith.addf %15, %17 : vector<392x16xf32>
    %cst_15 = arith.constant 0.000000e+00 : f32
    %19 = vector.broadcast %cst_15 : f32 to vector<392x16xf32>
    %20 = arith.maximumf %18, %19 : vector<392x16xf32>
    %21 = arith.truncf %20 : vector<392x16xf32> to vector<392x16xbf16>
    %c0_16 = arith.constant 0 : index
    %c0_17 = arith.constant 0 : index
    %22 = vector.load %arg3[%c0_16, %c0_17] : memref<392x16xbf16, #tpu.memory_space<vmem>>, vector<392x16xbf16>
    tpu.vector_store %arg3[%c0_16, %c0_17], %21 {strides = array<i32>} : memref<392x16xbf16, #tpu.memory_space<vmem>>, vector<392x16xbf16>,
    return
  }
}

module attributes {stable_mosaic.version = 11 : i64} {
  func.func @conv_relu_pool_kernel(%arg0: memref<4x50x400xbf16, #tpu.memory_space<vmem>>, %arg1: memref<400x32xbf16, #tpu.memory_space<vmem>>, %arg2: memref<1x32xf32, #tpu.memory_space<vmem>>, %arg3: memref<50x32xbf16, #tpu.memory_space<vmem>>) attributes {dimension_semantics = [], scalar_prefetch = 0 : i64, scratch_operands = 0 : i64, tpu.core_type = #tpu.core_type<tc>} {
    %c0 = arith.constant 0 : index
    %c0_0 = arith.constant 0 : index
    %0 = vector.load %arg1[%c0, %c0_0] : memref<400x32xbf16, #tpu.memory_space<vmem>>, vector<400x32xbf16>
    %c0_1 = arith.constant 0 : index
    %c0_2 = arith.constant 0 : index
    %c0_3 = arith.constant 0 : index
    %1 = vector.load %arg0[%c0_1, %c0_2, %c0_3] : memref<4x50x400xbf16, #tpu.memory_space<vmem>>, vector<1x50x400xbf16>
    %2 = vector.shape_cast %1 : vector<1x50x400xbf16> to vector<50x400xbf16>
    %cst = arith.constant dense<0.000000e+00> : vector<50x32xf32>
    %3 = tpu.matmul %2, %0, %cst {dimension_numbers = #tpu.dot_dimension_numbers<[1], [0], [0], [1], [0, 0, 1, 1], [], []>} : vector<50x400xbf16>, vector<400x32xbf16>, vector<50x32xf32> -> vector<50x32xf32>
    %c1 = arith.constant 1 : index
    %c0_4 = arith.constant 0 : index
    %c0_5 = arith.constant 0 : index
    %4 = vector.load %arg0[%c1, %c0_4, %c0_5] : memref<4x50x400xbf16, #tpu.memory_space<vmem>>, vector<1x50x400xbf16>
    %5 = vector.shape_cast %4 : vector<1x50x400xbf16> to vector<50x400xbf16>
    %cst_6 = arith.constant dense<0.000000e+00> : vector<50x32xf32>
    %6 = tpu.matmul %5, %0, %cst_6 {dimension_numbers = #tpu.dot_dimension_numbers<[1], [0], [0], [1], [0, 0, 1, 1], [], []>} : vector<50x400xbf16>, vector<400x32xbf16>, vector<50x32xf32> -> vector<50x32xf32>
    %7 = arith.maximumf %3, %6 : vector<50x32xf32>
    %c2 = arith.constant 2 : index
    %c0_7 = arith.constant 0 : index
    %c0_8 = arith.constant 0 : index
    %8 = vector.load %arg0[%c2, %c0_7, %c0_8] : memref<4x50x400xbf16, #tpu.memory_space<vmem>>, vector<1x50x400xbf16>
    %9 = vector.shape_cast %8 : vector<1x50x400xbf16> to vector<50x400xbf16>
    %cst_9 = arith.constant dense<0.000000e+00> : vector<50x32xf32>
    %10 = tpu.matmul %9, %0, %cst_9 {dimension_numbers = #tpu.dot_dimension_numbers<[1], [0], [0], [1], [0, 0, 1, 1], [], []>} : vector<50x400xbf16>, vector<400x32xbf16>, vector<50x32xf32> -> vector<50x32xf32>
    %11 = arith.maximumf %7, %10 : vector<50x32xf32>
    %c3 = arith.constant 3 : index
    %c0_10 = arith.constant 0 : index
    %c0_11 = arith.constant 0 : index
    %12 = vector.load %arg0[%c3, %c0_10, %c0_11] : memref<4x50x400xbf16, #tpu.memory_space<vmem>>, vector<1x50x400xbf16>
    %13 = vector.shape_cast %12 : vector<1x50x400xbf16> to vector<50x400xbf16>
    %cst_12 = arith.constant dense<0.000000e+00> : vector<50x32xf32>
    %14 = tpu.matmul %13, %0, %cst_12 {dimension_numbers = #tpu.dot_dimension_numbers<[1], [0], [0], [1], [0, 0, 1, 1], [], []>} : vector<50x400xbf16>, vector<400x32xbf16>, vector<50x32xf32> -> vector<50x32xf32>
    %15 = arith.maximumf %11, %14 : vector<50x32xf32>
    %c0_13 = arith.constant 0 : index
    %c0_14 = arith.constant 0 : index
    %16 = vector.load %arg2[%c0_13, %c0_14] : memref<1x32xf32, #tpu.memory_space<vmem>>, vector<1x32xf32>
    %17 = vector.broadcast %16 : vector<1x32xf32> to vector<50x32xf32>
    %18 = arith.addf %15, %17 : vector<50x32xf32>
    %cst_15 = arith.constant 0.000000e+00 : f32
    %19 = vector.broadcast %cst_15 : f32 to vector<50x32xf32>
    %20 = arith.maximumf %18, %19 : vector<50x32xf32>
    %21 = arith.truncf %20 : vector<50x32xf32> to vector<50x32xbf16>
    %c0_16 = arith.constant 0 : index
    %c0_17 = arith.constant 0 : index
    %22 = vector.load %arg3[%c0_16, %c0_17] : memref<50x32xbf16, #tpu.memory_space<vmem>>, vector<50x32xbf16>
    tpu.vector_store %arg3[%c0_16, %c0_17], %21 {strides = array<i32>} : memref<50x32xbf16, #tpu.memory_space<vmem>>, vector<50x32xbf16>,
    return
  }
}

module attributes {stable_mosaic.version = 11 : i64} {
  func.func @fc_head_kernel(%arg0: memref<2x800xbf16, #tpu.memory_space<vmem>>, %arg1: memref<2x250xbf16, #tpu.memory_space<vmem>>, %arg2: memref<800x2000xbf16, #tpu.memory_space<vmem>>, %arg3: memref<1x2000xf32, #tpu.memory_space<vmem>>, %arg4: memref<2000x250xbf16, #tpu.memory_space<vmem>>, %arg5: memref<1x250xf32, #tpu.memory_space<vmem>>, %arg6: memref<250x10xbf16, #tpu.memory_space<vmem>>, %arg7: memref<1x10xf32, #tpu.memory_space<vmem>>, %arg8: memref<2x10xf32, #tpu.memory_space<vmem>>, %arg9: memref<2x250xf32, #tpu.memory_space<vmem>>) attributes {dimension_semantics = [], scalar_prefetch = 0 : i64, scratch_operands = 0 : i64, tpu.core_type = #tpu.core_type<tc>} {
    %c0 = arith.constant 0 : index
    %c0_0 = arith.constant 0 : index
    %0 = vector.load %arg0[%c0, %c0_0] : memref<2x800xbf16, #tpu.memory_space<vmem>>, vector<2x800xbf16>
    %c0_1 = arith.constant 0 : index
    %c0_2 = arith.constant 0 : index
    %1 = vector.load %arg2[%c0_1, %c0_2] : memref<800x2000xbf16, #tpu.memory_space<vmem>>, vector<800x2000xbf16>
    %cst = arith.constant dense<0.000000e+00> : vector<2x2000xf32>
    %2 = tpu.matmul %0, %1, %cst {dimension_numbers = #tpu.dot_dimension_numbers<[1], [0], [0], [1], [0, 0, 1, 1], [], []>} : vector<2x800xbf16>, vector<800x2000xbf16>, vector<2x2000xf32> -> vector<2x2000xf32>
    %c0_3 = arith.constant 0 : index
    %c0_4 = arith.constant 0 : index
    %3 = vector.load %arg3[%c0_3, %c0_4] : memref<1x2000xf32, #tpu.memory_space<vmem>>, vector<1x2000xf32>
    %4 = vector.broadcast %3 : vector<1x2000xf32> to vector<2x2000xf32>
    %5 = arith.addf %2, %4 : vector<2x2000xf32>
    %cst_5 = arith.constant 0.000000e+00 : f32
    %6 = vector.broadcast %cst_5 : f32 to vector<2x2000xf32>
    %7 = arith.maximumf %5, %6 : vector<2x2000xf32>
    %8 = arith.truncf %7 : vector<2x2000xf32> to vector<2x2000xbf16>
    %c0_6 = arith.constant 0 : index
    %c0_7 = arith.constant 0 : index
    %9 = vector.load %arg4[%c0_6, %c0_7] : memref<2000x250xbf16, #tpu.memory_space<vmem>>, vector<2000x250xbf16>
    %cst_8 = arith.constant dense<0.000000e+00> : vector<2x250xf32>
    %10 = tpu.matmul %8, %9, %cst_8 {dimension_numbers = #tpu.dot_dimension_numbers<[1], [0], [0], [1], [0, 0, 1, 1], [], []>} : vector<2x2000xbf16>, vector<2000x250xbf16>, vector<2x250xf32> -> vector<2x250xf32>
    %c0_9 = arith.constant 0 : index
    %c0_10 = arith.constant 0 : index
    %11 = vector.load %arg5[%c0_9, %c0_10] : memref<1x250xf32, #tpu.memory_space<vmem>>, vector<1x250xf32>
    %12 = vector.broadcast %11 : vector<1x250xf32> to vector<2x250xf32>
    %13 = arith.addf %10, %12 : vector<2x250xf32>
    %cst_11 = arith.constant 0.000000e+00 : f32
    %14 = vector.broadcast %cst_11 : f32 to vector<2x250xf32>
    %15 = arith.maximumf %13, %14 : vector<2x250xf32>
    %c0_12 = arith.constant 0 : index
    %c0_13 = arith.constant 0 : index
    %16 = vector.load %arg9[%c0_12, %c0_13] : memref<2x250xf32, #tpu.memory_space<vmem>>, vector<2x250xf32>
    tpu.vector_store %arg9[%c0_12, %c0_13], %15 {strides = array<i32>} : memref<2x250xf32, #tpu.memory_space<vmem>>, vector<2x250xf32>,
    %c0_14 = arith.constant 0 : index
    %c0_15 = arith.constant 0 : index
    %17 = vector.load %arg1[%c0_14, %c0_15] : memref<2x250xbf16, #tpu.memory_space<vmem>>, vector<2x250xbf16>
    %c0_16 = arith.constant 0 : index
    %c0_17 = arith.constant 0 : index
    %18 = vector.load %arg6[%c0_16, %c0_17] : memref<250x10xbf16, #tpu.memory_space<vmem>>, vector<250x10xbf16>
    %cst_18 = arith.constant dense<0.000000e+00> : vector<2x10xf32>
    %19 = tpu.matmul %17, %18, %cst_18 {dimension_numbers = #tpu.dot_dimension_numbers<[1], [0], [0], [1], [0, 0, 1, 1], [], []>} : vector<2x250xbf16>, vector<250x10xbf16>, vector<2x10xf32> -> vector<2x10xf32>
    %c0_19 = arith.constant 0 : index
    %c0_20 = arith.constant 0 : index
    %20 = vector.load %arg7[%c0_19, %c0_20] : memref<1x10xf32, #tpu.memory_space<vmem>>, vector<1x10xf32>
    %21 = vector.broadcast %20 : vector<1x10xf32> to vector<2x10xf32>
    %22 = arith.addf %19, %21 : vector<2x10xf32>
    %c0_21 = arith.constant 0 : index
    %c0_22 = arith.constant 0 : index
    %23 = vector.load %arg8[%c0_21, %c0_22] : memref<2x10xf32, #tpu.memory_space<vmem>>, vector<2x10xf32>
    tpu.vector_store %arg8[%c0_21, %c0_22], %22 {strides = array<i32>} : memref<2x10xf32, #tpu.memory_space<vmem>>, vector<2x10xf32>,
    return
  }
}

</mosaic_0001>

<llo_original>
// kernel: cnn1_small_forward.3
$region0: #{cnn1_small_forward.3}
  #allocation0 [shape = 'u32[]', space=smem, size = 0x4, offset = 0x4, fixed_abs, tag = 'smem constant byte address 0x4 - core index']
  #allocation1 [shape = 'u32[144,128]{1,0:T(1,128)}', space=vmem, size = 0x12000, scoped, tag = 'internal scratch']
  %s0 = inlined_call_operand.vmem [shape: bf16[4,392,128], index: 0, kind: input, shape index: {}]
  %s1 = inlined_call_operand.vmem [shape: bf16[128,16], index: 1, kind: input, shape index: {}]
  %s2 = inlined_call_operand.vmem [shape: f32[1,16], index: 2, kind: input, shape index: {}]
  %s3 = inlined_call_operand.vmem [shape: bf16[392,16], index: 3, kind: output, shape index: {}]
  %s4 = sld [smem:[#allocation0]]
  $region22: #{cnn1_small_forward.3} parent=0
    _
  %s6 = ssub.s32 1, %s4
  %s7 = scalar_select 0, %s6, %s4
  // Predicated region
  $region2: #{cnn1_small_forward.3} parent=0 // pred_check
    _
  $region3: #{cnn1_small_forward.3} parent=0 // pred_check_branch
    %9 = sbr.rel (0) target = $region5
  $region4: #{cnn1_small_forward.3} parent=0 // pred_region
    _
  $region5: #{cnn1_small_forward.3} parent=0 // pred_fallthru
    _
  // Predicated region
  $region6: #{cnn1_small_forward.3} parent=0 // pred_check
    _
  $region7: #{cnn1_small_forward.3} parent=0 // pred_check_branch
    %11 = sbr.rel (0) target = $region9
  $region8: #{cnn1_small_forward.3} parent=0 // pred_region
    _
  $region9: #{cnn1_small_forward.3} parent=0 // pred_fallthru
    _
  // Predicated region
  $region10: #{cnn1_small_forward.3} parent=0 // pred_check
    _
  $region11: #{cnn1_small_forward.3} parent=0 // pred_check_branch
    %13 = sbr.rel (0) target = $region13
  $region12: #{cnn1_small_forward.3} parent=0 // pred_region
    _
  $region13: #{cnn1_small_forward.3} parent=0 // pred_fallthru
    _
  %v15 = vld [vmem:[%s1] sm:$0xf]
  %v16 = vld [vmem:[%s1 + $0x4] sm:$0xf]
  %v17 = vld [vmem:[%s1 + $0x8] sm:$0xf]
  %v18 = vld [vmem:[%s1 + $0xc] sm:$0xf]
  %v19 = vld [vmem:[%s1 + $0x10] sm:$0xf]
  %v20 = vld [vmem:[%s1 + $0x14] sm:$0xf]
  %v21 = vld [vmem:[%s1 + $0x18] sm:$0xf]
  %v22 = vld [vmem:[%s1 + $0x1c] sm:$0xf]
  %v23 = vld [vmem:[%s1 + $0x20] sm:$0xf]
  %v24 = vld [vmem:[%s1 + $0x24] sm:$0xf]
  %v25 = vld [vmem:[%s1 + $0x28] sm:$0xf]
  %v26 = vld [vmem:[%s1 + $0x2c] sm:$0xf]
  %v27 = vld [vmem:[%s1 + $0x30] sm:$0xf]
  %v28 = vld [vmem:[%s1 + $0x34] sm:$0xf]
  %v29 = vld [vmem:[%s1 + $0x38] sm:$0xf]
  %v30 = vld [vmem:[%s1 + $0x3c] sm:$0xf]
  %v31 = vld [vmem:[%s0] sm:$0xf]
  %v32 = vld [vmem:[%s0 + $0x4] sm:$0xf]
  %v33 = vld [vmem:[%s0 + $0x8] sm:$0xf]
  %v34 = vld [vmem:[%s0 + $0xc] sm:$0xf]
  %v35 = vld [vmem:[%s0 + $0x10] sm:$0xf]
  %v36 = vld [vmem:[%s0 + $0x14] sm:$0xf]
  %v37 = vld [vmem:[%s0 + $0x18] sm:$0xf]
  %v38 = vld [vmem:[%s0 + $0x1c] sm:$0xf]
  %v39 = vld [vmem:[%s0 + $0x20] sm:$0xf]
  %v40 = vld [vmem:[%s0 + $0x24] sm:$0xf]
  %v41 = vld [vmem:[%s0 + $0x28] sm:$0xf]
  %v42 = vld [vmem:[%s0 + $0x2c] sm:$0xf]
  %v43 = vld [vmem:[%s0 + $0x30] sm:$0xf]
  %v44 = vld [vmem:[%s0 + $0x34] sm:$0xf]
  %v45 = vld [vmem:[%s0 + $0x38] sm:$0xf]
  %v46 = vld [vmem:[%s0 + $0x3c] sm:$0xf]
  %v47 = vld [vmem:[%s0 + $0x40] sm:$0xf]
  %v48 = vld [vmem:[%s0 + $0x44] sm:$0xf]
  %v49 = vld [vmem:[%s0 + $0x48] sm:$0xf]
  %v50 = vld [vmem:[%s0 + $0x4c] sm:$0xf]
  %v51 = vld [vmem:[%s0 + $0x50] sm:$0xf]
  %v52 = vld [vmem:[%s0 + $0x54] sm:$0xf]
  %v53 = vld [vmem:[%s0 + $0x58] sm:$0xf]
  %v54 = vld [vmem:[%s0 + $0x5c] sm:$0xf]
  %v55 = vld [vmem:[%s0 + $0x60] sm:$0xf]
  %v56 = vld [vmem:[%s0 + $0x64] sm:$0xf]
  %v57 = vld [vmem:[%s0 + $0x68] sm:$0xf]
  %v58 = vld [vmem:[%s0 + $0x6c] sm:$0xf]
  %v59 = vld [vmem:[%s0 + $0x70] sm:$0xf]
  %v60 = vld [vmem:[%s0 + $0x74] sm:$0xf]
  %v61 = vld [vmem:[%s0 + $0x78] sm:$0xf]
  %v62 = vld [vmem:[%s0 + $0x7c] sm:$0xf]
  %v63 = vld [vmem:[%s0 + $0x80] sm:$0xf]
  %v64 = vld [vmem:[%s0 + $0x84] sm:$0xf]
  %v65 = vld [vmem:[%s0 + $0x88] sm:$0xf]
  %v66 = vld [vmem:[%s0 + $0x8c] sm:$0xf]
  %v67 = vld [vmem:[%s0 + $0x90] sm:$0xf]
  %v68 = vld [vmem:[%s0 + $0x94] sm:$0xf]
  %v69 = vld [vmem:[%s0 + $0x98] sm:$0xf]
  %v70 = vld [vmem:[%s0 + $0x9c] sm:$0xf]
  %v71 = vld [vmem:[%s0 + $0xa0] sm:$0xf]
  %v72 = vld [vmem:[%s0 + $0xa4] sm:$0xf]
  %v73 = vld [vmem:[%s0 + $0xa8] sm:$0xf]
  %v74 = vld [vmem:[%s0 + $0xac] sm:$0xf]
  %v75 = vld [vmem:[%s0 + $0xb0] sm:$0xf]
  %v76 = vld [vmem:[%s0 + $0xb4] sm:$0xf]
  %v77 = vld [vmem:[%s0 + $0xb8] sm:$0xf]
  %v78 = vld [vmem:[%s0 + $0xbc] sm:$0xf]
  %v79 = vld [vmem:[%s0 + $0xc0] sm:$0xf]
  %v129 = vunpack.c.l.b16 %v31
  %v130 = vunpack.c.l.b16 %v32
  %v131 = vunpack.c.l.b16 %v33
  %v132 = vunpack.c.l.b16 %v34
  %v133 = vunpack.c.l.b16 %v35
  %v134 = vunpack.c.l.b16 %v36
  %v135 = vunpack.c.l.b16 %v37
  %v136 = vunpack.c.l.b16 %v38
  %v137 = vunpack.c.l.b16 %v39
  %v138 = vunpack.c.l.b16 %v40
  %v139 = vunpack.c.l.b16 %v41
  %v140 = vunpack.c.l.b16 %v42
  %v141 = vunpack.c.l.b16 %v43
  %v142 = vunpack.c.l.b16 %v44
  %v143 = vunpack.c.l.b16 %v45
  %v144 = vunpack.c.l.b16 %v46
  %v145 = vunpack.c.l.b16 %v47
  %v146 = vunpack.c.l.b16 %v48
  %v147 = vunpack.c.l.b16 %v49
  %v148 = vunpack.c.l.b16 %v50
  %v149 = vunpack.c.l.b16 %v51
  %v150 = vunpack.c.l.b16 %v52
  %v151 = vunpack.c.l.b16 %v53
  %v152 = vunpack.c.l.b16 %v54
  %v153 = vunpack.c.l.b16 %v55
  %v154 = vunpack.c.l.b16 %v56
  %v155 = vunpack.c.l.b16 %v57
  %v156 = vunpack.c.l.b16 %v58
  %v157 = vunpack.c.l.b16 %v59
  %v158 = vunpack.c.l.b16 %v60
  %v159 = vunpack.c.l.b16 %v61
  %v160 = vunpack.c.l.b16 %v62
  %v161 = vunpack.c.l.b16 %v63
  %v162 = vunpack.c.l.b16 %v64
  %v163 = vunpack.c.l.b16 %v65
  %v164 = vunpack.c.l.b16 %v66
  %v165 = vunpack.c.l.b16 %v67
  %v166 = vunpack.c.l.b16 %v68
  %v167 = vunpack.c.l.b16 %v69
  %v168 = vunpack.c.l.b16 %v70
  %v169 = vunpack.c.l.b16 %v71
  %v170 = vunpack.c.l.b16 %v72
  %v171 = vunpack.c.l.b16 %v73
  %v172 = vunpack.c.l.b16 %v74
  %v173 = vunpack.c.l.b16 %v75
  %v174 = vunpack.c.l.b16 %v76
  %v175 = vunpack.c.l.b16 %v77
  %v176 = vunpack.c.l.b16 %v78
  %v177 = vunpack.c.l.b16 %v79
  %v178 = vpack.c.b16 %v130, %v129
  %v179 = vpack.c.b16 %v132, %v131
  %v180 = vpack.c.b16 %v134, %v133
  %v181 = vpack.c.b16 %v136, %v135
  %v182 = vpack.c.b16 %v138, %v137
  %v183 = vpack.c.b16 %v140, %v139
  %v184 = vpack.c.b16 %v142, %v141
  %v185 = vpack.c.b16 %v144, %v143
  %v186 = vpack.c.b16 %v146, %v145
  %v187 = vpack.c.b16 %v148, %v147
  %v188 = vpack.c.b16 %v150, %v149
  %v189 = vpack.c.b16 %v152, %v151
  %v190 = vpack.c.b16 %v154, %v153
  %v191 = vpack.c.b16 %v156, %v155
  %v192 = vpack.c.b16 %v158, %v157
  %v193 = vpack.c.b16 %v160, %v159
  %v194 = vpack.c.b16 %v162, %v161
  %v195 = vpack.c.b16 %v164, %v163
  %v196 = vpack.c.b16 %v166, %v165
  %v197 = vpack.c.b16 %v168, %v167
  %v198 = vpack.c.b16 %v170, %v169
  %v199 = vpack.c.b16 %v172, %v171
  %v200 = vpack.c.b16 %v174, %v173
  %v201 = vpack.c.b16 %v176, %v175
  %v202 = vpack.c.b16 %v177, %v177
  %v244 = vunpack.c.l.b16 %v15
  %v245 = vunpack.c.l.b16 %v16
  %v246 = vunpack.c.l.b16 %v17
  %v247 = vunpack.c.l.b16 %v18
  %v248 = vunpack.c.l.b16 %v19
  %v249 = vunpack.c.l.b16 %v20
  %v250 = vunpack.c.l.b16 %v21
  %v251 = vunpack.c.l.b16 %v22
  %v252 = vunpack.c.l.b16 %v23
  %v253 = vunpack.c.l.b16 %v24
  %v254 = vunpack.c.l.b16 %v25
  %v255 = vunpack.c.l.b16 %v26
  %v256 = vunpack.c.l.b16 %v27
  %v257 = vunpack.c.l.b16 %v28
  %v258 = vunpack.c.l.b16 %v29
  %v259 = vunpack.c.l.b16 %v30
  %v260 = vpack.c.b16 %v245, %v244
  %v261 = vpack.c.b16 %v247, %v246
  %v262 = vpack.c.b16 %v249, %v248
  %v263 = vpack.c.b16 %v251, %v250
  %v264 = vpack.c.b16 %v253, %v252
  %v265 = vpack.c.b16 %v255, %v254
  %v266 = vpack.c.b16 %v257, %v256
  %v267 = vpack.c.b16 %v259, %v258
  %276 = vmatprep.subr.bf16.mxu0 0
  %277 = vmatpush1.bf16.msra.mxu0 %v260
  %278 = vmatprep.subr.bf16.mxu0 0
  %279 = vmatpush1.bf16.msra.mxu0 %v261
  %280 = vmatprep.subr.bf16.mxu0 0
  %281 = vmatpush1.bf16.msra.mxu0 %v262
  %282 = vmatprep.subr.bf16.mxu0 0
  %283 = vmatpush1.bf16.msra.mxu0 %v263
  %284 = vmatprep.subr.bf16.mxu0 0
  %285 = vmatpush1.bf16.msra.mxu0 %v264
  %286 = vmatprep.subr.bf16.mxu0 0
  %287 = vmatpush1.bf16.msra.mxu0 %v265
  %288 = vmatprep.subr.bf16.mxu0 0
  %289 = vmatpush1.bf16.msra.mxu0 %v266
  %290 = vmatprep.subr.bf16.mxu0 0
  %291 = vmatpush1.bf16.msra.mxu0 %v267
  %292 = vmatprep.subr.bf16.mxu0 0
  %293 = vmatpush1.bf16.msra.mxu0 0
  %294 = vmatprep.subr.bf16.mxu0 0
  %295 = vmatpush1.bf16.msra.mxu0 0
  %296 = vmatprep.subr.bf16.mxu0 0
  %297 = vmatpush1.bf16.msra.mxu0 0
  %298 = vmatprep.subr.bf16.mxu0 0
  %299 = vmatpush1.bf16.msra.mxu0 0
  %300 = vmatprep.subr.bf16.mxu0 0
  %301 = vmatpush1.bf16.msra.mxu0 0
  %302 = vmatprep.subr.bf16.mxu0 0
  %303 = vmatpush1.bf16.msra.mxu0 0
  %304 = vmatprep.subr.bf16.mxu0 0
  %305 = vmatpush1.bf16.msra.mxu0 0
  %306 = vmatprep.subr.bf16.mxu0 0
  %307 = vmatpush1.bf16.msra.mxu0 0
  %308 = vmatprep.mubr.bf16.mxu0 0
  %309 = vmatmul.mubr.bf16.gmra.mrb[0].mxu0 %v178
  %v310 = vpop.f32.mrb[0].mxu0
  %v311 = vadd.f32 0.0, %v310
  %v312 = vpop.f32.mrb[0].mxu0
  %v313 = vpop.f32.mrb[0].mxu0
  %v314 = vadd.f32 0.0, %v313
  %v315 = vpop.f32.mrb[0].mxu0
  %316 = vmatprep.mubr.bf16.mxu0 0
  %317 = vmatmul.mubr.bf16.gmra.mrb[0].mxu0 %v179
  %v318 = vpop.f32.mrb[0].mxu0
  %v319 = vadd.f32 0.0, %v318
  %v320 = vpop.f32.mrb[0].mxu0
  %v321 = vpop.f32.mrb[0].mxu0
  %v322 = vadd.f32 0.0, %v321
  %v323 = vpop.f32.mrb[0].mxu0
  %324 = vmatprep.mubr.bf16.mxu0 0
  %325 = vmatmul.mubr.bf16.gmra.mrb[0].mxu0 %v180
  %v326 = vpop.f32.mrb[0].mxu0
  %v327 = vadd.f32 0.0, %v326
  %v328 = vpop.f32.mrb[0].mxu0
  %v329 = vpop.f32.mrb[0].mxu0
  %v330 = vadd.f32 0.0, %v329
  %v331 = vpop.f32.mrb[0].mxu0
  %332 = vmatprep.mubr.bf16.mxu0 0
  %333 = vmatmul.mubr.bf16.gmra.mrb[0].mxu0 %v181
  %v334 = vpop.f32.mrb[0].mxu0
  %v335 = vadd.f32 0.0, %v334
  %v336 = vpop.f32.mrb[0].mxu0
  %v337 = vpop.f32.mrb[0].mxu0
  %v338 = vadd.f32 0.0, %v337
  %v339 = vpop.f32.mrb[0].mxu0
  %340 = vmatprep.mubr.bf16.mxu0 0
  %341 = vmatmul.mubr.bf16.gmra.mrb[0].mxu0 %v182
  %v342 = vpop.f32.mrb[0].mxu0
  %v343 = vadd.f32 0.0, %v342
  %v344 = vpop.f32.mrb[0].mxu0
  %v345 = vpop.f32.mrb[0].mxu0
  %v346 = vadd.f32 0.0, %v345
  %v347 = vpop.f32.mrb[0].mxu0
  %348 = vmatprep.mubr.bf16.mxu0 0
  %349 = vmatmul.mubr.bf16.gmra.mrb[0].mxu0 %v183
  %v350 = vpop.f32.mrb[0].mxu0
  %v351 = vadd.f32 0.0, %v350
  %v352 = vpop.f32.mrb[0].mxu0
  %v353 = vpop.f32.mrb[0].mxu0
  %v354 = vadd.f32 0.0, %v353
  %v355 = vpop.f32.mrb[0].mxu0
  %356 = vmatprep.mubr.bf16.mxu0 0
  %357 = vmatmul.mubr.bf16.gmra.mrb[0].mxu0 %v184
  %v358 = vpop.f32.mrb[0].mxu0
  %v359 = vadd.f32 0.0, %v358
  %v360 = vpop.f32.mrb[0].mxu0
  %v361 = vpop.f32.mrb[0].mxu0
  %v362 = vadd.f32 0.0, %v361
  %v363 = vpop.f32.mrb[0].mxu0
  %364 = vmatprep.mubr.bf16.mxu0 0
  %365 = vmatmul.mubr.bf16.gmra.mrb[0].mxu0 %v185
  %v366 = vpop.f32.mrb[0].mxu0
  %v367 = vadd.f32 0.0, %v366
  %v368 = vpop.f32.mrb[0].mxu0
  %v369 = vpop.f32.mrb[0].mxu0
  %v370 = vadd.f32 0.0, %v369
  %v371 = vpop.f32.mrb[0].mxu0
  %372 = vmatprep.mubr.bf16.mxu0 0
  %373 = vmatmul.mubr.bf16.gmra.mrb[0].mxu0 %v186
  %v374 = vpop.f32.mrb[0].mxu0
  %v375 = vadd.f32 0.0, %v374
  %v376 = vpop.f32.mrb[0].mxu0
  %v377 = vpop.f32.mrb[0].mxu0
  %v378 = vadd.f32 0.0, %v377
  %v379 = vpop.f32.mrb[0].mxu0
  %380 = vmatprep.mubr.bf16.mxu0 0
  %381 = vmatmul.mubr.bf16.gmra.mrb[0].mxu0 %v187
  %v382 = vpop.f32.mrb[0].mxu0
  %v383 = vadd.f32 0.0, %v382
  %v384 = vpop.f32.mrb[0].mxu0
  %v385 = vpop.f32.mrb[0].mxu0
  %v386 = vadd.f32 0.0, %v385
  %v387 = vpop.f32.mrb[0].mxu0
  %388 = vmatprep.mubr.bf16.mxu0 0
  %389 = vmatmul.mubr.bf16.gmra.mrb[0].mxu0 %v188
  %v390 = vpop.f32.mrb[0].mxu0
  %v391 = vadd.f32 0.0, %v390
  %v392 = vpop.f32.mrb[0].mxu0
  %v393 = vpop.f32.mrb[0].mxu0
  %v394 = vadd.f32 0.0, %v393
  %v395 = vpop.f32.mrb[0].mxu0
  %396 = vmatprep.mubr.bf16.mxu0 0
  %397 = vmatmul.mubr.bf16.gmra.mrb[0].mxu0 %v189
  %v398 = vpop.f32.mrb[0].mxu0
  %v399 = vadd.f32 0.0, %v398
  %v400 = vpop.f32.mrb[0].mxu0
  %v401 = vpop.f32.mrb[0].mxu0
  %v402 = vadd.f32 0.0, %v401
  %v403 = vpop.f32.mrb[0].mxu0
  %404 = vmatprep.mubr.bf16.mxu0 0
  %405 = vmatmul.mubr.bf16.gmra.mrb[0].mxu0 %v190
  %v406 = vpop.f32.mrb[0].mxu0
  %v407 = vadd.f32 0.0, %v406
  %v408 = vpop.f32.mrb[0].mxu0
  %v409 = vpop.f32.mrb[0].mxu0
  %v410 = vadd.f32 0.0, %v409
  %v411 = vpop.f32.mrb[0].mxu0
  %412 = vmatprep.mubr.bf16.mxu0 0
  %413 = vmatmul.mubr.bf16.gmra.mrb[0].mxu0 %v191
  %v414 = vpop.f32.mrb[0].mxu0
  %v415 = vadd.f32 0.0, %v414
  %v416 = vpop.f32.mrb[0].mxu0
  %v417 = vpop.f32.mrb[0].mxu0
  %v418 = vadd.f32 0.0, %v417
  %v419 = vpop.f32.mrb[0].mxu0
  %420 = vmatprep.mubr.bf16.mxu0 0
  %421 = vmatmul.mubr.bf16.gmra.mrb[0].mxu0 %v192
  %v422 = vpop.f32.mrb[0].mxu0
  %v423 = vadd.f32 0.0, %v422
  %v424 = vpop.f32.mrb[0].mxu0
  %v425 = vpop.f32.mrb[0].mxu0
  %v426 = vadd.f32 0.0, %v425
  %v427 = vpop.f32.mrb[0].mxu0
  %428 = vmatprep.mubr.bf16.mxu0 0
  %429 = vmatmul.mubr.bf16.gmra.mrb[0].mxu0 %v193
  %v430 = vpop.f32.mrb[0].mxu0
  %v431 = vadd.f32 0.0, %v430
  %v432 = vpop.f32.mrb[0].mxu0
  %v433 = vpop.f32.mrb[0].mxu0
  %v434 = vadd.f32 0.0, %v433
  %v435 = vpop.f32.mrb[0].mxu0
  %436 = vmatprep.mubr.bf16.mxu0 0
  %437 = vmatmul.mubr.bf16.gmra.mrb[0].mxu0 %v194
  %v438 = vpop.f32.mrb[0].mxu0
  %v439 = vadd.f32 0.0, %v438
  %v440 = vpop.f32.mrb[0].mxu0
  %v441 = vpop.f32.mrb[0].mxu0
  %v442 = vadd.f32 0.0, %v441
  %v443 = vpop.f32.mrb[0].mxu0
  %444 = vmatprep.mubr.bf16.mxu0 0
  %445 = vmatmul.mubr.bf16.gmra.mrb[0].mxu0 %v195
  %v446 = vpop.f32.mrb[0].mxu0
  %v447 = vadd.f32 0.0, %v446
  %v448 = vpop.f32.mrb[0].mxu0
  %v449 = vpop.f32.mrb[0].mxu0
  %v450 = vadd.f32 0.0, %v449
  %v451 = vpop.f32.mrb[0].mxu0
  %452 = vmatprep.mubr.bf16.mxu0 0
  %453 = vmatmul.mubr.bf16.gmra.mrb[0].mxu0 %v196
  %v454 = vpop.f32.mrb[0].mxu0
  %v455 = vadd.f32 0.0, %v454
  %v456 = vpop.f32.mrb[0].mxu0
  %v457 = vpop.f32.mrb[0].mxu0
  %v458 = vadd.f32 0.0, %v457
  %v459 = vpop.f32.mrb[0].mxu0
  %460 = vmatprep.mubr.bf16.mxu0 0
  %461 = vmatmul.mubr.bf16.gmra.mrb[0].mxu0 %v197
  %v462 = vpop.f32.mrb[0].mxu0
  %v463 = vadd.f32 0.0, %v462
  %v464 = vpop.f32.mrb[0].mxu0
  %v465 = vpop.f32.mrb[0].mxu0
  %v466 = vadd.f32 0.0, %v465
  %v467 = vpop.f32.mrb[0].mxu0
  %468 = vmatprep.mubr.bf16.mxu0 0
  %469 = vmatmul.mubr.bf16.gmra.mrb[0].mxu0 %v198
  %v470 = vpop.f32.mrb[0].mxu0
  %v471 = vadd.f32 0.0, %v470
  %v472 = vpop.f32.mrb[0].mxu0
  %v473 = vpop.f32.mrb[0].mxu0
  %v474 = vadd.f32 0.0, %v473
  %v475 = vpop.f32.mrb[0].mxu0
  %476 = vmatprep.mubr.bf16.mxu0 0
  %477 = vmatmul.mubr.bf16.gmra.mrb[0].mxu0 %v199
  %v478 = vpop.f32.mrb[0].mxu0
  %v479 = vadd.f32 0.0, %v478
  %v480 = vpop.f32.mrb[0].mxu0
  %v481 = vpop.f32.mrb[0].mxu0
  %v482 = vadd.f32 0.0, %v481
  %v483 = vpop.f32.mrb[0].mxu0
  %484 = vmatprep.mubr.bf16.mxu0 0
  %485 = vmatmul.mubr.bf16.gmra.mrb[0].mxu0 %v200
  %v486 = vpop.f32.mrb[0].mxu0
  %v487 = vadd.f32 0.0, %v486
  %v488 = vpop.f32.mrb[0].mxu0
  %v489 = vpop.f32.mrb[0].mxu0
  %v490 = vadd.f32 0.0, %v489
  %v491 = vpop.f32.mrb[0].mxu0
  %492 = vmatprep.mubr.bf16.mxu0 0
  %493 = vmatmul.mubr.bf16.gmra.mrb[0].mxu0 %v201
  %v494 = vpop.f32.mrb[0].mxu0
  %v495 = vadd.f32 0.0, %v494
  %v496 = vpop.f32.mrb[0].mxu0
  %v497 = vpop.f32.mrb[0].mxu0
  %v498 = vadd.f32 0.0, %v497
  %v499 = vpop.f32.mrb[0].mxu0
  %500 = vmatprep.mubr.bf16.mxu0 0
  %501 = vmatmul.mubr.bf16.gmra.mrb[0].mxu0 %v202
  %v502 = vpop.f32.mrb[0].mxu0
  %v503 = vadd.f32 0.0, %v502
  %v504 = vpop.f32.mrb[0].mxu0
  %v505 = vpop.f32.mrb[0].mxu0
  %v506 = vpop.f32.mrb[0].mxu0
  %507 = vdwg.mxu0
  %s508 = scalar_lea.vmem %s0, 196
  %v509 = vld [vmem:[%s508] sm:$0xf]
  %v510 = vld [vmem:[%s508 + $0x4] sm:$0xf]
  %v511 = vld [vmem:[%s508 + $0x8] sm:$0xf]
  %v512 = vld [vmem:[%s508 + $0xc] sm:$0xf]
  %v513 = vld [vmem:[%s508 + $0x10] sm:$0xf]
  %v514 = vld [vmem:[%s508 + $0x14] sm:$0xf]
  %v515 = vld [vmem:[%s508 + $0x18] sm:$0xf]
  %v516 = vld [vmem:[%s508 + $0x1c] sm:$0xf]
  %v517 = vld [vmem:[%s508 + $0x20] sm:$0xf]
  %v518 = vld [vmem:[%s508 + $0x24] sm:$0xf]
  %v519 = vld [vmem:[%s508 + $0x28] sm:$0xf]
  %v520 = vld [vmem:[%s508 + $0x2c] sm:$0xf]
  %v521 = vld [vmem:[%s508 + $0x30] sm:$0xf]
  %v522 = vld [vmem:[%s508 + $0x34] sm:$0xf]
  %v523 = vld [vmem:[%s508 + $0x38] sm:$0xf]
  %v524 = vld [vmem:[%s508 + $0x3c] sm:$0xf]
  %v525 = vld [vmem:[%s508 + $0x40] sm:$0xf]
  %v526 = vld [vmem:[%s508 + $0x44] sm:$0xf]
  %v527 = vld [vmem:[%s508 + $0x48] sm:$0xf]
  %v528 = vld [vmem:[%s508 + $0x4c] sm:$0xf]
  %v529 = vld [vmem:[%s508 + $0x50] sm:$0xf]
  %v530 = vld [vmem:[%s508 + $0x54] sm:$0xf]
  %v531 = vld [vmem:[%s508 + $0x58] sm:$0xf]
  %v532 = vld [vmem:[%s508 + $0x5c] sm:$0xf]
  %v533 = vld [vmem:[%s508 + $0x60] sm:$0xf]
  %v534 = vld [vmem:[%s508 + $0x64] sm:$0xf]
  %v535 = vld [vmem:[%s508 + $0x68] sm:$0xf]
  %v536 = vld [vmem:[%s508 + $0x6c] sm:$0xf]
  %v537 = vld [vmem:[%s508 + $0x70] sm:$0xf]
  %v538 = vld [vmem:[%s508 + $0x74] sm:$0xf]
  %v539 = vld [vmem:[%s508 + $0x78] sm:$0xf]
  %v540 = vld [vmem:[%s508 + $0x7c] sm:$0xf]
  %v541 = vld [vmem:[%s508 + $0x80] sm:$0xf]
  %v542 = vld [vmem:[%s508 + $0x84] sm:$0xf]
  %v543 = vld [vmem:[%s508 + $0x88] sm:$0xf]
  %v544 = vld [vmem:[%s508 + $0x8c] sm:$0xf]
  %v545 = vld [vmem:[%s508 + $0x90] sm:$0xf]
  %v546 = vld [vmem:[%s508 + $0x94] sm:$0xf]
  %v547 = vld [vmem:[%s508 + $0x98] sm:$0xf]
  %v548 = vld [vmem:[%s508 + $0x9c] sm:$0xf]
  %v549 = vld [vmem:[%s508 + $0xa0] sm:$0xf]
  %v550 = vld [vmem:[%s508 + $0xa4] sm:$0xf]
  %v551 = vld [vmem:[%s508 + $0xa8] sm:$0xf]
  %v552 = vld [vmem:[%s508 + $0xac] sm:$0xf]
  %v553 = vld [vmem:[%s508 + $0xb0] sm:$0xf]
  %v554 = vld [vmem:[%s508 + $0xb4] sm:$0xf]
  %v555 = vld [vmem:[%s508 + $0xb8] sm:$0xf]
  %v556 = vld [vmem:[%s508 + $0xbc] sm:$0xf]
  %v557 = vld [vmem:[%s508 + $0xc0] sm:$0xf]
  %v607 = vunpack.c.l.b16 %v509
  %v608 = vunpack.c.l.b16 %v510
  %v609 = vunpack.c.l.b16 %v511
  %v610 = vunpack.c.l.b16 %v512
  %v611 = vunpack.c.l.b16 %v513
  %v612 = vunpack.c.l.b16 %v514
  %v613 = vunpack.c.l.b16 %v515
  %v614 = vunpack.c.l.b16 %v516
  %v615 = vunpack.c.l.b16 %v517
  %v616 = vunpack.c.l.b16 %v518
  %v617 = vunpack.c.l.b16 %v519
  %v618 = vunpack.c.l.b16 %v520
  %v619 = vunpack.c.l.b16 %v521
  %v620 = vunpack.c.l.b16 %v522
  %v621 = vunpack.c.l.b16 %v523
  %v622 = vunpack.c.l.b16 %v524
  %v623 = vunpack.c.l.b16 %v525
  %v624 = vunpack.c.l.b16 %v526
  %v625 = vunpack.c.l.b16 %v527
  %v626 = vunpack.c.l.b16 %v528
  %v627 = vunpack.c.l.b16 %v529
  %v628 = vunpack.c.l.b16 %v530
  %v629 = vunpack.c.l.b16 %v531
  %v630 = vunpack.c.l.b16 %v532
  %v631 = vunpack.c.l.b16 %v533
  %v632 = vunpack.c.l.b16 %v534
  %v633 = vunpack.c.l.b16 %v535
  %v634 = vunpack.c.l.b16 %v536
  %v635 = vunpack.c.l.b16 %v537
  %v636 = vunpack.c.l.b16 %v538
  %v637 = vunpack.c.l.b16 %v539
  %v638 = vunpack.c.l.b16 %v540
  %v639 = vunpack.c.l.b16 %v541
  %v640 = vunpack.c.l.b16 %v542
  %v641 = vunpack.c.l.b16 %v543
  %v642 = vunpack.c.l.b16 %v544
  %v643 = vunpack.c.l.b16 %v545
  %v644 = vunpack.c.l.b16 %v546
  %v645 = vunpack.c.l.b16 %v547
  %v646 = vunpack.c.l.b16 %v548
  %v647 = vunpack.c.l.b16 %v549
  %v648 = vunpack.c.l.b16 %v550
  %v649 = vunpack.c.l.b16 %v551
  %v650 = vunpack.c.l.b16 %v552
  %v651 = vunpack.c.l.b16 %v553
  %v652 = vunpack.c.l.b16 %v554
  %v653 = vunpack.c.l.b16 %v555
  %v654 = vunpack.c.l.b16 %v556
  %v655 = vunpack.c.l.b16 %v557
  %v656 = vpack.c.b16 %v608, %v607
  %v657 = vpack.c.b16 %v610, %v609
  %v658 = vpack.c.b16 %v612, %v611
  %v659 = vpack.c.b16 %v614, %v613
  %v660 = vpack.c.b16 %v616, %v615
  %v661 = vpack.c.b16 %v618, %v617
  %v662 = vpack.c.b16 %v620, %v619
  %v663 = vpack.c.b16 %v622, %v621
  %v664 = vpack.c.b16 %v624, %v623
  %v665 = vpack.c.b16 %v626, %v625
  %v666 = vpack.c.b16 %v628, %v627
  %v667 = vpack.c.b16 %v630, %v629
  %v668 = vpack.c.b16 %v632, %v631
  %v669 = vpack.c.b16 %v634, %v633
  %v670 = vpack.c.b16 %v636, %v635
  %v671 = vpack.c.b16 %v638, %v637
  %v672 = vpack.c.b16 %v640, %v639
  %v673 = vpack.c.b16 %v642, %v641
  %v674 = vpack.c.b16 %v644, %v643
  %v675 = vpack.c.b16 %v646, %v645
  %v676 = vpack.c.b16 %v648, %v647
  %v677 = vpack.c.b16 %v650, %v649
  %v678 = vpack.c.b16 %v652, %v651
  %v679 = vpack.c.b16 %v654, %v653
  %v680 = vpack.c.b16 %v655, %v655
  %706 = vmatprep.subr.bf16.mxu0 0
  %707 = vmatpush1.bf16.msra.mxu0 %v260
  %708 = vmatprep.subr.bf16.mxu0 0
  %709 = vmatpush1.bf16.msra.mxu0 %v261
  %710 = vmatprep.subr.bf16.mxu0 0
  %711 = vmatpush1.bf16.msra.mxu0 %v262
  %712 = vmatprep.subr.bf16.mxu0 0
  %713 = vmatpush1.bf16.msra.mxu0 %v263
  %714 = vmatprep.subr.bf16.mxu0 0
  %715 = vmatpush1.bf16.msra.mxu0 %v264
  %716 = vmatprep.subr.bf16.mxu0 0
  %717 = vmatpush1.bf16.msra.mxu0 %v265
  %718 = vmatprep.subr.bf16.mxu0 0
  %719 = vmatpush1.bf16.msra.mxu0 %v266
  %720 = vmatprep.subr.bf16.mxu0 0
  %721 = vmatpush1.bf16.msra.mxu0 %v267
  %722 = vmatprep.subr.bf16.mxu0 0
  %723 = vmatpush1.bf16.msra.mxu0 0
  %724 = vmatprep.subr.bf16.mxu0 0
  %725 = vmatpush1.bf16.msra.mxu0 0
  %726 = vmatprep.subr.bf16.mxu0 0
  %727 = vmatpush1.bf16.msra.mxu0 0
  %728 = vmatprep.subr.bf16.mxu0 0
  %729 = vmatpush1.bf16.msra.mxu0 0
  %730 = vmatprep.subr.bf16.mxu0 0
  %731 = vmatpush1.bf16.msra.mxu0 0
  %732 = vmatprep.subr.bf16.mxu0 0
  %733 = vmatpush1.bf16.msra.mxu0 0
  %734 = vmatprep.subr.bf16.mxu0 0
  %735 = vmatpush1.bf16.msra.mxu0 0
  %736 = vmatprep.subr.bf16.mxu0 0
  %737 = vmatpush1.bf16.msra.mxu0 0
  %738 = vmatprep.mubr.bf16.mxu0 0
  %739 = vmatmul.mubr.bf16.gmra.mrb[0].mxu0 %v656
  %v740 = vpop.f32.mrb[0].mxu0
  %v741 = vadd.f32 0.0, %v740
  %v742 = vpop.f32.mrb[0].mxu0
  %v743 = vpop.f32.mrb[0].mxu0
  %v744 = vadd.f32 0.0, %v743
  %v745 = vpop.f32.mrb[0].mxu0
  %746 = vmatprep.mubr.bf16.mxu0 0
  %747 = vmatmul.mubr.bf16.gmra.mrb[0].mxu0 %v657
  %v748 = vpop.f32.mrb[0].mxu0
  %v749 = vadd.f32 0.0, %v748
  %v750 = vpop.f32.mrb[0].mxu0
  %v751 = vpop.f32.mrb[0].mxu0
  %v752 = vadd.f32 0.0, %v751
  %v753 = vpop.f32.mrb[0].mxu0
  %754 = vmatprep.mubr.bf16.mxu0 0
  %755 = vmatmul.mubr.bf16.gmra.mrb[0].mxu0 %v658
  %v756 = vpop.f32.mrb[0].mxu0
  %v757 = vadd.f32 0.0, %v756
  %v758 = vpop.f32.mrb[0].mxu0
  %v759 = vpop.f32.mrb[0].mxu0
  %v760 = vadd.f32 0.0, %v759
  %v761 = vpop.f32.mrb[0].mxu0
  %762 = vmatprep.mubr.bf16.mxu0 0
  %763 = vmatmul.mubr.bf16.gmra.mrb[0].mxu0 %v659
  %v764 = vpop.f32.mrb[0].mxu0
  %v765 = vadd.f32 0.0, %v764
  %v766 = vpop.f32.mrb[0].mxu0
  %v767 = vpop.f32.mrb[0].mxu0
  %v768 = vadd.f32 0.0, %v767
  %v769 = vpop.f32.mrb[0].mxu0
  %770 = vmatprep.mubr.bf16.mxu0 0
  %771 = vmatmul.mubr.bf16.gmra.mrb[0].mxu0 %v660
  %v772 = vpop.f32.mrb[0].mxu0
  %v773 = vadd.f32 0.0, %v772
  %v774 = vpop.f32.mrb[0].mxu0
  %v775 = vpop.f32.mrb[0].mxu0
  %v776 = vadd.f32 0.0, %v775
  %v777 = vpop.f32.mrb[0].mxu0
  %778 = vmatprep.mubr.bf16.mxu0 0
  %779 = vmatmul.mubr.bf16.gmra.mrb[0].mxu0 %v661
  %v780 = vpop.f32.mrb[0].mxu0
  %v781 = vadd.f32 0.0, %v780
  %v782 = vpop.f32.mrb[0].mxu0
  %v783 = vpop.f32.mrb[0].mxu0
  %v784 = vadd.f32 0.0, %v783
  %v785 = vpop.f32.mrb[0].mxu0
  %786 = vmatprep.mubr.bf16.mxu0 0
  %787 = vmatmul.mubr.bf16.gmra.mrb[0].mxu0 %v662
  %v788 = vpop.f32.mrb[0].mxu0
  %v789 = vadd.f32 0.0, %v788
  %v790 = vpop.f32.mrb[0].mxu0
  %v791 = vpop.f32.mrb[0].mxu0
  %v792 = vadd.f32 0.0, %v791
  %v793 = vpop.f32.mrb[0].mxu0
  %794 = vmatprep.mubr.bf16.mxu0 0
  %795 = vmatmul.mubr.bf16.gmra.mrb[0].mxu0 %v663
  %v796 = vpop.f32.mrb[0].mxu0
  %v797 = vadd.f32 0.0, %v796
  %v798 = vpop.f32.mrb[0].mxu0
  %v799 = vpop.f32.mrb[0].mxu0
  %v800 = vadd.f32 0.0, %v799
  %v801 = vpop.f32.mrb[0].mxu0
  %802 = vmatprep.mubr.bf16.mxu0 0
  %803 = vmatmul.mubr.bf16.gmra.mrb[0].mxu0 %v664
  %v804 = vpop.f32.mrb[0].mxu0
  %v805 = vadd.f32 0.0, %v804
  %v806 = vpop.f32.mrb[0].mxu0
  %v807 = vpop.f32.mrb[0].mxu0
  %v808 = vadd.f32 0.0, %v807
  %v809 = vpop.f32.mrb[0].mxu0
  %810 = vmatprep.mubr.bf16.mxu0 0
  %811 = vmatmul.mubr.bf16.gmra.mrb[0].mxu0 %v665
  %v812 = vpop.f32.mrb[0].mxu0
  %v813 = vadd.f32 0.0, %v812
  %v814 = vpop.f32.mrb[0].mxu0
  %v815 = vpop.f32.mrb[0].mxu0
  %v816 = vadd.f32 0.0, %v815
  %v817 = vpop.f32.mrb[0].mxu0
  %818 = vmatprep.mubr.bf16.mxu0 0
  %819 = vmatmul.mubr.bf16.gmra.mrb[0].mxu0 %v666
  %v820 = vpop.f32.mrb[0].mxu0
  %v821 = vadd.f32 0.0, %v820
  %v822 = vpop.f32.mrb[0].mxu0
  %v823 = vpop.f32.mrb[0].mxu0
  %v824 = vadd.f32 0.0, %v823
  %v825 = vpop.f32.mrb[0].mxu0
  %826 = vmatprep.mubr.bf16.mxu0 0
  %827 = vmatmul.mubr.bf16.gmra.mrb[0].mxu0 %v667
  %v828 = vpop.f32.mrb[0].mxu0
  %v829 = vadd.f32 0.0, %v828
  %v830 = vpop.f32.mrb[0].mxu0
  %v831 = vpop.f32.mrb[0].mxu0
  %v832 = vadd.f32 0.0, %v831
  %v833 = vpop.f32.mrb[0].mxu0
  %834 = vmatprep.mubr.bf16.mxu0 0
  %835 = vmatmul.mubr.bf16.gmra.mrb[0].mxu0 %v668
  %v836 = vpop.f32.mrb[0].mxu0
  %v837 = vadd.f32 0.0, %v836
  %v838 = vpop.f32.mrb[0].mxu0
  %v839 = vpop.f32.mrb[0].mxu0
  %v840 = vadd.f32 0.0, %v839
  %v841 = vpop.f32.mrb[0].mxu0
  %842 = vmatprep.mubr.bf16.mxu0 0
  %843 = vmatmul.mubr.bf16.gmra.mrb[0].mxu0 %v669
  %v844 = vpop.f32.mrb[0].mxu0
  %v845 = vadd.f32 0.0, %v844
  %v846 = vpop.f32.mrb[0].mxu0
  %v847 = vpop.f32.mrb[0].mxu0
  %v848 = vadd.f32 0.0, %v847
  %v849 = vpop.f32.mrb[0].mxu0
  %850 = vmatprep.mubr.bf16.mxu0 0
  %851 = vmatmul.mubr.bf16.gmra.mrb[0].mxu0 %v670
  %v852 = vpop.f32.mrb[0].mxu0
  %v853 = vadd.f32 0.0, %v852
  %v854 = vpop.f32.mrb[0].mxu0
  %v855 = vpop.f32.mrb[0].mxu0
  %v856 = vadd.f32 0.0, %v855
  %v857 = vpop.f32.mrb[0].mxu0
  %858 = vmatprep.mubr.bf16.mxu0 0
  %859 = vmatmul.mubr.bf16.gmra.mrb[0].mxu0 %v671
  %v860 = vpop.f32.mrb[0].mxu0
  %v861 = vadd.f32 0.0, %v860
  %v862 = vpop.f32.mrb[0].mxu0
  %v863 = vpop.f32.mrb[0].mxu0
  %v864 = vadd.f32 0.0, %v863
  %v865 = vpop.f32.mrb[0].mxu0
  %866 = vmatprep.mubr.bf16.mxu0 0
  %867 = vmatmul.mubr.bf16.gmra.mrb[0].mxu0 %v672
  %v868 = vpop.f32.mrb[0].mxu0
  %v869 = vadd.f32 0.0, %v868
  %v870 = vpop.f32.mrb[0].mxu0
  %v871 = vpop.f32.mrb[0].mxu0
  %v872 = vadd.f32 0.0, %v871
  %v873 = vpop.f32.mrb[0].mxu0
  %874 = vmatprep.mubr.bf16.mxu0 0
  %875 = vmatmul.mubr.bf16.gmra.mrb[0].mxu0 %v673
  %v876 = vpop.f32.mrb[0].mxu0
  %v877 = vadd.f32 0.0, %v876
  %v878 = vpop.f32.mrb[0].mxu0
  %v879 = vpop.f32.mrb[0].mxu0
  %v880 = vadd.f32 0.0, %v879
  %v881 = vpop.f32.mrb[0].mxu0
  %882 = vmatprep.mubr.bf16.mxu0 0
  %883 = vmatmul.mubr.bf16.gmra.mrb[0].mxu0 %v674
  %v884 = vpop.f32.mrb[0].mxu0
  %v885 = vadd.f32 0.0, %v884
  %v886 = vpop.f32.mrb[0].mxu0
  %v887 = vpop.f32.mrb[0].mxu0
  %v888 = vadd.f32 0.0, %v887
  %v889 = vpop.f32.mrb[0].mxu0
  %890 = vmatprep.mubr.bf16.mxu0 0
  %891 = vmatmul.mubr.bf16.gmra.mrb[0].mxu0 %v675
  %v892 = vpop.f32.mrb[0].mxu0
  %v893 = vadd.f32 0.0, %v892
  %v894 = vpop.f32.mrb[0].mxu0
  %v895 = vpop.f32.mrb[0].mxu0
  %v896 = vadd.f32 0.0, %v895
  %v897 = vpop.f32.mrb[0].mxu0
  %898 = vmatprep.mubr.bf16.mxu0 0
  %899 = vmatmul.mubr.bf16.gmra.mrb[0].mxu0 %v676
  %v900 = vpop.f32.mrb[0].mxu0
  %v901 = vadd.f32 0.0, %v900
  %v902 = vpop.f32.mrb[0].mxu0
  %v903 = vpop.f32.mrb[0].mxu0
  %v904 = vadd.f32 0.0, %v903
  %v905 = vpop.f32.mrb[0].mxu0
  %906 = vmatprep.mubr.bf16.mxu0 0
  %907 = vmatmul.mubr.bf16.gmra.mrb[0].mxu0 %v677
  %v908 = vpop.f32.mrb[0].mxu0
  %v909 = vadd.f32 0.0, %v908
  %v910 = vpop.f32.mrb[0].mxu0
  %v911 = vpop.f32.mrb[0].mxu0
  %v912 = vadd.f32 0.0, %v911
  %v913 = vpop.f32.mrb[0].mxu0
  %914 = vmatprep.mubr.bf16.mxu0 0
  %915 = vmatmul.mubr.bf16.gmra.mrb[0].mxu0 %v678
  %v916 = vpop.f32.mrb[0].mxu0
  %v917 = vadd.f32 0.0, %v916
  %v918 = vpop.f32.mrb[0].mxu0
  %v919 = vpop.f32.mrb[0].mxu0
  %v920 = vadd.f32 0.0, %v919
  %v921 = vpop.f32.mrb[0].mxu0
  %922 = vmatprep.mubr.bf16.mxu0 0
  %923 = vmatmul.mubr.bf16.gmra.mrb[0].mxu0 %v679
  %v924 = vpop.f32.mrb[0].mxu0
  %v925 = vadd.f32 0.0, %v924
  %v926 = vpop.f32.mrb[0].mxu0
  %v927 = vpop.f32.mrb[0].mxu0
  %v928 = vadd.f32 0.0, %v927
  %v929 = vpop.f32.mrb[0].mxu0
  %930 = vmatprep.mubr.bf16.mxu0 0
  %931 = vmatmul.mubr.bf16.gmra.mrb[0].mxu0 %v680
  %v932 = vpop.f32.mrb[0].mxu0
  %v933 = vadd.f32 0.0, %v932
  %v934 = vpop.f32.mrb[0].mxu0
  %v935 = vpop.f32.mrb[0].mxu0
  %v936 = vpop.f32.mrb[0].mxu0
  %937 = vdwg.mxu0
  %v938 = vmax.f32 %v311, %v741
  %v939 = vmax.f32 %v314, %v744
  %v940 = vmax.f32 %v319, %v749
  %v941 = vmax.f32 %v322, %v752
  %v942 = vmax.f32 %v327, %v757
  %v943 = vmax.f32 %v330, %v760
  %v944 = vmax.f32 %v335, %v765
  %v945 = vmax.f32 %v338, %v768
  %v946 = vmax.f32 %v343, %v773
  %v947 = vmax.f32 %v346, %v776
  %v948 = vmax.f32 %v351, %v781
  %v949 = vmax.f32 %v354, %v784
  %v950 = vmax.f32 %v359, %v789
  %v951 = vmax.f32 %v362, %v792
  %v952 = vmax.f32 %v367, %v797
  %v953 = vmax.f32 %v370, %v800
  %v954 = vmax.f32 %v375, %v805
  %v955 = vmax.f32 %v378, %v808
  %v956 = vmax.f32 %v383, %v813
  %v957 = vmax.f32 %v386, %v816
  %v958 = vmax.f32 %v391, %v821
  %v959 = vmax.f32 %v394, %v824
  %v960 = vmax.f32 %v399, %v829
  %v961 = vmax.f32 %v402, %v832
  %v962 = vmax.f32 %v407, %v837
  %v963 = vmax.f32 %v410, %v840
  %v964 = vmax.f32 %v415, %v845
  %v965 = vmax.f32 %v418, %v848
  %v966 = vmax.f32 %v423, %v853
  %v967 = vmax.f32 %v426, %v856
  %v968 = vmax.f32 %v431, %v861
  %v969 = vmax.f32 %v434, %v864
  %v970 = vmax.f32 %v439, %v869
  %v971 = vmax.f32 %v442, %v872
  %v972 = vmax.f32 %v447, %v877
  %v973 = vmax.f32 %v450, %v880
  %v974 = vmax.f32 %v455, %v885
  %v975 = vmax.f32 %v458, %v888
  %v976 = vmax.f32 %v463, %v893
  %v977 = vmax.f32 %v466, %v896
  %v978 = vmax.f32 %v471, %v901
  %v979 = vmax.f32 %v474, %v904
  %v980 = vmax.f32 %v479, %v909
  %v981 = vmax.f32 %v482, %v912
  %v982 = vmax.f32 %v487, %v917
  %v983 = vmax.f32 %v490, %v920
  %v984 = vmax.f32 %v495, %v925
  %v985 = vmax.f32 %v498, %v928
  %v986 = vmax.f32 %v503, %v933
  %s987 = scalar_lea.vmem %s0, 392
  %v988 = vld [vmem:[%s987] sm:$0xf]
  %v989 = vld [vmem:[%s987 + $0x4] sm:$0xf]
  %v990 = vld [vmem:[%s987 + $0x8] sm:$0xf]
  %v991 = vld [vmem:[%s987 + $0xc] sm:$0xf]
  %v992 = vld [vmem:[%s987 + $0x10] sm:$0xf]
  %v993 = vld [vmem:[%s987 + $0x14] sm:$0xf]
  %v994 = vld [vmem:[%s987 + $0x18] sm:$0xf]
  %v995 = vld [vmem:[%s987 + $0x1c] sm:$0xf]
  %v996 = vld [vmem:[%s987 + $0x20] sm:$0xf]
  %v997 = vld [vmem:[%s987 + $0x24] sm:$0xf]
  %v998 = vld [vmem:[%s987 + $0x28] sm:$0xf]
  %v999 = vld [vmem:[%s987 + $0x2c] sm:$0xf]
  %v1000 = vld [vmem:[%s987 + $0x30] sm:$0xf]
  %v1001 = vld [vmem:[%s987 + $0x34] sm:$0xf]
  %v1002 = vld [vmem:[%s987 + $0x38] sm:$0xf]
  %v1003 = vld [vmem:[%s987 + $0x3c] sm:$0xf]
  %v1004 = vld [vmem:[%s987 + $0x40] sm:$0xf]
  %v1005 = vld [vmem:[%s987 + $0x44] sm:$0xf]
  %v1006 = vld [vmem:[%s987 + $0x48] sm:$0xf]
  %v1007 = vld [vmem:[%s987 + $0x4c] sm:$0xf]
  %v1008 = vld [vmem:[%s987 + $0x50] sm:$0xf]
  %v1009 = vld [vmem:[%s987 + $0x54] sm:$0xf]
  %v1010 = vld [vmem:[%s987 + $0x58] sm:$0xf]
  %v1011 = vld [vmem:[%s987 + $0x5c] sm:$0xf]
  %v1012 = vld [vmem:[%s987 + $0x60] sm:$0xf]
  %v1013 = vld [vmem:[%s987 + $0x64] sm:$0xf]
  %v1014 = vld [vmem:[%s987 + $0x68] sm:$0xf]
  %v1015 = vld [vmem:[%s987 + $0x6c] sm:$0xf]
  %v1016 = vld [vmem:[%s987 + $0x70] sm:$0xf]
  %v1017 = vld [vmem:[%s987 + $0x74] sm:$0xf]
  %v1018 = vld [vmem:[%s987 + $0x78] sm:$0xf]
  %v1019 = vld [vmem:[%s987 + $0x7c] sm:$0xf]
  %v1020 = vld [vmem:[%s987 + $0x80] sm:$0xf]
  %v1021 = vld [vmem:[%s987 + $0x84] sm:$0xf]
  %v1022 = vld [vmem:[%s987 + $0x88] sm:$0xf]
  %v1023 = vld [vmem:[%s987 + $0x8c] sm:$0xf]
  %v1024 = vld [vmem:[%s987 + $0x90] sm:$0xf]
  %v1025 = vld [vmem:[%s987 + $0x94] sm:$0xf]
  %v1026 = vld [vmem:[%s987 + $0x98] sm:$0xf]
  %v1027 = vld [vmem:[%s987 + $0x9c] sm:$0xf]
  %v1028 = vld [vmem:[%s987 + $0xa0] sm:$0xf]
  %v1029 = vld [vmem:[%s987 + $0xa4] sm:$0xf]
  %v1030 = vld [vmem:[%s987 + $0xa8] sm:$0xf]
  %v1031 = vld [vmem:[%s987 + $0xac] sm:$0xf]
  %v1032 = vld [vmem:[%s987 + $0xb0] sm:$0xf]
  %v1033 = vld [vmem:[%s987 + $0xb4] sm:$0xf]
  %v1034 = vld [vmem:[%s987 + $0xb8] sm:$0xf]
  %v1035 = vld [vmem:[%s987 + $0xbc] sm:$0xf]
  %v1036 = vld [vmem:[%s987 + $0xc0] sm:$0xf]
  %v1086 = vunpack.c.l.b16 %v988
  %v1087 = vunpack.c.l.b16 %v989
  %v1088 = vunpack.c.l.b16 %v990
  %v1089 = vunpack.c.l.b16 %v991
  %v1090 = vunpack.c.l.b16 %v992
  %v1091 = vunpack.c.l.b16 %v993
  %v1092 = vunpack.c.l.b16 %v994
  %v1093 = vunpack.c.l.b16 %v995
  %v1094 = vunpack.c.l.b16 %v996
  %v1095 = vunpack.c.l.b16 %v997
  %v1096 = vunpack.c.l.b16 %v998
  %v1097 = vunpack.c.l.b16 %v999
  %v1098 = vunpack.c.l.b16 %v1000
  %v1099 = vunpack.c.l.b16 %v1001
  %v1100 = vunpack.c.l.b16 %v1002
  %v1101 = vunpack.c.l.b16 %v1003
  %v1102 = vunpack.c.l.b16 %v1004
  %v1103 = vunpack.c.l.b16 %v1005
  %v1104 = vunpack.c.l.b16 %v1006
  %v1105 = vunpack.c.l.b16 %v1007
  %v1106 = vunpack.c.l.b16 %v1008
  %v1107 = vunpack.c.l.b16 %v1009
  %v1108 = vunpack.c.l.b16 %v1010
  %v1109 = vunpack.c.l.b16 %v1011
  %v1110 = vunpack.c.l.b16 %v1012
  %v1111 = vunpack.c.l.b16 %v1013
  %v1112 = vunpack.c.l.b16 %v1014
  %v1113 = vunpack.c.l.b16 %v1015
  %v1114 = vunpack.c.l.b16 %v1016
  %v1115 = vunpack.c.l.b16 %v1017
  %v1116 = vunpack.c.l.b16 %v1018
  %v1117 = vunpack.c.l.b16 %v1019
  %v1118 = vunpack.c.l.b16 %v1020
  %v1119 = vunpack.c.l.b16 %v1021
  %v1120 = vunpack.c.l.b16 %v1022
  %v1121 = vunpack.c.l.b16 %v1023
  %v1122 = vunpack.c.l.b16 %v1024
  %v1123 = vunpack.c.l.b16 %v1025
  %v1124 = vunpack.c.l.b16 %v1026
  %v1125 = vunpack.c.l.b16 %v1027
  %v1126 = vunpack.c.l.b16 %v1028
  %v1127 = vunpack.c.l.b16 %v1029
  %v1128 = vunpack.c.l.b16 %v1030
  %v1129 = vunpack.c.l.b16 %v1031
  %v1130 = vunpack.c.l.b16 %v1032
  %v1131 = vunpack.c.l.b16 %v1033
  %v1132 = vunpack.c.l.b16 %v1034
  %v1133 = vunpack.c.l.b16 %v1035
  %v1134 = vunpack.c.l.b16 %v1036
  %v1135 = vpack.c.b16 %v1087, %v1086
  %v1136 = vpack.c.b16 %v1089, %v1088
  %v1137 = vpack.c.b16 %v1091, %v1090
  %v1138 = vpack.c.b16 %v1093, %v1092
  %v1139 = vpack.c.b16 %v1095, %v1094
  %v1140 = vpack.c.b16 %v1097, %v1096
  %v1141 = vpack.c.b16 %v1099, %v1098
  %v1142 = vpack.c.b16 %v1101, %v1100
  %v1143 = vpack.c.b16 %v1103, %v1102
  %v1144 = vpack.c.b16 %v1105, %v1104
  %v1145 = vpack.c.b16 %v1107, %v1106
  %v1146 = vpack.c.b16 %v1109, %v1108
  %v1147 = vpack.c.b16 %v1111, %v1110
  %v1148 = vpack.c.b16 %v1113, %v1112
  %v1149 = vpack.c.b16 %v1115, %v1114
  %v1150 = vpack.c.b16 %v1117, %v1116
  %v1151 = vpack.c.b16 %v1119, %v1118
  %v1152 = vpack.c.b16 %v1121, %v1120
  %v1153 = vpack.c.b16 %v1123, %v1122
  %v1154 = vpack.c.b16 %v1125, %v1124
  %v1155 = vpack.c.b16 %v1127, %v1126
  %v1156 = vpack.c.b16 %v1129, %v1128
  %v1157 = vpack.c.b16 %v1131, %v1130
  %v1158 = vpack.c.b16 %v1133, %v1132
  %v1159 = vpack.c.b16 %v1134, %v1134
  %1185 = vmatprep.subr.bf16.mxu0 0
  %1186 = vmatpush1.bf16.msra.mxu0 %v260
  %1187 = vmatprep.subr.bf16.mxu0 0
  %1188 = vmatpush1.bf16.msra.mxu0 %v261
  %1189 = vmatprep.subr.bf16.mxu0 0
  %1190 = vmatpush1.bf16.msra.mxu0 %v262
  %1191 = vmatprep.subr.bf16.mxu0 0
  %1192 = vmatpush1.bf16.msra.mxu0 %v263
  %1193 = vmatprep.subr.bf16.mxu0 0
  %1194 = vmatpush1.bf16.msra.mxu0 %v264
  %1195 = vmatprep.subr.bf16.mxu0 0
  %1196 = vmatpush1.bf16.msra.mxu0 %v265
  %1197 = vmatprep.subr.bf16.mxu0 0
  %1198 = vmatpush1.bf16.msra.mxu0 %v266
  %1199 = vmatprep.subr.bf16.mxu0 0
  %1200 = vmatpush1.bf16.msra.mxu0 %v267
  %1201 = vmatprep.subr.bf16.mxu0 0
  %1202 = vmatpush1.bf16.msra.mxu0 0
  %1203 = vmatprep.subr.bf16.mxu0 0
  %1204 = vmatpush1.bf16.msra.mxu0 0
  %1205 = vmatprep.subr.bf16.mxu0 0
  %1206 = vmatpush1.bf16.msra.mxu0 0
  %1207 = vmatprep.subr.bf16.mxu0 0
  %1208 = vmatpush1.bf16.msra.mxu0 0
  %1209 = vmatprep.subr.bf16.mxu0 0
  %1210 = vmatpush1.bf16.msra.mxu0 0
  %1211 = vmatprep.subr.bf16.mxu0 0
  %1212 = vmatpush1.bf16.msra.mxu0 0
  %1213 = vmatprep.subr.bf16.mxu0 0
  %1214 = vmatpush1.bf16.msra.mxu0 0
  %1215 = vmatprep.subr.bf16.mxu0 0
  %1216 = vmatpush1.bf16.msra.mxu0 0
  %1217 = vmatprep.mubr.bf16.mxu0 0
  %1218 = vmatmul.mubr.bf16.gmra.mrb[0].mxu0 %v1135
  %v1219 = vpop.f32.mrb[0].mxu0
  %v1220 = vadd.f32 0.0, %v1219
  %v1221 = vpop.f32.mrb[0].mxu0
  %v1222 = vpop.f32.mrb[0].mxu0
  %v1223 = vadd.f32 0.0, %v1222
  %v1224 = vpop.f32.mrb[0].mxu0
  %1225 = vmatprep.mubr.bf16.mxu0 0
  %1226 = vmatmul.mubr.bf16.gmra.mrb[0].mxu0 %v1136
  %v1227 = vpop.f32.mrb[0].mxu0
  %v1228 = vadd.f32 0.0, %v1227
  %v1229 = vpop.f32.mrb[0].mxu0
  %v1230 = vpop.f32.mrb[0].mxu0
  %v1231 = vadd.f32 0.0, %v1230
  %v1232 = vpop.f32.mrb[0].mxu0
  %1233 = vmatprep.mubr.bf16.mxu0 0
  %1234 = vmatmul.mubr.bf16.gmra.mrb[0].mxu0 %v1137
  %v1235 = vpop.f32.mrb[0].mxu0
  %v1236 = vadd.f32 0.0, %v1235
  %v1237 = vpop.f32.mrb[0].mxu0
  %v1238 = vpop.f32.mrb[0].mxu0
  %v1239 = vadd.f32 0.0, %v1238
  %v1240 = vpop.f32.mrb[0].mxu0
  %1241 = vmatprep.mubr.bf16.mxu0 0
  %1242 = vmatmul.mubr.bf16.gmra.mrb[0].mxu0 %v1138
  %v1243 = vpop.f32.mrb[0].mxu0
  %v1244 = vadd.f32 0.0, %v1243
  %v1245 = vpop.f32.mrb[0].mxu0
  %v1246 = vpop.f32.mrb[0].mxu0
  %v1247 = vadd.f32 0.0, %v1246
  %v1248 = vpop.f32.mrb[0].mxu0
  %1249 = vmatprep.mubr.bf16.mxu0 0
  %1250 = vmatmul.mubr.bf16.gmra.mrb[0].mxu0 %v1139
  %v1251 = vpop.f32.mrb[0].mxu0
  %v1252 = vadd.f32 0.0, %v1251
  %v1253 = vpop.f32.mrb[0].mxu0
  %v1254 = vpop.f32.mrb[0].mxu0
  %v1255 = vadd.f32 0.0, %v1254
  %v1256 = vpop.f32.mrb[0].mxu0
  %1257 = vmatprep.mubr.bf16.mxu0 0
  %1258 = vmatmul.mubr.bf16.gmra.mrb[0].mxu0 %v1140
  %v1259 = vpop.f32.mrb[0].mxu0
  %v1260 = vadd.f32 0.0, %v1259
  %v1261 = vpop.f32.mrb[0].mxu0
  %v1262 = vpop.f32.mrb[0].mxu0
  %v1263 = vadd.f32 0.0, %v1262
  %v1264 = vpop.f32.mrb[0].mxu0
  %1265 = vmatprep.mubr.bf16.mxu0 0
  %1266 = vmatmul.mubr.bf16.gmra.mrb[0].mxu0 %v1141
  %v1267 = vpop.f32.mrb[0].mxu0
  %v1268 = vadd.f32 0.0, %v1267
  %v1269 = vpop.f32.mrb[0].mxu0
  %v1270 = vpop.f32.mrb[0].mxu0
  %v1271 = vadd.f32 0.0, %v1270
  %v1272 = vpop.f32.mrb[0].mxu0
  %1273 = vmatprep.mubr.bf16.mxu0 0
  %1274 = vmatmul.mubr.bf16.gmra.mrb[0].mxu0 %v1142
  %v1275 = vpop.f32.mrb[0].mxu0
  %v1276 = vadd.f32 0.0, %v1275
  %v1277 = vpop.f32.mrb[0].mxu0
  %v1278 = vpop.f32.mrb[0].mxu0
  %v1279 = vadd.f32 0.0, %v1278
  %v1280 = vpop.f32.mrb[0].mxu0
  %1281 = vmatprep.mubr.bf16.mxu0 0
  %1282 = vmatmul.mubr.bf16.gmra.mrb[0].mxu0 %v1143
  %v1283 = vpop.f32.mrb[0].mxu0
  %v1284 = vadd.f32 0.0, %v1283
  %v1285 = vpop.f32.mrb[0].mxu0
  %v1286 = vpop.f32.mrb[0].mxu0
  %v1287 = vadd.f32 0.0, %v1286
  %v1288 = vpop.f32.mrb[0].mxu0
  %1289 = vmatprep.mubr.bf16.mxu0 0
  %1290 = vmatmul.mubr.bf16.gmra.mrb[0].mxu0 %v1144
  %v1291 = vpop.f32.mrb[0].mxu0
  %v1292 = vadd.f32 0.0, %v1291
  %v1293 = vpop.f32.mrb[0].mxu0
  %v1294 = vpop.f32.mrb[0].mxu0
  %v1295 = vadd.f32 0.0, %v1294
  %v1296 = vpop.f32.mrb[0].mxu0
  %1297 = vmatprep.mubr.bf16.mxu0 0
  %1298 = vmatmul.mubr.bf16.gmra.mrb[0].mxu0 %v1145
  %v1299 = vpop.f32.mrb[0].mxu0
  %v1300 = vadd.f32 0.0, %v1299
  %v1301 = vpop.f32.mrb[0].mxu0
  %v1302 = vpop.f32.mrb[0].mxu0
  %v1303 = vadd.f32 0.0, %v1302
  %v1304 = vpop.f32.mrb[0].mxu0
  %1305 = vmatprep.mubr.bf16.mxu0 0
  %1306 = vmatmul.mubr.bf16.gmra.mrb[0].mxu0 %v1146
  %v1307 = vpop.f32.mrb[0].mxu0
  %v1308 = vadd.f32 0.0, %v1307
  %v1309 = vpop.f32.mrb[0].mxu0
  %v1310 = vpop.f32.mrb[0].mxu0
  %v1311 = vadd.f32 0.0, %v1310
  %v1312 = vpop.f32.mrb[0].mxu0
  %1313 = vmatprep.mubr.bf16.mxu0 0
  %1314 = vmatmul.mubr.bf16.gmra.mrb[0].mxu0 %v1147
  %v1315 = vpop.f32.mrb[0].mxu0
  %v1316 = vadd.f32 0.0, %v1315
  %v1317 = vpop.f32.mrb[0].mxu0
  %v1318 = vpop.f32.mrb[0].mxu0
  %v1319 = vadd.f32 0.0, %v1318
  %v1320 = vpop.f32.mrb[0].mxu0
  %1321 = vmatprep.mubr.bf16.mxu0 0
  %1322 = vmatmul.mubr.bf16.gmra.mrb[0].mxu0 %v1148
  %v1323 = vpop.f32.mrb[0].mxu0
  %v1324 = vadd.f32 0.0, %v1323
  %v1325 = vpop.f32.mrb[0].mxu0
  %v1326 = vpop.f32.mrb[0].mxu0
  %v1327 = vadd.f32 0.0, %v1326
  %v1328 = vpop.f32.mrb[0].mxu0
  %1329 = vmatprep.mubr.bf16.mxu0 0
  %1330 = vmatmul.mubr.bf16.gmra.mrb[0].mxu0 %v1149
  %v1331 = vpop.f32.mrb[0].mxu0
  %v1332 = vadd.f32 0.0, %v1331
  %v1333 = vpop.f32.mrb[0].mxu0
  %v1334 = vpop.f32.mrb[0].mxu0
  %v1335 = vadd.f32 0.0, %v1334
  %v1336 = vpop.f32.mrb[0].mxu0
  %1337 = vmatprep.mubr.bf16.mxu0 0
  %1338 = vmatmul.mubr.bf16.gmra.mrb[0].mxu0 %v1150
  %v1339 = vpop.f32.mrb[0].mxu0
  %v1340 = vadd.f32 0.0, %v1339
  %v1341 = vpop.f32.mrb[0].mxu0
  %v1342 = vpop.f32.mrb[0].mxu0
  %v1343 = vadd.f32 0.0, %v1342
  %v1344 = vpop.f32.mrb[0].mxu0
  %1345 = vmatprep.mubr.bf16.mxu0 0
  %1346 = vmatmul.mubr.bf16.gmra.mrb[0].mxu0 %v1151
  %v1347 = vpop.f32.mrb[0].mxu0
  %v1348 = vadd.f32 0.0, %v1347
  %v1349 = vpop.f32.mrb[0].mxu0
  %v1350 = vpop.f32.mrb[0].mxu0
  %v1351 = vadd.f32 0.0, %v1350
  %v1352 = vpop.f32.mrb[0].mxu0
  %1353 = vmatprep.mubr.bf16.mxu0 0
  %1354 = vmatmul.mubr.bf16.gmra.mrb[0].mxu0 %v1152
  %v1355 = vpop.f32.mrb[0].mxu0
  %v1356 = vadd.f32 0.0, %v1355
  %v1357 = vpop.f32.mrb[0].mxu0
  %v1358 = vpop.f32.mrb[0].mxu0
  %v1359 = vadd.f32 0.0, %v1358
  %v1360 = vpop.f32.mrb[0].mxu0
  %1361 = vmatprep.mubr.bf16.mxu0 0
  %1362 = vmatmul.mubr.bf16.gmra.mrb[0].mxu0 %v1153
  %v1363 = vpop.f32.mrb[0].mxu0
  %v1364 = vadd.f32 0.0, %v1363
  %v1365 = vpop.f32.mrb[0].mxu0
  %v1366 = vpop.f32.mrb[0].mxu0
  %v1367 = vadd.f32 0.0, %v1366
  %v1368 = vpop.f32.mrb[0].mxu0
  %1369 = vmatprep.mubr.bf16.mxu0 0
  %1370 = vmatmul.mubr.bf16.gmra.mrb[0].mxu0 %v1154
  %v1371 = vpop.f32.mrb[0].mxu0
  %v1372 = vadd.f32 0.0, %v1371
  %v1373 = vpop.f32.mrb[0].mxu0
  %v1374 = vpop.f32.mrb[0].mxu0
  %v1375 = vadd.f32 0.0, %v1374
  %v1376 = vpop.f32.mrb[0].mxu0
  %1377 = vmatprep.mubr.bf16.mxu0 0
  %1378 = vmatmul.mubr.bf16.gmra.mrb[0].mxu0 %v1155
  %v1379 = vpop.f32.mrb[0].mxu0
  %v1380 = vadd.f32 0.0, %v1379
  %v1381 = vpop.f32.mrb[0].mxu0
  %v1382 = vpop.f32.mrb[0].mxu0
  %v1383 = vadd.f32 0.0, %v1382
  %v1384 = vpop.f32.mrb[0].mxu0
  %1385 = vmatprep.mubr.bf16.mxu0 0
  %1386 = vmatmul.mubr.bf16.gmra.mrb[0].mxu0 %v1156
  %v1387 = vpop.f32.mrb[0].mxu0
  %v1388 = vadd.f32 0.0, %v1387
  %v1389 = vpop.f32.mrb[0].mxu0
  %v1390 = vpop.f32.mrb[0].mxu0
  %v1391 = vadd.f32 0.0, %v1390
  %v1392 = vpop.f32.mrb[0].mxu0
  %1393 = vmatprep.mubr.bf16.mxu0 0
  %1394 = vmatmul.mubr.bf16.gmra.mrb[0].mxu0 %v1157
  %v1395 = vpop.f32.mrb[0].mxu0
  %v1396 = vadd.f32 0.0, %v1395
  %v1397 = vpop.f32.mrb[0].mxu0
  %v1398 = vpop.f32.mrb[0].mxu0
  %v1399 = vadd.f32 0.0, %v1398
  %v1400 = vpop.f32.mrb[0].mxu0
  %1401 = vmatprep.mubr.bf16.mxu0 0
  %1402 = vmatmul.mubr.bf16.gmra.mrb[0].mxu0 %v1158
  %v1403 = vpop.f32.mrb[0].mxu0
  %v1404 = vadd.f32 0.0, %v1403
  %v1405 = vpop.f32.mrb[0].mxu0
  %v1406 = vpop.f32.mrb[0].mxu0
  %v1407 = vadd.f32 0.0, %v1406
  %v1408 = vpop.f32.mrb[0].mxu0
  %1409 = vmatprep.mubr.bf16.mxu0 0
  %1410 = vmatmul.mubr.bf16.gmra.mrb[0].mxu0 %v1159
  %v1411 = vpop.f32.mrb[0].mxu0
  %v1412 = vadd.f32 0.0, %v1411
  %v1413 = vpop.f32.mrb[0].mxu0
  %v1414 = vpop.f32.mrb[0].mxu0
  %v1415 = vpop.f32.mrb[0].mxu0
  %1416 = vdwg.mxu0
  %v1417 = vmax.f32 %v938, %v1220
  %v1418 = vmax.f32 %v939, %v1223
  %v1419 = vmax.f32 %v940, %v1228
  %v1420 = vmax.f32 %v941, %v1231
  %v1421 = vmax.f32 %v942, %v1236
  %v1422 = vmax.f32 %v943, %v1239
  %v1423 = vmax.f32 %v944, %v1244
  %v1424 = vmax.f32 %v945, %v1247
  %v1425 = vmax.f32 %v946, %v1252
  %v1426 = vmax.f32 %v947, %v1255
  %v1427 = vmax.f32 %v948, %v1260
  %v1428 = vmax.f32 %v949, %v1263
  %v1429 = vmax.f32 %v950, %v1268
  %v1430 = vmax.f32 %v951, %v1271
  %v1431 = vmax.f32 %v952, %v1276
  %v1432 = vmax.f32 %v953, %v1279
  %v1433 = vmax.f32 %v954, %v1284
  %v1434 = vmax.f32 %v955, %v1287
  %v1435 = vmax.f32 %v956, %v1292
  %v1436 = vmax.f32 %v957, %v1295
  %v1437 = vmax.f32 %v958, %v1300
  %v1438 = vmax.f32 %v959, %v1303
  %v1439 = vmax.f32 %v960, %v1308
  %v1440 = vmax.f32 %v961, %v1311
  %v1441 = vmax.f32 %v962, %v1316
  %v1442 = vmax.f32 %v963, %v1319
  %v1443 = vmax.f32 %v964, %v1324
  %v1444 = vmax.f32 %v965, %v1327
  %v1445 = vmax.f32 %v966, %v1332
  %v1446 = vmax.f32 %v967, %v1335
  %v1447 = vmax.f32 %v968, %v1340
  %v1448 = vmax.f32 %v969, %v1343
  %v1449 = vmax.f32 %v970, %v1348
  %v1450 = vmax.f32 %v971, %v1351
  %v1451 = vmax.f32 %v972, %v1356
  %v1452 = vmax.f32 %v973, %v1359
  %v1453 = vmax.f32 %v974, %v1364
  %v1454 = vmax.f32 %v975, %v1367
  %v1455 = vmax.f32 %v976, %v1372
  %v1456 = vmax.f32 %v977, %v1375
  %v1457 = vmax.f32 %v978, %v1380
  %v1458 = vmax.f32 %v979, %v1383
  %v1459 = vmax.f32 %v980, %v1388
  %v1460 = vmax.f32 %v981, %v1391
  %v1461 = vmax.f32 %v982, %v1396
  %v1462 = vmax.f32 %v983, %v1399
  %v1463 = vmax.f32 %v984, %v1404
  %v1464 = vmax.f32 %v985, %v1407
  %v1465 = vmax.f32 %v986, %v1412
  %s1466 = scalar_lea.vmem %s0, 588
  %v1467 = vld [vmem:[%s1466] sm:$0xf]
  %v1468 = vld [vmem:[%s1466 + $0x4] sm:$0xf]
  %v1469 = vld [vmem:[%s1466 + $0x8] sm:$0xf]
  %v1470 = vld [vmem:[%s1466 + $0xc] sm:$0xf]
  %v1471 = vld [vmem:[%s1466 + $0x10] sm:$0xf]
  %v1472 = vld [vmem:[%s1466 + $0x14] sm:$0xf]
  %v1473 = vld [vmem:[%s1466 + $0x18] sm:$0xf]
  %v1474 = vld [vmem:[%s1466 + $0x1c] sm:$0xf]
  %v1475 = vld [vmem:[%s1466 + $0x20] sm:$0xf]
  %v1476 = vld [vmem:[%s1466 + $0x24] sm:$0xf]
  %v1477 = vld [vmem:[%s1466 + $0x28] sm:$0xf]
  %v1478 = vld [vmem:[%s1466 + $0x2c] sm:$0xf]
  %v1479 = vld [vmem:[%s1466 + $0x30] sm:$0xf]
  %v1480 = vld [vmem:[%s1466 + $0x34] sm:$0xf]
  %v1481 = vld [vmem:[%s1466 + $0x38] sm:$0xf]
  %v1482 = vld [vmem:[%s1466 + $0x3c] sm:$0xf]
  %v1483 = vld [vmem:[%s1466 + $0x40] sm:$0xf]
  %v1484 = vld [vmem:[%s1466 + $0x44] sm:$0xf]
  %v1485 = vld [vmem:[%s1466 + $0x48] sm:$0xf]
  %v1486 = vld [vmem:[%s1466 + $0x4c] sm:$0xf]
  %v1487 = vld [vmem:[%s1466 + $0x50] sm:$0xf]
  %v1488 = vld [vmem:[%s1466 + $0x54] sm:$0xf]
  %v1489 = vld [vmem:[%s1466 + $0x58] sm:$0xf]
  %v1490 = vld [vmem:[%s1466 + $0x5c] sm:$0xf]
  %v1491 = vld [vmem:[%s1466 + $0x60] sm:$0xf]
  %v1492 = vld [vmem:[%s1466 + $0x64] sm:$0xf]
  %v1493 = vld [vmem:[%s1466 + $0x68] sm:$0xf]
  %v1494 = vld [vmem:[%s1466 + $0x6c] sm:$0xf]
  %v1495 = vld [vmem:[%s1466 + $0x70] sm:$0xf]
  %v1496 = vld [vmem:[%s1466 + $0x74] sm:$0xf]
  %v1497 = vld [vmem:[%s1466 + $0x78] sm:$0xf]
  %v1498 = vld [vmem:[%s1466 + $0x7c] sm:$0xf]
  %v1499 = vld [vmem:[%s1466 + $0x80] sm:$0xf]
  %v1500 = vld [vmem:[%s1466 + $0x84] sm:$0xf]
  %v1501 = vld [vmem:[%s1466 + $0x88] sm:$0xf]
  %v1502 = vld [vmem:[%s1466 + $0x8c] sm:$0xf]
  %v1503 = vld [vmem:[%s1466 + $0x90] sm:$0xf]
  %v1504 = vld [vmem:[%s1466 + $0x94] sm:$0xf]
  %v1505 = vld [vmem:[%s1466 + $0x98] sm:$0xf]
  %v1506 = vld [vmem:[%s1466 + $0x9c] sm:$0xf]
  %v1507 = vld [vmem:[%s1466 + $0xa0] sm:$0xf]
  %v1508 = vld [vmem:[%s1466 + $0xa4] sm:$0xf]
  %v1509 = vld [vmem:[%s1466 + $0xa8] sm:$0xf]
  %v1510 = vld [vmem:[%s1466 + $0xac] sm:$0xf]
  %v1511 = vld [vmem:[%s1466 + $0xb0] sm:$0xf]
  %v1512 = vld [vmem:[%s1466 + $0xb4] sm:$0xf]
  %v1513 = vld [vmem:[%s1466 + $0xb8] sm:$0xf]
  %v1514 = vld [vmem:[%s1466 + $0xbc] sm:$0xf]
  %v1515 = vld [vmem:[%s1466 + $0xc0] sm:$0xf]
  %v1565 = vunpack.c.l.b16 %v1467
  %v1566 = vunpack.c.l.b16 %v1468
  %v1567 = vunpack.c.l.b16 %v1469
  %v1568 = vunpack.c.l.b16 %v1470
  %v1569 = vunpack.c.l.b16 %v1471
  %v1570 = vunpack.c.l.b16 %v1472
  %v1571 = vunpack.c.l.b16 %v1473
  %v1572 = vunpack.c.l.b16 %v1474
  %v1573 = vunpack.c.l.b16 %v1475
  %v1574 = vunpack.c.l.b16 %v1476
  %v1575 = vunpack.c.l.b16 %v1477
  %v1576 = vunpack.c.l.b16 %v1478
  %v1577 = vunpack.c.l.b16 %v1479
  %v1578 = vunpack.c.l.b16 %v1480
  %v1579 = vunpack.c.l.b16 %v1481
  %v1580 = vunpack.c.l.b16 %v1482
  %v1581 = vunpack.c.l.b16 %v1483
  %v1582 = vunpack.c.l.b16 %v1484
  %v1583 = vunpack.c.l.b16 %v1485
  %v1584 = vunpack.c.l.b16 %v1486
  %v1585 = vunpack.c.l.b16 %v1487
  %v1586 = vunpack.c.l.b16 %v1488
  %v1587 = vunpack.c.l.b16 %v1489
  %v1588 = vunpack.c.l.b16 %v1490
  %v1589 = vunpack.c.l.b16 %v1491
  %v1590 = vunpack.c.l.b16 %v1492
  %v1591 = vunpack.c.l.b16 %v1493
  %v1592 = vunpack.c.l.b16 %v1494
  %v1593 = vunpack.c.l.b16 %v1495
  %v1594 = vunpack.c.l.b16 %v1496
  %v1595 = vunpack.c.l.b16 %v1497
  %v1596 = vunpack.c.l.b16 %v1498
  %v1597 = vunpack.c.l.b16 %v1499
  %v1598 = vunpack.c.l.b16 %v1500
  %v1599 = vunpack.c.l.b16 %v1501
  %v1600 = vunpack.c.l.b16 %v1502
  %v1601 = vunpack.c.l.b16 %v1503
  %v1602 = vunpack.c.l.b16 %v1504
  %v1603 = vunpack.c.l.b16 %v1505
  %v1604 = vunpack.c.l.b16 %v1506
  %v1605 = vunpack.c.l.b16 %v1507
  %v1606 = vunpack.c.l.b16 %v1508
  %v1607 = vunpack.c.l.b16 %v1509
  %v1608 = vunpack.c.l.b16 %v1510
  %v1609 = vunpack.c.l.b16 %v1511
  %v1610 = vunpack.c.l.b16 %v1512
  %v1611 = vunpack.c.l.b16 %v1513
  %v1612 = vunpack.c.l.b16 %v1514
  %v1613 = vunpack.c.l.b16 %v1515
  %v1614 = vpack.c.b16 %v1566, %v1565
  %v1615 = vpack.c.b16 %v1568, %v1567
  %v1616 = vpack.c.b16 %v1570, %v1569
  %v1617 = vpack.c.b16 %v1572, %v1571
  %v1618 = vpack.c.b16 %v1574, %v1573
  %v1619 = vpack.c.b16 %v1576, %v1575
  %v1620 = vpack.c.b16 %v1578, %v1577
  %v1621 = vpack.c.b16 %v1580, %v1579
  %v1622 = vpack.c.b16 %v1582, %v1581
  %v1623 = vpack.c.b16 %v1584, %v1583
  %v1624 = vpack.c.b16 %v1586, %v1585
  %v1625 = vpack.c.b16 %v1588, %v1587
  %v1626 = vpack.c.b16 %v1590, %v1589
  %v1627 = vpack.c.b16 %v1592, %v1591
  %v1628 = vpack.c.b16 %v1594, %v1593
  %v1629 = vpack.c.b16 %v1596, %v1595
  %v1630 = vpack.c.b16 %v1598, %v1597
  %v1631 = vpack.c.b16 %v1600, %v1599
  %v1632 = vpack.c.b16 %v1602, %v1601
  %v1633 = vpack.c.b16 %v1604, %v1603
  %v1634 = vpack.c.b16 %v1606, %v1605
  %v1635 = vpack.c.b16 %v1608, %v1607
  %v1636 = vpack.c.b16 %v1610, %v1609
  %v1637 = vpack.c.b16 %v1612, %v1611
  %v1638 = vpack.c.b16 %v1613, %v1613
  %1664 = vmatprep.subr.bf16.mxu0 0
  %1665 = vmatpush1.bf16.msra.mxu0 %v260
  %1666 = vmatprep.subr.bf16.mxu0 0
  %1667 = vmatpush1.bf16.msra.mxu0 %v261
  %1668 = vmatprep.subr.bf16.mxu0 0
  %1669 = vmatpush1.bf16.msra.mxu0 %v262
  %1670 = vmatprep.subr.bf16.mxu0 0
  %1671 = vmatpush1.bf16.msra.mxu0 %v263
  %1672 = vmatprep.subr.bf16.mxu0 0
  %1673 = vmatpush1.bf16.msra.mxu0 %v264
  %1674 = vmatprep.subr.bf16.mxu0 0
  %1675 = vmatpush1.bf16.msra.mxu0 %v265
  %1676 = vmatprep.subr.bf16.mxu0 0
  %1677 = vmatpush1.bf16.msra.mxu0 %v266
  %1678 = vmatprep.subr.bf16.mxu0 0
  %1679 = vmatpush1.bf16.msra.mxu0 %v267
  %1680 = vmatprep.subr.bf16.mxu0 0
  %1681 = vmatpush1.bf16.msra.mxu0 0
  %1682 = vmatprep.subr.bf16.mxu0 0
  %1683 = vmatpush1.bf16.msra.mxu0 0
  %1684 = vmatprep.subr.bf16.mxu0 0
  %1685 = vmatpush1.bf16.msra.mxu0 0
  %1686 = vmatprep.subr.bf16.mxu0 0
  %1687 = vmatpush1.bf16.msra.mxu0 0
  %1688 = vmatprep.subr.bf16.mxu0 0
  %1689 = vmatpush1.bf16.msra.mxu0 0
  %1690 = vmatprep.subr.bf16.mxu0 0
  %1691 = vmatpush1.bf16.msra.mxu0 0
  %1692 = vmatprep.subr.bf16.mxu0 0
  %1693 = vmatpush1.bf16.msra.mxu0 0
  %1694 = vmatprep.subr.bf16.mxu0 0
  %1695 = vmatpush1.bf16.msra.mxu0 0
  %1696 = vmatprep.mubr.bf16.mxu0 0
  %1697 = vmatmul.mubr.bf16.gmra.mrb[0].mxu0 %v1614
  %v1698 = vpop.f32.mrb[0].mxu0
  %v1699 = vadd.f32 0.0, %v1698
  %v1700 = vpop.f32.mrb[0].mxu0
  %v1701 = vpop.f32.mrb[0].mxu0
  %v1702 = vadd.f32 0.0, %v1701
  %v1703 = vpop.f32.mrb[0].mxu0
  %1704 = vmatprep.mubr.bf16.mxu0 0
  %1705 = vmatmul.mubr.bf16.gmra.mrb[0].mxu0 %v1615
  %v1706 = vpop.f32.mrb[0].mxu0
  %v1707 = vadd.f32 0.0, %v1706
  %v1708 = vpop.f32.mrb[0].mxu0
  %v1709 = vpop.f32.mrb[0].mxu0
  %v1710 = vadd.f32 0.0, %v1709
  %v1711 = vpop.f32.mrb[0].mxu0
  %1712 = vmatprep.mubr.bf16.mxu0 0
  %1713 = vmatmul.mubr.bf16.gmra.mrb[0].mxu0 %v1616
  %v1714 = vpop.f32.mrb[0].mxu0
  %v1715 = vadd.f32 0.0, %v1714
  %v1716 = vpop.f32.mrb[0].mxu0
  %v1717 = vpop.f32.mrb[0].mxu0
  %v1718 = vadd.f32 0.0, %v1717
  %v1719 = vpop.f32.mrb[0].mxu0
  %1720 = vmatprep.mubr.bf16.mxu0 0
  %1721 = vmatmul.mubr.bf16.gmra.mrb[0].mxu0 %v1617
  %v1722 = vpop.f32.mrb[0].mxu0
  %v1723 = vadd.f32 0.0, %v1722
  %v1724 = vpop.f32.mrb[0].mxu0
  %v1725 = vpop.f32.mrb[0].mxu0
  %v1726 = vadd.f32 0.0, %v1725
  %v1727 = vpop.f32.mrb[0].mxu0
  %1728 = vmatprep.mubr.bf16.mxu0 0
  %1729 = vmatmul.mubr.bf16.gmra.mrb[0].mxu0 %v1618
  %v1730 = vpop.f32.mrb[0].mxu0
  %v1731 = vadd.f32 0.0, %v1730
  %v1732 = vpop.f32.mrb[0].mxu0
  %v1733 = vpop.f32.mrb[0].mxu0
  %v1734 = vadd.f32 0.0, %v1733
  %v1735 = vpop.f32.mrb[0].mxu0
  %1736 = vmatprep.mubr.bf16.mxu0 0
  %1737 = vmatmul.mubr.bf16.gmra.mrb[0].mxu0 %v1619
  %v1738 = vpop.f32.mrb[0].mxu0
  %v1739 = vadd.f32 0.0, %v1738
  %v1740 = vpop.f32.mrb[0].mxu0
  %v1741 = vpop.f32.mrb[0].mxu0
  %v1742 = vadd.f32 0.0, %v1741
  %v1743 = vpop.f32.mrb[0].mxu0
  %1744 = vmatprep.mubr.bf16.mxu0 0
  %1745 = vmatmul.mubr.bf16.gmra.mrb[0].mxu0 %v1620
  %v1746 = vpop.f32.mrb[0].mxu0
  %v1747 = vadd.f32 0.0, %v1746
  %v1748 = vpop.f32.mrb[0].mxu0
  %v1749 = vpop.f32.mrb[0].mxu0
  %v1750 = vadd.f32 0.0, %v1749
  %v1751 = vpop.f32.mrb[0].mxu0
  %1752 = vmatprep.mubr.bf16.mxu0 0
  %1753 = vmatmul.mubr.bf16.gmra.mrb[0].mxu0 %v1621
  %v1754 = vpop.f32.mrb[0].mxu0
  %v1755 = vadd.f32 0.0, %v1754
  %v1756 = vpop.f32.mrb[0].mxu0
  %v1757 = vpop.f32.mrb[0].mxu0
  %v1758 = vadd.f32 0.0, %v1757
  %v1759 = vpop.f32.mrb[0].mxu0
  %1760 = vmatprep.mubr.bf16.mxu0 0
  %1761 = vmatmul.mubr.bf16.gmra.mrb[0].mxu0 %v1622
  %v1762 = vpop.f32.mrb[0].mxu0
  %v1763 = vadd.f32 0.0, %v1762
  %v1764 = vpop.f32.mrb[0].mxu0
  %v1765 = vpop.f32.mrb[0].mxu0
  %v1766 = vadd.f32 0.0, %v1765
  %v1767 = vpop.f32.mrb[0].mxu0
  %1768 = vmatprep.mubr.bf16.mxu0 0
  %1769 = vmatmul.mubr.bf16.gmra.mrb[0].mxu0 %v1623
  %v1770 = vpop.f32.mrb[0].mxu0
  %v1771 = vadd.f32 0.0, %v1770
  %v1772 = vpop.f32.mrb[0].mxu0
  %v1773 = vpop.f32.mrb[0].mxu0
  %v1774 = vadd.f32 0.0, %v1773
  %v1775 = vpop.f32.mrb[0].mxu0
  %1776 = vmatprep.mubr.bf16.mxu0 0
  %1777 = vmatmul.mubr.bf16.gmra.mrb[0].mxu0 %v1624
  %v1778 = vpop.f32.mrb[0].mxu0
  %v1779 = vadd.f32 0.0, %v1778
  %v1780 = vpop.f32.mrb[0].mxu0
  %v1781 = vpop.f32.mrb[0].mxu0
  %v1782 = vadd.f32 0.0, %v1781
  %v1783 = vpop.f32.mrb[0].mxu0
  %1784 = vmatprep.mubr.bf16.mxu0 0
  %1785 = vmatmul.mubr.bf16.gmra.mrb[0].mxu0 %v1625
  %v1786 = vpop.f32.mrb[0].mxu0
  %v1787 = vadd.f32 0.0, %v1786
  %v1788 = vpop.f32.mrb[0].mxu0
  %v1789 = vpop.f32.mrb[0].mxu0
  %v1790 = vadd.f32 0.0, %v1789
  %v1791 = vpop.f32.mrb[0].mxu0
  %1792 = vmatprep.mubr.bf16.mxu0 0
  %1793 = vmatmul.mubr.bf16.gmra.mrb[0].mxu0 %v1626
  %v1794 = vpop.f32.mrb[0].mxu0
  %v1795 = vadd.f32 0.0, %v1794
  %v1796 = vpop.f32.mrb[0].mxu0
  %v1797 = vpop.f32.mrb[0].mxu0
  %v1798 = vadd.f32 0.0, %v1797
  %v1799 = vpop.f32.mrb[0].mxu0
  %1800 = vmatprep.mubr.bf16.mxu0 0
  %1801 = vmatmul.mubr.bf16.gmra.mrb[0].mxu0 %v1627
  %v1802 = vpop.f32.mrb[0].mxu0
  %v1803 = vadd.f32 0.0, %v1802
  %v1804 = vpop.f32.mrb[0].mxu0
  %v1805 = vpop.f32.mrb[0].mxu0
  %v1806 = vadd.f32 0.0, %v1805
  %v1807 = vpop.f32.mrb[0].mxu0
  %1808 = vmatprep.mubr.bf16.mxu0 0
  %1809 = vmatmul.mubr.bf16.gmra.mrb[0].mxu0 %v1628
  %v1810 = vpop.f32.mrb[0].mxu0
  %v1811 = vadd.f32 0.0, %v1810
  %v1812 = vpop.f32.mrb[0].mxu0
  %v1813 = vpop.f32.mrb[0].mxu0
  %v1814 = vadd.f32 0.0, %v1813
  %v1815 = vpop.f32.mrb[0].mxu0
  %1816 = vmatprep.mubr.bf16.mxu0 0
  %1817 = vmatmul.mubr.bf16.gmra.mrb[0].mxu0 %v1629
  %v1818 = vpop.f32.mrb[0].mxu0
  %v1819 = vadd.f32 0.0, %v1818
  %v1820 = vpop.f32.mrb[0].mxu0
  %v1821 = vpop.f32.mrb[0].mxu0
  %v1822 = vadd.f32 0.0, %v1821
  %v1823 = vpop.f32.mrb[0].mxu0
  %1824 = vmatprep.mubr.bf16.mxu0 0
  %1825 = vmatmul.mubr.bf16.gmra.mrb[0].mxu0 %v1630
  %v1826 = vpop.f32.mrb[0].mxu0
  %v1827 = vadd.f32 0.0, %v1826
  %v1828 = vpop.f32.mrb[0].mxu0
  %v1829 = vpop.f32.mrb[0].mxu0
  %v1830 = vadd.f32 0.0, %v1829
  %v1831 = vpop.f32.mrb[0].mxu0
  %1832 = vmatprep.mubr.bf16.mxu0 0
  %1833 = vmatmul.mubr.bf16.gmra.mrb[0].mxu0 %v1631
  %v1834 = vpop.f32.mrb[0].mxu0
  %v1835 = vadd.f32 0.0, %v1834
  %v1836 = vpop.f32.mrb[0].mxu0
  %v1837 = vpop.f32.mrb[0].mxu0
  %v1838 = vadd.f32 0.0, %v1837
  %v1839 = vpop.f32.mrb[0].mxu0
  %1840 = vmatprep.mubr.bf16.mxu0 0
  %1841 = vmatmul.mubr.bf16.gmra.mrb[0].mxu0 %v1632
  %v1842 = vpop.f32.mrb[0].mxu0
  %v1843 = vadd.f32 0.0, %v1842
  %v1844 = vpop.f32.mrb[0].mxu0
  %v1845 = vpop.f32.mrb[0].mxu0
  %v1846 = vadd.f32 0.0, %v1845
  %v1847 = vpop.f32.mrb[0].mxu0
  %1848 = vmatprep.mubr.bf16.mxu0 0
  %1849 = vmatmul.mubr.bf16.gmra.mrb[0].mxu0 %v1633
  %v1850 = vpop.f32.mrb[0].mxu0
  %v1851 = vadd.f32 0.0, %v1850
  %v1852 = vpop.f32.mrb[0].mxu0
  %v1853 = vpop.f32.mrb[0].mxu0
  %v1854 = vadd.f32 0.0, %v1853
  %v1855 = vpop.f32.mrb[0].mxu0
  %1856 = vmatprep.mubr.bf16.mxu0 0
  %1857 = vmatmul.mubr.bf16.gmra.mrb[0].mxu0 %v1634
  %v1858 = vpop.f32.mrb[0].mxu0
  %v1859 = vadd.f32 0.0, %v1858
  %v1860 = vpop.f32.mrb[0].mxu0
  %v1861 = vpop.f32.mrb[0].mxu0
  %v1862 = vadd.f32 0.0, %v1861
  %v1863 = vpop.f32.mrb[0].mxu0
  %1864 = vmatprep.mubr.bf16.mxu0 0
  %1865 = vmatmul.mubr.bf16.gmra.mrb[0].mxu0 %v1635
  %v1866 = vpop.f32.mrb[0].mxu0
  %v1867 = vadd.f32 0.0, %v1866
  %v1868 = vpop.f32.mrb[0].mxu0
  %v1869 = vpop.f32.mrb[0].mxu0
  %v1870 = vadd.f32 0.0, %v1869
  %v1871 = vpop.f32.mrb[0].mxu0
  %1872 = vmatprep.mubr.bf16.mxu0 0
  %1873 = vmatmul.mubr.bf16.gmra.mrb[0].mxu0 %v1636
  %v1874 = vpop.f32.mrb[0].mxu0
  %v1875 = vadd.f32 0.0, %v1874
  %v1876 = vpop.f32.mrb[0].mxu0
  %v1877 = vpop.f32.mrb[0].mxu0
  %v1878 = vadd.f32 0.0, %v1877
  %v1879 = vpop.f32.mrb[0].mxu0
  %1880 = vmatprep.mubr.bf16.mxu0 0
  %1881 = vmatmul.mubr.bf16.gmra.mrb[0].mxu0 %v1637
  %v1882 = vpop.f32.mrb[0].mxu0
  %v1883 = vadd.f32 0.0, %v1882
  %v1884 = vpop.f32.mrb[0].mxu0
  %v1885 = vpop.f32.mrb[0].mxu0
  %v1886 = vadd.f32 0.0, %v1885
  %v1887 = vpop.f32.mrb[0].mxu0
  %1888 = vmatprep.mubr.bf16.mxu0 0
  %1889 = vmatmul.mubr.bf16.gmra.mrb[0].mxu0 %v1638
  %v1890 = vpop.f32.mrb[0].mxu0
  %v1891 = vadd.f32 0.0, %v1890
  %v1892 = vpop.f32.mrb[0].mxu0
  %v1893 = vpop.f32.mrb[0].mxu0
  %v1894 = vpop.f32.mrb[0].mxu0
  %1895 = vdwg.mxu0
  %v1896 = vmax.f32 %v1417, %v1699
  %v1897 = vmax.f32 %v1418, %v1702
  %v1898 = vmax.f32 %v1419, %v1707
  %v1899 = vmax.f32 %v1420, %v1710
  %v1900 = vmax.f32 %v1421, %v1715
  %v1901 = vmax.f32 %v1422, %v1718
  %v1902 = vmax.f32 %v1423, %v1723
  %v1903 = vmax.f32 %v1424, %v1726
  %v1904 = vmax.f32 %v1425, %v1731
  %v1905 = vmax.f32 %v1426, %v1734
  %v1906 = vmax.f32 %v1427, %v1739
  %v1907 = vmax.f32 %v1428, %v1742
  %v1908 = vmax.f32 %v1429, %v1747
  %v1909 = vmax.f32 %v1430, %v1750
  %v1910 = vmax.f32 %v1431, %v1755
  %v1911 = vmax.f32 %v1432, %v1758
  %v1912 = vmax.f32 %v1433, %v1763
  %v1913 = vmax.f32 %v1434, %v1766
  %v1914 = vmax.f32 %v1435, %v1771
  %v1915 = vmax.f32 %v1436, %v1774
  %v1916 = vmax.f32 %v1437, %v1779
  %v1917 = vmax.f32 %v1438, %v1782
  %v1918 = vmax.f32 %v1439, %v1787
  %v1919 = vmax.f32 %v1440, %v1790
  %v1920 = vmax.f32 %v1441, %v1795
  %v1921 = vmax.f32 %v1442, %v1798
  %v1922 = vmax.f32 %v1443, %v1803
  %v1923 = vmax.f32 %v1444, %v1806
  %v1924 = vmax.f32 %v1445, %v1811
  %v1925 = vmax.f32 %v1446, %v1814
  %v1926 = vmax.f32 %v1447, %v1819
  %v1927 = vmax.f32 %v1448, %v1822
  %v1928 = vmax.f32 %v1449, %v1827
  %v1929 = vmax.f32 %v1450, %v1830
  %v1930 = vmax.f32 %v1451, %v1835
  %v1931 = vmax.f32 %v1452, %v1838
  %v1932 = vmax.f32 %v1453, %v1843
  %v1933 = vmax.f32 %v1454, %v1846
  %v1934 = vmax.f32 %v1455, %v1851
  %v1935 = vmax.f32 %v1456, %v1854
  %v1936 = vmax.f32 %v1457, %v1859
  %v1937 = vmax.f32 %v1458, %v1862
  %v1938 = vmax.f32 %v1459, %v1867
  %v1939 = vmax.f32 %v1460, %v1870
  %v1940 = vmax.f32 %v1461, %v1875
  %v1941 = vmax.f32 %v1462, %v1878
  %v1942 = vmax.f32 %v1463, %v1883
  %v1943 = vmax.f32 %v1464, %v1886
  %v1944 = vmax.f32 %v1465, %v1891
  %v1945 = vld [vmem:[%s2] sm:$0x1]
  %v1947 = vlaneseq
  %v1948 = vshrl.u32 %v1947, 7
  %v1949 = vsub.s32 0, %v1948
  %v1950 = vrot.slane %v1945, %v1949
  %v1952 = vadd.f32 %v1896, %v1950
  %v1953 = vadd.f32 %v1897, %v1950
  %v1954 = vadd.f32 %v1898, %v1950
  %v1955 = vadd.f32 %v1899, %v1950
  %v1956 = vadd.f32 %v1900, %v1950
  %v1957 = vadd.f32 %v1901, %v1950
  %v1958 = vadd.f32 %v1902, %v1950
  %v1959 = vadd.f32 %v1903, %v1950
  %v1960 = vadd.f32 %v1904, %v1950
  %v1961 = vadd.f32 %v1905, %v1950
  %v1962 = vadd.f32 %v1906, %v1950
  %v1963 = vadd.f32 %v1907, %v1950
  %v1964 = vadd.f32 %v1908, %v1950
  %v1965 = vadd.f32 %v1909, %v1950
  %v1966 = vadd.f32 %v1910, %v1950
  %v1967 = vadd.f32 %v1911, %v1950
  %v1968 = vadd.f32 %v1912, %v1950
  %v1969 = vadd.f32 %v1913, %v1950
  %v1970 = vadd.f32 %v1914, %v1950
  %v1971 = vadd.f32 %v1915, %v1950
  %v1972 = vadd.f32 %v1916, %v1950
  %v1973 = vadd.f32 %v1917, %v1950
  %v1974 = vadd.f32 %v1918, %v1950
  %v1975 = vadd.f32 %v1919, %v1950
  %v1976 = vadd.f32 %v1920, %v1950
  %v1977 = vadd.f32 %v1921, %v1950
  %v1978 = vadd.f32 %v1922, %v1950
  %v1979 = vadd.f32 %v1923, %v1950
  %v1980 = vadd.f32 %v1924, %v1950
  %v1981 = vadd.f32 %v1925, %v1950
  %v1982 = vadd.f32 %v1926, %v1950
  %v1983 = vadd.f32 %v1927, %v1950
  %v1984 = vadd.f32 %v1928, %v1950
  %v1985 = vadd.f32 %v1929, %v1950
  %v1986 = vadd.f32 %v1930, %v1950
  %v1987 = vadd.f32 %v1931, %v1950
  %v1988 = vadd.f32 %v1932, %v1950
  %v1989 = vadd.f32 %v1933, %v1950
  %v1990 = vadd.f32 %v1934, %v1950
  %v1991 = vadd.f32 %v1935, %v1950
  %v1992 = vadd.f32 %v1936, %v1950
  %v1993 = vadd.f32 %v1937, %v1950
  %v1994 = vadd.f32 %v1938, %v1950
  %v1995 = vadd.f32 %v1939, %v1950
  %v1996 = vadd.f32 %v1940, %v1950
  %v1997 = vadd.f32 %v1941, %v1950
  %v1998 = vadd.f32 %v1942, %v1950
  %v1999 = vadd.f32 %v1943, %v1950
  %v2000 = vadd.f32 %v1944, %v1950
  %v2001 = vmax.f32 %v1952, 0.0
  %v2002 = vmax.f32 %v1953, 0.0
  %v2003 = vmax.f32 %v1954, 0.0
  %v2004 = vmax.f32 %v1955, 0.0
  %v2005 = vmax.f32 %v1956, 0.0
  %v2006 = vmax.f32 %v1957, 0.0
  %v2007 = vmax.f32 %v1958, 0.0
  %v2008 = vmax.f32 %v1959, 0.0
  %v2009 = vmax.f32 %v1960, 0.0
  %v2010 = vmax.f32 %v1961, 0.0
  %v2011 = vmax.f32 %v1962, 0.0
  %v2012 = vmax.f32 %v1963, 0.0
  %v2013 = vmax.f32 %v1964, 0.0
  %v2014 = vmax.f32 %v1965, 0.0
  %v2015 = vmax.f32 %v1966, 0.0
  %v2016 = vmax.f32 %v1967, 0.0
  %v2017 = vmax.f32 %v1968, 0.0
  %v2018 = vmax.f32 %v1969, 0.0
  %v2019 = vmax.f32 %v1970, 0.0
  %v2020 = vmax.f32 %v1971, 0.0
  %v2021 = vmax.f32 %v1972, 0.0
  %v2022 = vmax.f32 %v1973, 0.0
  %v2023 = vmax.f32 %v1974, 0.0
  %v2024 = vmax.f32 %v1975, 0.0
  %v2025 = vmax.f32 %v1976, 0.0
  %v2026 = vmax.f32 %v1977, 0.0
  %v2027 = vmax.f32 %v1978, 0.0
  %v2028 = vmax.f32 %v1979, 0.0
  %v2029 = vmax.f32 %v1980, 0.0
  %v2030 = vmax.f32 %v1981, 0.0
  %v2031 = vmax.f32 %v1982, 0.0
  %v2032 = vmax.f32 %v1983, 0.0
  %v2033 = vmax.f32 %v1984, 0.0
  %v2034 = vmax.f32 %v1985, 0.0
  %v2035 = vmax.f32 %v1986, 0.0
  %v2036 = vmax.f32 %v1987, 0.0
  %v2037 = vmax.f32 %v1988, 0.0
  %v2038 = vmax.f32 %v1989, 0.0
  %v2039 = vmax.f32 %v1990, 0.0
  %v2040 = vmax.f32 %v1991, 0.0
  %v2041 = vmax.f32 %v1992, 0.0
  %v2042 = vmax.f32 %v1993, 0.0
  %v2043 = vmax.f32 %v1994, 0.0
  %v2044 = vmax.f32 %v1995, 0.0
  %v2045 = vmax.f32 %v1996, 0.0
  %v2046 = vmax.f32 %v1997, 0.0
  %v2047 = vmax.f32 %v1998, 0.0
  %v2048 = vmax.f32 %v1999, 0.0
  %v2049 = vmax.f32 %v2000, 0.0
  %v2050 = vpack.c.bf16 %v2002, %v2001
  %v2051 = vpack.c.bf16 %v2004, %v2003
  %v2052 = vpack.c.bf16 %v2006, %v2005
  %v2053 = vpack.c.bf16 %v2008, %v2007
  %v2054 = vpack.c.bf16 %v2010, %v2009
  %v2055 = vpack.c.bf16 %v2012, %v2011
  %v2056 = vpack.c.bf16 %v2014, %v2013
  %v2057 = vpack.c.bf16 %v2016, %v2015
  %v2058 = vpack.c.bf16 %v2018, %v2017
  %v2059 = vpack.c.bf16 %v2020, %v2019
  %v2060 = vpack.c.bf16 %v2022, %v2021
  %v2061 = vpack.c.bf16 %v2024, %v2023
  %v2062 = vpack.c.bf16 %v2026, %v2025
  %v2063 = vpack.c.bf16 %v2028, %v2027
  %v2064 = vpack.c.bf16 %v2030, %v2029
  %v2065 = vpack.c.bf16 %v2032, %v2031
  %v2066 = vpack.c.bf16 %v2034, %v2033
  %v2067 = vpack.c.bf16 %v2036, %v2035
  %v2068 = vpack.c.bf16 %v2038, %v2037
  %v2069 = vpack.c.bf16 %v2040, %v2039
  %v2070 = vpack.c.bf16 %v2042, %v2041
  %v2071 = vpack.c.bf16 %v2044, %v2043
  %v2072 = vpack.c.bf16 %v2046, %v2045
  %v2073 = vpack.c.bf16 %v2048, %v2047
  %v2074 = vpack.c.bf16 %v2049, %v2049
  %v2100 = vunpack.c.l.b16 %v2050
  %v2101 = vunpack.c.h.b16 %v2050
  %v2102 = vunpack.c.l.b16 %v2051
  %v2103 = vunpack.c.h.b16 %v2051
  %v2104 = vunpack.c.l.b16 %v2052
  %v2105 = vunpack.c.h.b16 %v2052
  %v2106 = vunpack.c.l.b16 %v2053
  %v2107 = vunpack.c.h.b16 %v2053
  %v2108 = vunpack.c.l.b16 %v2054
  %v2109 = vunpack.c.h.b16 %v2054
  %v2110 = vunpack.c.l.b16 %v2055
  %v2111 = vunpack.c.h.b16 %v2055
  %v2112 = vunpack.c.l.b16 %v2056
  %v2113 = vunpack.c.h.b16 %v2056
  %v2114 = vunpack.c.l.b16 %v2057
  %v2115 = vunpack.c.h.b16 %v2057
  %v2116 = vunpack.c.l.b16 %v2058
  %v2117 = vunpack.c.h.b16 %v2058
  %v2118 = vunpack.c.l.b16 %v2059
  %v2119 = vunpack.c.h.b16 %v2059
  %v2120 = vunpack.c.l.b16 %v2060
  %v2121 = vunpack.c.h.b16 %v2060
  %v2122 = vunpack.c.l.b16 %v2061
  %v2123 = vunpack.c.h.b16 %v2061
  %v2124 = vunpack.c.l.b16 %v2062
  %v2125 = vunpack.c.h.b16 %v2062
  %v2126 = vunpack.c.l.b16 %v2063
  %v2127 = vunpack.c.h.b16 %v2063
  %v2128 = vunpack.c.l.b16 %v2064
  %v2129 = vunpack.c.h.b16 %v2064
  %v2130 = vunpack.c.l.b16 %v2065
  %v2131 = vunpack.c.h.b16 %v2065
  %v2132 = vunpack.c.l.b16 %v2066
  %v2133 = vunpack.c.h.b16 %v2066
  %v2134 = vunpack.c.l.b16 %v2067
  %v2135 = vunpack.c.h.b16 %v2067
  %v2136 = vunpack.c.l.b16 %v2068
  %v2137 = vunpack.c.h.b16 %v2068
  %v2138 = vunpack.c.l.b16 %v2069
  %v2139 = vunpack.c.h.b16 %v2069
  %v2140 = vunpack.c.l.b16 %v2070
  %v2141 = vunpack.c.h.b16 %v2070
  %v2142 = vunpack.c.l.b16 %v2071
  %v2143 = vunpack.c.h.b16 %v2071
  %v2144 = vunpack.c.l.b16 %v2072
  %v2145 = vunpack.c.h.b16 %v2072
  %v2146 = vunpack.c.l.b16 %v2073
  %v2147 = vunpack.c.h.b16 %v2073
  %v2148 = vunpack.c.l.b16 %v2074
  %v2149 = vpack.c.b16 %v2100, %v2100
  %v2150 = vpack.c.b16 %v2101, %v2101
  %v2151 = vpack.c.b16 %v2102, %v2102
  %v2152 = vpack.c.b16 %v2103, %v2103
  %v2153 = vpack.c.b16 %v2104, %v2104
  %v2154 = vpack.c.b16 %v2105, %v2105
  %v2155 = vpack.c.b16 %v2106, %v2106
  %v2156 = vpack.c.b16 %v2107, %v2107
  %v2157 = vpack.c.b16 %v2108, %v2108
  %v2158 = vpack.c.b16 %v2109, %v2109
  %v2159 = vpack.c.b16 %v2110, %v2110
  %v2160 = vpack.c.b16 %v2111, %v2111
  %v2161 = vpack.c.b16 %v2112, %v2112
  %v2162 = vpack.c.b16 %v2113, %v2113
  %v2163 = vpack.c.b16 %v2114, %v2114
  %v2164 = vpack.c.b16 %v2115, %v2115
  %v2165 = vpack.c.b16 %v2116, %v2116
  %v2166 = vpack.c.b16 %v2117, %v2117
  %v2167 = vpack.c.b16 %v2118, %v2118
  %v2168 = vpack.c.b16 %v2119, %v2119
  %v2169 = vpack.c.b16 %v2120, %v2120
  %v2170 = vpack.c.b16 %v2121, %v2121
  %v2171 = vpack.c.b16 %v2122, %v2122
  %v2172 = vpack.c.b16 %v2123, %v2123
  %v2173 = vpack.c.b16 %v2124, %v2124
  %v2174 = vpack.c.b16 %v2125, %v2125
  %v2175 = vpack.c.b16 %v2126, %v2126
  %v2176 = vpack.c.b16 %v2127, %v2127
  %v2177 = vpack.c.b16 %v2128, %v2128
  %v2178 = vpack.c.b16 %v2129, %v2129
  %v2179 = vpack.c.b16 %v2130, %v2130
  %v2180 = vpack.c.b16 %v2131, %v2131
  %v2181 = vpack.c.b16 %v2132, %v2132
  %v2182 = vpack.c.b16 %v2133, %v2133
  %v2183 = vpack.c.b16 %v2134, %v2134
  %v2184 = vpack.c.b16 %v2135, %v2135
  %v2185 = vpack.c.b16 %v2136, %v2136
  %v2186 = vpack.c.b16 %v2137, %v2137
  %v2187 = vpack.c.b16 %v2138, %v2138
  %v2188 = vpack.c.b16 %v2139, %v2139
  %v2189 = vpack.c.b16 %v2140, %v2140
  %v2190 = vpack.c.b16 %v2141, %v2141
  %v2191 = vpack.c.b16 %v2142, %v2142
  %v2192 = vpack.c.b16 %v2143, %v2143
  %v2193 = vpack.c.b16 %v2144, %v2144
  %v2194 = vpack.c.b16 %v2145, %v2145
  %v2195 = vpack.c.b16 %v2146, %v2146
  %v2196 = vpack.c.b16 %v2147, %v2147
  %v2197 = vpack.c.b16 %v2148, %v2148
  %vm2247 = vcmask 125952
  %2248 = vst.msk [vmem:[%s3] sm:$0xf] %vm2247, %v2149
  %2249 = vst.msk [vmem:[%s3 + $0x4] sm:$0xf] %vm2247, %v2150
  %2250 = vst.msk [vmem:[%s3 + $0x8] sm:$0xf] %vm2247, %v2151
  %2251 = vst.msk [vmem:[%s3 + $0xc] sm:$0xf] %vm2247, %v2152
  %2252 = vst.msk [vmem:[%s3 + $0x10] sm:$0xf] %vm2247, %v2153
  %2253 = vst.msk [vmem:[%s3 + $0x14] sm:$0xf] %vm2247, %v2154
  %2254 = vst.msk [vmem:[%s3 + $0x18] sm:$0xf] %vm2247, %v2155
  %2255 = vst.msk [vmem:[%s3 + $0x1c] sm:$0xf] %vm2247, %v2156
  %2256 = vst.msk [vmem:[%s3 + $0x20] sm:$0xf] %vm2247, %v2157
  %2257 = vst.msk [vmem:[%s3 + $0x24] sm:$0xf] %vm2247, %v2158
  %2258 = vst.msk [vmem:[%s3 + $0x28] sm:$0xf] %vm2247, %v2159
  %2259 = vst.msk [vmem:[%s3 + $0x2c] sm:$0xf] %vm2247, %v2160
  %2260 = vst.msk [vmem:[%s3 + $0x30] sm:$0xf] %vm2247, %v2161
  %2261 = vst.msk [vmem:[%s3 + $0x34] sm:$0xf] %vm2247, %v2162
  %2262 = vst.msk [vmem:[%s3 + $0x38] sm:$0xf] %vm2247, %v2163
  %2263 = vst.msk [vmem:[%s3 + $0x3c] sm:$0xf] %vm2247, %v2164
  %2264 = vst.msk [vmem:[%s3 + $0x40] sm:$0xf] %vm2247, %v2165
  %2265 = vst.msk [vmem:[%s3 + $0x44] sm:$0xf] %vm2247, %v2166
  %2266 = vst.msk [vmem:[%s3 + $0x48] sm:$0xf] %vm2247, %v2167
  %2267 = vst.msk [vmem:[%s3 + $0x4c] sm:$0xf] %vm2247, %v2168
  %2268 = vst.msk [vmem:[%s3 + $0x50] sm:$0xf] %vm2247, %v2169
  %2269 = vst.msk [vmem:[%s3 + $0x54] sm:$0xf] %vm2247, %v2170
  %2270 = vst.msk [vmem:[%s3 + $0x58] sm:$0xf] %vm2247, %v2171
  %2271 = vst.msk [vmem:[%s3 + $0x5c] sm:$0xf] %vm2247, %v2172
  %2272 = vst.msk [vmem:[%s3 + $0x60] sm:$0xf] %vm2247, %v2173
  %2273 = vst.msk [vmem:[%s3 + $0x64] sm:$0xf] %vm2247, %v2174
  %2274 = vst.msk [vmem:[%s3 + $0x68] sm:$0xf] %vm2247, %v2175
  %2275 = vst.msk [vmem:[%s3 + $0x6c] sm:$0xf] %vm2247, %v2176
  %2276 = vst.msk [vmem:[%s3 + $0x70] sm:$0xf] %vm2247, %v2177
  %2277 = vst.msk [vmem:[%s3 + $0x74] sm:$0xf] %vm2247, %v2178
  %2278 = vst.msk [vmem:[%s3 + $0x78] sm:$0xf] %vm2247, %v2179
  %2279 = vst.msk [vmem:[%s3 + $0x7c] sm:$0xf] %vm2247, %v2180
  %2280 = vst.msk [vmem:[%s3 + $0x80] sm:$0xf] %vm2247, %v2181
  %2281 = vst.msk [vmem:[%s3 + $0x84] sm:$0xf] %vm2247, %v2182
  %2282 = vst.msk [vmem:[%s3 + $0x88] sm:$0xf] %vm2247, %v2183
  %2283 = vst.msk [vmem:[%s3 + $0x8c] sm:$0xf] %vm2247, %v2184
  %2284 = vst.msk [vmem:[%s3 + $0x90] sm:$0xf] %vm2247, %v2185
  %2285 = vst.msk [vmem:[%s3 + $0x94] sm:$0xf] %vm2247, %v2186
  %2286 = vst.msk [vmem:[%s3 + $0x98] sm:$0xf] %vm2247, %v2187
  %2287 = vst.msk [vmem:[%s3 + $0x9c] sm:$0xf] %vm2247, %v2188
  %2288 = vst.msk [vmem:[%s3 + $0xa0] sm:$0xf] %vm2247, %v2189
  %2289 = vst.msk [vmem:[%s3 + $0xa4] sm:$0xf] %vm2247, %v2190
  %2290 = vst.msk [vmem:[%s3 + $0xa8] sm:$0xf] %vm2247, %v2191
  %2291 = vst.msk [vmem:[%s3 + $0xac] sm:$0xf] %vm2247, %v2192
  %2292 = vst.msk [vmem:[%s3 + $0xb0] sm:$0xf] %vm2247, %v2193
  %2293 = vst.msk [vmem:[%s3 + $0xb4] sm:$0xf] %vm2247, %v2194
  %2294 = vst.msk [vmem:[%s3 + $0xb8] sm:$0xf] %vm2247, %v2195
  %2295 = vst.msk [vmem:[%s3 + $0xbc] sm:$0xf] %vm2247, %v2196
  %2296 = vst.msk [vmem:[%s3 + $0xc0] sm:$0xf] %vm2247, %v2197
  // Predicated region
  $region14: #{cnn1_small_forward.3} parent=0 // pred_check
    _
  $region15: #{cnn1_small_forward.3} parent=0 // pred_check_branch
    %2298 = sbr.rel (0) target = $region17
  $region16: #{cnn1_small_forward.3} parent=0 // pred_region
    _
  $region17: #{cnn1_small_forward.3} parent=0 // pred_fallthru
    _
  // Predicated region
  $region18: #{cnn1_small_forward.3} parent=0 // pred_check
    _
  $region19: #{cnn1_small_forward.3} parent=0 // pred_check_branch
    %2300 = sbr.rel (0) target = $region21
  $region20: #{cnn1_small_forward.3} parent=0 // pred_region
    _
  $region21: #{cnn1_small_forward.3} parent=0 // pred_fallthru
    _

// kernel: cnn1_small_forward.4
$region0: #{cnn1_small_forward.4}
  #allocation0 [shape = 'u32[]', space=smem, size = 0x4, offset = 0x4, fixed_abs, tag = 'smem constant byte address 0x4 - core index']
  #allocation1 [shape = 'u32[144,128]{1,0:T(1,128)}', space=vmem, size = 0x12000, scoped, tag = 'internal scratch']
  %s0 = inlined_call_operand.vmem [shape: bf16[4,50,400], index: 0, kind: input, shape index: {}]
  %s1 = inlined_call_operand.vmem [shape: bf16[400,32], index: 1, kind: input, shape index: {}]
  %s2 = inlined_call_operand.vmem [shape: f32[1,32], index: 2, kind: input, shape index: {}]
  %s3 = inlined_call_operand.vmem [shape: bf16[50,32], index: 3, kind: output, shape index: {}]
  %s4 = sld [smem:[#allocation0]]
  $region22: #{cnn1_small_forward.4} parent=0
    _
  %s6 = ssub.s32 1, %s4
  %s7 = scalar_select 0, %s6, %s4
  // Predicated region
  $region2: #{cnn1_small_forward.4} parent=0 // pred_check
    _
  $region3: #{cnn1_small_forward.4} parent=0 // pred_check_branch
    %9 = sbr.rel (0) target = $region5
  $region4: #{cnn1_small_forward.4} parent=0 // pred_region
    _
  $region5: #{cnn1_small_forward.4} parent=0 // pred_fallthru
    _
  // Predicated region
  $region6: #{cnn1_small_forward.4} parent=0 // pred_check
    _
  $region7: #{cnn1_small_forward.4} parent=0 // pred_check_branch
    %11 = sbr.rel (0) target = $region9
  $region8: #{cnn1_small_forward.4} parent=0 // pred_region
    _
  $region9: #{cnn1_small_forward.4} parent=0 // pred_fallthru
    _
  // Predicated region
  $region10: #{cnn1_small_forward.4} parent=0 // pred_check
    _
  $region11: #{cnn1_small_forward.4} parent=0 // pred_check_branch
    %13 = sbr.rel (0) target = $region13
  $region12: #{cnn1_small_forward.4} parent=0 // pred_region
    _
  $region13: #{cnn1_small_forward.4} parent=0 // pred_fallthru
    _
  %v15 = vld [vmem:[%s1] sm:$0xf]
  %v16 = vld [vmem:[%s1 + $0x4] sm:$0xf]
  %v17 = vld [vmem:[%s1 + $0x8] sm:$0xf]
  %v18 = vld [vmem:[%s1 + $0xc] sm:$0xf]
  %v19 = vld [vmem:[%s1 + $0x10] sm:$0xf]
  %v20 = vld [vmem:[%s1 + $0x14] sm:$0xf]
  %v21 = vld [vmem:[%s1 + $0x18] sm:$0xf]
  %v22 = vld [vmem:[%s1 + $0x1c] sm:$0xf]
  %v23 = vld [vmem:[%s1 + $0x20] sm:$0xf]
  %v24 = vld [vmem:[%s1 + $0x24] sm:$0xf]
  %v25 = vld [vmem:[%s1 + $0x28] sm:$0xf]
  %v26 = vld [vmem:[%s1 + $0x2c] sm:$0xf]
  %v27 = vld [vmem:[%s1 + $0x30] sm:$0xf]
  %v28 = vld [vmem:[%s1 + $0x34] sm:$0xf]
  %v29 = vld [vmem:[%s1 + $0x38] sm:$0xf]
  %v30 = vld [vmem:[%s1 + $0x3c] sm:$0xf]
  %v31 = vld [vmem:[%s1 + $0x40] sm:$0xf]
  %v32 = vld [vmem:[%s1 + $0x44] sm:$0xf]
  %v33 = vld [vmem:[%s1 + $0x48] sm:$0xf]
  %v34 = vld [vmem:[%s1 + $0x4c] sm:$0xf]
  %v35 = vld [vmem:[%s1 + $0x50] sm:$0xf]
  %v36 = vld [vmem:[%s1 + $0x54] sm:$0xf]
  %v37 = vld [vmem:[%s1 + $0x58] sm:$0xf]
  %v38 = vld [vmem:[%s1 + $0x5c] sm:$0xf]
  %v39 = vld [vmem:[%s1 + $0x60] sm:$0xf]
  %v40 = vld [vmem:[%s1 + $0x64] sm:$0xf]
  %v41 = vld [vmem:[%s1 + $0x68] sm:$0xf]
  %v42 = vld [vmem:[%s1 + $0x6c] sm:$0xf]
  %v43 = vld [vmem:[%s1 + $0x70] sm:$0xf]
  %v44 = vld [vmem:[%s1 + $0x74] sm:$0xf]
  %v45 = vld [vmem:[%s1 + $0x78] sm:$0xf]
  %v46 = vld [vmem:[%s1 + $0x7c] sm:$0xf]
  %v47 = vld [vmem:[%s1 + $0x80] sm:$0xf]
  %v48 = vld [vmem:[%s1 + $0x84] sm:$0xf]
  %v49 = vld [vmem:[%s1 + $0x88] sm:$0xf]
  %v50 = vld [vmem:[%s1 + $0x8c] sm:$0xf]
  %v51 = vld [vmem:[%s1 + $0x90] sm:$0xf]
  %v52 = vld [vmem:[%s1 + $0x94] sm:$0xf]
  %v53 = vld [vmem:[%s1 + $0x98] sm:$0xf]
  %v54 = vld [vmem:[%s1 + $0x9c] sm:$0xf]
  %v55 = vld [vmem:[%s1 + $0xa0] sm:$0xf]
  %v56 = vld [vmem:[%s1 + $0xa4] sm:$0xf]
  %v57 = vld [vmem:[%s1 + $0xa8] sm:$0xf]
  %v58 = vld [vmem:[%s1 + $0xac] sm:$0xf]
  %v59 = vld [vmem:[%s1 + $0xb0] sm:$0xf]
  %v60 = vld [vmem:[%s1 + $0xb4] sm:$0xf]
  %v61 = vld [vmem:[%s1 + $0xb8] sm:$0xf]
  %v62 = vld [vmem:[%s1 + $0xbc] sm:$0xf]
  %v63 = vld [vmem:[%s1 + $0xc0] sm:$0xf]
  %v64 = vld [vmem:[%s1 + $0xc4] sm:$0xf]
  %v65 = vld [vmem:[%s0] sm:$0xff]
  %v66 = vld [vmem:[%s0 + $0x8] sm:$0xff]
  %v67 = vld [vmem:[%s0 + $0x10] sm:$0xff]
  %v68 = vld [vmem:[%s0 + $0x18] sm:$0xff]
  %v69 = vld [vmem:[%s0 + $0x20] sm:$0xff]
  %v70 = vld [vmem:[%s0 + $0x28] sm:$0xff]
  %v71 = vld [vmem:[%s0 + $0x30] sm:$0xff]
  %v72 = vld [vmem:[%s0 + $0x38] sm:$0xff]
  %v73 = vld [vmem:[%s0 + $0x40] sm:$0xff]
  %v74 = vld [vmem:[%s0 + $0x48] sm:$0xff]
  %v75 = vld [vmem:[%s0 + $0x50] sm:$0xff]
  %v76 = vld [vmem:[%s0 + $0x58] sm:$0xff]
  %v77 = vld [vmem:[%s0 + $0x60] sm:$0x11]
  %v78 = vld [vmem:[%s0 + $0x68] sm:$0x11]
  %v93 = vunpack.c.l.b16 %v65
  %v94 = vunpack.c.h.b16 %v65
  %v95 = vunpack.c.l.b16 %v66
  %v96 = vunpack.c.h.b16 %v66
  %v97 = vunpack.c.l.b16 %v67
  %v98 = vunpack.c.h.b16 %v67
  %v99 = vunpack.c.l.b16 %v68
  %v100 = vunpack.c.h.b16 %v68
  %v101 = vunpack.c.l.b16 %v69
  %v102 = vunpack.c.h.b16 %v69
  %v103 = vunpack.c.l.b16 %v70
  %v104 = vunpack.c.h.b16 %v70
  %v105 = vunpack.c.l.b16 %v71
  %v106 = vunpack.c.h.b16 %v71
  %v107 = vunpack.c.l.b16 %v72
  %v108 = vunpack.c.h.b16 %v72
  %v109 = vunpack.c.l.b16 %v73
  %v110 = vunpack.c.h.b16 %v73
  %v111 = vunpack.c.l.b16 %v74
  %v112 = vunpack.c.h.b16 %v74
  %v113 = vunpack.c.l.b16 %v75
  %v114 = vunpack.c.h.b16 %v75
  %v115 = vunpack.c.l.b16 %v76
  %v116 = vunpack.c.h.b16 %v76
  %v117 = vunpack.c.l.b16 %v77
  %v118 = vunpack.c.h.b16 %v77
  %v119 = vunpack.c.l.b16 %v78
  %v120 = vunpack.c.h.b16 %v78
  %v121 = vpack.c.b16 %v97, %v93
  %v122 = vpack.c.b16 %v98, %v94
  %v123 = vpack.c.b16 %v99, %v95
  %v124 = vpack.c.b16 %v100, %v96
  %v125 = vpack.c.b16 %v105, %v101
  %v126 = vpack.c.b16 %v106, %v102
  %v127 = vpack.c.b16 %v107, %v103
  %v128 = vpack.c.b16 %v108, %v104
  %v129 = vpack.c.b16 %v113, %v109
  %v130 = vpack.c.b16 %v114, %v110
  %v131 = vpack.c.b16 %v115, %v111
  %v132 = vpack.c.b16 %v116, %v112
  %v133 = vpack.c.b16 %v117, %v117
  %v134 = vpack.c.b16 %v118, %v118
  %v135 = vpack.c.b16 %v119, %v119
  %v136 = vpack.c.b16 %v120, %v120
  %v199 = vunpack.c.l.b16 %v15
  %v200 = vunpack.c.l.b16 %v16
  %v201 = vunpack.c.l.b16 %v17
  %v202 = vunpack.c.l.b16 %v18
  %v203 = vunpack.c.l.b16 %v19
  %v204 = vunpack.c.l.b16 %v20
  %v205 = vunpack.c.l.b16 %v21
  %v206 = vunpack.c.l.b16 %v22
  %v207 = vunpack.c.l.b16 %v23
  %v208 = vunpack.c.l.b16 %v24
  %v209 = vunpack.c.l.b16 %v25
  %v210 = vunpack.c.l.b16 %v26
  %v211 = vunpack.c.l.b16 %v27
  %v212 = vunpack.c.l.b16 %v28
  %v213 = vunpack.c.l.b16 %v29
  %v214 = vunpack.c.l.b16 %v30
  %v215 = vunpack.c.l.b16 %v31
  %v216 = vunpack.c.l.b16 %v32
  %v217 = vunpack.c.l.b16 %v33
  %v218 = vunpack.c.l.b16 %v34
  %v219 = vunpack.c.l.b16 %v35
  %v220 = vunpack.c.l.b16 %v36
  %v221 = vunpack.c.l.b16 %v37
  %v222 = vunpack.c.l.b16 %v38
  %v223 = vunpack.c.l.b16 %v39
  %v224 = vunpack.c.l.b16 %v40
  %v225 = vunpack.c.l.b16 %v41
  %v226 = vunpack.c.l.b16 %v42
  %v227 = vunpack.c.l.b16 %v43
  %v228 = vunpack.c.l.b16 %v44
  %v229 = vunpack.c.l.b16 %v45
  %v230 = vunpack.c.l.b16 %v46
  %v231 = vunpack.c.l.b16 %v47
  %v232 = vunpack.c.l.b16 %v48
  %v233 = vunpack.c.l.b16 %v49
  %v234 = vunpack.c.l.b16 %v50
  %v235 = vunpack.c.l.b16 %v51
  %v236 = vunpack.c.l.b16 %v52
  %v237 = vunpack.c.l.b16 %v53
  %v238 = vunpack.c.l.b16 %v54
  %v239 = vunpack.c.l.b16 %v55
  %v240 = vunpack.c.l.b16 %v56
  %v241 = vunpack.c.l.b16 %v57
  %v242 = vunpack.c.l.b16 %v58
  %v243 = vunpack.c.l.b16 %v59
  %v244 = vunpack.c.l.b16 %v60
  %v245 = vunpack.c.l.b16 %v61
  %v246 = vunpack.c.l.b16 %v62
  %v247 = vunpack.c.l.b16 %v63
  %v248 = vunpack.c.l.b16 %v64
  %v249 = vpack.c.b16 %v200, %v199
  %v250 = vpack.c.b16 %v202, %v201
  %v251 = vpack.c.b16 %v204, %v203
  %v252 = vpack.c.b16 %v206, %v205
  %v253 = vpack.c.b16 %v208, %v207
  %v254 = vpack.c.b16 %v210, %v209
  %v255 = vpack.c.b16 %v212, %v211
  %v256 = vpack.c.b16 %v214, %v213
  %v257 = vpack.c.b16 %v216, %v215
  %v258 = vpack.c.b16 %v218, %v217
  %v259 = vpack.c.b16 %v220, %v219
  %v260 = vpack.c.b16 %v222, %v221
  %v261 = vpack.c.b16 %v224, %v223
  %v262 = vpack.c.b16 %v226, %v225
  %v263 = vpack.c.b16 %v228, %v227
  %v264 = vpack.c.b16 %v230, %v229
  %v265 = vpack.c.b16 %v232, %v231
  %v266 = vpack.c.b16 %v234, %v233
  %v267 = vpack.c.b16 %v236, %v235
  %v268 = vpack.c.b16 %v238, %v237
  %v269 = vpack.c.b16 %v240, %v239
  %v270 = vpack.c.b16 %v242, %v241
  %v271 = vpack.c.b16 %v244, %v243
  %v272 = vpack.c.b16 %v246, %v245
  %v273 = vpack.c.b16 %v248, %v247
  %vm299 = vcmask 130048
  %v301 = vsel %vm299, %v124, 0
  %v304 = vsel %vm299, %v128, 0
  %v307 = vsel %vm299, %v132, 0
  %v310 = vsel %vm299, %v136, 0
  %312 = vmatprep.subr.bf16.mxu0 0
  %313 = vmatpush1.bf16.msra.mxu0 %v249
  %314 = vmatprep.subr.bf16.mxu0 0
  %315 = vmatpush1.bf16.msra.mxu0 %v250
  %316 = vmatprep.subr.bf16.mxu0 0
  %317 = vmatpush1.bf16.msra.mxu0 %v251
  %318 = vmatprep.subr.bf16.mxu0 0
  %319 = vmatpush1.bf16.msra.mxu0 %v252
  %320 = vmatprep.subr.bf16.mxu0 0
  %321 = vmatpush1.bf16.msra.mxu0 %v253
  %322 = vmatprep.subr.bf16.mxu0 0
  %323 = vmatpush1.bf16.msra.mxu0 %v254
  %324 = vmatprep.subr.bf16.mxu0 0
  %325 = vmatpush1.bf16.msra.mxu0 %v255
  %326 = vmatprep.subr.bf16.mxu0 0
  %327 = vmatpush1.bf16.msra.mxu0 %v256
  %328 = vmatprep.subr.bf16.mxu0 0
  %329 = vmatpush1.bf16.msra.mxu0 %v257
  %330 = vmatprep.subr.bf16.mxu0 0
  %331 = vmatpush1.bf16.msra.mxu0 %v258
  %332 = vmatprep.subr.bf16.mxu0 0
  %333 = vmatpush1.bf16.msra.mxu0 %v259
  %334 = vmatprep.subr.bf16.mxu0 0
  %335 = vmatpush1.bf16.msra.mxu0 %v260
  %336 = vmatprep.subr.bf16.mxu0 0
  %337 = vmatpush1.bf16.msra.mxu0 %v261
  %338 = vmatprep.subr.bf16.mxu0 0
  %339 = vmatpush1.bf16.msra.mxu0 %v262
  %340 = vmatprep.subr.bf16.mxu0 0
  %341 = vmatpush1.bf16.msra.mxu0 %v263
  %342 = vmatprep.subr.bf16.mxu0 0
  %343 = vmatpush1.bf16.msra.mxu0 %v264
  %344 = vmatprep.mubr.bf16.mxu0 %v122
  %345 = vmatmul.mubr.bf16.gmra.mrb[0].mxu0 %v121
  %v346 = vpop.f32.mrb[0].mxu0
  %v347 = vadd.f32 0.0, %v346
  %v348 = vpop.f32.mrb[0].mxu0
  %v349 = vpop.f32.mrb[0].mxu0
  %v350 = vadd.f32 0.0, %v349
  %v351 = vpop.f32.mrb[0].mxu0
  %352 = vmatprep.mubr.bf16.mxu0 %v126
  %353 = vmatmul.mubr.bf16.gmra.mrb[0].mxu0 %v125
  %v354 = vpop.f32.mrb[0].mxu0
  %v355 = vadd.f32 0.0, %v354
  %v356 = vpop.f32.mrb[0].mxu0
  %v357 = vpop.f32.mrb[0].mxu0
  %v358 = vadd.f32 0.0, %v357
  %v359 = vpop.f32.mrb[0].mxu0
  %360 = vmatprep.mubr.bf16.mxu0 %v130
  %361 = vmatmul.mubr.bf16.gmra.mrb[0].mxu0 %v129
  %v362 = vpop.f32.mrb[0].mxu0
  %v363 = vadd.f32 0.0, %v362
  %v364 = vpop.f32.mrb[0].mxu0
  %v365 = vpop.f32.mrb[0].mxu0
  %v366 = vadd.f32 0.0, %v365
  %v367 = vpop.f32.mrb[0].mxu0
  %368 = vmatprep.mubr.bf16.mxu0 %v134
  %369 = vmatmul.mubr.bf16.gmra.mrb[0].mxu0 %v133
  %v370 = vpop.f32.mrb[0].mxu0
  %v371 = vadd.f32 0.0, %v370
  %v372 = vpop.f32.mrb[0].mxu0
  %v373 = vpop.f32.mrb[0].mxu0
  %v374 = vpop.f32.mrb[0].mxu0
  %375 = vdwg.mxu0
  %376 = vmatprep.subr.bf16.mxu0 0
  %377 = vmatpush1.bf16.msra.mxu0 %v265
  %378 = vmatprep.subr.bf16.mxu0 0
  %379 = vmatpush1.bf16.msra.mxu0 %v266
  %380 = vmatprep.subr.bf16.mxu0 0
  %381 = vmatpush1.bf16.msra.mxu0 %v267
  %382 = vmatprep.subr.bf16.mxu0 0
  %383 = vmatpush1.bf16.msra.mxu0 %v268
  %384 = vmatprep.subr.bf16.mxu0 0
  %385 = vmatpush1.bf16.msra.mxu0 %v269
  %386 = vmatprep.subr.bf16.mxu0 0
  %387 = vmatpush1.bf16.msra.mxu0 %v270
  %388 = vmatprep.subr.bf16.mxu0 0
  %389 = vmatpush1.bf16.msra.mxu0 %v271
  %390 = vmatprep.subr.bf16.mxu0 0
  %391 = vmatpush1.bf16.msra.mxu0 %v272
  %392 = vmatprep.subr.bf16.mxu0 0
  %393 = vmatpush1.bf16.msra.mxu0 %v273
  %394 = vmatprep.subr.bf16.mxu0 0
  %395 = vmatpush1.bf16.msra.mxu0 0
  %396 = vmatprep.subr.bf16.mxu0 0
  %397 = vmatpush1.bf16.msra.mxu0 0
  %398 = vmatprep.subr.bf16.mxu0 0
  %399 = vmatpush1.bf16.msra.mxu0 0
  %400 = vmatprep.subr.bf16.mxu0 0
  %401 = vmatpush1.bf16.msra.mxu0 0
  %402 = vmatprep.subr.bf16.mxu0 0
  %403 = vmatpush1.bf16.msra.mxu0 0
  %404 = vmatprep.subr.bf16.mxu0 0
  %405 = vmatpush1.bf16.msra.mxu0 0
  %406 = vmatprep.subr.bf16.mxu0 0
  %407 = vmatpush1.bf16.msra.mxu0 0
  %408 = vmatprep.mubr.bf16.mxu0 %v301
  %409 = vmatmul.mubr.bf16.gmra.mrb[0].mxu0 %v123
  %v410 = vpop.f32.mrb[0].mxu0
  %v411 = vadd.f32 %v347, %v410
  %v412 = vpop.f32.mrb[0].mxu0
  %v413 = vpop.f32.mrb[0].mxu0
  %v414 = vadd.f32 %v350, %v413
  %v415 = vpop.f32.mrb[0].mxu0
  %416 = vmatprep.mubr.bf16.mxu0 %v304
  %417 = vmatmul.mubr.bf16.gmra.mrb[0].mxu0 %v127
  %v418 = vpop.f32.mrb[0].mxu0
  %v419 = vadd.f32 %v355, %v418
  %v420 = vpop.f32.mrb[0].mxu0
  %v421 = vpop.f32.mrb[0].mxu0
  %v422 = vadd.f32 %v358, %v421
  %v423 = vpop.f32.mrb[0].mxu0
  %424 = vmatprep.mubr.bf16.mxu0 %v307
  %425 = vmatmul.mubr.bf16.gmra.mrb[0].mxu0 %v131
  %v426 = vpop.f32.mrb[0].mxu0
  %v427 = vadd.f32 %v363, %v426
  %v428 = vpop.f32.mrb[0].mxu0
  %v429 = vpop.f32.mrb[0].mxu0
  %v430 = vadd.f32 %v366, %v429
  %v431 = vpop.f32.mrb[0].mxu0
  %432 = vmatprep.mubr.bf16.mxu0 %v310
  %433 = vmatmul.mubr.bf16.gmra.mrb[0].mxu0 %v135
  %v434 = vpop.f32.mrb[0].mxu0
  %v435 = vadd.f32 %v371, %v434
  %v436 = vpop.f32.mrb[0].mxu0
  %v437 = vpop.f32.mrb[0].mxu0
  %v438 = vpop.f32.mrb[0].mxu0
  %439 = vdwg.mxu0
  %s440 = scalar_lea.vmem %s0, 112
  %v441 = vld [vmem:[%s440] sm:$0xff]
  %v442 = vld [vmem:[%s440 + $0x8] sm:$0xff]
  %v443 = vld [vmem:[%s440 + $0x10] sm:$0xff]
  %v444 = vld [vmem:[%s440 + $0x18] sm:$0xff]
  %v445 = vld [vmem:[%s440 + $0x20] sm:$0xff]
  %v446 = vld [vmem:[%s440 + $0x28] sm:$0xff]
  %v447 = vld [vmem:[%s440 + $0x30] sm:$0xff]
  %v448 = vld [vmem:[%s440 + $0x38] sm:$0xff]
  %v449 = vld [vmem:[%s440 + $0x40] sm:$0xff]
  %v450 = vld [vmem:[%s440 + $0x48] sm:$0xff]
  %v451 = vld [vmem:[%s440 + $0x50] sm:$0xff]
  %v452 = vld [vmem:[%s440 + $0x58] sm:$0xff]
  %v453 = vld [vmem:[%s440 + $0x60] sm:$0x11]
  %v454 = vld [vmem:[%s440 + $0x68] sm:$0x11]
  %v469 = vunpack.c.l.b16 %v441
  %v470 = vunpack.c.h.b16 %v441
  %v471 = vunpack.c.l.b16 %v442
  %v472 = vunpack.c.h.b16 %v442
  %v473 = vunpack.c.l.b16 %v443
  %v474 = vunpack.c.h.b16 %v443
  %v475 = vunpack.c.l.b16 %v444
  %v476 = vunpack.c.h.b16 %v444
  %v477 = vunpack.c.l.b16 %v445
  %v478 = vunpack.c.h.b16 %v445
  %v479 = vunpack.c.l.b16 %v446
  %v480 = vunpack.c.h.b16 %v446
  %v481 = vunpack.c.l.b16 %v447
  %v482 = vunpack.c.h.b16 %v447
  %v483 = vunpack.c.l.b16 %v448
  %v484 = vunpack.c.h.b16 %v448
  %v485 = vunpack.c.l.b16 %v449
  %v486 = vunpack.c.h.b16 %v449
  %v487 = vunpack.c.l.b16 %v450
  %v488 = vunpack.c.h.b16 %v450
  %v489 = vunpack.c.l.b16 %v451
  %v490 = vunpack.c.h.b16 %v451
  %v491 = vunpack.c.l.b16 %v452
  %v492 = vunpack.c.h.b16 %v452
  %v493 = vunpack.c.l.b16 %v453
  %v494 = vunpack.c.h.b16 %v453
  %v495 = vunpack.c.l.b16 %v454
  %v496 = vunpack.c.h.b16 %v454
  %v497 = vpack.c.b16 %v473, %v469
  %v498 = vpack.c.b16 %v474, %v470
  %v499 = vpack.c.b16 %v475, %v471
  %v500 = vpack.c.b16 %v476, %v472
  %v501 = vpack.c.b16 %v481, %v477
  %v502 = vpack.c.b16 %v482, %v478
  %v503 = vpack.c.b16 %v483, %v479
  %v504 = vpack.c.b16 %v484, %v480
  %v505 = vpack.c.b16 %v489, %v485
  %v506 = vpack.c.b16 %v490, %v486
  %v507 = vpack.c.b16 %v491, %v487
  %v508 = vpack.c.b16 %v492, %v488
  %v509 = vpack.c.b16 %v493, %v493
  %v510 = vpack.c.b16 %v494, %v494
  %v511 = vpack.c.b16 %v495, %v495
  %v512 = vpack.c.b16 %v496, %v496
  %v526 = vsel %vm299, %v500, 0
  %v529 = vsel %vm299, %v504, 0
  %v532 = vsel %vm299, %v508, 0
  %v535 = vsel %vm299, %v512, 0
  %537 = vmatprep.subr.bf16.mxu0 0
  %538 = vmatpush1.bf16.msra.mxu0 %v249
  %539 = vmatprep.subr.bf16.mxu0 0
  %540 = vmatpush1.bf16.msra.mxu0 %v250
  %541 = vmatprep.subr.bf16.mxu0 0
  %542 = vmatpush1.bf16.msra.mxu0 %v251
  %543 = vmatprep.subr.bf16.mxu0 0
  %544 = vmatpush1.bf16.msra.mxu0 %v252
  %545 = vmatprep.subr.bf16.mxu0 0
  %546 = vmatpush1.bf16.msra.mxu0 %v253
  %547 = vmatprep.subr.bf16.mxu0 0
  %548 = vmatpush1.bf16.msra.mxu0 %v254
  %549 = vmatprep.subr.bf16.mxu0 0
  %550 = vmatpush1.bf16.msra.mxu0 %v255
  %551 = vmatprep.subr.bf16.mxu0 0
  %552 = vmatpush1.bf16.msra.mxu0 %v256
  %553 = vmatprep.subr.bf16.mxu0 0
  %554 = vmatpush1.bf16.msra.mxu0 %v257
  %555 = vmatprep.subr.bf16.mxu0 0
  %556 = vmatpush1.bf16.msra.mxu0 %v258
  %557 = vmatprep.subr.bf16.mxu0 0
  %558 = vmatpush1.bf16.msra.mxu0 %v259
  %559 = vmatprep.subr.bf16.mxu0 0
  %560 = vmatpush1.bf16.msra.mxu0 %v260
  %561 = vmatprep.subr.bf16.mxu0 0
  %562 = vmatpush1.bf16.msra.mxu0 %v261
  %563 = vmatprep.subr.bf16.mxu0 0
  %564 = vmatpush1.bf16.msra.mxu0 %v262
  %565 = vmatprep.subr.bf16.mxu0 0
  %566 = vmatpush1.bf16.msra.mxu0 %v263
  %567 = vmatprep.subr.bf16.mxu0 0
  %568 = vmatpush1.bf16.msra.mxu0 %v264
  %569 = vmatprep.mubr.bf16.mxu0 %v498
  %570 = vmatmul.mubr.bf16.gmra.mrb[0].mxu0 %v497
  %v571 = vpop.f32.mrb[0].mxu0
  %v572 = vadd.f32 0.0, %v571
  %v573 = vpop.f32.mrb[0].mxu0
  %v574 = vpop.f32.mrb[0].mxu0
  %v575 = vadd.f32 0.0, %v574
  %v576 = vpop.f32.mrb[0].mxu0
  %577 = vmatprep.mubr.bf16.mxu0 %v502
  %578 = vmatmul.mubr.bf16.gmra.mrb[0].mxu0 %v501
  %v579 = vpop.f32.mrb[0].mxu0
  %v580 = vadd.f32 0.0, %v579
  %v581 = vpop.f32.mrb[0].mxu0
  %v582 = vpop.f32.mrb[0].mxu0
  %v583 = vadd.f32 0.0, %v582
  %v584 = vpop.f32.mrb[0].mxu0
  %585 = vmatprep.mubr.bf16.mxu0 %v506
  %586 = vmatmul.mubr.bf16.gmra.mrb[0].mxu0 %v505
  %v587 = vpop.f32.mrb[0].mxu0
  %v588 = vadd.f32 0.0, %v587
  %v589 = vpop.f32.mrb[0].mxu0
  %v590 = vpop.f32.mrb[0].mxu0
  %v591 = vadd.f32 0.0, %v590
  %v592 = vpop.f32.mrb[0].mxu0
  %593 = vmatprep.mubr.bf16.mxu0 %v510
  %594 = vmatmul.mubr.bf16.gmra.mrb[0].mxu0 %v509
  %v595 = vpop.f32.mrb[0].mxu0
  %v596 = vadd.f32 0.0, %v595
  %v597 = vpop.f32.mrb[0].mxu0
  %v598 = vpop.f32.mrb[0].mxu0
  %v599 = vpop.f32.mrb[0].mxu0
  %600 = vdwg.mxu0
  %601 = vmatprep.subr.bf16.mxu0 0
  %602 = vmatpush1.bf16.msra.mxu0 %v265
  %603 = vmatprep.subr.bf16.mxu0 0
  %604 = vmatpush1.bf16.msra.mxu0 %v266
  %605 = vmatprep.subr.bf16.mxu0 0
  %606 = vmatpush1.bf16.msra.mxu0 %v267
  %607 = vmatprep.subr.bf16.mxu0 0
  %608 = vmatpush1.bf16.msra.mxu0 %v268
  %609 = vmatprep.subr.bf16.mxu0 0
  %610 = vmatpush1.bf16.msra.mxu0 %v269
  %611 = vmatprep.subr.bf16.mxu0 0
  %612 = vmatpush1.bf16.msra.mxu0 %v270
  %613 = vmatprep.subr.bf16.mxu0 0
  %614 = vmatpush1.bf16.msra.mxu0 %v271
  %615 = vmatprep.subr.bf16.mxu0 0
  %616 = vmatpush1.bf16.msra.mxu0 %v272
  %617 = vmatprep.subr.bf16.mxu0 0
  %618 = vmatpush1.bf16.msra.mxu0 %v273
  %619 = vmatprep.subr.bf16.mxu0 0
  %620 = vmatpush1.bf16.msra.mxu0 0
  %621 = vmatprep.subr.bf16.mxu0 0
  %622 = vmatpush1.bf16.msra.mxu0 0
  %623 = vmatprep.subr.bf16.mxu0 0
  %624 = vmatpush1.bf16.msra.mxu0 0
  %625 = vmatprep.subr.bf16.mxu0 0
  %626 = vmatpush1.bf16.msra.mxu0 0
  %627 = vmatprep.subr.bf16.mxu0 0
  %628 = vmatpush1.bf16.msra.mxu0 0
  %629 = vmatprep.subr.bf16.mxu0 0
  %630 = vmatpush1.bf16.msra.mxu0 0
  %631 = vmatprep.subr.bf16.mxu0 0
  %632 = vmatpush1.bf16.msra.mxu0 0
  %633 = vmatprep.mubr.bf16.mxu0 %v526
  %634 = vmatmul.mubr.bf16.gmra.mrb[0].mxu0 %v499
  %v635 = vpop.f32.mrb[0].mxu0
  %v636 = vadd.f32 %v572, %v635
  %v637 = vpop.f32.mrb[0].mxu0
  %v638 = vpop.f32.mrb[0].mxu0
  %v639 = vadd.f32 %v575, %v638
  %v640 = vpop.f32.mrb[0].mxu0
  %641 = vmatprep.mubr.bf16.mxu0 %v529
  %642 = vmatmul.mubr.bf16.gmra.mrb[0].mxu0 %v503
  %v643 = vpop.f32.mrb[0].mxu0
  %v644 = vadd.f32 %v580, %v643
  %v645 = vpop.f32.mrb[0].mxu0
  %v646 = vpop.f32.mrb[0].mxu0
  %v647 = vadd.f32 %v583, %v646
  %v648 = vpop.f32.mrb[0].mxu0
  %649 = vmatprep.mubr.bf16.mxu0 %v532
  %650 = vmatmul.mubr.bf16.gmra.mrb[0].mxu0 %v507
  %v651 = vpop.f32.mrb[0].mxu0
  %v652 = vadd.f32 %v588, %v651
  %v653 = vpop.f32.mrb[0].mxu0
  %v654 = vpop.f32.mrb[0].mxu0
  %v655 = vadd.f32 %v591, %v654
  %v656 = vpop.f32.mrb[0].mxu0
  %657 = vmatprep.mubr.bf16.mxu0 %v535
  %658 = vmatmul.mubr.bf16.gmra.mrb[0].mxu0 %v511
  %v659 = vpop.f32.mrb[0].mxu0
  %v660 = vadd.f32 %v596, %v659
  %v661 = vpop.f32.mrb[0].mxu0
  %v662 = vpop.f32.mrb[0].mxu0
  %v663 = vpop.f32.mrb[0].mxu0
  %664 = vdwg.mxu0
  %v665 = vmax.f32 %v411, %v636
  %v666 = vmax.f32 %v414, %v639
  %v667 = vmax.f32 %v419, %v644
  %v668 = vmax.f32 %v422, %v647
  %v669 = vmax.f32 %v427, %v652
  %v670 = vmax.f32 %v430, %v655
  %v671 = vmax.f32 %v435, %v660
  %s672 = scalar_lea.vmem %s0, 224
  %v673 = vld [vmem:[%s672] sm:$0xff]
  %v674 = vld [vmem:[%s672 + $0x8] sm:$0xff]
  %v675 = vld [vmem:[%s672 + $0x10] sm:$0xff]
  %v676 = vld [vmem:[%s672 + $0x18] sm:$0xff]
  %v677 = vld [vmem:[%s672 + $0x20] sm:$0xff]
  %v678 = vld [vmem:[%s672 + $0x28] sm:$0xff]
  %v679 = vld [vmem:[%s672 + $0x30] sm:$0xff]
  %v680 = vld [vmem:[%s672 + $0x38] sm:$0xff]
  %v681 = vld [vmem:[%s672 + $0x40] sm:$0xff]
  %v682 = vld [vmem:[%s672 + $0x48] sm:$0xff]
  %v683 = vld [vmem:[%s672 + $0x50] sm:$0xff]
  %v684 = vld [vmem:[%s672 + $0x58] sm:$0xff]
  %v685 = vld [vmem:[%s672 + $0x60] sm:$0x11]
  %v686 = vld [vmem:[%s672 + $0x68] sm:$0x11]
  %v701 = vunpack.c.l.b16 %v673
  %v702 = vunpack.c.h.b16 %v673
  %v703 = vunpack.c.l.b16 %v674
  %v704 = vunpack.c.h.b16 %v674
  %v705 = vunpack.c.l.b16 %v675
  %v706 = vunpack.c.h.b16 %v675
  %v707 = vunpack.c.l.b16 %v676
  %v708 = vunpack.c.h.b16 %v676
  %v709 = vunpack.c.l.b16 %v677
  %v710 = vunpack.c.h.b16 %v677
  %v711 = vunpack.c.l.b16 %v678
  %v712 = vunpack.c.h.b16 %v678
  %v713 = vunpack.c.l.b16 %v679
  %v714 = vunpack.c.h.b16 %v679
  %v715 = vunpack.c.l.b16 %v680
  %v716 = vunpack.c.h.b16 %v680
  %v717 = vunpack.c.l.b16 %v681
  %v718 = vunpack.c.h.b16 %v681
  %v719 = vunpack.c.l.b16 %v682
  %v720 = vunpack.c.h.b16 %v682
  %v721 = vunpack.c.l.b16 %v683
  %v722 = vunpack.c.h.b16 %v683
  %v723 = vunpack.c.l.b16 %v684
  %v724 = vunpack.c.h.b16 %v684
  %v725 = vunpack.c.l.b16 %v685
  %v726 = vunpack.c.h.b16 %v685
  %v727 = vunpack.c.l.b16 %v686
  %v728 = vunpack.c.h.b16 %v686
  %v729 = vpack.c.b16 %v705, %v701
  %v730 = vpack.c.b16 %v706, %v702
  %v731 = vpack.c.b16 %v707, %v703
  %v732 = vpack.c.b16 %v708, %v704
  %v733 = vpack.c.b16 %v713, %v709
  %v734 = vpack.c.b16 %v714, %v710
  %v735 = vpack.c.b16 %v715, %v711
  %v736 = vpack.c.b16 %v716, %v712
  %v737 = vpack.c.b16 %v721, %v717
  %v738 = vpack.c.b16 %v722, %v718
  %v739 = vpack.c.b16 %v723, %v719
  %v740 = vpack.c.b16 %v724, %v720
  %v741 = vpack.c.b16 %v725, %v725
  %v742 = vpack.c.b16 %v726, %v726
  %v743 = vpack.c.b16 %v727, %v727
  %v744 = vpack.c.b16 %v728, %v728
  %v758 = vsel %vm299, %v732, 0
  %v761 = vsel %vm299, %v736, 0
  %v764 = vsel %vm299, %v740, 0
  %v767 = vsel %vm299, %v744, 0
  %769 = vmatprep.subr.bf16.mxu0 0
  %770 = vmatpush1.bf16.msra.mxu0 %v249
  %771 = vmatprep.subr.bf16.mxu0 0
  %772 = vmatpush1.bf16.msra.mxu0 %v250
  %773 = vmatprep.subr.bf16.mxu0 0
  %774 = vmatpush1.bf16.msra.mxu0 %v251
  %775 = vmatprep.subr.bf16.mxu0 0
  %776 = vmatpush1.bf16.msra.mxu0 %v252
  %777 = vmatprep.subr.bf16.mxu0 0
  %778 = vmatpush1.bf16.msra.mxu0 %v253
  %779 = vmatprep.subr.bf16.mxu0 0
  %780 = vmatpush1.bf16.msra.mxu0 %v254
  %781 = vmatprep.subr.bf16.mxu0 0
  %782 = vmatpush1.bf16.msra.mxu0 %v255
  %783 = vmatprep.subr.bf16.mxu0 0
  %784 = vmatpush1.bf16.msra.mxu0 %v256
  %785 = vmatprep.subr.bf16.mxu0 0
  %786 = vmatpush1.bf16.msra.mxu0 %v257
  %787 = vmatprep.subr.bf16.mxu0 0
  %788 = vmatpush1.bf16.msra.mxu0 %v258
  %789 = vmatprep.subr.bf16.mxu0 0
  %790 = vmatpush1.bf16.msra.mxu0 %v259
  %791 = vmatprep.subr.bf16.mxu0 0
  %792 = vmatpush1.bf16.msra.mxu0 %v260
  %793 = vmatprep.subr.bf16.mxu0 0
  %794 = vmatpush1.bf16.msra.mxu0 %v261
  %795 = vmatprep.subr.bf16.mxu0 0
  %796 = vmatpush1.bf16.msra.mxu0 %v262
  %797 = vmatprep.subr.bf16.mxu0 0
  %798 = vmatpush1.bf16.msra.mxu0 %v263
  %799 = vmatprep.subr.bf16.mxu0 0
  %800 = vmatpush1.bf16.msra.mxu0 %v264
  %801 = vmatprep.mubr.bf16.mxu0 %v730
  %802 = vmatmul.mubr.bf16.gmra.mrb[0].mxu0 %v729
  %v803 = vpop.f32.mrb[0].mxu0
  %v804 = vadd.f32 0.0, %v803
  %v805 = vpop.f32.mrb[0].mxu0
  %v806 = vpop.f32.mrb[0].mxu0
  %v807 = vadd.f32 0.0, %v806
  %v808 = vpop.f32.mrb[0].mxu0
  %809 = vmatprep.mubr.bf16.mxu0 %v734
  %810 = vmatmul.mubr.bf16.gmra.mrb[0].mxu0 %v733
  %v811 = vpop.f32.mrb[0].mxu0
  %v812 = vadd.f32 0.0, %v811
  %v813 = vpop.f32.mrb[0].mxu0
  %v814 = vpop.f32.mrb[0].mxu0
  %v815 = vadd.f32 0.0, %v814
  %v816 = vpop.f32.mrb[0].mxu0
  %817 = vmatprep.mubr.bf16.mxu0 %v738
  %818 = vmatmul.mubr.bf16.gmra.mrb[0].mxu0 %v737
  %v819 = vpop.f32.mrb[0].mxu0
  %v820 = vadd.f32 0.0, %v819
  %v821 = vpop.f32.mrb[0].mxu0
  %v822 = vpop.f32.mrb[0].mxu0
  %v823 = vadd.f32 0.0, %v822
  %v824 = vpop.f32.mrb[0].mxu0
  %825 = vmatprep.mubr.bf16.mxu0 %v742
  %826 = vmatmul.mubr.bf16.gmra.mrb[0].mxu0 %v741
  %v827 = vpop.f32.mrb[0].mxu0
  %v828 = vadd.f32 0.0, %v827
  %v829 = vpop.f32.mrb[0].mxu0
  %v830 = vpop.f32.mrb[0].mxu0
  %v831 = vpop.f32.mrb[0].mxu0
  %832 = vdwg.mxu0
  %833 = vmatprep.subr.bf16.mxu0 0
  %834 = vmatpush1.bf16.msra.mxu0 %v265
  %835 = vmatprep.subr.bf16.mxu0 0
  %836 = vmatpush1.bf16.msra.mxu0 %v266
  %837 = vmatprep.subr.bf16.mxu0 0
  %838 = vmatpush1.bf16.msra.mxu0 %v267
  %839 = vmatprep.subr.bf16.mxu0 0
  %840 = vmatpush1.bf16.msra.mxu0 %v268
  %841 = vmatprep.subr.bf16.mxu0 0
  %842 = vmatpush1.bf16.msra.mxu0 %v269
  %843 = vmatprep.subr.bf16.mxu0 0
  %844 = vmatpush1.bf16.msra.mxu0 %v270
  %845 = vmatprep.subr.bf16.mxu0 0
  %846 = vmatpush1.bf16.msra.mxu0 %v271
  %847 = vmatprep.subr.bf16.mxu0 0
  %848 = vmatpush1.bf16.msra.mxu0 %v272
  %849 = vmatprep.subr.bf16.mxu0 0
  %850 = vmatpush1.bf16.msra.mxu0 %v273
  %851 = vmatprep.subr.bf16.mxu0 0
  %852 = vmatpush1.bf16.msra.mxu0 0
  %853 = vmatprep.subr.bf16.mxu0 0
  %854 = vmatpush1.bf16.msra.mxu0 0
  %855 = vmatprep.subr.bf16.mxu0 0
  %856 = vmatpush1.bf16.msra.mxu0 0
  %857 = vmatprep.subr.bf16.mxu0 0
  %858 = vmatpush1.bf16.msra.mxu0 0
  %859 = vmatprep.subr.bf16.mxu0 0
  %860 = vmatpush1.bf16.msra.mxu0 0
  %861 = vmatprep.subr.bf16.mxu0 0
  %862 = vmatpush1.bf16.msra.mxu0 0
  %863 = vmatprep.subr.bf16.mxu0 0
  %864 = vmatpush1.bf16.msra.mxu0 0
  %865 = vmatprep.mubr.bf16.mxu0 %v758
  %866 = vmatmul.mubr.bf16.gmra.mrb[0].mxu0 %v731
  %v867 = vpop.f32.mrb[0].mxu0
  %v868 = vadd.f32 %v804, %v867
  %v869 = vpop.f32.mrb[0].mxu0
  %v870 = vpop.f32.mrb[0].mxu0
  %v871 = vadd.f32 %v807, %v870
  %v872 = vpop.f32.mrb[0].mxu0
  %873 = vmatprep.mubr.bf16.mxu0 %v761
  %874 = vmatmul.mubr.bf16.gmra.mrb[0].mxu0 %v735
  %v875 = vpop.f32.mrb[0].mxu0
  %v876 = vadd.f32 %v812, %v875
  %v877 = vpop.f32.mrb[0].mxu0
  %v878 = vpop.f32.mrb[0].mxu0
  %v879 = vadd.f32 %v815, %v878
  %v880 = vpop.f32.mrb[0].mxu0
  %881 = vmatprep.mubr.bf16.mxu0 %v764
  %882 = vmatmul.mubr.bf16.gmra.mrb[0].mxu0 %v739
  %v883 = vpop.f32.mrb[0].mxu0
  %v884 = vadd.f32 %v820, %v883
  %v885 = vpop.f32.mrb[0].mxu0
  %v886 = vpop.f32.mrb[0].mxu0
  %v887 = vadd.f32 %v823, %v886
  %v888 = vpop.f32.mrb[0].mxu0
  %889 = vmatprep.mubr.bf16.mxu0 %v767
  %890 = vmatmul.mubr.bf16.gmra.mrb[0].mxu0 %v743
  %v891 = vpop.f32.mrb[0].mxu0
  %v892 = vadd.f32 %v828, %v891
  %v893 = vpop.f32.mrb[0].mxu0
  %v894 = vpop.f32.mrb[0].mxu0
  %v895 = vpop.f32.mrb[0].mxu0
  %896 = vdwg.mxu0
  %v897 = vmax.f32 %v665, %v868
  %v898 = vmax.f32 %v666, %v871
  %v899 = vmax.f32 %v667, %v876
  %v900 = vmax.f32 %v668, %v879
  %v901 = vmax.f32 %v669, %v884
  %v902 = vmax.f32 %v670, %v887
  %v903 = vmax.f32 %v671, %v892
  %s904 = scalar_lea.vmem %s0, 336
  %v905 = vld [vmem:[%s904] sm:$0xff]
  %v906 = vld [vmem:[%s904 + $0x8] sm:$0xff]
  %v907 = vld [vmem:[%s904 + $0x10] sm:$0xff]
  %v908 = vld [vmem:[%s904 + $0x18] sm:$0xff]
  %v909 = vld [vmem:[%s904 + $0x20] sm:$0xff]
  %v910 = vld [vmem:[%s904 + $0x28] sm:$0xff]
  %v911 = vld [vmem:[%s904 + $0x30] sm:$0xff]
  %v912 = vld [vmem:[%s904 + $0x38] sm:$0xff]
  %v913 = vld [vmem:[%s904 + $0x40] sm:$0xff]
  %v914 = vld [vmem:[%s904 + $0x48] sm:$0xff]
  %v915 = vld [vmem:[%s904 + $0x50] sm:$0xff]
  %v916 = vld [vmem:[%s904 + $0x58] sm:$0xff]
  %v917 = vld [vmem:[%s904 + $0x60] sm:$0x11]
  %v918 = vld [vmem:[%s904 + $0x68] sm:$0x11]
  %v933 = vunpack.c.l.b16 %v905
  %v934 = vunpack.c.h.b16 %v905
  %v935 = vunpack.c.l.b16 %v906
  %v936 = vunpack.c.h.b16 %v906
  %v937 = vunpack.c.l.b16 %v907
  %v938 = vunpack.c.h.b16 %v907
  %v939 = vunpack.c.l.b16 %v908
  %v940 = vunpack.c.h.b16 %v908
  %v941 = vunpack.c.l.b16 %v909
  %v942 = vunpack.c.h.b16 %v909
  %v943 = vunpack.c.l.b16 %v910
  %v944 = vunpack.c.h.b16 %v910
  %v945 = vunpack.c.l.b16 %v911
  %v946 = vunpack.c.h.b16 %v911
  %v947 = vunpack.c.l.b16 %v912
  %v948 = vunpack.c.h.b16 %v912
  %v949 = vunpack.c.l.b16 %v913
  %v950 = vunpack.c.h.b16 %v913
  %v951 = vunpack.c.l.b16 %v914
  %v952 = vunpack.c.h.b16 %v914
  %v953 = vunpack.c.l.b16 %v915
  %v954 = vunpack.c.h.b16 %v915
  %v955 = vunpack.c.l.b16 %v916
  %v956 = vunpack.c.h.b16 %v916
  %v957 = vunpack.c.l.b16 %v917
  %v958 = vunpack.c.h.b16 %v917
  %v959 = vunpack.c.l.b16 %v918
  %v960 = vunpack.c.h.b16 %v918
  %v961 = vpack.c.b16 %v937, %v933
  %v962 = vpack.c.b16 %v938, %v934
  %v963 = vpack.c.b16 %v939, %v935
  %v964 = vpack.c.b16 %v940, %v936
  %v965 = vpack.c.b16 %v945, %v941
  %v966 = vpack.c.b16 %v946, %v942
  %v967 = vpack.c.b16 %v947, %v943
  %v968 = vpack.c.b16 %v948, %v944
  %v969 = vpack.c.b16 %v953, %v949
  %v970 = vpack.c.b16 %v954, %v950
  %v971 = vpack.c.b16 %v955, %v951
  %v972 = vpack.c.b16 %v956, %v952
  %v973 = vpack.c.b16 %v957, %v957
  %v974 = vpack.c.b16 %v958, %v958
  %v975 = vpack.c.b16 %v959, %v959
  %v976 = vpack.c.b16 %v960, %v960
  %v990 = vsel %vm299, %v964, 0
  %v993 = vsel %vm299, %v968, 0
  %v996 = vsel %vm299, %v972, 0
  %v999 = vsel %vm299, %v976, 0
  %1001 = vmatprep.subr.bf16.mxu0 0
  %1002 = vmatpush1.bf16.msra.mxu0 %v249
  %1003 = vmatprep.subr.bf16.mxu0 0
  %1004 = vmatpush1.bf16.msra.mxu0 %v250
  %1005 = vmatprep.subr.bf16.mxu0 0
  %1006 = vmatpush1.bf16.msra.mxu0 %v251
  %1007 = vmatprep.subr.bf16.mxu0 0
  %1008 = vmatpush1.bf16.msra.mxu0 %v252
  %1009 = vmatprep.subr.bf16.mxu0 0
  %1010 = vmatpush1.bf16.msra.mxu0 %v253
  %1011 = vmatprep.subr.bf16.mxu0 0
  %1012 = vmatpush1.bf16.msra.mxu0 %v254
  %1013 = vmatprep.subr.bf16.mxu0 0
  %1014 = vmatpush1.bf16.msra.mxu0 %v255
  %1015 = vmatprep.subr.bf16.mxu0 0
  %1016 = vmatpush1.bf16.msra.mxu0 %v256
  %1017 = vmatprep.subr.bf16.mxu0 0
  %1018 = vmatpush1.bf16.msra.mxu0 %v257
  %1019 = vmatprep.subr.bf16.mxu0 0
  %1020 = vmatpush1.bf16.msra.mxu0 %v258
  %1021 = vmatprep.subr.bf16.mxu0 0
  %1022 = vmatpush1.bf16.msra.mxu0 %v259
  %1023 = vmatprep.subr.bf16.mxu0 0
  %1024 = vmatpush1.bf16.msra.mxu0 %v260
  %1025 = vmatprep.subr.bf16.mxu0 0
  %1026 = vmatpush1.bf16.msra.mxu0 %v261
  %1027 = vmatprep.subr.bf16.mxu0 0
  %1028 = vmatpush1.bf16.msra.mxu0 %v262
  %1029 = vmatprep.subr.bf16.mxu0 0
  %1030 = vmatpush1.bf16.msra.mxu0 %v263
  %1031 = vmatprep.subr.bf16.mxu0 0
  %1032 = vmatpush1.bf16.msra.mxu0 %v264
  %1033 = vmatprep.mubr.bf16.mxu0 %v962
  %1034 = vmatmul.mubr.bf16.gmra.mrb[0].mxu0 %v961
  %v1035 = vpop.f32.mrb[0].mxu0
  %v1036 = vadd.f32 0.0, %v1035
  %v1037 = vpop.f32.mrb[0].mxu0
  %v1038 = vpop.f32.mrb[0].mxu0
  %v1039 = vadd.f32 0.0, %v1038
  %v1040 = vpop.f32.mrb[0].mxu0
  %1041 = vmatprep.mubr.bf16.mxu0 %v966
  %1042 = vmatmul.mubr.bf16.gmra.mrb[0].mxu0 %v965
  %v1043 = vpop.f32.mrb[0].mxu0
  %v1044 = vadd.f32 0.0, %v1043
  %v1045 = vpop.f32.mrb[0].mxu0
  %v1046 = vpop.f32.mrb[0].mxu0
  %v1047 = vadd.f32 0.0, %v1046
  %v1048 = vpop.f32.mrb[0].mxu0
  %1049 = vmatprep.mubr.bf16.mxu0 %v970
  %1050 = vmatmul.mubr.bf16.gmra.mrb[0].mxu0 %v969
  %v1051 = vpop.f32.mrb[0].mxu0
  %v1052 = vadd.f32 0.0, %v1051
  %v1053 = vpop.f32.mrb[0].mxu0
  %v1054 = vpop.f32.mrb[0].mxu0
  %v1055 = vadd.f32 0.0, %v1054
  %v1056 = vpop.f32.mrb[0].mxu0
  %1057 = vmatprep.mubr.bf16.mxu0 %v974
  %1058 = vmatmul.mubr.bf16.gmra.mrb[0].mxu0 %v973
  %v1059 = vpop.f32.mrb[0].mxu0
  %v1060 = vadd.f32 0.0, %v1059
  %v1061 = vpop.f32.mrb[0].mxu0
  %v1062 = vpop.f32.mrb[0].mxu0
  %v1063 = vpop.f32.mrb[0].mxu0
  %1064 = vdwg.mxu0
  %1065 = vmatprep.subr.bf16.mxu0 0
  %1066 = vmatpush1.bf16.msra.mxu0 %v265
  %1067 = vmatprep.subr.bf16.mxu0 0
  %1068 = vmatpush1.bf16.msra.mxu0 %v266
  %1069 = vmatprep.subr.bf16.mxu0 0
  %1070 = vmatpush1.bf16.msra.mxu0 %v267
  %1071 = vmatprep.subr.bf16.mxu0 0
  %1072 = vmatpush1.bf16.msra.mxu0 %v268
  %1073 = vmatprep.subr.bf16.mxu0 0
  %1074 = vmatpush1.bf16.msra.mxu0 %v269
  %1075 = vmatprep.subr.bf16.mxu0 0
  %1076 = vmatpush1.bf16.msra.mxu0 %v270
  %1077 = vmatprep.subr.bf16.mxu0 0
  %1078 = vmatpush1.bf16.msra.mxu0 %v271
  %1079 = vmatprep.subr.bf16.mxu0 0
  %1080 = vmatpush1.bf16.msra.mxu0 %v272
  %1081 = vmatprep.subr.bf16.mxu0 0
  %1082 = vmatpush1.bf16.msra.mxu0 %v273
  %1083 = vmatprep.subr.bf16.mxu0 0
  %1084 = vmatpush1.bf16.msra.mxu0 0
  %1085 = vmatprep.subr.bf16.mxu0 0
  %1086 = vmatpush1.bf16.msra.mxu0 0
  %1087 = vmatprep.subr.bf16.mxu0 0
  %1088 = vmatpush1.bf16.msra.mxu0 0
  %1089 = vmatprep.subr.bf16.mxu0 0
  %1090 = vmatpush1.bf16.msra.mxu0 0
  %1091 = vmatprep.subr.bf16.mxu0 0
  %1092 = vmatpush1.bf16.msra.mxu0 0
  %1093 = vmatprep.subr.bf16.mxu0 0
  %1094 = vmatpush1.bf16.msra.mxu0 0
  %1095 = vmatprep.subr.bf16.mxu0 0
  %1096 = vmatpush1.bf16.msra.mxu0 0
  %1097 = vmatprep.mubr.bf16.mxu0 %v990
  %1098 = vmatmul.mubr.bf16.gmra.mrb[0].mxu0 %v963
  %v1099 = vpop.f32.mrb[0].mxu0
  %v1100 = vadd.f32 %v1036, %v1099
  %v1101 = vpop.f32.mrb[0].mxu0
  %v1102 = vpop.f32.mrb[0].mxu0
  %v1103 = vadd.f32 %v1039, %v1102
  %v1104 = vpop.f32.mrb[0].mxu0
  %1105 = vmatprep.mubr.bf16.mxu0 %v993
  %1106 = vmatmul.mubr.bf16.gmra.mrb[0].mxu0 %v967
  %v1107 = vpop.f32.mrb[0].mxu0
  %v1108 = vadd.f32 %v1044, %v1107
  %v1109 = vpop.f32.mrb[0].mxu0
  %v1110 = vpop.f32.mrb[0].mxu0
  %v1111 = vadd.f32 %v1047, %v1110
  %v1112 = vpop.f32.mrb[0].mxu0
  %1113 = vmatprep.mubr.bf16.mxu0 %v996
  %1114 = vmatmul.mubr.bf16.gmra.mrb[0].mxu0 %v971
  %v1115 = vpop.f32.mrb[0].mxu0
  %v1116 = vadd.f32 %v1052, %v1115
  %v1117 = vpop.f32.mrb[0].mxu0
  %v1118 = vpop.f32.mrb[0].mxu0
  %v1119 = vadd.f32 %v1055, %v1118
  %v1120 = vpop.f32.mrb[0].mxu0
  %1121 = vmatprep.mubr.bf16.mxu0 %v999
  %1122 = vmatmul.mubr.bf16.gmra.mrb[0].mxu0 %v975
  %v1123 = vpop.f32.mrb[0].mxu0
  %v1124 = vadd.f32 %v1060, %v1123
  %v1125 = vpop.f32.mrb[0].mxu0
  %v1126 = vpop.f32.mrb[0].mxu0
  %v1127 = vpop.f32.mrb[0].mxu0
  %1128 = vdwg.mxu0
  %v1129 = vmax.f32 %v897, %v1100
  %v1130 = vmax.f32 %v898, %v1103
  %v1131 = vmax.f32 %v899, %v1108
  %v1132 = vmax.f32 %v900, %v1111
  %v1133 = vmax.f32 %v901, %v1116
  %v1134 = vmax.f32 %v902, %v1119
  %v1135 = vmax.f32 %v903, %v1124
  %v1136 = vld [vmem:[%s2] sm:$0x1]
  %v1138 = vlaneseq
  %v1139 = vshrl.u32 %v1138, 7
  %v1140 = vsub.s32 0, %v1139
  %v1141 = vrot.slane %v1136, %v1140
  %v1143 = vadd.f32 %v1129, %v1141
  %v1144 = vadd.f32 %v1130, %v1141
  %v1145 = vadd.f32 %v1131, %v1141
  %v1146 = vadd.f32 %v1132, %v1141
  %v1147 = vadd.f32 %v1133, %v1141
  %v1148 = vadd.f32 %v1134, %v1141
  %v1149 = vadd.f32 %v1135, %v1141
  %v1150 = vmax.f32 %v1143, 0.0
  %v1151 = vmax.f32 %v1144, 0.0
  %v1152 = vmax.f32 %v1145, 0.0
  %v1153 = vmax.f32 %v1146, 0.0
  %v1154 = vmax.f32 %v1147, 0.0
  %v1155 = vmax.f32 %v1148, 0.0
  %v1156 = vmax.f32 %v1149, 0.0
  %v1157 = vpack.c.bf16 %v1151, %v1150
  %v1158 = vpack.c.bf16 %v1153, %v1152
  %v1159 = vpack.c.bf16 %v1155, %v1154
  %v1160 = vpack.c.bf16 %v1156, %v1156
  %v1165 = vunpack.c.l.b16 %v1157
  %v1166 = vunpack.c.h.b16 %v1157
  %v1167 = vunpack.c.l.b16 %v1158
  %v1168 = vunpack.c.h.b16 %v1158
  %v1169 = vunpack.c.l.b16 %v1159
  %v1170 = vunpack.c.h.b16 %v1159
  %v1171 = vunpack.c.l.b16 %v1160
  %v1172 = vpack.c.b16 %v1165, %v1165
  %v1173 = vpack.c.b16 %v1166, %v1166
  %v1174 = vpack.c.b16 %v1167, %v1167
  %v1175 = vpack.c.b16 %v1168, %v1168
  %v1176 = vpack.c.b16 %v1169, %v1169
  %v1177 = vpack.c.b16 %v1170, %v1170
  %v1178 = vpack.c.b16 %v1171, %v1171
  %vm1186 = vcmask 257024
  %1187 = vst.msk [vmem:[%s3] sm:$0xf] %vm1186, %v1172
  %1188 = vst.msk [vmem:[%s3 + $0x4] sm:$0xf] %vm1186, %v1173
  %1189 = vst.msk [vmem:[%s3 + $0x8] sm:$0xf] %vm1186, %v1174
  %1190 = vst.msk [vmem:[%s3 + $0xc] sm:$0xf] %vm1186, %v1175
  %1191 = vst.msk [vmem:[%s3 + $0x10] sm:$0xf] %vm1186, %v1176
  %1192 = vst.msk [vmem:[%s3 + $0x14] sm:$0xf] %vm1186, %v1177
  %vm1193 = vcmask 253952
  %1194 = vst.msk [vmem:[%s3 + $0x18] sm:$0x1] %vm1193, %v1178
  // Predicated region
  $region14: #{cnn1_small_forward.4} parent=0 // pred_check
    _
  $region15: #{cnn1_small_forward.4} parent=0 // pred_check_branch
    %1196 = sbr.rel (0) target = $region17
  $region16: #{cnn1_small_forward.4} parent=0 // pred_region
    _
  $region17: #{cnn1_small_forward.4} parent=0 // pred_fallthru
    _
  // Predicated region
  $region18: #{cnn1_small_forward.4} parent=0 // pred_check
    _
  $region19: #{cnn1_small_forward.4} parent=0 // pred_check_branch
    %1198 = sbr.rel (0) target = $region21
  $region20: #{cnn1_small_forward.4} parent=0 // pred_region
    _
  $region21: #{cnn1_small_forward.4} parent=0 // pred_fallthru
    _

// kernel: cnn1_small_forward.5
$region0: #{cnn1_small_forward.5}
  #allocation0 [shape = 'u32[]', space=smem, size = 0x4, offset = 0x4, fixed_abs, tag = 'smem constant byte address 0x4 - core index']
  #allocation1 [shape = 'u32[144,128]{1,0:T(1,128)}', space=vmem, size = 0x12000, scoped, tag = 'internal scratch']
  %s0 = inlined_call_operand.vmem [shape: bf16[2,800], index: 0, kind: input, shape index: {}]
  %s1 = inlined_call_operand.vmem [shape: bf16[2,250], index: 1, kind: input, shape index: {}]
  %s2 = inlined_call_operand.vmem [shape: bf16[800,2000], index: 2, kind: input, shape index: {}]
  %s3 = inlined_call_operand.vmem [shape: f32[1,2000], index: 3, kind: input, shape index: {}]
  %s4 = inlined_call_operand.vmem [shape: bf16[2000,250], index: 4, kind: input, shape index: {}]
  %s5 = inlined_call_operand.vmem [shape: f32[1,250], index: 5, kind: input, shape index: {}]
  %s6 = inlined_call_operand.vmem [shape: bf16[250,10], index: 6, kind: input, shape index: {}]
  %s7 = inlined_call_operand.vmem [shape: f32[1,10], index: 7, kind: input, shape index: {}]
  %s8 = inlined_call_operand.hbm [shape: f32[2,10], index: 8, kind: output, shape index: {0}]
  %s9 = inlined_call_operand.hbm [shape: f32[2,250], index: 9, kind: output, shape index: {1}]
  %10 = xla_tuple %s8, %s9
  %s11 = sld [smem:[#allocation0]]
  $region50: #{cnn1_small_forward.5} parent=0
    _
  %s13 = ssub.s32 1, %s11
  %s14 = scalar_select 0, %s13, %s11
  $region1: #{cnn1_small_forward.5} parent=0
    #allocation2 [shape = 'u8[1024]{0}', space=vmem, size = 0x400, scoped, tag = 'output window, operand 0, single buffered']
    #allocation3 [shape = 's32[1]{0}', space=sflag, size = 0x4, scoped, tag = 'scoped memory for cnn1_small_forward.5']
    #allocation4 [shape = 'u8[2048]{0}', space=vmem, size = 0x800, scoped, tag = 'output window, operand 1, single buffered']
    #allocation5 [shape = 's32[1]{0}', space=sflag, size = 0x4, scoped, tag = 'scoped memory for cnn1_small_forward.5']
    %15 = vsyncpa [#allocation3], 0
    %16 = vsyncpa [#allocation5], 0
    // Predicated region
    $region2: #{cnn1_small_forward.5} parent=1 // pred_check
      _
    $region3: #{cnn1_small_forward.5} parent=1 // pred_check_branch
      %18 = sbr.rel (0) target = $region5
    $region4: #{cnn1_small_forward.5} parent=1 // pred_region
      _
    $region5: #{cnn1_small_forward.5} parent=1 // pred_fallthru
      _
    // Predicated region
    $region6: #{cnn1_small_forward.5} parent=1 // pred_check
      _
    $region7: #{cnn1_small_forward.5} parent=1 // pred_check_branch
      %20 = sbr.rel (0) target = $region9
    $region8: #{cnn1_small_forward.5} parent=1 // pred_region
      _
    $region9: #{cnn1_small_forward.5} parent=1 // pred_fallthru
      _
    // Predicated region
    $region10: #{cnn1_small_forward.5} parent=1 // pred_check
      _
    $region11: #{cnn1_small_forward.5} parent=1 // pred_check_branch
      %22 = sbr.rel (0) target = $region13
    $region12: #{cnn1_small_forward.5} parent=1 // pred_region
      _
    $region13: #{cnn1_small_forward.5} parent=1 // pred_fallthru
      _
    // Predicated region
    $region14: #{cnn1_small_forward.5} parent=1 // pred_check
      _
    $region15: #{cnn1_small_forward.5} parent=1 // pred_check_branch
      %24 = sbr.rel (0) target = $region17
    $region16: #{cnn1_small_forward.5} parent=1 // pred_region
      _
    $region17: #{cnn1_small_forward.5} parent=1 // pred_fallthru
      _
    // Predicated region
    $region18: #{cnn1_small_forward.5} parent=1 // pred_check
      _
    $region19: #{cnn1_small_forward.5} parent=1 // pred_check_branch
      %26 = sbr.rel (0) target = $region21
    $region20: #{cnn1_small_forward.5} parent=1 // pred_region
      _
    $region21: #{cnn1_small_forward.5} parent=1 // pred_fallthru
      _
    // Predicated region
    $region22: #{cnn1_small_forward.5} parent=1 // pred_check
      _
    $region23: #{cnn1_small_forward.5} parent=1 // pred_check_branch
      %28 = sbr.rel (0) target = $region25
    $region24: #{cnn1_small_forward.5} parent=1 // pred_region
      _
    $region25: #{cnn1_small_forward.5} parent=1 // pred_fallthru
      _
    // Predicated region
    $region26: #{cnn1_small_forward.5} parent=1 // pred_check
      _
    $region27: #{cnn1_small_forward.5} parent=1 // pred_check_branch
      %30 = sbr.rel (0) target = $region29
    $region28: #{cnn1_small_forward.5} parent=1 // pred_region
      _
    $region29: #{cnn1_small_forward.5} parent=1 // pred_fallthru
      _
    // Predicated region
    $region30: #{cnn1_small_forward.5} parent=1 // pred_check
      _
    $region31: #{cnn1_small_forward.5} parent=1 // pred_check_branch
      %32 = sbr.rel (0) target = $region33
    $region32: #{cnn1_small_forward.5} parent=1 // pred_region
      _
    $region33: #{cnn1_small_forward.5} parent=1 // pred_fallthru
      _
    %v34 = vld [vmem:[%s0] sm:$0x7f]
    %v35 = vld [vmem:[%s2] sm:$0xff]
    %v36 = vld [vmem:[%s2 + $0x8] sm:$0xff]
    %v37 = vld [vmem:[%s2 + $0x10] sm:$0xff]
    %v38 = vld [vmem:[%s2 + $0x18] sm:$0xff]
    %v39 = vld [vmem:[%s2 + $0x20] sm:$0xff]
    %v40 = vld [vmem:[%s2 + $0x28] sm:$0xff]
    %v41 = vld [vmem:[%s2 + $0x30] sm:$0xff]
    %v42 = vld [vmem:[%s2 + $0x38] sm:$0xff]
    %v43 = vld [vmem:[%s2 + $0x40] sm:$0xff]
    %v44 = vld [vmem:[%s2 + $0x48] sm:$0xff]
    %v45 = vld [vmem:[%s2 + $0x50] sm:$0xff]
    %v46 = vld [vmem:[%s2 + $0x58] sm:$0xff]
    %v47 = vld [vmem:[%s2 + $0x60] sm:$0xff]
    %v48 = vld [vmem:[%s2 + $0x68] sm:$0xff]
    %v49 = vld [vmem:[%s2 + $0x70] sm:$0xff]
    %v50 = vld [vmem:[%s2 + $0x78] sm:$0xff]
    %v51 = vld [vmem:[%s2 + $0x80] sm:$0xff]
    %v52 = vld [vmem:[%s2 + $0x88] sm:$0xff]
    %v53 = vld [vmem:[%s2 + $0x90] sm:$0xff]
    %v54 = vld [vmem:[%s2 + $0x98] sm:$0xff]
    %v55 = vld [vmem:[%s2 + $0xa0] sm:$0xff]
    %v56 = vld [vmem:[%s2 + $0xa8] sm:$0xff]
    %v57 = vld [vmem:[%s2 + $0xb0] sm:$0xff]
    %v58 = vld [vmem:[%s2 + $0xb8] sm:$0xff]
    %v59 = vld [vmem:[%s2 + $0xc0] sm:$0xff]
    %v60 = vld [vmem:[%s2 + $0xc8] sm:$0xff]
    %v61 = vld [vmem:[%s2 + $0xd0] sm:$0xff]
    %v62 = vld [vmem:[%s2 + $0xd8] sm:$0xff]
    %v63 = vld [vmem:[%s2 + $0xe0] sm:$0xff]
    %v64 = vld [vmem:[%s2 + $0xe8] sm:$0xff]
    %v65 = vld [vmem:[%s2 + $0xf0] sm:$0xff]
    %v66 = vld [vmem:[%s2 + $0xf8] sm:$0xff]
    %v67 = vld [vmem:[%s2 + $0x100] sm:$0xff]
    %v68 = vld [vmem:[%s2 + $0x108] sm:$0xff]
    %v69 = vld [vmem:[%s2 + $0x110] sm:$0xff]
    %v70 = vld [vmem:[%s2 + $0x118] sm:$0xff]
    %v71 = vld [vmem:[%s2 + $0x120] sm:$0xff]
    %v72 = vld [vmem:[%s2 + $0x128] sm:$0xff]
    %v73 = vld [vmem:[%s2 + $0x130] sm:$0xff]
    %v74 = vld [vmem:[%s2 + $0x138] sm:$0xff]
    %v75 = vld [vmem:[%s2 + $0x140] sm:$0xff]
    %v76 = vld [vmem:[%s2 + $0x148] sm:$0xff]
    %v77 = vld [vmem:[%s2 + $0x150] sm:$0xff]
    %v78 = vld [vmem:[%s2 + $0x158] sm:$0xff]
    %v79 = vld [vmem:[%s2 + $0x160] sm:$0xff]
    %v80 = vld [vmem:[%s2 + $0x168] sm:$0xff]
    %v81 = vld [vmem:[%s2 + $0x170] sm:$0xff]
    %v82 = vld [vmem:[%s2 + $0x178] sm:$0xff]
    %v83 = vld [vmem:[%s2 + $0x180] sm:$0xff]
    %v84 = vld [vmem:[%s2 + $0x188] sm:$0xff]
    %v85 = vld [vmem:[%s2 + $0x190] sm:$0xff]
    %v86 = vld [vmem:[%s2 + $0x198] sm:$0xff]
    %v87 = vld [vmem:[%s2 + $0x1a0] sm:$0xff]
    %v88 = vld [vmem:[%s2 + $0x1a8] sm:$0xff]
    %v89 = vld [vmem:[%s2 + $0x1b0] sm:$0xff]
    %v90 = vld [vmem:[%s2 + $0x1b8] sm:$0xff]
    %v91 = vld [vmem:[%s2 + $0x1c0] sm:$0xff]
    %v92 = vld [vmem:[%s2 + $0x1c8] sm:$0xff]
    %v93 = vld [vmem:[%s2 + $0x1d0] sm:$0xff]
    %v94 = vld [vmem:[%s2 + $0x1d8] sm:$0xff]
    %v95 = vld [vmem:[%s2 + $0x1e0] sm:$0xff]
    %v96 = vld [vmem:[%s2 + $0x1e8] sm:$0xff]
    %v97 = vld [vmem:[%s2 + $0x1f0] sm:$0xff]
    %v98 = vld [vmem:[%s2 + $0x1f8] sm:$0xff]
    %v99 = vld [vmem:[%s2 + $0x200] sm:$0xff]
    %v100 = vld [vmem:[%s2 + $0x208] sm:$0xff]
    %v101 = vld [vmem:[%s2 + $0x210] sm:$0xff]
    %v102 = vld [vmem:[%s2 + $0x218] sm:$0xff]
    %v103 = vld [vmem:[%s2 + $0x220] sm:$0xff]
    %v104 = vld [vmem:[%s2 + $0x228] sm:$0xff]
    %v105 = vld [vmem:[%s2 + $0x230] sm:$0xff]
    %v106 = vld [vmem:[%s2 + $0x238] sm:$0xff]
    %v107 = vld [vmem:[%s2 + $0x240] sm:$0xff]
    %v108 = vld [vmem:[%s2 + $0x248] sm:$0xff]
    %v109 = vld [vmem:[%s2 + $0x250] sm:$0xff]
    %v110 = vld [vmem:[%s2 + $0x258] sm:$0xff]
    %v111 = vld [vmem:[%s2 + $0x260] sm:$0xff]
    %v112 = vld [vmem:[%s2 + $0x268] sm:$0xff]
    %v113 = vld [vmem:[%s2 + $0x270] sm:$0xff]
    %v114 = vld [vmem:[%s2 + $0x278] sm:$0xff]
    %v115 = vld [vmem:[%s2 + $0x280] sm:$0xff]
    %v116 = vld [vmem:[%s2 + $0x288] sm:$0xff]
    %v117 = vld [vmem:[%s2 + $0x290] sm:$0xff]
    %v118 = vld [vmem:[%s2 + $0x298] sm:$0xff]
    %v119 = vld [vmem:[%s2 + $0x2a0] sm:$0xff]
    %v120 = vld [vmem:[%s2 + $0x2a8] sm:$0xff]
    %v121 = vld [vmem:[%s2 + $0x2b0] sm:$0xff]
    %v122 = vld [vmem:[%s2 + $0x2b8] sm:$0xff]
    %v123 = vld [vmem:[%s2 + $0x2c0] sm:$0xff]
    %v124 = vld [vmem:[%s2 + $0x2c8] sm:$0xff]
    %v125 = vld [vmem:[%s2 + $0x2d0] sm:$0xff]
    %v126 = vld [vmem:[%s2 + $0x2d8] sm:$0xff]
    %v127 = vld [vmem:[%s2 + $0x2e0] sm:$0xff]
    %v128 = vld [vmem:[%s2 + $0x2e8] sm:$0xff]
    %v129 = vld [vmem:[%s2 + $0x2f0] sm:$0xff]
    %v130 = vld [vmem:[%s2 + $0x2f8] sm:$0xff]
    %v131 = vld [vmem:[%s2 + $0x300] sm:$0xff]
    %v132 = vld [vmem:[%s2 + $0x308] sm:$0xff]
    %v133 = vld [vmem:[%s2 + $0x310] sm:$0xff]
    %v134 = vld [vmem:[%s2 + $0x318] sm:$0xff]
    %v135 = vld [vmem:[%s2 + $0x320] sm:$0xff]
    %v136 = vld [vmem:[%s2 + $0x328] sm:$0xff]
    %v137 = vld [vmem:[%s2 + $0x330] sm:$0xff]
    %v138 = vld [vmem:[%s2 + $0x338] sm:$0xff]
    %v139 = vld [vmem:[%s2 + $0x340] sm:$0xff]
    %v140 = vld [vmem:[%s2 + $0x348] sm:$0xff]
    %v141 = vld [vmem:[%s2 + $0x350] sm:$0xff]
    %v142 = vld [vmem:[%s2 + $0x358] sm:$0xff]
    %v143 = vld [vmem:[%s2 + $0x360] sm:$0xff]
    %v144 = vld [vmem:[%s2 + $0x368] sm:$0xff]
    %v145 = vld [vmem:[%s2 + $0x370] sm:$0xff]
    %v146 = vld [vmem:[%s2 + $0x378] sm:$0xff]
    %v147 = vld [vmem:[%s2 + $0x380] sm:$0xff]
    %v148 = vld [vmem:[%s2 + $0x388] sm:$0xff]
    %v149 = vld [vmem:[%s2 + $0x390] sm:$0xff]
    %v150 = vld [vmem:[%s2 + $0x398] sm:$0xff]
    %v151 = vld [vmem:[%s2 + $0x3a0] sm:$0xff]
    %v152 = vld [vmem:[%s2 + $0x3a8] sm:$0xff]
    %v153 = vld [vmem:[%s2 + $0x3b0] sm:$0xff]
    %v154 = vld [vmem:[%s2 + $0x3b8] sm:$0xff]
    %v155 = vld [vmem:[%s2 + $0x3c0] sm:$0xff]
    %v156 = vld [vmem:[%s2 + $0x3c8] sm:$0xff]
    %v157 = vld [vmem:[%s2 + $0x3d0] sm:$0xff]
    %v158 = vld [vmem:[%s2 + $0x3d8] sm:$0xff]
    %v159 = vld [vmem:[%s2 + $0x3e0] sm:$0xff]
    %v160 = vld [vmem:[%s2 + $0x3e8] sm:$0xff]
    %v161 = vld [vmem:[%s2 + $0x3f0] sm:$0xff]
    %v162 = vld [vmem:[%s2 + $0x3f8] sm:$0xff]
    %v163 = vld [vmem:[%s2 + $0x400] sm:$0xff]
    %v164 = vld [vmem:[%s2 + $0x408] sm:$0xff]
    %v165 = vld [vmem:[%s2 + $0x410] sm:$0xff]
    %v166 = vld [vmem:[%s2 + $0x418] sm:$0xff]
    %v167 = vld [vmem:[%s2 + $0x420] sm:$0xff]
    %v168 = vld [vmem:[%s2 + $0x428] sm:$0xff]
    %v169 = vld [vmem:[%s2 + $0x430] sm:$0xff]
    %v170 = vld [vmem:[%s2 + $0x438] sm:$0xff]
    %v171 = vld [vmem:[%s2 + $0x440] sm:$0xff]
    %v172 = vld [vmem:[%s2 + $0x448] sm:$0xff]
    %v173 = vld [vmem:[%s2 + $0x450] sm:$0xff]
    %v174 = vld [vmem:[%s2 + $0x458] sm:$0xff]
    %v175 = vld [vmem:[%s2 + $0x460] sm:$0xff]
    %v176 = vld [vmem:[%s2 + $0x468] sm:$0xff]
    %v177 = vld [vmem:[%s2 + $0x470] sm:$0xff]
    %v178 = vld [vmem:[%s2 + $0x478] sm:$0xff]
    %v179 = vld [vmem:[%s2 + $0x480] sm:$0xff]
    %v180 = vld [vmem:[%s2 + $0x488] sm:$0xff]
    %v181 = vld [vmem:[%s2 + $0x490] sm:$0xff]
    %v182 = vld [vmem:[%s2 + $0x498] sm:$0xff]
    %v183 = vld [vmem:[%s2 + $0x4a0] sm:$0xff]
    %v184 = vld [vmem:[%s2 + $0x4a8] sm:$0xff]
    %v185 = vld [vmem:[%s2 + $0x4b0] sm:$0xff]
    %v186 = vld [vmem:[%s2 + $0x4b8] sm:$0xff]
    %v187 = vld [vmem:[%s2 + $0x4c0] sm:$0xff]
    %v188 = vld [vmem:[%s2 + $0x4c8] sm:$0xff]
    %v189 = vld [vmem:[%s2 + $0x4d0] sm:$0xff]
    %v190 = vld [vmem:[%s2 + $0x4d8] sm:$0xff]
    %v191 = vld [vmem:[%s2 + $0x4e0] sm:$0xff]
    %v192 = vld [vmem:[%s2 + $0x4e8] sm:$0xff]
    %v193 = vld [vmem:[%s2 + $0x4f0] sm:$0xff]
    %v194 = vld [vmem:[%s2 + $0x4f8] sm:$0xff]
    %v195 = vld [vmem:[%s2 + $0x500] sm:$0xff]
    %v196 = vld [vmem:[%s2 + $0x508] sm:$0xff]
    %v197 = vld [vmem:[%s2 + $0x510] sm:$0xff]
    %v198 = vld [vmem:[%s2 + $0x518] sm:$0xff]
    %v199 = vld [vmem:[%s2 + $0x520] sm:$0xff]
    %v200 = vld [vmem:[%s2 + $0x528] sm:$0xff]
    %v201 = vld [vmem:[%s2 + $0x530] sm:$0xff]
    %v202 = vld [vmem:[%s2 + $0x538] sm:$0xff]
    %v203 = vld [vmem:[%s2 + $0x540] sm:$0xff]
    %v204 = vld [vmem:[%s2 + $0x548] sm:$0xff]
    %v205 = vld [vmem:[%s2 + $0x550] sm:$0xff]
    %v206 = vld [vmem:[%s2 + $0x558] sm:$0xff]
    %v207 = vld [vmem:[%s2 + $0x560] sm:$0xff]
    %v208 = vld [vmem:[%s2 + $0x568] sm:$0xff]
    %v209 = vld [vmem:[%s2 + $0x570] sm:$0xff]
    %v210 = vld [vmem:[%s2 + $0x578] sm:$0xff]
    %v211 = vld [vmem:[%s2 + $0x580] sm:$0xff]
    %v212 = vld [vmem:[%s2 + $0x588] sm:$0xff]
    %v213 = vld [vmem:[%s2 + $0x590] sm:$0xff]
    %v214 = vld [vmem:[%s2 + $0x598] sm:$0xff]
    %v215 = vld [vmem:[%s2 + $0x5a0] sm:$0xff]
    %v216 = vld [vmem:[%s2 + $0x5a8] sm:$0xff]
    %v217 = vld [vmem:[%s2 + $0x5b0] sm:$0xff]
    %v218 = vld [vmem:[%s2 + $0x5b8] sm:$0xff]
    %v219 = vld [vmem:[%s2 + $0x5c0] sm:$0xff]
    %v220 = vld [vmem:[%s2 + $0x5c8] sm:$0xff]
    %v221 = vld [vmem:[%s2 + $0x5d0] sm:$0xff]
    %v222 = vld [vmem:[%s2 + $0x5d8] sm:$0xff]
    %v223 = vld [vmem:[%s2 + $0x5e0] sm:$0xff]
    %v224 = vld [vmem:[%s2 + $0x5e8] sm:$0xff]
    %v225 = vld [vmem:[%s2 + $0x5f0] sm:$0xff]
    %v226 = vld [vmem:[%s2 + $0x5f8] sm:$0xff]
    %v227 = vld [vmem:[%s2 + $0x600] sm:$0xff]
    %v228 = vld [vmem:[%s2 + $0x608] sm:$0xff]
    %v229 = vld [vmem:[%s2 + $0x610] sm:$0xff]
    %v230 = vld [vmem:[%s2 + $0x618] sm:$0xff]
    %v231 = vld [vmem:[%s2 + $0x620] sm:$0xff]
    %v232 = vld [vmem:[%s2 + $0x628] sm:$0xff]
    %v233 = vld [vmem:[%s2 + $0x630] sm:$0xff]
    %v234 = vld [vmem:[%s2 + $0x638] sm:$0xff]
    %v235 = vld [vmem:[%s2 + $0x640] sm:$0xff]
    %v236 = vld [vmem:[%s2 + $0x648] sm:$0xff]
    %v237 = vld [vmem:[%s2 + $0x650] sm:$0xff]
    %v238 = vld [vmem:[%s2 + $0x658] sm:$0xff]
    %v239 = vld [vmem:[%s2 + $0x660] sm:$0xff]
    %v240 = vld [vmem:[%s2 + $0x668] sm:$0xff]
    %v241 = vld [vmem:[%s2 + $0x670] sm:$0xff]
    %v242 = vld [vmem:[%s2 + $0x678] sm:$0xff]
    %v243 = vld [vmem:[%s2 + $0x680] sm:$0xff]
    %v244 = vld [vmem:[%s2 + $0x688] sm:$0xff]
    %v245 = vld [vmem:[%s2 + $0x690] sm:$0xff]
    %v246 = vld [vmem:[%s2 + $0x698] sm:$0xff]
    %v247 = vld [vmem:[%s2 + $0x6a0] sm:$0xff]
    %v248 = vld [vmem:[%s2 + $0x6a8] sm:$0xff]
    %v249 = vld [vmem:[%s2 + $0x6b0] sm:$0xff]
    %v250 = vld [vmem:[%s2 + $0x6b8] sm:$0xff]
    %v251 = vld [vmem:[%s2 + $0x6c0] sm:$0xff]
    %v252 = vld [vmem:[%s2 + $0x6c8] sm:$0xff]
    %v253 = vld [vmem:[%s2 + $0x6d0] sm:$0xff]
    %v254 = vld [vmem:[%s2 + $0x6d8] sm:$0xff]
    %v255 = vld [vmem:[%s2 + $0x6e0] sm:$0xff]
    %v256 = vld [vmem:[%s2 + $0x6e8] sm:$0xff]
    %v257 = vld [vmem:[%s2 + $0x6f0] sm:$0xff]
    %v258 = vld [vmem:[%s2 + $0x6f8] sm:$0xff]
    %v259 = vld [vmem:[%s2 + $0x700] sm:$0xff]
    %v260 = vld [vmem:[%s2 + $0x708] sm:$0xff]
    %v261 = vld [vmem:[%s2 + $0x710] sm:$0xff]
    %v262 = vld [vmem:[%s2 + $0x718] sm:$0xff]
    %v263 = vld [vmem:[%s2 + $0x720] sm:$0xff]
    %v264 = vld [vmem:[%s2 + $0x728] sm:$0xff]
    %v265 = vld [vmem:[%s2 + $0x730] sm:$0xff]
    %v266 = vld [vmem:[%s2 + $0x738] sm:$0xff]
    %v267 = vld [vmem:[%s2 + $0x740] sm:$0xff]
    %v268 = vld [vmem:[%s2 + $0x748] sm:$0xff]
    %v269 = vld [vmem:[%s2 + $0x750] sm:$0xff]
    %v270 = vld [vmem:[%s2 + $0x758] sm:$0xff]
    %v271 = vld [vmem:[%s2 + $0x760] sm:$0xff]
    %v272 = vld [vmem:[%s2 + $0x768] sm:$0xff]
    %v273 = vld [vmem:[%s2 + $0x770] sm:$0xff]
    %v274 = vld [vmem:[%s2 + $0x778] sm:$0xff]
    %v275 = vld [vmem:[%s2 + $0x780] sm:$0xff]
    %v276 = vld [vmem:[%s2 + $0x788] sm:$0xff]
    %v277 = vld [vmem:[%s2 + $0x790] sm:$0xff]
    %v278 = vld [vmem:[%s2 + $0x798] sm:$0xff]
    %v279 = vld [vmem:[%s2 + $0x7a0] sm:$0xff]
    %v280 = vld [vmem:[%s2 + $0x7a8] sm:$0xff]
    %v281 = vld [vmem:[%s2 + $0x7b0] sm:$0xff]
    %v282 = vld [vmem:[%s2 + $0x7b8] sm:$0xff]
    %v283 = vld [vmem:[%s2 + $0x7c0] sm:$0xff]
    %v284 = vld [vmem:[%s2 + $0x7c8] sm:$0xff]
    %v285 = vld [vmem:[%s2 + $0x7d0] sm:$0xff]
    %v286 = vld [vmem:[%s2 + $0x7d8] sm:$0xff]
    %v287 = vld [vmem:[%s2 + $0x7e0] sm:$0xff]
    %v288 = vld [vmem:[%s2 + $0x7e8] sm:$0xff]
    %v289 = vld [vmem:[%s2 + $0x7f0] sm:$0xff]
    %v290 = vld [vmem:[%s2 + $0x7f8] sm:$0xff]
    %v291 = vld [vmem:[%s2 + $0x800] sm:$0xff]
    %v292 = vld [vmem:[%s2 + $0x808] sm:$0xff]
    %v293 = vld [vmem:[%s2 + $0x810] sm:$0xff]
    %v294 = vld [vmem:[%s2 + $0x818] sm:$0xff]
    %v295 = vld [vmem:[%s2 + $0x820] sm:$0xff]
    %v296 = vld [vmem:[%s2 + $0x828] sm:$0xff]
    %v297 = vld [vmem:[%s2 + $0x830] sm:$0xff]
    %v298 = vld [vmem:[%s2 + $0x838] sm:$0xff]
    %v299 = vld [vmem:[%s2 + $0x840] sm:$0xff]
    %v300 = vld [vmem:[%s2 + $0x848] sm:$0xff]
    %v301 = vld [vmem:[%s2 + $0x850] sm:$0xff]
    %v302 = vld [vmem:[%s2 + $0x858] sm:$0xff]
    %v303 = vld [vmem:[%s2 + $0x860] sm:$0xff]
    %v304 = vld [vmem:[%s2 + $0x868] sm:$0xff]
    %v305 = vld [vmem:[%s2 + $0x870] sm:$0xff]
    %v306 = vld [vmem:[%s2 + $0x878] sm:$0xff]
    %v307 = vld [vmem:[%s2 + $0x880] sm:$0xff]
    %v308 = vld [vmem:[%s2 + $0x888] sm:$0xff]
    %v309 = vld [vmem:[%s2 + $0x890] sm:$0xff]
    %v310 = vld [vmem:[%s2 + $0x898] sm:$0xff]
    %v311 = vld [vmem:[%s2 + $0x8a0] sm:$0xff]
    %v312 = vld [vmem:[%s2 + $0x8a8] sm:$0xff]
    %v313 = vld [vmem:[%s2 + $0x8b0] sm:$0xff]
    %v314 = vld [vmem:[%s2 + $0x8b8] sm:$0xff]
    %v315 = vld [vmem:[%s2 + $0x8c0] sm:$0xff]
    %v316 = vld [vmem:[%s2 + $0x8c8] sm:$0xff]
    %v317 = vld [vmem:[%s2 + $0x8d0] sm:$0xff]
    %v318 = vld [vmem:[%s2 + $0x8d8] sm:$0xff]
    %v319 = vld [vmem:[%s2 + $0x8e0] sm:$0xff]
    %v320 = vld [vmem:[%s2 + $0x8e8] sm:$0xff]
    %v321 = vld [vmem:[%s2 + $0x8f0] sm:$0xff]
    %v322 = vld [vmem:[%s2 + $0x8f8] sm:$0xff]
    %v323 = vld [vmem:[%s2 + $0x900] sm:$0xff]
    %v324 = vld [vmem:[%s2 + $0x908] sm:$0xff]
    %v325 = vld [vmem:[%s2 + $0x910] sm:$0xff]
    %v326 = vld [vmem:[%s2 + $0x918] sm:$0xff]
    %v327 = vld [vmem:[%s2 + $0x920] sm:$0xff]
    %v328 = vld [vmem:[%s2 + $0x928] sm:$0xff]
    %v329 = vld [vmem:[%s2 + $0x930] sm:$0xff]
    %v330 = vld [vmem:[%s2 + $0x938] sm:$0xff]
    %v331 = vld [vmem:[%s2 + $0x940] sm:$0xff]
    %v332 = vld [vmem:[%s2 + $0x948] sm:$0xff]
    %v333 = vld [vmem:[%s2 + $0x950] sm:$0xff]
    %v334 = vld [vmem:[%s2 + $0x958] sm:$0xff]
    %v335 = vld [vmem:[%s2 + $0x960] sm:$0xff]
    %v336 = vld [vmem:[%s2 + $0x968] sm:$0xff]
    %v337 = vld [vmem:[%s2 + $0x970] sm:$0xff]
    %v338 = vld [vmem:[%s2 + $0x978] sm:$0xff]
    %v339 = vld [vmem:[%s2 + $0x980] sm:$0xff]
    %v340 = vld [vmem:[%s2 + $0x988] sm:$0xff]
    %v341 = vld [vmem:[%s2 + $0x990] sm:$0xff]
    %v342 = vld [vmem:[%s2 + $0x998] sm:$0xff]
    %v343 = vld [vmem:[%s2 + $0x9a0] sm:$0xff]
    %v344 = vld [vmem:[%s2 + $0x9a8] sm:$0xff]
    %v345 = vld [vmem:[%s2 + $0x9b0] sm:$0xff]
    %v346 = vld [vmem:[%s2 + $0x9b8] sm:$0xff]
    %v347 = vld [vmem:[%s2 + $0x9c0] sm:$0xff]
    %v348 = vld [vmem:[%s2 + $0x9c8] sm:$0xff]
    %v349 = vld [vmem:[%s2 + $0x9d0] sm:$0xff]
    %v350 = vld [vmem:[%s2 + $0x9d8] sm:$0xff]
    %v351 = vld [vmem:[%s2 + $0x9e0] sm:$0xff]
    %v352 = vld [vmem:[%s2 + $0x9e8] sm:$0xff]
    %v353 = vld [vmem:[%s2 + $0x9f0] sm:$0xff]
    %v354 = vld [vmem:[%s2 + $0x9f8] sm:$0xff]
    %v355 = vld [vmem:[%s2 + $0xa00] sm:$0xff]
    %v356 = vld [vmem:[%s2 + $0xa08] sm:$0xff]
    %v357 = vld [vmem:[%s2 + $0xa10] sm:$0xff]
    %v358 = vld [vmem:[%s2 + $0xa18] sm:$0xff]
    %v359 = vld [vmem:[%s2 + $0xa20] sm:$0xff]
    %v360 = vld [vmem:[%s2 + $0xa28] sm:$0xff]
    %v361 = vld [vmem:[%s2 + $0xa30] sm:$0xff]
    %v362 = vld [vmem:[%s2 + $0xa38] sm:$0xff]
    %v363 = vld [vmem:[%s2 + $0xa40] sm:$0xff]
    %v364 = vld [vmem:[%s2 + $0xa48] sm:$0xff]
    %v365 = vld [vmem:[%s2 + $0xa50] sm:$0xff]
    %v366 = vld [vmem:[%s2 + $0xa58] sm:$0xff]
    %v367 = vld [vmem:[%s2 + $0xa60] sm:$0xff]
    %v368 = vld [vmem:[%s2 + $0xa68] sm:$0xff]
    %v369 = vld [vmem:[%s2 + $0xa70] sm:$0xff]
    %v370 = vld [vmem:[%s2 + $0xa78] sm:$0xff]
    %v371 = vld [vmem:[%s2 + $0xa80] sm:$0xff]
    %v372 = vld [vmem:[%s2 + $0xa88] sm:$0xff]
    %v373 = vld [vmem:[%s2 + $0xa90] sm:$0xff]
    %v374 = vld [vmem:[%s2 + $0xa98] sm:$0xff]
    %v375 = vld [vmem:[%s2 + $0xaa0] sm:$0xff]
    %v376 = vld [vmem:[%s2 + $0xaa8] sm:$0xff]
    %v377 = vld [vmem:[%s2 + $0xab0] sm:$0xff]
    %v378 = vld [vmem:[%s2 + $0xab8] sm:$0xff]
    %v379 = vld [vmem:[%s2 + $0xac0] sm:$0xff]
    %v380 = vld [vmem:[%s2 + $0xac8] sm:$0xff]
    %v381 = vld [vmem:[%s2 + $0xad0] sm:$0xff]
    %v382 = vld [vmem:[%s2 + $0xad8] sm:$0xff]
    %v383 = vld [vmem:[%s2 + $0xae0] sm:$0xff]
    %v384 = vld [vmem:[%s2 + $0xae8] sm:$0xff]
    %v385 = vld [vmem:[%s2 + $0xaf0] sm:$0xff]
    %v386 = vld [vmem:[%s2 + $0xaf8] sm:$0xff]
    %v387 = vld [vmem:[%s2 + $0xb00] sm:$0xff]
    %v388 = vld [vmem:[%s2 + $0xb08] sm:$0xff]
    %v389 = vld [vmem:[%s2 + $0xb10] sm:$0xff]
    %v390 = vld [vmem:[%s2 + $0xb18] sm:$0xff]
    %v391 = vld [vmem:[%s2 + $0xb20] sm:$0xff]
    %v392 = vld [vmem:[%s2 + $0xb28] sm:$0xff]
    %v393 = vld [vmem:[%s2 + $0xb30] sm:$0xff]
    %v394 = vld [vmem:[%s2 + $0xb38] sm:$0xff]
    %v395 = vld [vmem:[%s2 + $0xb40] sm:$0xff]
    %v396 = vld [vmem:[%s2 + $0xb48] sm:$0xff]
    %v397 = vld [vmem:[%s2 + $0xb50] sm:$0xff]
    %v398 = vld [vmem:[%s2 + $0xb58] sm:$0xff]
    %v399 = vld [vmem:[%s2 + $0xb60] sm:$0xff]
    %v400 = vld [vmem:[%s2 + $0xb68] sm:$0xff]
    %v401 = vld [vmem:[%s2 + $0xb70] sm:$0xff]
    %v402 = vld [vmem:[%s2 + $0xb78] sm:$0xff]
    %v403 = vld [vmem:[%s2 + $0xb80] sm:$0xff]
    %v404 = vld [vmem:[%s2 + $0xb88] sm:$0xff]
    %v405 = vld [vmem:[%s2 + $0xb90] sm:$0xff]
    %v406 = vld [vmem:[%s2 + $0xb98] sm:$0xff]
    %v407 = vld [vmem:[%s2 + $0xba0] sm:$0xff]
    %v408 = vld [vmem:[%s2 + $0xba8] sm:$0xff]
    %v409 = vld [vmem:[%s2 + $0xbb0] sm:$0xff]
    %v410 = vld [vmem:[%s2 + $0xbb8] sm:$0xff]
    %v411 = vld [vmem:[%s2 + $0xbc0] sm:$0xff]
    %v412 = vld [vmem:[%s2 + $0xbc8] sm:$0xff]
    %v413 = vld [vmem:[%s2 + $0xbd0] sm:$0xff]
    %v414 = vld [vmem:[%s2 + $0xbd8] sm:$0xff]
    %v415 = vld [vmem:[%s2 + $0xbe0] sm:$0xff]
    %v416 = vld [vmem:[%s2 + $0xbe8] sm:$0xff]
    %v417 = vld [vmem:[%s2 + $0xbf0] sm:$0xff]
    %v418 = vld [vmem:[%s2 + $0xbf8] sm:$0xff]
    %v419 = vld [vmem:[%s2 + $0xc00] sm:$0xff]
    %v420 = vld [vmem:[%s2 + $0xc08] sm:$0xff]
    %v421 = vld [vmem:[%s2 + $0xc10] sm:$0xff]
    %v422 = vld [vmem:[%s2 + $0xc18] sm:$0xff]
    %v423 = vld [vmem:[%s2 + $0xc20] sm:$0xff]
    %v424 = vld [vmem:[%s2 + $0xc28] sm:$0xff]
    %v425 = vld [vmem:[%s2 + $0xc30] sm:$0xff]
    %v426 = vld [vmem:[%s2 + $0xc38] sm:$0xff]
    %v427 = vld [vmem:[%s2 + $0xc40] sm:$0xff]
    %v428 = vld [vmem:[%s2 + $0xc48] sm:$0xff]
    %v429 = vld [vmem:[%s2 + $0xc50] sm:$0xff]
    %v430 = vld [vmem:[%s2 + $0xc58] sm:$0xff]
    %v431 = vld [vmem:[%s2 + $0xc60] sm:$0xff]
    %v432 = vld [vmem:[%s2 + $0xc68] sm:$0xff]
    %v433 = vld [vmem:[%s2 + $0xc70] sm:$0xff]
    %v434 = vld [vmem:[%s2 + $0xc78] sm:$0xff]
    %v435 = vld [vmem:[%s2 + $0xc80] sm:$0xff]
    %v436 = vld [vmem:[%s2 + $0xc88] sm:$0xff]
    %v437 = vld [vmem:[%s2 + $0xc90] sm:$0xff]
    %v438 = vld [vmem:[%s2 + $0xc98] sm:$0xff]
    %v439 = vld [vmem:[%s2 + $0xca0] sm:$0xff]
    %v440 = vld [vmem:[%s2 + $0xca8] sm:$0xff]
    %v441 = vld [vmem:[%s2 + $0xcb0] sm:$0xff]
    %v442 = vld [vmem:[%s2 + $0xcb8] sm:$0xff]
    %v443 = vld [vmem:[%s2 + $0xcc0] sm:$0xff]
    %v444 = vld [vmem:[%s2 + $0xcc8] sm:$0xff]
    %v445 = vld [vmem:[%s2 + $0xcd0] sm:$0xff]
    %v446 = vld [vmem:[%s2 + $0xcd8] sm:$0xff]
    %v447 = vld [vmem:[%s2 + $0xce0] sm:$0xff]
    %v448 = vld [vmem:[%s2 + $0xce8] sm:$0xff]
    %v449 = vld [vmem:[%s2 + $0xcf0] sm:$0xff]
    %v450 = vld [vmem:[%s2 + $0xcf8] sm:$0xff]
    %v451 = vld [vmem:[%s2 + $0xd00] sm:$0xff]
    %v452 = vld [vmem:[%s2 + $0xd08] sm:$0xff]
    %v453 = vld [vmem:[%s2 + $0xd10] sm:$0xff]
    %v454 = vld [vmem:[%s2 + $0xd18] sm:$0xff]
    %v455 = vld [vmem:[%s2 + $0xd20] sm:$0xff]
    %v456 = vld [vmem:[%s2 + $0xd28] sm:$0xff]
    %v457 = vld [vmem:[%s2 + $0xd30] sm:$0xff]
    %v458 = vld [vmem:[%s2 + $0xd38] sm:$0xff]
    %v459 = vld [vmem:[%s2 + $0xd40] sm:$0xff]
    %v460 = vld [vmem:[%s2 + $0xd48] sm:$0xff]
    %v461 = vld [vmem:[%s2 + $0xd50] sm:$0xff]
    %v462 = vld [vmem:[%s2 + $0xd58] sm:$0xff]
    %v463 = vld [vmem:[%s2 + $0xd60] sm:$0xff]
    %v464 = vld [vmem:[%s2 + $0xd68] sm:$0xff]
    %v465 = vld [vmem:[%s2 + $0xd70] sm:$0xff]
    %v466 = vld [vmem:[%s2 + $0xd78] sm:$0xff]
    %v467 = vld [vmem:[%s2 + $0xd80] sm:$0xff]
    %v468 = vld [vmem:[%s2 + $0xd88] sm:$0xff]
    %v469 = vld [vmem:[%s2 + $0xd90] sm:$0xff]
    %v470 = vld [vmem:[%s2 + $0xd98] sm:$0xff]
    %v471 = vld [vmem:[%s2 + $0xda0] sm:$0xff]
    %v472 = vld [vmem:[%s2 + $0xda8] sm:$0xff]
    %v473 = vld [vmem:[%s2 + $0xdb0] sm:$0xff]
    %v474 = vld [vmem:[%s2 + $0xdb8] sm:$0xff]
    %v475 = vld [vmem:[%s2 + $0xdc0] sm:$0xff]
    %v476 = vld [vmem:[%s2 + $0xdc8] sm:$0xff]
    %v477 = vld [vmem:[%s2 + $0xdd0] sm:$0xff]
    %v478 = vld [vmem:[%s2 + $0xdd8] sm:$0xff]
    %v479 = vld [vmem:[%s2 + $0xde0] sm:$0xff]
    %v480 = vld [vmem:[%s2 + $0xde8] sm:$0xff]
    %v481 = vld [vmem:[%s2 + $0xdf0] sm:$0xff]
    %v482 = vld [vmem:[%s2 + $0xdf8] sm:$0xff]
    %v483 = vld [vmem:[%s2 + $0xe00] sm:$0xff]
    %v484 = vld [vmem:[%s2 + $0xe08] sm:$0xff]
    %v485 = vld [vmem:[%s2 + $0xe10] sm:$0xff]
    %v486 = vld [vmem:[%s2 + $0xe18] sm:$0xff]
    %v487 = vld [vmem:[%s2 + $0xe20] sm:$0xff]
    %v488 = vld [vmem:[%s2 + $0xe28] sm:$0xff]
    %v489 = vld [vmem:[%s2 + $0xe30] sm:$0xff]
    %v490 = vld [vmem:[%s2 + $0xe38] sm:$0xff]
    %v491 = vld [vmem:[%s2 + $0xe40] sm:$0xff]
    %v492 = vld [vmem:[%s2 + $0xe48] sm:$0xff]
    %v493 = vld [vmem:[%s2 + $0xe50] sm:$0xff]
    %v494 = vld [vmem:[%s2 + $0xe58] sm:$0xff]
    %v495 = vld [vmem:[%s2 + $0xe60] sm:$0xff]
    %v496 = vld [vmem:[%s2 + $0xe68] sm:$0xff]
    %v497 = vld [vmem:[%s2 + $0xe70] sm:$0xff]
    %v498 = vld [vmem:[%s2 + $0xe78] sm:$0xff]
    %v499 = vld [vmem:[%s2 + $0xe80] sm:$0xff]
    %v500 = vld [vmem:[%s2 + $0xe88] sm:$0xff]
    %v501 = vld [vmem:[%s2 + $0xe90] sm:$0xff]
    %v502 = vld [vmem:[%s2 + $0xe98] sm:$0xff]
    %v503 = vld [vmem:[%s2 + $0xea0] sm:$0xff]
    %v504 = vld [vmem:[%s2 + $0xea8] sm:$0xff]
    %v505 = vld [vmem:[%s2 + $0xeb0] sm:$0xff]
    %v506 = vld [vmem:[%s2 + $0xeb8] sm:$0xff]
    %v507 = vld [vmem:[%s2 + $0xec0] sm:$0xff]
    %v508 = vld [vmem:[%s2 + $0xec8] sm:$0xff]
    %v509 = vld [vmem:[%s2 + $0xed0] sm:$0xff]
    %v510 = vld [vmem:[%s2 + $0xed8] sm:$0xff]
    %v511 = vld [vmem:[%s2 + $0xee0] sm:$0xff]
    %v512 = vld [vmem:[%s2 + $0xee8] sm:$0xff]
    %v513 = vld [vmem:[%s2 + $0xef0] sm:$0xff]
    %v514 = vld [vmem:[%s2 + $0xef8] sm:$0xff]
    %v515 = vld [vmem:[%s2 + $0xf00] sm:$0xff]
    %v516 = vld [vmem:[%s2 + $0xf08] sm:$0xff]
    %v517 = vld [vmem:[%s2 + $0xf10] sm:$0xff]
    %v518 = vld [vmem:[%s2 + $0xf18] sm:$0xff]
    %v519 = vld [vmem:[%s2 + $0xf20] sm:$0xff]
    %v520 = vld [vmem:[%s2 + $0xf28] sm:$0xff]
    %v521 = vld [vmem:[%s2 + $0xf30] sm:$0xff]
    %v522 = vld [vmem:[%s2 + $0xf38] sm:$0xff]
    %v523 = vld [vmem:[%s2 + $0xf40] sm:$0xff]
    %v524 = vld [vmem:[%s2 + $0xf48] sm:$0xff]
    %v525 = vld [vmem:[%s2 + $0xf50] sm:$0xff]
    %v526 = vld [vmem:[%s2 + $0xf58] sm:$0xff]
    %v527 = vld [vmem:[%s2 + $0xf60] sm:$0xff]
    %v528 = vld [vmem:[%s2 + $0xf68] sm:$0xff]
    %v529 = vld [vmem:[%s2 + $0xf70] sm:$0xff]
    %v530 = vld [vmem:[%s2 + $0xf78] sm:$0xff]
    %v531 = vld [vmem:[%s2 + $0xf80] sm:$0xff]
    %v532 = vld [vmem:[%s2 + $0xf88] sm:$0xff]
    %v533 = vld [vmem:[%s2 + $0xf90] sm:$0xff]
    %v534 = vld [vmem:[%s2 + $0xf98] sm:$0xff]
    %v535 = vld [vmem:[%s2 + $0xfa0] sm:$0xff]
    %v536 = vld [vmem:[%s2 + $0xfa8] sm:$0xff]
    %v537 = vld [vmem:[%s2 + $0xfb0] sm:$0xff]
    %v538 = vld [vmem:[%s2 + $0xfb8] sm:$0xff]
    %v539 = vld [vmem:[%s2 + $0xfc0] sm:$0xff]
    %v540 = vld [vmem:[%s2 + $0xfc8] sm:$0xff]
    %v541 = vld [vmem:[%s2 + $0xfd0] sm:$0xff]
    %v542 = vld [vmem:[%s2 + $0xfd8] sm:$0xff]
    %v543 = vld [vmem:[%s2 + $0xfe0] sm:$0xff]
    %v544 = vld [vmem:[%s2 + $0xfe8] sm:$0xff]
    %v545 = vld [vmem:[%s2 + $0xff0] sm:$0xff]
    %v546 = vld [vmem:[%s2 + $0xff8] sm:$0xff]
    %v547 = vld [vmem:[%s2 + $0x1000] sm:$0xff]
    %v548 = vld [vmem:[%s2 + $0x1008] sm:$0xff]
    %v549 = vld [vmem:[%s2 + $0x1010] sm:$0xff]
    %v550 = vld [vmem:[%s2 + $0x1018] sm:$0xff]
    %v551 = vld [vmem:[%s2 + $0x1020] sm:$0xff]
    %v552 = vld [vmem:[%s2 + $0x1028] sm:$0xff]
    %v553 = vld [vmem:[%s2 + $0x1030] sm:$0xff]
    %v554 = vld [vmem:[%s2 + $0x1038] sm:$0xff]
    %v555 = vld [vmem:[%s2 + $0x1040] sm:$0xff]
    %v556 = vld [vmem:[%s2 + $0x1048] sm:$0xff]
    %v557 = vld [vmem:[%s2 + $0x1050] sm:$0xff]
    %v558 = vld [vmem:[%s2 + $0x1058] sm:$0xff]
    %v559 = vld [vmem:[%s2 + $0x1060] sm:$0xff]
    %v560 = vld [vmem:[%s2 + $0x1068] sm:$0xff]
    %v561 = vld [vmem:[%s2 + $0x1070] sm:$0xff]
    %v562 = vld [vmem:[%s2 + $0x1078] sm:$0xff]
    %v563 = vld [vmem:[%s2 + $0x1080] sm:$0xff]
    %v564 = vld [vmem:[%s2 + $0x1088] sm:$0xff]
    %v565 = vld [vmem:[%s2 + $0x1090] sm:$0xff]
    %v566 = vld [vmem:[%s2 + $0x1098] sm:$0xff]
    %v567 = vld [vmem:[%s2 + $0x10a0] sm:$0xff]
    %v568 = vld [vmem:[%s2 + $0x10a8] sm:$0xff]
    %v569 = vld [vmem:[%s2 + $0x10b0] sm:$0xff]
    %v570 = vld [vmem:[%s2 + $0x10b8] sm:$0xff]
    %v571 = vld [vmem:[%s2 + $0x10c0] sm:$0xff]
    %v572 = vld [vmem:[%s2 + $0x10c8] sm:$0xff]
    %v573 = vld [vmem:[%s2 + $0x10d0] sm:$0xff]
    %v574 = vld [vmem:[%s2 + $0x10d8] sm:$0xff]
    %v575 = vld [vmem:[%s2 + $0x10e0] sm:$0xff]
    %v576 = vld [vmem:[%s2 + $0x10e8] sm:$0xff]
    %v577 = vld [vmem:[%s2 + $0x10f0] sm:$0xff]
    %v578 = vld [vmem:[%s2 + $0x10f8] sm:$0xff]
    %v579 = vld [vmem:[%s2 + $0x1100] sm:$0xff]
    %v580 = vld [vmem:[%s2 + $0x1108] sm:$0xff]
    %v581 = vld [vmem:[%s2 + $0x1110] sm:$0xff]
    %v582 = vld [vmem:[%s2 + $0x1118] sm:$0xff]
    %v583 = vld [vmem:[%s2 + $0x1120] sm:$0xff]
    %v584 = vld [vmem:[%s2 + $0x1128] sm:$0xff]
    %v585 = vld [vmem:[%s2 + $0x1130] sm:$0xff]
    %v586 = vld [vmem:[%s2 + $0x1138] sm:$0xff]
    %v587 = vld [vmem:[%s2 + $0x1140] sm:$0xff]
    %v588 = vld [vmem:[%s2 + $0x1148] sm:$0xff]
    %v589 = vld [vmem:[%s2 + $0x1150] sm:$0xff]
    %v590 = vld [vmem:[%s2 + $0x1158] sm:$0xff]
    %v591 = vld [vmem:[%s2 + $0x1160] sm:$0xff]
    %v592 = vld [vmem:[%s2 + $0x1168] sm:$0xff]
    %v593 = vld [vmem:[%s2 + $0x1170] sm:$0xff]
    %v594 = vld [vmem:[%s2 + $0x1178] sm:$0xff]
    %v595 = vld [vmem:[%s2 + $0x1180] sm:$0xff]
    %v596 = vld [vmem:[%s2 + $0x1188] sm:$0xff]
    %v597 = vld [vmem:[%s2 + $0x1190] sm:$0xff]
    %v598 = vld [vmem:[%s2 + $0x1198] sm:$0xff]
    %v599 = vld [vmem:[%s2 + $0x11a0] sm:$0xff]
    %v600 = vld [vmem:[%s2 + $0x11a8] sm:$0xff]
    %v601 = vld [vmem:[%s2 + $0x11b0] sm:$0xff]
    %v602 = vld [vmem:[%s2 + $0x11b8] sm:$0xff]
    %v603 = vld [vmem:[%s2 + $0x11c0] sm:$0xff]
    %v604 = vld [vmem:[%s2 + $0x11c8] sm:$0xff]
    %v605 = vld [vmem:[%s2 + $0x11d0] sm:$0xff]
    %v606 = vld [vmem:[%s2 + $0x11d8] sm:$0xff]
    %v607 = vld [vmem:[%s2 + $0x11e0] sm:$0xff]
    %v608 = vld [vmem:[%s2 + $0x11e8] sm:$0xff]
    %v609 = vld [vmem:[%s2 + $0x11f0] sm:$0xff]
    %v610 = vld [vmem:[%s2 + $0x11f8] sm:$0xff]
    %v611 = vld [vmem:[%s2 + $0x1200] sm:$0xff]
    %v612 = vld [vmem:[%s2 + $0x1208] sm:$0xff]
    %v613 = vld [vmem:[%s2 + $0x1210] sm:$0xff]
    %v614 = vld [vmem:[%s2 + $0x1218] sm:$0xff]
    %v615 = vld [vmem:[%s2 + $0x1220] sm:$0xff]
    %v616 = vld [vmem:[%s2 + $0x1228] sm:$0xff]
    %v617 = vld [vmem:[%s2 + $0x1230] sm:$0xff]
    %v618 = vld [vmem:[%s2 + $0x1238] sm:$0xff]
    %v619 = vld [vmem:[%s2 + $0x1240] sm:$0xff]
    %v620 = vld [vmem:[%s2 + $0x1248] sm:$0xff]
    %v621 = vld [vmem:[%s2 + $0x1250] sm:$0xff]
    %v622 = vld [vmem:[%s2 + $0x1258] sm:$0xff]
    %v623 = vld [vmem:[%s2 + $0x1260] sm:$0xff]
    %v624 = vld [vmem:[%s2 + $0x1268] sm:$0xff]
    %v625 = vld [vmem:[%s2 + $0x1270] sm:$0xff]
    %v626 = vld [vmem:[%s2 + $0x1278] sm:$0xff]
    %v627 = vld [vmem:[%s2 + $0x1280] sm:$0xff]
    %v628 = vld [vmem:[%s2 + $0x1288] sm:$0xff]
    %v629 = vld [vmem:[%s2 + $0x1290] sm:$0xff]
    %v630 = vld [vmem:[%s2 + $0x1298] sm:$0xff]
    %v631 = vld [vmem:[%s2 + $0x12a0] sm:$0xff]
    %v632 = vld [vmem:[%s2 + $0x12a8] sm:$0xff]
    %v633 = vld [vmem:[%s2 + $0x12b0] sm:$0xff]
    %v634 = vld [vmem:[%s2 + $0x12b8] sm:$0xff]
    %v635 = vld [vmem:[%s2 + $0x12c0] sm:$0xff]
    %v636 = vld [vmem:[%s2 + $0x12c8] sm:$0xff]
    %v637 = vld [vmem:[%s2 + $0x12d0] sm:$0xff]
    %v638 = vld [vmem:[%s2 + $0x12d8] sm:$0xff]
    %v639 = vld [vmem:[%s2 + $0x12e0] sm:$0xff]
    %v640 = vld [vmem:[%s2 + $0x12e8] sm:$0xff]
    %v641 = vld [vmem:[%s2 + $0x12f0] sm:$0xff]
    %v642 = vld [vmem:[%s2 + $0x12f8] sm:$0xff]
    %v643 = vld [vmem:[%s2 + $0x1300] sm:$0xff]
    %v644 = vld [vmem:[%s2 + $0x1308] sm:$0xff]
    %v645 = vld [vmem:[%s2 + $0x1310] sm:$0xff]
    %v646 = vld [vmem:[%s2 + $0x1318] sm:$0xff]
    %v647 = vld [vmem:[%s2 + $0x1320] sm:$0xff]
    %v648 = vld [vmem:[%s2 + $0x1328] sm:$0xff]
    %v649 = vld [vmem:[%s2 + $0x1330] sm:$0xff]
    %v650 = vld [vmem:[%s2 + $0x1338] sm:$0xff]
    %v651 = vld [vmem:[%s2 + $0x1340] sm:$0xff]
    %v652 = vld [vmem:[%s2 + $0x1348] sm:$0xff]
    %v653 = vld [vmem:[%s2 + $0x1350] sm:$0xff]
    %v654 = vld [vmem:[%s2 + $0x1358] sm:$0xff]
    %v655 = vld [vmem:[%s2 + $0x1360] sm:$0xff]
    %v656 = vld [vmem:[%s2 + $0x1368] sm:$0xff]
    %v657 = vld [vmem:[%s2 + $0x1370] sm:$0xff]
    %v658 = vld [vmem:[%s2 + $0x1378] sm:$0xff]
    %v659 = vld [vmem:[%s2 + $0x1380] sm:$0xff]
    %v660 = vld [vmem:[%s2 + $0x1388] sm:$0xff]
    %v661 = vld [vmem:[%s2 + $0x1390] sm:$0xff]
    %v662 = vld [vmem:[%s2 + $0x1398] sm:$0xff]
    %v663 = vld [vmem:[%s2 + $0x13a0] sm:$0xff]
    %v664 = vld [vmem:[%s2 + $0x13a8] sm:$0xff]
    %v665 = vld [vmem:[%s2 + $0x13b0] sm:$0xff]
    %v666 = vld [vmem:[%s2 + $0x13b8] sm:$0xff]
    %v667 = vld [vmem:[%s2 + $0x13c0] sm:$0xff]
    %v668 = vld [vmem:[%s2 + $0x13c8] sm:$0xff]
    %v669 = vld [vmem:[%s2 + $0x13d0] sm:$0xff]
    %v670 = vld [vmem:[%s2 + $0x13d8] sm:$0xff]
    %v671 = vld [vmem:[%s2 + $0x13e0] sm:$0xff]
    %v672 = vld [vmem:[%s2 + $0x13e8] sm:$0xff]
    %v673 = vld [vmem:[%s2 + $0x13f0] sm:$0xff]
    %v674 = vld [vmem:[%s2 + $0x13f8] sm:$0xff]
    %v675 = vld [vmem:[%s2 + $0x1400] sm:$0xff]
    %v676 = vld [vmem:[%s2 + $0x1408] sm:$0xff]
    %v677 = vld [vmem:[%s2 + $0x1410] sm:$0xff]
    %v678 = vld [vmem:[%s2 + $0x1418] sm:$0xff]
    %v679 = vld [vmem:[%s2 + $0x1420] sm:$0xff]
    %v680 = vld [vmem:[%s2 + $0x1428] sm:$0xff]
    %v681 = vld [vmem:[%s2 + $0x1430] sm:$0xff]
    %v682 = vld [vmem:[%s2 + $0x1438] sm:$0xff]
    %v683 = vld [vmem:[%s2 + $0x1440] sm:$0xff]
    %v684 = vld [vmem:[%s2 + $0x1448] sm:$0xff]
    %v685 = vld [vmem:[%s2 + $0x1450] sm:$0xff]
    %v686 = vld [vmem:[%s2 + $0x1458] sm:$0xff]
    %v687 = vld [vmem:[%s2 + $0x1460] sm:$0xff]
    %v688 = vld [vmem:[%s2 + $0x1468] sm:$0xff]
    %v689 = vld [vmem:[%s2 + $0x1470] sm:$0xff]
    %v690 = vld [vmem:[%s2 + $0x1478] sm:$0xff]
    %v691 = vld [vmem:[%s2 + $0x1480] sm:$0xff]
    %v692 = vld [vmem:[%s2 + $0x1488] sm:$0xff]
    %v693 = vld [vmem:[%s2 + $0x1490] sm:$0xff]
    %v694 = vld [vmem:[%s2 + $0x1498] sm:$0xff]
    %v695 = vld [vmem:[%s2 + $0x14a0] sm:$0xff]
    %v696 = vld [vmem:[%s2 + $0x14a8] sm:$0xff]
    %v697 = vld [vmem:[%s2 + $0x14b0] sm:$0xff]
    %v698 = vld [vmem:[%s2 + $0x14b8] sm:$0xff]
    %v699 = vld [vmem:[%s2 + $0x14c0] sm:$0xff]
    %v700 = vld [vmem:[%s2 + $0x14c8] sm:$0xff]
    %v701 = vld [vmem:[%s2 + $0x14d0] sm:$0xff]
    %v702 = vld [vmem:[%s2 + $0x14d8] sm:$0xff]
    %v703 = vld [vmem:[%s2 + $0x14e0] sm:$0xff]
    %v704 = vld [vmem:[%s2 + $0x14e8] sm:$0xff]
    %v705 = vld [vmem:[%s2 + $0x14f0] sm:$0xff]
    %v706 = vld [vmem:[%s2 + $0x14f8] sm:$0xff]
    %v707 = vld [vmem:[%s2 + $0x1500] sm:$0xff]
    %v708 = vld [vmem:[%s2 + $0x1508] sm:$0xff]
    %v709 = vld [vmem:[%s2 + $0x1510] sm:$0xff]
    %v710 = vld [vmem:[%s2 + $0x1518] sm:$0xff]
    %v711 = vld [vmem:[%s2 + $0x1520] sm:$0xff]
    %v712 = vld [vmem:[%s2 + $0x1528] sm:$0xff]
    %v713 = vld [vmem:[%s2 + $0x1530] sm:$0xff]
    %v714 = vld [vmem:[%s2 + $0x1538] sm:$0xff]
    %v715 = vld [vmem:[%s2 + $0x1540] sm:$0xff]
    %v716 = vld [vmem:[%s2 + $0x1548] sm:$0xff]
    %v717 = vld [vmem:[%s2 + $0x1550] sm:$0xff]
    %v718 = vld [vmem:[%s2 + $0x1558] sm:$0xff]
    %v719 = vld [vmem:[%s2 + $0x1560] sm:$0xff]
    %v720 = vld [vmem:[%s2 + $0x1568] sm:$0xff]
    %v721 = vld [vmem:[%s2 + $0x1570] sm:$0xff]
    %v722 = vld [vmem:[%s2 + $0x1578] sm:$0xff]
    %v723 = vld [vmem:[%s2 + $0x1580] sm:$0xff]
    %v724 = vld [vmem:[%s2 + $0x1588] sm:$0xff]
    %v725 = vld [vmem:[%s2 + $0x1590] sm:$0xff]
    %v726 = vld [vmem:[%s2 + $0x1598] sm:$0xff]
    %v727 = vld [vmem:[%s2 + $0x15a0] sm:$0xff]
    %v728 = vld [vmem:[%s2 + $0x15a8] sm:$0xff]
    %v729 = vld [vmem:[%s2 + $0x15b0] sm:$0xff]
    %v730 = vld [vmem:[%s2 + $0x15b8] sm:$0xff]
    %v731 = vld [vmem:[%s2 + $0x15c0] sm:$0xff]
    %v732 = vld [vmem:[%s2 + $0x15c8] sm:$0xff]
    %v733 = vld [vmem:[%s2 + $0x15d0] sm:$0xff]
    %v734 = vld [vmem:[%s2 + $0x15d8] sm:$0xff]
    %v735 = vld [vmem:[%s2 + $0x15e0] sm:$0xff]
    %v736 = vld [vmem:[%s2 + $0x15e8] sm:$0xff]
    %v737 = vld [vmem:[%s2 + $0x15f0] sm:$0xff]
    %v738 = vld [vmem:[%s2 + $0x15f8] sm:$0xff]
    %v739 = vld [vmem:[%s2 + $0x1600] sm:$0xff]
    %v740 = vld [vmem:[%s2 + $0x1608] sm:$0xff]
    %v741 = vld [vmem:[%s2 + $0x1610] sm:$0xff]
    %v742 = vld [vmem:[%s2 + $0x1618] sm:$0xff]
    %v743 = vld [vmem:[%s2 + $0x1620] sm:$0xff]
    %v744 = vld [vmem:[%s2 + $0x1628] sm:$0xff]
    %v745 = vld [vmem:[%s2 + $0x1630] sm:$0xff]
    %v746 = vld [vmem:[%s2 + $0x1638] sm:$0xff]
    %v747 = vld [vmem:[%s2 + $0x1640] sm:$0xff]
    %v748 = vld [vmem:[%s2 + $0x1648] sm:$0xff]
    %v749 = vld [vmem:[%s2 + $0x1650] sm:$0xff]
    %v750 = vld [vmem:[%s2 + $0x1658] sm:$0xff]
    %v751 = vld [vmem:[%s2 + $0x1660] sm:$0xff]
    %v752 = vld [vmem:[%s2 + $0x1668] sm:$0xff]
    %v753 = vld [vmem:[%s2 + $0x1670] sm:$0xff]
    %v754 = vld [vmem:[%s2 + $0x1678] sm:$0xff]
    %v755 = vld [vmem:[%s2 + $0x1680] sm:$0xff]
    %v756 = vld [vmem:[%s2 + $0x1688] sm:$0xff]
    %v757 = vld [vmem:[%s2 + $0x1690] sm:$0xff]
    %v758 = vld [vmem:[%s2 + $0x1698] sm:$0xff]
    %v759 = vld [vmem:[%s2 + $0x16a0] sm:$0xff]
    %v760 = vld [vmem:[%s2 + $0x16a8] sm:$0xff]
    %v761 = vld [vmem:[%s2 + $0x16b0] sm:$0xff]
    %v762 = vld [vmem:[%s2 + $0x16b8] sm:$0xff]
    %v763 = vld [vmem:[%s2 + $0x16c0] sm:$0xff]
    %v764 = vld [vmem:[%s2 + $0x16c8] sm:$0xff]
    %v765 = vld [vmem:[%s2 + $0x16d0] sm:$0xff]
    %v766 = vld [vmem:[%s2 + $0x16d8] sm:$0xff]
    %v767 = vld [vmem:[%s2 + $0x16e0] sm:$0xff]
    %v768 = vld [vmem:[%s2 + $0x16e8] sm:$0xff]
    %v769 = vld [vmem:[%s2 + $0x16f0] sm:$0xff]
    %v770 = vld [vmem:[%s2 + $0x16f8] sm:$0xff]
    %v771 = vld [vmem:[%s2 + $0x1700] sm:$0xff]
    %v772 = vld [vmem:[%s2 + $0x1708] sm:$0xff]
    %v773 = vld [vmem:[%s2 + $0x1710] sm:$0xff]
    %v774 = vld [vmem:[%s2 + $0x1718] sm:$0xff]
    %v775 = vld [vmem:[%s2 + $0x1720] sm:$0xff]
    %v776 = vld [vmem:[%s2 + $0x1728] sm:$0xff]
    %v777 = vld [vmem:[%s2 + $0x1730] sm:$0xff]
    %v778 = vld [vmem:[%s2 + $0x1738] sm:$0xff]
    %v779 = vld [vmem:[%s2 + $0x1740] sm:$0xff]
    %v780 = vld [vmem:[%s2 + $0x1748] sm:$0xff]
    %v781 = vld [vmem:[%s2 + $0x1750] sm:$0xff]
    %v782 = vld [vmem:[%s2 + $0x1758] sm:$0xff]
    %v783 = vld [vmem:[%s2 + $0x1760] sm:$0xff]
    %v784 = vld [vmem:[%s2 + $0x1768] sm:$0xff]
    %v785 = vld [vmem:[%s2 + $0x1770] sm:$0xff]
    %v786 = vld [vmem:[%s2 + $0x1778] sm:$0xff]
    %v787 = vld [vmem:[%s2 + $0x1780] sm:$0xff]
    %v788 = vld [vmem:[%s2 + $0x1788] sm:$0xff]
    %v789 = vld [vmem:[%s2 + $0x1790] sm:$0xff]
    %v790 = vld [vmem:[%s2 + $0x1798] sm:$0xff]
    %v791 = vld [vmem:[%s2 + $0x17a0] sm:$0xff]
    %v792 = vld [vmem:[%s2 + $0x17a8] sm:$0xff]
    %v793 = vld [vmem:[%s2 + $0x17b0] sm:$0xff]
    %v794 = vld [vmem:[%s2 + $0x17b8] sm:$0xff]
    %v795 = vld [vmem:[%s2 + $0x17c0] sm:$0xff]
    %v796 = vld [vmem:[%s2 + $0x17c8] sm:$0xff]
    %v797 = vld [vmem:[%s2 + $0x17d0] sm:$0xff]
    %v798 = vld [vmem:[%s2 + $0x17d8] sm:$0xff]
    %v799 = vld [vmem:[%s2 + $0x17e0] sm:$0xff]
    %v800 = vld [vmem:[%s2 + $0x17e8] sm:$0xff]
    %v801 = vld [vmem:[%s2 + $0x17f0] sm:$0xff]
    %v802 = vld [vmem:[%s2 + $0x17f8] sm:$0xff]
    %v803 = vld [vmem:[%s2 + $0x1800] sm:$0xff]
    %v804 = vld [vmem:[%s2 + $0x1808] sm:$0xff]
    %v805 = vld [vmem:[%s2 + $0x1810] sm:$0xff]
    %v806 = vld [vmem:[%s2 + $0x1818] sm:$0xff]
    %v807 = vld [vmem:[%s2 + $0x1820] sm:$0xff]
    %v808 = vld [vmem:[%s2 + $0x1828] sm:$0xff]
    %v809 = vld [vmem:[%s2 + $0x1830] sm:$0xff]
    %v810 = vld [vmem:[%s2 + $0x1838] sm:$0xff]
    %v811 = vld [vmem:[%s2 + $0x1840] sm:$0xff]
    %v812 = vld [vmem:[%s2 + $0x1848] sm:$0xff]
    %v813 = vld [vmem:[%s2 + $0x1850] sm:$0xff]
    %v814 = vld [vmem:[%s2 + $0x1858] sm:$0xff]
    %v815 = vld [vmem:[%s2 + $0x1860] sm:$0xff]
    %v816 = vld [vmem:[%s2 + $0x1868] sm:$0xff]
    %v817 = vld [vmem:[%s2 + $0x1870] sm:$0xff]
    %v818 = vld [vmem:[%s2 + $0x1878] sm:$0xff]
    %v819 = vld [vmem:[%s2 + $0x1880] sm:$0xff]
    %v820 = vld [vmem:[%s2 + $0x1888] sm:$0xff]
    %v821 = vld [vmem:[%s2 + $0x1890] sm:$0xff]
    %v822 = vld [vmem:[%s2 + $0x1898] sm:$0xff]
    %v823 = vld [vmem:[%s2 + $0x18a0] sm:$0xff]
    %v824 = vld [vmem:[%s2 + $0x18a8] sm:$0xff]
    %v825 = vld [vmem:[%s2 + $0x18b0] sm:$0xff]
    %v826 = vld [vmem:[%s2 + $0x18b8] sm:$0xff]
    %v827 = vld [vmem:[%s2 + $0x18c0] sm:$0xff]
    %v828 = vld [vmem:[%s2 + $0x18c8] sm:$0xff]
    %v829 = vld [vmem:[%s2 + $0x18d0] sm:$0xff]
    %v830 = vld [vmem:[%s2 + $0x18d8] sm:$0xff]
    %v831 = vld [vmem:[%s2 + $0x18e0] sm:$0xff]
    %v832 = vld [vmem:[%s2 + $0x18e8] sm:$0xff]
    %v833 = vld [vmem:[%s2 + $0x18f0] sm:$0xff]
    %v834 = vld [vmem:[%s2 + $0x18f8] sm:$0xff]
    %v835 = vld [vmem:[%s3] sm:$0xff]
    %v836 = vld [vmem:[%s3 + $0x8] sm:$0xff]
    %v839 = vlaneseq
    %v840 = vshrl.u32 %v839, 7
    %v841 = vsub.s32 0, %v840
    %v842 = vrot.slane %v835, %v841
    %v843 = vlaneseq
    %v844 = vshrl.u32 %v843, 7
    %v845 = vsub.s32 1, %v844
    %v846 = vrot.slane %v835, %v845
    %v847 = vlaneseq
    %v848 = vshrl.u32 %v847, 7
    %v849 = vsub.s32 2, %v848
    %v850 = vrot.slane %v835, %v849
    %v851 = vlaneseq
    %v852 = vshrl.u32 %v851, 7
    %v853 = vsub.s32 3, %v852
    %v854 = vrot.slane %v835, %v853
    %v855 = vlaneseq
    %v856 = vshrl.u32 %v855, 7
    %v857 = vsub.s32 4, %v856
    %v858 = vrot.slane %v835, %v857
    %v859 = vlaneseq
    %v860 = vshrl.u32 %v859, 7
    %v861 = vsub.s32 5, %v860
    %v862 = vrot.slane %v835, %v861
    %v863 = vlaneseq
    %v864 = vshrl.u32 %v863, 7
    %v865 = vsub.s32 6, %v864
    %v866 = vrot.slane %v835, %v865
    %v867 = vlaneseq
    %v868 = vshrl.u32 %v867, 7
    %v869 = vsub.s32 7, %v868
    %v870 = vrot.slane %v835, %v869
    %v871 = vlaneseq
    %v872 = vshrl.u32 %v871, 7
    %v873 = vsub.s32 0, %v872
    %v874 = vrot.slane %v836, %v873
    %v875 = vlaneseq
    %v876 = vshrl.u32 %v875, 7
    %v877 = vsub.s32 1, %v876
    %v878 = vrot.slane %v836, %v877
    %v879 = vlaneseq
    %v880 = vshrl.u32 %v879, 7
    %v881 = vsub.s32 2, %v880
    %v882 = vrot.slane %v836, %v881
    %v883 = vlaneseq
    %v884 = vshrl.u32 %v883, 7
    %v885 = vsub.s32 3, %v884
    %v886 = vrot.slane %v836, %v885
    %v887 = vlaneseq
    %v888 = vshrl.u32 %v887, 7
    %v889 = vsub.s32 4, %v888
    %v890 = vrot.slane %v836, %v889
    %v891 = vlaneseq
    %v892 = vshrl.u32 %v891, 7
    %v893 = vsub.s32 5, %v892
    %v894 = vrot.slane %v836, %v893
    %v895 = vlaneseq
    %v896 = vshrl.u32 %v895, 7
    %v897 = vsub.s32 6, %v896
    %v898 = vrot.slane %v836, %v897
    %v899 = vlaneseq
    %v900 = vshrl.u32 %v899, 7
    %v901 = vsub.s32 7, %v900
    %v902 = vrot.slane %v836, %v901
    %v920 = vcombine.high %v34, %v34
    %v922 = vunpack.c.l.s4 1966171168
    %v923 = vunpack.c.0.s8 %v922
    %v924 = vlaneseq
    %v925 = vshrl.u32 %v924, 7
    %v926 = vsub.s32 %v923, %v925
    %v927 = vrot.slane %v34, %v926
    %v929 = vunpack.c.l.s4 1966171168
    %v930 = vunpack.c.0.s8 %v929
    %v931 = vlaneseq
    %v932 = vshrl.u32 %v931, 7
    %v933 = vsub.s32 %v930, %v932
    %v934 = vrot.slane %v920, %v933
    %v935 = vcombine.high %v927, %v927
    %v936 = vcombine.high %v934, %v934
    %v938 = vunpack.c.l.s4 1966171168
    %v939 = vunpack.c.0.s8 %v938
    %v940 = vlaneseq
    %v941 = vshrl.u32 %v940, 7
    %v942 = vsub.s32 %v939, %v941
    %v943 = vrot.slane %v927, %v942
    %v945 = vunpack.c.l.s4 1966171168
    %v946 = vunpack.c.0.s8 %v945
    %v947 = vlaneseq
    %v948 = vshrl.u32 %v947, 7
    %v949 = vsub.s32 %v946, %v948
    %v950 = vrot.slane %v934, %v949
    %v952 = vunpack.c.l.s4 1966171168
    %v953 = vunpack.c.0.s8 %v952
    %v954 = vlaneseq
    %v955 = vshrl.u32 %v954, 7
    %v956 = vsub.s32 %v953, %v955
    %v957 = vrot.slane %v935, %v956
    %v959 = vunpack.c.l.s4 1966171168
    %v960 = vunpack.c.0.s8 %v959
    %v961 = vlaneseq
    %v962 = vshrl.u32 %v961, 7
    %v963 = vsub.s32 %v960, %v962
    %v964 = vrot.slane %v936, %v963
    %v965 = vcombine.high %v943, %v943
    %v966 = vcombine.high %v950, %v950
    %v967 = vcombine.high %v957, %v957
    %v1774 = vunpack.c.l.b16 %v35
    %v1775 = vunpack.c.h.b16 %v35
    %v1776 = vunpack.c.l.b16 %v36
    %v1777 = vunpack.c.h.b16 %v36
    %v1778 = vunpack.c.l.b16 %v37
    %v1779 = vunpack.c.h.b16 %v37
    %v1780 = vunpack.c.l.b16 %v38
    %v1781 = vunpack.c.h.b16 %v38
    %v1782 = vunpack.c.l.b16 %v39
    %v1783 = vunpack.c.h.b16 %v39
    %v1784 = vunpack.c.l.b16 %v40
    %v1785 = vunpack.c.h.b16 %v40
    %v1786 = vunpack.c.l.b16 %v41
    %v1787 = vunpack.c.h.b16 %v41
    %v1788 = vunpack.c.l.b16 %v42
    %v1789 = vunpack.c.h.b16 %v42
    %v1790 = vunpack.c.l.b16 %v43
    %v1791 = vunpack.c.h.b16 %v43
    %v1792 = vunpack.c.l.b16 %v44
    %v1793 = vunpack.c.h.b16 %v44
    %v1794 = vunpack.c.l.b16 %v45
    %v1795 = vunpack.c.h.b16 %v45
    %v1796 = vunpack.c.l.b16 %v46
    %v1797 = vunpack.c.h.b16 %v46
    %v1798 = vunpack.c.l.b16 %v47
    %v1799 = vunpack.c.h.b16 %v47
    %v1800 = vunpack.c.l.b16 %v48
    %v1801 = vunpack.c.h.b16 %v48
    %v1802 = vunpack.c.l.b16 %v49
    %v1803 = vunpack.c.h.b16 %v49
    %v1804 = vunpack.c.l.b16 %v50
    %v1805 = vunpack.c.h.b16 %v50
    %v1806 = vunpack.c.l.b16 %v51
    %v1807 = vunpack.c.h.b16 %v51
    %v1808 = vunpack.c.l.b16 %v52
    %v1809 = vunpack.c.h.b16 %v52
    %v1810 = vunpack.c.l.b16 %v53
    %v1811 = vunpack.c.h.b16 %v53
    %v1812 = vunpack.c.l.b16 %v54
    %v1813 = vunpack.c.h.b16 %v54
    %v1814 = vunpack.c.l.b16 %v55
    %v1815 = vunpack.c.h.b16 %v55
    %v1816 = vunpack.c.l.b16 %v56
    %v1817 = vunpack.c.h.b16 %v56
    %v1818 = vunpack.c.l.b16 %v57
    %v1819 = vunpack.c.h.b16 %v57
    %v1820 = vunpack.c.l.b16 %v58
    %v1821 = vunpack.c.h.b16 %v58
    %v1822 = vunpack.c.l.b16 %v59
    %v1823 = vunpack.c.h.b16 %v59
    %v1824 = vunpack.c.l.b16 %v60
    %v1825 = vunpack.c.h.b16 %v60
    %v1826 = vunpack.c.l.b16 %v61
    %v1827 = vunpack.c.h.b16 %v61
    %v1828 = vunpack.c.l.b16 %v62
    %v1829 = vunpack.c.h.b16 %v62
    %v1830 = vunpack.c.l.b16 %v63
    %v1831 = vunpack.c.h.b16 %v63
    %v1832 = vunpack.c.l.b16 %v64
    %v1833 = vunpack.c.h.b16 %v64
    %v1834 = vunpack.c.l.b16 %v65
    %v1835 = vunpack.c.h.b16 %v65
    %v1836 = vunpack.c.l.b16 %v66
    %v1837 = vunpack.c.h.b16 %v66
    %v1838 = vunpack.c.l.b16 %v67
    %v1839 = vunpack.c.h.b16 %v67
    %v1840 = vunpack.c.l.b16 %v68
    %v1841 = vunpack.c.h.b16 %v68
    %v1842 = vunpack.c.l.b16 %v69
    %v1843 = vunpack.c.h.b16 %v69
    %v1844 = vunpack.c.l.b16 %v70
    %v1845 = vunpack.c.h.b16 %v70
    %v1846 = vunpack.c.l.b16 %v71
    %v1847 = vunpack.c.h.b16 %v71
    %v1848 = vunpack.c.l.b16 %v72
    %v1849 = vunpack.c.h.b16 %v72
    %v1850 = vunpack.c.l.b16 %v73
    %v1851 = vunpack.c.h.b16 %v73
    %v1852 = vunpack.c.l.b16 %v74
    %v1853 = vunpack.c.h.b16 %v74
    %v1854 = vunpack.c.l.b16 %v75
    %v1855 = vunpack.c.h.b16 %v75
    %v1856 = vunpack.c.l.b16 %v76
    %v1857 = vunpack.c.h.b16 %v76
    %v1858 = vunpack.c.l.b16 %v77
    %v1859 = vunpack.c.h.b16 %v77
    %v1860 = vunpack.c.l.b16 %v78
    %v1861 = vunpack.c.h.b16 %v78
    %v1862 = vunpack.c.l.b16 %v79
    %v1863 = vunpack.c.h.b16 %v79
    %v1864 = vunpack.c.l.b16 %v80
    %v1865 = vunpack.c.h.b16 %v80
    %v1866 = vunpack.c.l.b16 %v81
    %v1867 = vunpack.c.h.b16 %v81
    %v1868 = vunpack.c.l.b16 %v82
    %v1869 = vunpack.c.h.b16 %v82
    %v1870 = vunpack.c.l.b16 %v83
    %v1871 = vunpack.c.h.b16 %v83
    %v1872 = vunpack.c.l.b16 %v84
    %v1873 = vunpack.c.h.b16 %v84
    %v1874 = vunpack.c.l.b16 %v85
    %v1875 = vunpack.c.h.b16 %v85
    %v1876 = vunpack.c.l.b16 %v86
    %v1877 = vunpack.c.h.b16 %v86
    %v1878 = vunpack.c.l.b16 %v87
    %v1879 = vunpack.c.h.b16 %v87
    %v1880 = vunpack.c.l.b16 %v88
    %v1881 = vunpack.c.h.b16 %v88
    %v1882 = vunpack.c.l.b16 %v89
    %v1883 = vunpack.c.h.b16 %v89
    %v1884 = vunpack.c.l.b16 %v90
    %v1885 = vunpack.c.h.b16 %v90
    %v1886 = vunpack.c.l.b16 %v91
    %v1887 = vunpack.c.h.b16 %v91
    %v1888 = vunpack.c.l.b16 %v92
    %v1889 = vunpack.c.h.b16 %v92
    %v1890 = vunpack.c.l.b16 %v93
    %v1891 = vunpack.c.h.b16 %v93
    %v1892 = vunpack.c.l.b16 %v94
    %v1893 = vunpack.c.h.b16 %v94
    %v1894 = vunpack.c.l.b16 %v95
    %v1895 = vunpack.c.h.b16 %v95
    %v1896 = vunpack.c.l.b16 %v96
    %v1897 = vunpack.c.h.b16 %v96
    %v1898 = vunpack.c.l.b16 %v97
    %v1899 = vunpack.c.h.b16 %v97
    %v1900 = vunpack.c.l.b16 %v98
    %v1901 = vunpack.c.h.b16 %v98
    %v1902 = vunpack.c.l.b16 %v99
    %v1903 = vunpack.c.h.b16 %v99
    %v1904 = vunpack.c.l.b16 %v100
    %v1905 = vunpack.c.h.b16 %v100
    %v1906 = vunpack.c.l.b16 %v101
    %v1907 = vunpack.c.h.b16 %v101
    %v1908 = vunpack.c.l.b16 %v102
    %v1909 = vunpack.c.h.b16 %v102
    %v1910 = vunpack.c.l.b16 %v103
    %v1911 = vunpack.c.h.b16 %v103
    %v1912 = vunpack.c.l.b16 %v104
    %v1913 = vunpack.c.h.b16 %v104
    %v1914 = vunpack.c.l.b16 %v105
    %v1915 = vunpack.c.h.b16 %v105
    %v1916 = vunpack.c.l.b16 %v106
    %v1917 = vunpack.c.h.b16 %v106
    %v1918 = vunpack.c.l.b16 %v107
    %v1919 = vunpack.c.h.b16 %v107
    %v1920 = vunpack.c.l.b16 %v108
    %v1921 = vunpack.c.h.b16 %v108
    %v1922 = vunpack.c.l.b16 %v109
    %v1923 = vunpack.c.h.b16 %v109
    %v1924 = vunpack.c.l.b16 %v110
    %v1925 = vunpack.c.h.b16 %v110
    %v1926 = vunpack.c.l.b16 %v111
    %v1927 = vunpack.c.h.b16 %v111
    %v1928 = vunpack.c.l.b16 %v112
    %v1929 = vunpack.c.h.b16 %v112
    %v1930 = vunpack.c.l.b16 %v113
    %v1931 = vunpack.c.h.b16 %v113
    %v1932 = vunpack.c.l.b16 %v114
    %v1933 = vunpack.c.h.b16 %v114
    %v1934 = vunpack.c.l.b16 %v115
    %v1935 = vunpack.c.h.b16 %v115
    %v1936 = vunpack.c.l.b16 %v116
    %v1937 = vunpack.c.h.b16 %v116
    %v1938 = vunpack.c.l.b16 %v117
    %v1939 = vunpack.c.h.b16 %v117
    %v1940 = vunpack.c.l.b16 %v118
    %v1941 = vunpack.c.h.b16 %v118
    %v1942 = vunpack.c.l.b16 %v119
    %v1943 = vunpack.c.h.b16 %v119
    %v1944 = vunpack.c.l.b16 %v120
    %v1945 = vunpack.c.h.b16 %v120
    %v1946 = vunpack.c.l.b16 %v121
    %v1947 = vunpack.c.h.b16 %v121
    %v1948 = vunpack.c.l.b16 %v122
    %v1949 = vunpack.c.h.b16 %v122
    %v1950 = vunpack.c.l.b16 %v123
    %v1951 = vunpack.c.h.b16 %v123
    %v1952 = vunpack.c.l.b16 %v124
    %v1953 = vunpack.c.h.b16 %v124
    %v1954 = vunpack.c.l.b16 %v125
    %v1955 = vunpack.c.h.b16 %v125
    %v1956 = vunpack.c.l.b16 %v126
    %v1957 = vunpack.c.h.b16 %v126
    %v1958 = vunpack.c.l.b16 %v127
    %v1959 = vunpack.c.h.b16 %v127
    %v1960 = vunpack.c.l.b16 %v128
    %v1961 = vunpack.c.h.b16 %v128
    %v1962 = vunpack.c.l.b16 %v129
    %v1963 = vunpack.c.h.b16 %v129
    %v1964 = vunpack.c.l.b16 %v130
    %v1965 = vunpack.c.h.b16 %v130
    %v1966 = vunpack.c.l.b16 %v131
    %v1967 = vunpack.c.h.b16 %v131
    %v1968 = vunpack.c.l.b16 %v132
    %v1969 = vunpack.c.h.b16 %v132
    %v1970 = vunpack.c.l.b16 %v133
    %v1971 = vunpack.c.h.b16 %v133
    %v1972 = vunpack.c.l.b16 %v134
    %v1973 = vunpack.c.h.b16 %v134
    %v1974 = vunpack.c.l.b16 %v135
    %v1975 = vunpack.c.h.b16 %v135
    %v1976 = vunpack.c.l.b16 %v136
    %v1977 = vunpack.c.h.b16 %v136
    %v1978 = vunpack.c.l.b16 %v137
    %v1979 = vunpack.c.h.b16 %v137
    %v1980 = vunpack.c.l.b16 %v138
    %v1981 = vunpack.c.h.b16 %v138
    %v1982 = vunpack.c.l.b16 %v139
    %v1983 = vunpack.c.h.b16 %v139
    %v1984 = vunpack.c.l.b16 %v140
    %v1985 = vunpack.c.h.b16 %v140
    %v1986 = vunpack.c.l.b16 %v141
    %v1987 = vunpack.c.h.b16 %v141
    %v1988 = vunpack.c.l.b16 %v142
    %v1989 = vunpack.c.h.b16 %v142
    %v1990 = vunpack.c.l.b16 %v143
    %v1991 = vunpack.c.h.b16 %v143
    %v1992 = vunpack.c.l.b16 %v144
    %v1993 = vunpack.c.h.b16 %v144
    %v1994 = vunpack.c.l.b16 %v145
    %v1995 = vunpack.c.h.b16 %v145
    %v1996 = vunpack.c.l.b16 %v146
    %v1997 = vunpack.c.h.b16 %v146
    %v1998 = vunpack.c.l.b16 %v147
    %v1999 = vunpack.c.h.b16 %v147
    %v2000 = vunpack.c.l.b16 %v148
    %v2001 = vunpack.c.h.b16 %v148
    %v2002 = vunpack.c.l.b16 %v149
    %v2003 = vunpack.c.h.b16 %v149
    %v2004 = vunpack.c.l.b16 %v150
    %v2005 = vunpack.c.h.b16 %v150
    %v2006 = vunpack.c.l.b16 %v151
    %v2007 = vunpack.c.h.b16 %v151
    %v2008 = vunpack.c.l.b16 %v152
    %v2009 = vunpack.c.h.b16 %v152
    %v2010 = vunpack.c.l.b16 %v153
    %v2011 = vunpack.c.h.b16 %v153
    %v2012 = vunpack.c.l.b16 %v154
    %v2013 = vunpack.c.h.b16 %v154
    %v2014 = vunpack.c.l.b16 %v155
    %v2015 = vunpack.c.h.b16 %v155
    %v2016 = vunpack.c.l.b16 %v156
    %v2017 = vunpack.c.h.b16 %v156
    %v2018 = vunpack.c.l.b16 %v157
    %v2019 = vunpack.c.h.b16 %v157
    %v2020 = vunpack.c.l.b16 %v158
    %v2021 = vunpack.c.h.b16 %v158
    %v2022 = vunpack.c.l.b16 %v159
    %v2023 = vunpack.c.h.b16 %v159
    %v2024 = vunpack.c.l.b16 %v160
    %v2025 = vunpack.c.h.b16 %v160
    %v2026 = vunpack.c.l.b16 %v161
    %v2027 = vunpack.c.h.b16 %v161
    %v2028 = vunpack.c.l.b16 %v162
    %v2029 = vunpack.c.h.b16 %v162
    %v2030 = vunpack.c.l.b16 %v163
    %v2031 = vunpack.c.h.b16 %v163
    %v2032 = vunpack.c.l.b16 %v164
    %v2033 = vunpack.c.h.b16 %v164
    %v2034 = vunpack.c.l.b16 %v165
    %v2035 = vunpack.c.h.b16 %v165
    %v2036 = vunpack.c.l.b16 %v166
    %v2037 = vunpack.c.h.b16 %v166
    %v2038 = vunpack.c.l.b16 %v167
    %v2039 = vunpack.c.h.b16 %v167
    %v2040 = vunpack.c.l.b16 %v168
    %v2041 = vunpack.c.h.b16 %v168
    %v2042 = vunpack.c.l.b16 %v169
    %v2043 = vunpack.c.h.b16 %v169
    %v2044 = vunpack.c.l.b16 %v170
    %v2045 = vunpack.c.h.b16 %v170
    %v2046 = vunpack.c.l.b16 %v171
    %v2047 = vunpack.c.h.b16 %v171
    %v2048 = vunpack.c.l.b16 %v172
    %v2049 = vunpack.c.h.b16 %v172
    %v2050 = vunpack.c.l.b16 %v173
    %v2051 = vunpack.c.h.b16 %v173
    %v2052 = vunpack.c.l.b16 %v174
    %v2053 = vunpack.c.h.b16 %v174
    %v2054 = vunpack.c.l.b16 %v175
    %v2055 = vunpack.c.h.b16 %v175
    %v2056 = vunpack.c.l.b16 %v176
    %v2057 = vunpack.c.h.b16 %v176
    %v2058 = vunpack.c.l.b16 %v177
    %v2059 = vunpack.c.h.b16 %v177
    %v2060 = vunpack.c.l.b16 %v178
    %v2061 = vunpack.c.h.b16 %v178
    %v2062 = vunpack.c.l.b16 %v179
    %v2063 = vunpack.c.h.b16 %v179
    %v2064 = vunpack.c.l.b16 %v180
    %v2065 = vunpack.c.h.b16 %v180
    %v2066 = vunpack.c.l.b16 %v181
    %v2067 = vunpack.c.h.b16 %v181
    %v2068 = vunpack.c.l.b16 %v182
    %v2069 = vunpack.c.h.b16 %v182
    %v2070 = vunpack.c.l.b16 %v183
    %v2071 = vunpack.c.h.b16 %v183
    %v2072 = vunpack.c.l.b16 %v184
    %v2073 = vunpack.c.h.b16 %v184
    %v2074 = vunpack.c.l.b16 %v185
    %v2075 = vunpack.c.h.b16 %v185
    %v2076 = vunpack.c.l.b16 %v186
    %v2077 = vunpack.c.h.b16 %v186
    %v2078 = vunpack.c.l.b16 %v187
    %v2079 = vunpack.c.h.b16 %v187
    %v2080 = vunpack.c.l.b16 %v188
    %v2081 = vunpack.c.h.b16 %v188
    %v2082 = vunpack.c.l.b16 %v189
    %v2083 = vunpack.c.h.b16 %v189
    %v2084 = vunpack.c.l.b16 %v190
    %v2085 = vunpack.c.h.b16 %v190
    %v2086 = vunpack.c.l.b16 %v191
    %v2087 = vunpack.c.h.b16 %v191
    %v2088 = vunpack.c.l.b16 %v192
    %v2089 = vunpack.c.h.b16 %v192
    %v2090 = vunpack.c.l.b16 %v193
    %v2091 = vunpack.c.h.b16 %v193
    %v2092 = vunpack.c.l.b16 %v194
    %v2093 = vunpack.c.h.b16 %v194
    %v2094 = vunpack.c.l.b16 %v195
    %v2095 = vunpack.c.h.b16 %v195
    %v2096 = vunpack.c.l.b16 %v196
    %v2097 = vunpack.c.h.b16 %v196
    %v2098 = vunpack.c.l.b16 %v197
    %v2099 = vunpack.c.h.b16 %v197
    %v2100 = vunpack.c.l.b16 %v198
    %v2101 = vunpack.c.h.b16 %v198
    %v2102 = vunpack.c.l.b16 %v199
    %v2103 = vunpack.c.h.b16 %v199
    %v2104 = vunpack.c.l.b16 %v200
    %v2105 = vunpack.c.h.b16 %v200
    %v2106 = vunpack.c.l.b16 %v201
    %v2107 = vunpack.c.h.b16 %v201
    %v2108 = vunpack.c.l.b16 %v202
    %v2109 = vunpack.c.h.b16 %v202
    %v2110 = vunpack.c.l.b16 %v203
    %v2111 = vunpack.c.h.b16 %v203
    %v2112 = vunpack.c.l.b16 %v204
    %v2113 = vunpack.c.h.b16 %v204
    %v2114 = vunpack.c.l.b16 %v205
    %v2115 = vunpack.c.h.b16 %v205
    %v2116 = vunpack.c.l.b16 %v206
    %v2117 = vunpack.c.h.b16 %v206
    %v2118 = vunpack.c.l.b16 %v207
    %v2119 = vunpack.c.h.b16 %v207
    %v2120 = vunpack.c.l.b16 %v208
    %v2121 = vunpack.c.h.b16 %v208
    %v2122 = vunpack.c.l.b16 %v209
    %v2123 = vunpack.c.h.b16 %v209
    %v2124 = vunpack.c.l.b16 %v210
    %v2125 = vunpack.c.h.b16 %v210
    %v2126 = vunpack.c.l.b16 %v211
    %v2127 = vunpack.c.h.b16 %v211
    %v2128 = vunpack.c.l.b16 %v212
    %v2129 = vunpack.c.h.b16 %v212
    %v2130 = vunpack.c.l.b16 %v213
    %v2131 = vunpack.c.h.b16 %v213
    %v2132 = vunpack.c.l.b16 %v214
    %v2133 = vunpack.c.h.b16 %v214
    %v2134 = vunpack.c.l.b16 %v215
    %v2135 = vunpack.c.h.b16 %v215
    %v2136 = vunpack.c.l.b16 %v216
    %v2137 = vunpack.c.h.b16 %v216
    %v2138 = vunpack.c.l.b16 %v217
    %v2139 = vunpack.c.h.b16 %v217
    %v2140 = vunpack.c.l.b16 %v218
    %v2141 = vunpack.c.h.b16 %v218
    %v2142 = vunpack.c.l.b16 %v219
    %v2143 = vunpack.c.h.b16 %v219
    %v2144 = vunpack.c.l.b16 %v220
    %v2145 = vunpack.c.h.b16 %v220
    %v2146 = vunpack.c.l.b16 %v221
    %v2147 = vunpack.c.h.b16 %v221
    %v2148 = vunpack.c.l.b16 %v222
    %v2149 = vunpack.c.h.b16 %v222
    %v2150 = vunpack.c.l.b16 %v223
    %v2151 = vunpack.c.h.b16 %v223
    %v2152 = vunpack.c.l.b16 %v224
    %v2153 = vunpack.c.h.b16 %v224
    %v2154 = vunpack.c.l.b16 %v225
    %v2155 = vunpack.c.h.b16 %v225
    %v2156 = vunpack.c.l.b16 %v226
    %v2157 = vunpack.c.h.b16 %v226
    %v2158 = vunpack.c.l.b16 %v227
    %v2159 = vunpack.c.h.b16 %v227
    %v2160 = vunpack.c.l.b16 %v228
    %v2161 = vunpack.c.h.b16 %v228
    %v2162 = vunpack.c.l.b16 %v229
    %v2163 = vunpack.c.h.b16 %v229
    %v2164 = vunpack.c.l.b16 %v230
    %v2165 = vunpack.c.h.b16 %v230
    %v2166 = vunpack.c.l.b16 %v231
    %v2167 = vunpack.c.h.b16 %v231
    %v2168 = vunpack.c.l.b16 %v232
    %v2169 = vunpack.c.h.b16 %v232
    %v2170 = vunpack.c.l.b16 %v233
    %v2171 = vunpack.c.h.b16 %v233
    %v2172 = vunpack.c.l.b16 %v234
    %v2173 = vunpack.c.h.b16 %v234
    %v2174 = vunpack.c.l.b16 %v235
    %v2175 = vunpack.c.h.b16 %v235
    %v2176 = vunpack.c.l.b16 %v236
    %v2177 = vunpack.c.h.b16 %v236
    %v2178 = vunpack.c.l.b16 %v237
    %v2179 = vunpack.c.h.b16 %v237
    %v2180 = vunpack.c.l.b16 %v238
    %v2181 = vunpack.c.h.b16 %v238
    %v2182 = vunpack.c.l.b16 %v239
    %v2183 = vunpack.c.h.b16 %v239
    %v2184 = vunpack.c.l.b16 %v240
    %v2185 = vunpack.c.h.b16 %v240
    %v2186 = vunpack.c.l.b16 %v241
    %v2187 = vunpack.c.h.b16 %v241
    %v2188 = vunpack.c.l.b16 %v242
    %v2189 = vunpack.c.h.b16 %v242
    %v2190 = vunpack.c.l.b16 %v243
    %v2191 = vunpack.c.h.b16 %v243
    %v2192 = vunpack.c.l.b16 %v244
    %v2193 = vunpack.c.h.b16 %v244
    %v2194 = vunpack.c.l.b16 %v245
    %v2195 = vunpack.c.h.b16 %v245
    %v2196 = vunpack.c.l.b16 %v246
    %v2197 = vunpack.c.h.b16 %v246
    %v2198 = vunpack.c.l.b16 %v247
    %v2199 = vunpack.c.h.b16 %v247
    %v2200 = vunpack.c.l.b16 %v248
    %v2201 = vunpack.c.h.b16 %v248
    %v2202 = vunpack.c.l.b16 %v249
    %v2203 = vunpack.c.h.b16 %v249
    %v2204 = vunpack.c.l.b16 %v250
    %v2205 = vunpack.c.h.b16 %v250
    %v2206 = vunpack.c.l.b16 %v251
    %v2207 = vunpack.c.h.b16 %v251
    %v2208 = vunpack.c.l.b16 %v252
    %v2209 = vunpack.c.h.b16 %v252
    %v2210 = vunpack.c.l.b16 %v253
    %v2211 = vunpack.c.h.b16 %v253
    %v2212 = vunpack.c.l.b16 %v254
    %v2213 = vunpack.c.h.b16 %v254
    %v2214 = vunpack.c.l.b16 %v255
    %v2215 = vunpack.c.h.b16 %v255
    %v2216 = vunpack.c.l.b16 %v256
    %v2217 = vunpack.c.h.b16 %v256
    %v2218 = vunpack.c.l.b16 %v257
    %v2219 = vunpack.c.h.b16 %v257
    %v2220 = vunpack.c.l.b16 %v258
    %v2221 = vunpack.c.h.b16 %v258
    %v2222 = vunpack.c.l.b16 %v259
    %v2223 = vunpack.c.h.b16 %v259
    %v2224 = vunpack.c.l.b16 %v260
    %v2225 = vunpack.c.h.b16 %v260
    %v2226 = vunpack.c.l.b16 %v261
    %v2227 = vunpack.c.h.b16 %v261
    %v2228 = vunpack.c.l.b16 %v262
    %v2229 = vunpack.c.h.b16 %v262
    %v2230 = vunpack.c.l.b16 %v263
    %v2231 = vunpack.c.h.b16 %v263
    %v2232 = vunpack.c.l.b16 %v264
    %v2233 = vunpack.c.h.b16 %v264
    %v2234 = vunpack.c.l.b16 %v265
    %v2235 = vunpack.c.h.b16 %v265
    %v2236 = vunpack.c.l.b16 %v266
    %v2237 = vunpack.c.h.b16 %v266
    %v2238 = vunpack.c.l.b16 %v267
    %v2239 = vunpack.c.h.b16 %v267
    %v2240 = vunpack.c.l.b16 %v268
    %v2241 = vunpack.c.h.b16 %v268
    %v2242 = vunpack.c.l.b16 %v269
    %v2243 = vunpack.c.h.b16 %v269
    %v2244 = vunpack.c.l.b16 %v270
    %v2245 = vunpack.c.h.b16 %v270
    %v2246 = vunpack.c.l.b16 %v271
    %v2247 = vunpack.c.h.b16 %v271
    %v2248 = vunpack.c.l.b16 %v272
    %v2249 = vunpack.c.h.b16 %v272
    %v2250 = vunpack.c.l.b16 %v273
    %v2251 = vunpack.c.h.b16 %v273
    %v2252 = vunpack.c.l.b16 %v274
    %v2253 = vunpack.c.h.b16 %v274
    %v2254 = vunpack.c.l.b16 %v275
    %v2255 = vunpack.c.h.b16 %v275
    %v2256 = vunpack.c.l.b16 %v276
    %v2257 = vunpack.c.h.b16 %v276
    %v2258 = vunpack.c.l.b16 %v277
    %v2259 = vunpack.c.h.b16 %v277
    %v2260 = vunpack.c.l.b16 %v278
    %v2261 = vunpack.c.h.b16 %v278
    %v2262 = vunpack.c.l.b16 %v279
    %v2263 = vunpack.c.h.b16 %v279
    %v2264 = vunpack.c.l.b16 %v280
    %v2265 = vunpack.c.h.b16 %v280
    %v2266 = vunpack.c.l.b16 %v281
    %v2267 = vunpack.c.h.b16 %v281
    %v2268 = vunpack.c.l.b16 %v282
    %v2269 = vunpack.c.h.b16 %v282
    %v2270 = vunpack.c.l.b16 %v283
    %v2271 = vunpack.c.h.b16 %v283
    %v2272 = vunpack.c.l.b16 %v284
    %v2273 = vunpack.c.h.b16 %v284
    %v2274 = vunpack.c.l.b16 %v285
    %v2275 = vunpack.c.h.b16 %v285
    %v2276 = vunpack.c.l.b16 %v286
    %v2277 = vunpack.c.h.b16 %v286
    %v2278 = vunpack.c.l.b16 %v287
    %v2279 = vunpack.c.h.b16 %v287
    %v2280 = vunpack.c.l.b16 %v288
    %v2281 = vunpack.c.h.b16 %v288
    %v2282 = vunpack.c.l.b16 %v289
    %v2283 = vunpack.c.h.b16 %v289
    %v2284 = vunpack.c.l.b16 %v290
    %v2285 = vunpack.c.h.b16 %v290
    %v2286 = vunpack.c.l.b16 %v291
    %v2287 = vunpack.c.h.b16 %v291
    %v2288 = vunpack.c.l.b16 %v292
    %v2289 = vunpack.c.h.b16 %v292
    %v2290 = vunpack.c.l.b16 %v293
    %v2291 = vunpack.c.h.b16 %v293
    %v2292 = vunpack.c.l.b16 %v294
    %v2293 = vunpack.c.h.b16 %v294
    %v2294 = vunpack.c.l.b16 %v295
    %v2295 = vunpack.c.h.b16 %v295
    %v2296 = vunpack.c.l.b16 %v296
    %v2297 = vunpack.c.h.b16 %v296
    %v2298 = vunpack.c.l.b16 %v297
    %v2299 = vunpack.c.h.b16 %v297
    %v2300 = vunpack.c.l.b16 %v298
    %v2301 = vunpack.c.h.b16 %v298
    %v2302 = vunpack.c.l.b16 %v299
    %v2303 = vunpack.c.h.b16 %v299
    %v2304 = vunpack.c.l.b16 %v300
    %v2305 = vunpack.c.h.b16 %v300
    %v2306 = vunpack.c.l.b16 %v301
    %v2307 = vunpack.c.h.b16 %v301
    %v2308 = vunpack.c.l.b16 %v302
    %v2309 = vunpack.c.h.b16 %v302
    %v2310 = vunpack.c.l.b16 %v303
    %v2311 = vunpack.c.h.b16 %v303
    %v2312 = vunpack.c.l.b16 %v304
    %v2313 = vunpack.c.h.b16 %v304
    %v2314 = vunpack.c.l.b16 %v305
    %v2315 = vunpack.c.h.b16 %v305
    %v2316 = vunpack.c.l.b16 %v306
    %v2317 = vunpack.c.h.b16 %v306
    %v2318 = vunpack.c.l.b16 %v307
    %v2319 = vunpack.c.h.b16 %v307
    %v2320 = vunpack.c.l.b16 %v308
    %v2321 = vunpack.c.h.b16 %v308
    %v2322 = vunpack.c.l.b16 %v309
    %v2323 = vunpack.c.h.b16 %v309
    %v2324 = vunpack.c.l.b16 %v310
    %v2325 = vunpack.c.h.b16 %v310
    %v2326 = vunpack.c.l.b16 %v311
    %v2327 = vunpack.c.h.b16 %v311
    %v2328 = vunpack.c.l.b16 %v312
    %v2329 = vunpack.c.h.b16 %v312
    %v2330 = vunpack.c.l.b16 %v313
    %v2331 = vunpack.c.h.b16 %v313
    %v2332 = vunpack.c.l.b16 %v314
    %v2333 = vunpack.c.h.b16 %v314
    %v2334 = vunpack.c.l.b16 %v315
    %v2335 = vunpack.c.h.b16 %v315
    %v2336 = vunpack.c.l.b16 %v316
    %v2337 = vunpack.c.h.b16 %v316
    %v2338 = vunpack.c.l.b16 %v317
    %v2339 = vunpack.c.h.b16 %v317
    %v2340 = vunpack.c.l.b16 %v318
    %v2341 = vunpack.c.h.b16 %v318
    %v2342 = vunpack.c.l.b16 %v319
    %v2343 = vunpack.c.h.b16 %v319
    %v2344 = vunpack.c.l.b16 %v320
    %v2345 = vunpack.c.h.b16 %v320
    %v2346 = vunpack.c.l.b16 %v321
    %v2347 = vunpack.c.h.b16 %v321
    %v2348 = vunpack.c.l.b16 %v322
    %v2349 = vunpack.c.h.b16 %v322
    %v2350 = vunpack.c.l.b16 %v323
    %v2351 = vunpack.c.h.b16 %v323
    %v2352 = vunpack.c.l.b16 %v324
    %v2353 = vunpack.c.h.b16 %v324
    %v2354 = vunpack.c.l.b16 %v325
    %v2355 = vunpack.c.h.b16 %v325
    %v2356 = vunpack.c.l.b16 %v326
    %v2357 = vunpack.c.h.b16 %v326
    %v2358 = vunpack.c.l.b16 %v327
    %v2359 = vunpack.c.h.b16 %v327
    %v2360 = vunpack.c.l.b16 %v328
    %v2361 = vunpack.c.h.b16 %v328
    %v2362 = vunpack.c.l.b16 %v329
    %v2363 = vunpack.c.h.b16 %v329
    %v2364 = vunpack.c.l.b16 %v330
    %v2365 = vunpack.c.h.b16 %v330
    %v2366 = vunpack.c.l.b16 %v331
    %v2367 = vunpack.c.h.b16 %v331
    %v2368 = vunpack.c.l.b16 %v332
    %v2369 = vunpack.c.h.b16 %v332
    %v2370 = vunpack.c.l.b16 %v333
    %v2371 = vunpack.c.h.b16 %v333
    %v2372 = vunpack.c.l.b16 %v334
    %v2373 = vunpack.c.h.b16 %v334
    %v2374 = vunpack.c.l.b16 %v335
    %v2375 = vunpack.c.h.b16 %v335
    %v2376 = vunpack.c.l.b16 %v336
    %v2377 = vunpack.c.h.b16 %v336
    %v2378 = vunpack.c.l.b16 %v337
    %v2379 = vunpack.c.h.b16 %v337
    %v2380 = vunpack.c.l.b16 %v338
    %v2381 = vunpack.c.h.b16 %v338
    %v2382 = vunpack.c.l.b16 %v339
    %v2383 = vunpack.c.h.b16 %v339
    %v2384 = vunpack.c.l.b16 %v340
    %v2385 = vunpack.c.h.b16 %v340
    %v2386 = vunpack.c.l.b16 %v341
    %v2387 = vunpack.c.h.b16 %v341
    %v2388 = vunpack.c.l.b16 %v342
    %v2389 = vunpack.c.h.b16 %v342
    %v2390 = vunpack.c.l.b16 %v343
    %v2391 = vunpack.c.h.b16 %v343
    %v2392 = vunpack.c.l.b16 %v344
    %v2393 = vunpack.c.h.b16 %v344
    %v2394 = vunpack.c.l.b16 %v345
    %v2395 = vunpack.c.h.b16 %v345
    %v2396 = vunpack.c.l.b16 %v346
    %v2397 = vunpack.c.h.b16 %v346
    %v2398 = vunpack.c.l.b16 %v347
    %v2399 = vunpack.c.h.b16 %v347
    %v2400 = vunpack.c.l.b16 %v348
    %v2401 = vunpack.c.h.b16 %v348
    %v2402 = vunpack.c.l.b16 %v349
    %v2403 = vunpack.c.h.b16 %v349
    %v2404 = vunpack.c.l.b16 %v350
    %v2405 = vunpack.c.h.b16 %v350
    %v2406 = vunpack.c.l.b16 %v351
    %v2407 = vunpack.c.h.b16 %v351
    %v2408 = vunpack.c.l.b16 %v352
    %v2409 = vunpack.c.h.b16 %v352
    %v2410 = vunpack.c.l.b16 %v353
    %v2411 = vunpack.c.h.b16 %v353
    %v2412 = vunpack.c.l.b16 %v354
    %v2413 = vunpack.c.h.b16 %v354
    %v2414 = vunpack.c.l.b16 %v355
    %v2415 = vunpack.c.h.b16 %v355
    %v2416 = vunpack.c.l.b16 %v356
    %v2417 = vunpack.c.h.b16 %v356
    %v2418 = vunpack.c.l.b16 %v357
    %v2419 = vunpack.c.h.b16 %v357
    %v2420 = vunpack.c.l.b16 %v358
    %v2421 = vunpack.c.h.b16 %v358
    %v2422 = vunpack.c.l.b16 %v359
    %v2423 = vunpack.c.h.b16 %v359
    %v2424 = vunpack.c.l.b16 %v360
    %v2425 = vunpack.c.h.b16 %v360
    %v2426 = vunpack.c.l.b16 %v361
    %v2427 = vunpack.c.h.b16 %v361
    %v2428 = vunpack.c.l.b16 %v362
    %v2429 = vunpack.c.h.b16 %v362
    %v2430 = vunpack.c.l.b16 %v363
    %v2431 = vunpack.c.h.b16 %v363
    %v2432 = vunpack.c.l.b16 %v364
    %v2433 = vunpack.c.h.b16 %v364
    %v2434 = vunpack.c.l.b16 %v365
    %v2435 = vunpack.c.h.b16 %v365
    %v2436 = vunpack.c.l.b16 %v366
    %v2437 = vunpack.c.h.b16 %v366
    %v2438 = vunpack.c.l.b16 %v367
    %v2439 = vunpack.c.h.b16 %v367
    %v2440 = vunpack.c.l.b16 %v368
    %v2441 = vunpack.c.h.b16 %v368
    %v2442 = vunpack.c.l.b16 %v369
    %v2443 = vunpack.c.h.b16 %v369
    %v2444 = vunpack.c.l.b16 %v370
    %v2445 = vunpack.c.h.b16 %v370
    %v2446 = vunpack.c.l.b16 %v371
    %v2447 = vunpack.c.h.b16 %v371
    %v2448 = vunpack.c.l.b16 %v372
    %v2449 = vunpack.c.h.b16 %v372
    %v2450 = vunpack.c.l.b16 %v373
    %v2451 = vunpack.c.h.b16 %v373
    %v2452 = vunpack.c.l.b16 %v374
    %v2453 = vunpack.c.h.b16 %v374
    %v2454 = vunpack.c.l.b16 %v375
    %v2455 = vunpack.c.h.b16 %v375
    %v2456 = vunpack.c.l.b16 %v376
    %v2457 = vunpack.c.h.b16 %v376
    %v2458 = vunpack.c.l.b16 %v377
    %v2459 = vunpack.c.h.b16 %v377
    %v2460 = vunpack.c.l.b16 %v378
    %v2461 = vunpack.c.h.b16 %v378
    %v2462 = vunpack.c.l.b16 %v379
    %v2463 = vunpack.c.h.b16 %v379
    %v2464 = vunpack.c.l.b16 %v380
    %v2465 = vunpack.c.h.b16 %v380
    %v2466 = vunpack.c.l.b16 %v381
    %v2467 = vunpack.c.h.b16 %v381
    %v2468 = vunpack.c.l.b16 %v382
    %v2469 = vunpack.c.h.b16 %v382
    %v2470 = vunpack.c.l.b16 %v383
    %v2471 = vunpack.c.h.b16 %v383
    %v2472 = vunpack.c.l.b16 %v384
    %v2473 = vunpack.c.h.b16 %v384
    %v2474 = vunpack.c.l.b16 %v385
    %v2475 = vunpack.c.h.b16 %v385
    %v2476 = vunpack.c.l.b16 %v386
    %v2477 = vunpack.c.h.b16 %v386
    %v2478 = vunpack.c.l.b16 %v387
    %v2479 = vunpack.c.h.b16 %v387
    %v2480 = vunpack.c.l.b16 %v388
    %v2481 = vunpack.c.h.b16 %v388
    %v2482 = vunpack.c.l.b16 %v389
    %v2483 = vunpack.c.h.b16 %v389
    %v2484 = vunpack.c.l.b16 %v390
    %v2485 = vunpack.c.h.b16 %v390
    %v2486 = vunpack.c.l.b16 %v391
    %v2487 = vunpack.c.h.b16 %v391
    %v2488 = vunpack.c.l.b16 %v392
    %v2489 = vunpack.c.h.b16 %v392
    %v2490 = vunpack.c.l.b16 %v393
    %v2491 = vunpack.c.h.b16 %v393
    %v2492 = vunpack.c.l.b16 %v394
    %v2493 = vunpack.c.h.b16 %v394
    %v2494 = vunpack.c.l.b16 %v395
    %v2495 = vunpack.c.h.b16 %v395
    %v2496 = vunpack.c.l.b16 %v396
    %v2497 = vunpack.c.h.b16 %v396
    %v2498 = vunpack.c.l.b16 %v397
    %v2499 = vunpack.c.h.b16 %v397
    %v2500 = vunpack.c.l.b16 %v398
    %v2501 = vunpack.c.h.b16 %v398
    %v2502 = vunpack.c.l.b16 %v399
    %v2503 = vunpack.c.h.b16 %v399
    %v2504 = vunpack.c.l.b16 %v400
    %v2505 = vunpack.c.h.b16 %v400
    %v2506 = vunpack.c.l.b16 %v401
    %v2507 = vunpack.c.h.b16 %v401
    %v2508 = vunpack.c.l.b16 %v402
    %v2509 = vunpack.c.h.b16 %v402
    %v2510 = vunpack.c.l.b16 %v403
    %v2511 = vunpack.c.h.b16 %v403
    %v2512 = vunpack.c.l.b16 %v404
    %v2513 = vunpack.c.h.b16 %v404
    %v2514 = vunpack.c.l.b16 %v405
    %v2515 = vunpack.c.h.b16 %v405
    %v2516 = vunpack.c.l.b16 %v406
    %v2517 = vunpack.c.h.b16 %v406
    %v2518 = vunpack.c.l.b16 %v407
    %v2519 = vunpack.c.h.b16 %v407
    %v2520 = vunpack.c.l.b16 %v408
    %v2521 = vunpack.c.h.b16 %v408
    %v2522 = vunpack.c.l.b16 %v409
    %v2523 = vunpack.c.h.b16 %v409
    %v2524 = vunpack.c.l.b16 %v410
    %v2525 = vunpack.c.h.b16 %v410
    %v2526 = vunpack.c.l.b16 %v411
    %v2527 = vunpack.c.h.b16 %v411
    %v2528 = vunpack.c.l.b16 %v412
    %v2529 = vunpack.c.h.b16 %v412
    %v2530 = vunpack.c.l.b16 %v413
    %v2531 = vunpack.c.h.b16 %v413
    %v2532 = vunpack.c.l.b16 %v414
    %v2533 = vunpack.c.h.b16 %v414
    %v2534 = vunpack.c.l.b16 %v415
    %v2535 = vunpack.c.h.b16 %v415
    %v2536 = vunpack.c.l.b16 %v416
    %v2537 = vunpack.c.h.b16 %v416
    %v2538 = vunpack.c.l.b16 %v417
    %v2539 = vunpack.c.h.b16 %v417
    %v2540 = vunpack.c.l.b16 %v418
    %v2541 = vunpack.c.h.b16 %v418
    %v2542 = vunpack.c.l.b16 %v419
    %v2543 = vunpack.c.h.b16 %v419
    %v2544 = vunpack.c.l.b16 %v420
    %v2545 = vunpack.c.h.b16 %v420
    %v2546 = vunpack.c.l.b16 %v421
    %v2547 = vunpack.c.h.b16 %v421
    %v2548 = vunpack.c.l.b16 %v422
    %v2549 = vunpack.c.h.b16 %v422
    %v2550 = vunpack.c.l.b16 %v423
    %v2551 = vunpack.c.h.b16 %v423
    %v2552 = vunpack.c.l.b16 %v424
    %v2553 = vunpack.c.h.b16 %v424
    %v2554 = vunpack.c.l.b16 %v425
    %v2555 = vunpack.c.h.b16 %v425
    %v2556 = vunpack.c.l.b16 %v426
    %v2557 = vunpack.c.h.b16 %v426
    %v2558 = vunpack.c.l.b16 %v427
    %v2559 = vunpack.c.h.b16 %v427
    %v2560 = vunpack.c.l.b16 %v428
    %v2561 = vunpack.c.h.b16 %v428
    %v2562 = vunpack.c.l.b16 %v429
    %v2563 = vunpack.c.h.b16 %v429
    %v2564 = vunpack.c.l.b16 %v430
    %v2565 = vunpack.c.h.b16 %v430
    %v2566 = vunpack.c.l.b16 %v431
    %v2567 = vunpack.c.h.b16 %v431
    %v2568 = vunpack.c.l.b16 %v432
    %v2569 = vunpack.c.h.b16 %v432
    %v2570 = vunpack.c.l.b16 %v433
    %v2571 = vunpack.c.h.b16 %v433
    %v2572 = vunpack.c.l.b16 %v434
    %v2573 = vunpack.c.h.b16 %v434
    %v2574 = vunpack.c.l.b16 %v435
    %v2575 = vunpack.c.h.b16 %v435
    %v2576 = vunpack.c.l.b16 %v436
    %v2577 = vunpack.c.h.b16 %v436
    %v2578 = vunpack.c.l.b16 %v437
    %v2579 = vunpack.c.h.b16 %v437
    %v2580 = vunpack.c.l.b16 %v438
    %v2581 = vunpack.c.h.b16 %v438
    %v2582 = vunpack.c.l.b16 %v439
    %v2583 = vunpack.c.h.b16 %v439
    %v2584 = vunpack.c.l.b16 %v440
    %v2585 = vunpack.c.h.b16 %v440
    %v2586 = vunpack.c.l.b16 %v441
    %v2587 = vunpack.c.h.b16 %v441
    %v2588 = vunpack.c.l.b16 %v442
    %v2589 = vunpack.c.h.b16 %v442
    %v2590 = vunpack.c.l.b16 %v443
    %v2591 = vunpack.c.h.b16 %v443
    %v2592 = vunpack.c.l.b16 %v444
    %v2593 = vunpack.c.h.b16 %v444
    %v2594 = vunpack.c.l.b16 %v445
    %v2595 = vunpack.c.h.b16 %v445
    %v2596 = vunpack.c.l.b16 %v446
    %v2597 = vunpack.c.h.b16 %v446
    %v2598 = vunpack.c.l.b16 %v447
    %v2599 = vunpack.c.h.b16 %v447
    %v2600 = vunpack.c.l.b16 %v448
    %v2601 = vunpack.c.h.b16 %v448
    %v2602 = vunpack.c.l.b16 %v449
    %v2603 = vunpack.c.h.b16 %v449
    %v2604 = vunpack.c.l.b16 %v450
    %v2605 = vunpack.c.h.b16 %v450
    %v2606 = vunpack.c.l.b16 %v451
    %v2607 = vunpack.c.h.b16 %v451
    %v2608 = vunpack.c.l.b16 %v452
    %v2609 = vunpack.c.h.b16 %v452
    %v2610 = vunpack.c.l.b16 %v453
    %v2611 = vunpack.c.h.b16 %v453
    %v2612 = vunpack.c.l.b16 %v454
    %v2613 = vunpack.c.h.b16 %v454
    %v2614 = vunpack.c.l.b16 %v455
    %v2615 = vunpack.c.h.b16 %v455
    %v2616 = vunpack.c.l.b16 %v456
    %v2617 = vunpack.c.h.b16 %v456
    %v2618 = vunpack.c.l.b16 %v457
    %v2619 = vunpack.c.h.b16 %v457
    %v2620 = vunpack.c.l.b16 %v458
    %v2621 = vunpack.c.h.b16 %v458
    %v2622 = vunpack.c.l.b16 %v459
    %v2623 = vunpack.c.h.b16 %v459
    %v2624 = vunpack.c.l.b16 %v460
    %v2625 = vunpack.c.h.b16 %v460
    %v2626 = vunpack.c.l.b16 %v461
    %v2627 = vunpack.c.h.b16 %v461
    %v2628 = vunpack.c.l.b16 %v462
    %v2629 = vunpack.c.h.b16 %v462
    %v2630 = vunpack.c.l.b16 %v463
    %v2631 = vunpack.c.h.b16 %v463
    %v2632 = vunpack.c.l.b16 %v464
    %v2633 = vunpack.c.h.b16 %v464
    %v2634 = vunpack.c.l.b16 %v465
    %v2635 = vunpack.c.h.b16 %v465
    %v2636 = vunpack.c.l.b16 %v466
    %v2637 = vunpack.c.h.b16 %v466
    %v2638 = vunpack.c.l.b16 %v467
    %v2639 = vunpack.c.h.b16 %v467
    %v2640 = vunpack.c.l.b16 %v468
    %v2641 = vunpack.c.h.b16 %v468
    %v2642 = vunpack.c.l.b16 %v469
    %v2643 = vunpack.c.h.b16 %v469
    %v2644 = vunpack.c.l.b16 %v470
    %v2645 = vunpack.c.h.b16 %v470
    %v2646 = vunpack.c.l.b16 %v471
    %v2647 = vunpack.c.h.b16 %v471
    %v2648 = vunpack.c.l.b16 %v472
    %v2649 = vunpack.c.h.b16 %v472
    %v2650 = vunpack.c.l.b16 %v473
    %v2651 = vunpack.c.h.b16 %v473
    %v2652 = vunpack.c.l.b16 %v474
    %v2653 = vunpack.c.h.b16 %v474
    %v2654 = vunpack.c.l.b16 %v475
    %v2655 = vunpack.c.h.b16 %v475
    %v2656 = vunpack.c.l.b16 %v476
    %v2657 = vunpack.c.h.b16 %v476
    %v2658 = vunpack.c.l.b16 %v477
    %v2659 = vunpack.c.h.b16 %v477
    %v2660 = vunpack.c.l.b16 %v478
    %v2661 = vunpack.c.h.b16 %v478
    %v2662 = vunpack.c.l.b16 %v479
    %v2663 = vunpack.c.h.b16 %v479
    %v2664 = vunpack.c.l.b16 %v480
    %v2665 = vunpack.c.h.b16 %v480
    %v2666 = vunpack.c.l.b16 %v481
    %v2667 = vunpack.c.h.b16 %v481
    %v2668 = vunpack.c.l.b16 %v482
    %v2669 = vunpack.c.h.b16 %v482
    %v2670 = vunpack.c.l.b16 %v483
    %v2671 = vunpack.c.h.b16 %v483
    %v2672 = vunpack.c.l.b16 %v484
    %v2673 = vunpack.c.h.b16 %v484
    %v2674 = vunpack.c.l.b16 %v485
    %v2675 = vunpack.c.h.b16 %v485
    %v2676 = vunpack.c.l.b16 %v486
    %v2677 = vunpack.c.h.b16 %v486
    %v2678 = vunpack.c.l.b16 %v487
    %v2679 = vunpack.c.h.b16 %v487
    %v2680 = vunpack.c.l.b16 %v488
    %v2681 = vunpack.c.h.b16 %v488
    %v2682 = vunpack.c.l.b16 %v489
    %v2683 = vunpack.c.h.b16 %v489
    %v2684 = vunpack.c.l.b16 %v490
    %v2685 = vunpack.c.h.b16 %v490
    %v2686 = vunpack.c.l.b16 %v491
    %v2687 = vunpack.c.h.b16 %v491
    %v2688 = vunpack.c.l.b16 %v492
    %v2689 = vunpack.c.h.b16 %v492
    %v2690 = vunpack.c.l.b16 %v493
    %v2691 = vunpack.c.h.b16 %v493
    %v2692 = vunpack.c.l.b16 %v494
    %v2693 = vunpack.c.h.b16 %v494
    %v2694 = vunpack.c.l.b16 %v495
    %v2695 = vunpack.c.h.b16 %v495
    %v2696 = vunpack.c.l.b16 %v496
    %v2697 = vunpack.c.h.b16 %v496
    %v2698 = vunpack.c.l.b16 %v497
    %v2699 = vunpack.c.h.b16 %v497
    %v2700 = vunpack.c.l.b16 %v498
    %v2701 = vunpack.c.h.b16 %v498
    %v2702 = vunpack.c.l.b16 %v499
    %v2703 = vunpack.c.h.b16 %v499
    %v2704 = vunpack.c.l.b16 %v500
    %v2705 = vunpack.c.h.b16 %v500
    %v2706 = vunpack.c.l.b16 %v501
    %v2707 = vunpack.c.h.b16 %v501
    %v2708 = vunpack.c.l.b16 %v502
    %v2709 = vunpack.c.h.b16 %v502
    %v2710 = vunpack.c.l.b16 %v503
    %v2711 = vunpack.c.h.b16 %v503
    %v2712 = vunpack.c.l.b16 %v504
    %v2713 = vunpack.c.h.b16 %v504
    %v2714 = vunpack.c.l.b16 %v505
    %v2715 = vunpack.c.h.b16 %v505
    %v2716 = vunpack.c.l.b16 %v506
    %v2717 = vunpack.c.h.b16 %v506
    %v2718 = vunpack.c.l.b16 %v507
    %v2719 = vunpack.c.h.b16 %v507
    %v2720 = vunpack.c.l.b16 %v508
    %v2721 = vunpack.c.h.b16 %v508
    %v2722 = vunpack.c.l.b16 %v509
    %v2723 = vunpack.c.h.b16 %v509
    %v2724 = vunpack.c.l.b16 %v510
    %v2725 = vunpack.c.h.b16 %v510
    %v2726 = vunpack.c.l.b16 %v511
    %v2727 = vunpack.c.h.b16 %v511
    %v2728 = vunpack.c.l.b16 %v512
    %v2729 = vunpack.c.h.b16 %v512
    %v2730 = vunpack.c.l.b16 %v513
    %v2731 = vunpack.c.h.b16 %v513
    %v2732 = vunpack.c.l.b16 %v514
    %v2733 = vunpack.c.h.b16 %v514
    %v2734 = vunpack.c.l.b16 %v515
    %v2735 = vunpack.c.h.b16 %v515
    %v2736 = vunpack.c.l.b16 %v516
    %v2737 = vunpack.c.h.b16 %v516
    %v2738 = vunpack.c.l.b16 %v517
    %v2739 = vunpack.c.h.b16 %v517
    %v2740 = vunpack.c.l.b16 %v518
    %v2741 = vunpack.c.h.b16 %v518
    %v2742 = vunpack.c.l.b16 %v519
    %v2743 = vunpack.c.h.b16 %v519
    %v2744 = vunpack.c.l.b16 %v520
    %v2745 = vunpack.c.h.b16 %v520
    %v2746 = vunpack.c.l.b16 %v521
    %v2747 = vunpack.c.h.b16 %v521
    %v2748 = vunpack.c.l.b16 %v522
    %v2749 = vunpack.c.h.b16 %v522
    %v2750 = vunpack.c.l.b16 %v523
    %v2751 = vunpack.c.h.b16 %v523
    %v2752 = vunpack.c.l.b16 %v524
    %v2753 = vunpack.c.h.b16 %v524
    %v2754 = vunpack.c.l.b16 %v525
    %v2755 = vunpack.c.h.b16 %v525
    %v2756 = vunpack.c.l.b16 %v526
    %v2757 = vunpack.c.h.b16 %v526
    %v2758 = vunpack.c.l.b16 %v527
    %v2759 = vunpack.c.h.b16 %v527
    %v2760 = vunpack.c.l.b16 %v528
    %v2761 = vunpack.c.h.b16 %v528
    %v2762 = vunpack.c.l.b16 %v529
    %v2763 = vunpack.c.h.b16 %v529
    %v2764 = vunpack.c.l.b16 %v530
    %v2765 = vunpack.c.h.b16 %v530
    %v2766 = vunpack.c.l.b16 %v531
    %v2767 = vunpack.c.h.b16 %v531
    %v2768 = vunpack.c.l.b16 %v532
    %v2769 = vunpack.c.h.b16 %v532
    %v2770 = vunpack.c.l.b16 %v533
    %v2771 = vunpack.c.h.b16 %v533
    %v2772 = vunpack.c.l.b16 %v534
    %v2773 = vunpack.c.h.b16 %v534
    %v2774 = vunpack.c.l.b16 %v535
    %v2775 = vunpack.c.h.b16 %v535
    %v2776 = vunpack.c.l.b16 %v536
    %v2777 = vunpack.c.h.b16 %v536
    %v2778 = vunpack.c.l.b16 %v537
    %v2779 = vunpack.c.h.b16 %v537
    %v2780 = vunpack.c.l.b16 %v538
    %v2781 = vunpack.c.h.b16 %v538
    %v2782 = vunpack.c.l.b16 %v539
    %v2783 = vunpack.c.h.b16 %v539
    %v2784 = vunpack.c.l.b16 %v540
    %v2785 = vunpack.c.h.b16 %v540
    %v2786 = vunpack.c.l.b16 %v541
    %v2787 = vunpack.c.h.b16 %v541
    %v2788 = vunpack.c.l.b16 %v542
    %v2789 = vunpack.c.h.b16 %v542
    %v2790 = vunpack.c.l.b16 %v543
    %v2791 = vunpack.c.h.b16 %v543
    %v2792 = vunpack.c.l.b16 %v544
    %v2793 = vunpack.c.h.b16 %v544
    %v2794 = vunpack.c.l.b16 %v545
    %v2795 = vunpack.c.h.b16 %v545
    %v2796 = vunpack.c.l.b16 %v546
    %v2797 = vunpack.c.h.b16 %v546
    %v2798 = vunpack.c.l.b16 %v547
    %v2799 = vunpack.c.h.b16 %v547
    %v2800 = vunpack.c.l.b16 %v548
    %v2801 = vunpack.c.h.b16 %v548
    %v2802 = vunpack.c.l.b16 %v549
    %v2803 = vunpack.c.h.b16 %v549
    %v2804 = vunpack.c.l.b16 %v550
    %v2805 = vunpack.c.h.b16 %v550
    %v2806 = vunpack.c.l.b16 %v551
    %v2807 = vunpack.c.h.b16 %v551
    %v2808 = vunpack.c.l.b16 %v552
    %v2809 = vunpack.c.h.b16 %v552
    %v2810 = vunpack.c.l.b16 %v553
    %v2811 = vunpack.c.h.b16 %v553
    %v2812 = vunpack.c.l.b16 %v554
    %v2813 = vunpack.c.h.b16 %v554
    %v2814 = vunpack.c.l.b16 %v555
    %v2815 = vunpack.c.h.b16 %v555
    %v2816 = vunpack.c.l.b16 %v556
    %v2817 = vunpack.c.h.b16 %v556
    %v2818 = vunpack.c.l.b16 %v557
    %v2819 = vunpack.c.h.b16 %v557
    %v2820 = vunpack.c.l.b16 %v558
    %v2821 = vunpack.c.h.b16 %v558
    %v2822 = vunpack.c.l.b16 %v559
    %v2823 = vunpack.c.h.b16 %v559
    %v2824 = vunpack.c.l.b16 %v560
    %v2825 = vunpack.c.h.b16 %v560
    %v2826 = vunpack.c.l.b16 %v561
    %v2827 = vunpack.c.h.b16 %v561
    %v2828 = vunpack.c.l.b16 %v562
    %v2829 = vunpack.c.h.b16 %v562
    %v2830 = vunpack.c.l.b16 %v563
    %v2831 = vunpack.c.h.b16 %v563
    %v2832 = vunpack.c.l.b16 %v564
    %v2833 = vunpack.c.h.b16 %v564
    %v2834 = vunpack.c.l.b16 %v565
    %v2835 = vunpack.c.h.b16 %v565
    %v2836 = vunpack.c.l.b16 %v566
    %v2837 = vunpack.c.h.b16 %v566
    %v2838 = vunpack.c.l.b16 %v567
    %v2839 = vunpack.c.h.b16 %v567
    %v2840 = vunpack.c.l.b16 %v568
    %v2841 = vunpack.c.h.b16 %v568
    %v2842 = vunpack.c.l.b16 %v569
    %v2843 = vunpack.c.h.b16 %v569
    %v2844 = vunpack.c.l.b16 %v570
    %v2845 = vunpack.c.h.b16 %v570
    %v2846 = vunpack.c.l.b16 %v571
    %v2847 = vunpack.c.h.b16 %v571
    %v2848 = vunpack.c.l.b16 %v572
    %v2849 = vunpack.c.h.b16 %v572
    %v2850 = vunpack.c.l.b16 %v573
    %v2851 = vunpack.c.h.b16 %v573
    %v2852 = vunpack.c.l.b16 %v574
    %v2853 = vunpack.c.h.b16 %v574
    %v2854 = vunpack.c.l.b16 %v575
    %v2855 = vunpack.c.h.b16 %v575
    %v2856 = vunpack.c.l.b16 %v576
    %v2857 = vunpack.c.h.b16 %v576
    %v2858 = vunpack.c.l.b16 %v577
    %v2859 = vunpack.c.h.b16 %v577
    %v2860 = vunpack.c.l.b16 %v578
    %v2861 = vunpack.c.h.b16 %v578
    %v2862 = vunpack.c.l.b16 %v579
    %v2863 = vunpack.c.h.b16 %v579
    %v2864 = vunpack.c.l.b16 %v580
    %v2865 = vunpack.c.h.b16 %v580
    %v2866 = vunpack.c.l.b16 %v581
    %v2867 = vunpack.c.h.b16 %v581
    %v2868 = vunpack.c.l.b16 %v582
    %v2869 = vunpack.c.h.b16 %v582
    %v2870 = vunpack.c.l.b16 %v583
    %v2871 = vunpack.c.h.b16 %v583
    %v2872 = vunpack.c.l.b16 %v584
    %v2873 = vunpack.c.h.b16 %v584
    %v2874 = vunpack.c.l.b16 %v585
    %v2875 = vunpack.c.h.b16 %v585
    %v2876 = vunpack.c.l.b16 %v586
    %v2877 = vunpack.c.h.b16 %v586
    %v2878 = vunpack.c.l.b16 %v587
    %v2879 = vunpack.c.h.b16 %v587
    %v2880 = vunpack.c.l.b16 %v588
    %v2881 = vunpack.c.h.b16 %v588
    %v2882 = vunpack.c.l.b16 %v589
    %v2883 = vunpack.c.h.b16 %v589
    %v2884 = vunpack.c.l.b16 %v590
    %v2885 = vunpack.c.h.b16 %v590
    %v2886 = vunpack.c.l.b16 %v591
    %v2887 = vunpack.c.h.b16 %v591
    %v2888 = vunpack.c.l.b16 %v592
    %v2889 = vunpack.c.h.b16 %v592
    %v2890 = vunpack.c.l.b16 %v593
    %v2891 = vunpack.c.h.b16 %v593
    %v2892 = vunpack.c.l.b16 %v594
    %v2893 = vunpack.c.h.b16 %v594
    %v2894 = vunpack.c.l.b16 %v595
    %v2895 = vunpack.c.h.b16 %v595
    %v2896 = vunpack.c.l.b16 %v596
    %v2897 = vunpack.c.h.b16 %v596
    %v2898 = vunpack.c.l.b16 %v597
    %v2899 = vunpack.c.h.b16 %v597
    %v2900 = vunpack.c.l.b16 %v598
    %v2901 = vunpack.c.h.b16 %v598
    %v2902 = vunpack.c.l.b16 %v599
    %v2903 = vunpack.c.h.b16 %v599
    %v2904 = vunpack.c.l.b16 %v600
    %v2905 = vunpack.c.h.b16 %v600
    %v2906 = vunpack.c.l.b16 %v601
    %v2907 = vunpack.c.h.b16 %v601
    %v2908 = vunpack.c.l.b16 %v602
    %v2909 = vunpack.c.h.b16 %v602
    %v2910 = vunpack.c.l.b16 %v603
    %v2911 = vunpack.c.h.b16 %v603
    %v2912 = vunpack.c.l.b16 %v604
    %v2913 = vunpack.c.h.b16 %v604
    %v2914 = vunpack.c.l.b16 %v605
    %v2915 = vunpack.c.h.b16 %v605
    %v2916 = vunpack.c.l.b16 %v606
    %v2917 = vunpack.c.h.b16 %v606
    %v2918 = vunpack.c.l.b16 %v607
    %v2919 = vunpack.c.h.b16 %v607
    %v2920 = vunpack.c.l.b16 %v608
    %v2921 = vunpack.c.h.b16 %v608
    %v2922 = vunpack.c.l.b16 %v609
    %v2923 = vunpack.c.h.b16 %v609
    %v2924 = vunpack.c.l.b16 %v610
    %v2925 = vunpack.c.h.b16 %v610
    %v2926 = vunpack.c.l.b16 %v611
    %v2927 = vunpack.c.h.b16 %v611
    %v2928 = vunpack.c.l.b16 %v612
    %v2929 = vunpack.c.h.b16 %v612
    %v2930 = vunpack.c.l.b16 %v613
    %v2931 = vunpack.c.h.b16 %v613
    %v2932 = vunpack.c.l.b16 %v614
    %v2933 = vunpack.c.h.b16 %v614
    %v2934 = vunpack.c.l.b16 %v615
    %v2935 = vunpack.c.h.b16 %v615
    %v2936 = vunpack.c.l.b16 %v616
    %v2937 = vunpack.c.h.b16 %v616
    %v2938 = vunpack.c.l.b16 %v617
    %v2939 = vunpack.c.h.b16 %v617
    %v2940 = vunpack.c.l.b16 %v618
    %v2941 = vunpack.c.h.b16 %v618
    %v2942 = vunpack.c.l.b16 %v619
    %v2943 = vunpack.c.h.b16 %v619
    %v2944 = vunpack.c.l.b16 %v620
    %v2945 = vunpack.c.h.b16 %v620
    %v2946 = vunpack.c.l.b16 %v621
    %v2947 = vunpack.c.h.b16 %v621
    %v2948 = vunpack.c.l.b16 %v622
    %v2949 = vunpack.c.h.b16 %v622
    %v2950 = vunpack.c.l.b16 %v623
    %v2951 = vunpack.c.h.b16 %v623
    %v2952 = vunpack.c.l.b16 %v624
    %v2953 = vunpack.c.h.b16 %v624
    %v2954 = vunpack.c.l.b16 %v625
    %v2955 = vunpack.c.h.b16 %v625
    %v2956 = vunpack.c.l.b16 %v626
    %v2957 = vunpack.c.h.b16 %v626
    %v2958 = vunpack.c.l.b16 %v627
    %v2959 = vunpack.c.h.b16 %v627
    %v2960 = vunpack.c.l.b16 %v628
    %v2961 = vunpack.c.h.b16 %v628
    %v2962 = vunpack.c.l.b16 %v629
    %v2963 = vunpack.c.h.b16 %v629
    %v2964 = vunpack.c.l.b16 %v630
    %v2965 = vunpack.c.h.b16 %v630
    %v2966 = vunpack.c.l.b16 %v631
    %v2967 = vunpack.c.h.b16 %v631
    %v2968 = vunpack.c.l.b16 %v632
    %v2969 = vunpack.c.h.b16 %v632
    %v2970 = vunpack.c.l.b16 %v633
    %v2971 = vunpack.c.h.b16 %v633
    %v2972 = vunpack.c.l.b16 %v634
    %v2973 = vunpack.c.h.b16 %v634
    %v2974 = vunpack.c.l.b16 %v635
    %v2975 = vunpack.c.h.b16 %v635
    %v2976 = vunpack.c.l.b16 %v636
    %v2977 = vunpack.c.h.b16 %v636
    %v2978 = vunpack.c.l.b16 %v637
    %v2979 = vunpack.c.h.b16 %v637
    %v2980 = vunpack.c.l.b16 %v638
    %v2981 = vunpack.c.h.b16 %v638
    %v2982 = vunpack.c.l.b16 %v639
    %v2983 = vunpack.c.h.b16 %v639
    %v2984 = vunpack.c.l.b16 %v640
    %v2985 = vunpack.c.h.b16 %v640
    %v2986 = vunpack.c.l.b16 %v641
    %v2987 = vunpack.c.h.b16 %v641
    %v2988 = vunpack.c.l.b16 %v642
    %v2989 = vunpack.c.h.b16 %v642
    %v2990 = vunpack.c.l.b16 %v643
    %v2991 = vunpack.c.h.b16 %v643
    %v2992 = vunpack.c.l.b16 %v644
    %v2993 = vunpack.c.h.b16 %v644
    %v2994 = vunpack.c.l.b16 %v645
    %v2995 = vunpack.c.h.b16 %v645
    %v2996 = vunpack.c.l.b16 %v646
    %v2997 = vunpack.c.h.b16 %v646
    %v2998 = vunpack.c.l.b16 %v647
    %v2999 = vunpack.c.h.b16 %v647
    %v3000 = vunpack.c.l.b16 %v648
    %v3001 = vunpack.c.h.b16 %v648
    %v3002 = vunpack.c.l.b16 %v649
    %v3003 = vunpack.c.h.b16 %v649
    %v3004 = vunpack.c.l.b16 %v650
    %v3005 = vunpack.c.h.b16 %v650
    %v3006 = vunpack.c.l.b16 %v651
    %v3007 = vunpack.c.h.b16 %v651
    %v3008 = vunpack.c.l.b16 %v652
    %v3009 = vunpack.c.h.b16 %v652
    %v3010 = vunpack.c.l.b16 %v653
    %v3011 = vunpack.c.h.b16 %v653
    %v3012 = vunpack.c.l.b16 %v654
    %v3013 = vunpack.c.h.b16 %v654
    %v3014 = vunpack.c.l.b16 %v655
    %v3015 = vunpack.c.h.b16 %v655
    %v3016 = vunpack.c.l.b16 %v656
    %v3017 = vunpack.c.h.b16 %v656
    %v3018 = vunpack.c.l.b16 %v657
    %v3019 = vunpack.c.h.b16 %v657
    %v3020 = vunpack.c.l.b16 %v658
    %v3021 = vunpack.c.h.b16 %v658
    %v3022 = vunpack.c.l.b16 %v659
    %v3023 = vunpack.c.h.b16 %v659
    %v3024 = vunpack.c.l.b16 %v660
    %v3025 = vunpack.c.h.b16 %v660
    %v3026 = vunpack.c.l.b16 %v661
    %v3027 = vunpack.c.h.b16 %v661
    %v3028 = vunpack.c.l.b16 %v662
    %v3029 = vunpack.c.h.b16 %v662
    %v3030 = vunpack.c.l.b16 %v663
    %v3031 = vunpack.c.h.b16 %v663
    %v3032 = vunpack.c.l.b16 %v664
    %v3033 = vunpack.c.h.b16 %v664
    %v3034 = vunpack.c.l.b16 %v665
    %v3035 = vunpack.c.h.b16 %v665
    %v3036 = vunpack.c.l.b16 %v666
    %v3037 = vunpack.c.h.b16 %v666
    %v3038 = vunpack.c.l.b16 %v667
    %v3039 = vunpack.c.h.b16 %v667
    %v3040 = vunpack.c.l.b16 %v668
    %v3041 = vunpack.c.h.b16 %v668
    %v3042 = vunpack.c.l.b16 %v669
    %v3043 = vunpack.c.h.b16 %v669
    %v3044 = vunpack.c.l.b16 %v670
    %v3045 = vunpack.c.h.b16 %v670
    %v3046 = vunpack.c.l.b16 %v671
    %v3047 = vunpack.c.h.b16 %v671
    %v3048 = vunpack.c.l.b16 %v672
    %v3049 = vunpack.c.h.b16 %v672
    %v3050 = vunpack.c.l.b16 %v673
    %v3051 = vunpack.c.h.b16 %v673
    %v3052 = vunpack.c.l.b16 %v674
    %v3053 = vunpack.c.h.b16 %v674
    %v3054 = vunpack.c.l.b16 %v675
    %v3055 = vunpack.c.h.b16 %v675
    %v3056 = vunpack.c.l.b16 %v676
    %v3057 = vunpack.c.h.b16 %v676
    %v3058 = vunpack.c.l.b16 %v677
    %v3059 = vunpack.c.h.b16 %v677
    %v3060 = vunpack.c.l.b16 %v678
    %v3061 = vunpack.c.h.b16 %v678
    %v3062 = vunpack.c.l.b16 %v679
    %v3063 = vunpack.c.h.b16 %v679
    %v3064 = vunpack.c.l.b16 %v680
    %v3065 = vunpack.c.h.b16 %v680
    %v3066 = vunpack.c.l.b16 %v681
    %v3067 = vunpack.c.h.b16 %v681
    %v3068 = vunpack.c.l.b16 %v682
    %v3069 = vunpack.c.h.b16 %v682
    %v3070 = vunpack.c.l.b16 %v683
    %v3071 = vunpack.c.h.b16 %v683
    %v3072 = vunpack.c.l.b16 %v684
    %v3073 = vunpack.c.h.b16 %v684
    %v3074 = vunpack.c.l.b16 %v685
    %v3075 = vunpack.c.h.b16 %v685
    %v3076 = vunpack.c.l.b16 %v686
    %v3077 = vunpack.c.h.b16 %v686
    %v3078 = vunpack.c.l.b16 %v687
    %v3079 = vunpack.c.h.b16 %v687
    %v3080 = vunpack.c.l.b16 %v688
    %v3081 = vunpack.c.h.b16 %v688
    %v3082 = vunpack.c.l.b16 %v689
    %v3083 = vunpack.c.h.b16 %v689
    %v3084 = vunpack.c.l.b16 %v690
    %v3085 = vunpack.c.h.b16 %v690
    %v3086 = vunpack.c.l.b16 %v691
    %v3087 = vunpack.c.h.b16 %v691
    %v3088 = vunpack.c.l.b16 %v692
    %v3089 = vunpack.c.h.b16 %v692
    %v3090 = vunpack.c.l.b16 %v693
    %v3091 = vunpack.c.h.b16 %v693
    %v3092 = vunpack.c.l.b16 %v694
    %v3093 = vunpack.c.h.b16 %v694
    %v3094 = vunpack.c.l.b16 %v695
    %v3095 = vunpack.c.h.b16 %v695
    %v3096 = vunpack.c.l.b16 %v696
    %v3097 = vunpack.c.h.b16 %v696
    %v3098 = vunpack.c.l.b16 %v697
    %v3099 = vunpack.c.h.b16 %v697
    %v3100 = vunpack.c.l.b16 %v698
    %v3101 = vunpack.c.h.b16 %v698
    %v3102 = vunpack.c.l.b16 %v699
    %v3103 = vunpack.c.h.b16 %v699
    %v3104 = vunpack.c.l.b16 %v700
    %v3105 = vunpack.c.h.b16 %v700
    %v3106 = vunpack.c.l.b16 %v701
    %v3107 = vunpack.c.h.b16 %v701
    %v3108 = vunpack.c.l.b16 %v702
    %v3109 = vunpack.c.h.b16 %v702
    %v3110 = vunpack.c.l.b16 %v703
    %v3111 = vunpack.c.h.b16 %v703
    %v3112 = vunpack.c.l.b16 %v704
    %v3113 = vunpack.c.h.b16 %v704
    %v3114 = vunpack.c.l.b16 %v705
    %v3115 = vunpack.c.h.b16 %v705
    %v3116 = vunpack.c.l.b16 %v706
    %v3117 = vunpack.c.h.b16 %v706
    %v3118 = vunpack.c.l.b16 %v707
    %v3119 = vunpack.c.h.b16 %v707
    %v3120 = vunpack.c.l.b16 %v708
    %v3121 = vunpack.c.h.b16 %v708
    %v3122 = vunpack.c.l.b16 %v709
    %v3123 = vunpack.c.h.b16 %v709
    %v3124 = vunpack.c.l.b16 %v710
    %v3125 = vunpack.c.h.b16 %v710
    %v3126 = vunpack.c.l.b16 %v711
    %v3127 = vunpack.c.h.b16 %v711
    %v3128 = vunpack.c.l.b16 %v712
    %v3129 = vunpack.c.h.b16 %v712
    %v3130 = vunpack.c.l.b16 %v713
    %v3131 = vunpack.c.h.b16 %v713
    %v3132 = vunpack.c.l.b16 %v714
    %v3133 = vunpack.c.h.b16 %v714
    %v3134 = vunpack.c.l.b16 %v715
    %v3135 = vunpack.c.h.b16 %v715
    %v3136 = vunpack.c.l.b16 %v716
    %v3137 = vunpack.c.h.b16 %v716
    %v3138 = vunpack.c.l.b16 %v717
    %v3139 = vunpack.c.h.b16 %v717
    %v3140 = vunpack.c.l.b16 %v718
    %v3141 = vunpack.c.h.b16 %v718
    %v3142 = vunpack.c.l.b16 %v719
    %v3143 = vunpack.c.h.b16 %v719
    %v3144 = vunpack.c.l.b16 %v720
    %v3145 = vunpack.c.h.b16 %v720
    %v3146 = vunpack.c.l.b16 %v721
    %v3147 = vunpack.c.h.b16 %v721
    %v3148 = vunpack.c.l.b16 %v722
    %v3149 = vunpack.c.h.b16 %v722
    %v3150 = vunpack.c.l.b16 %v723
    %v3151 = vunpack.c.h.b16 %v723
    %v3152 = vunpack.c.l.b16 %v724
    %v3153 = vunpack.c.h.b16 %v724
    %v3154 = vunpack.c.l.b16 %v725
    %v3155 = vunpack.c.h.b16 %v725
    %v3156 = vunpack.c.l.b16 %v726
    %v3157 = vunpack.c.h.b16 %v726
    %v3158 = vunpack.c.l.b16 %v727
    %v3159 = vunpack.c.h.b16 %v727
    %v3160 = vunpack.c.l.b16 %v728
    %v3161 = vunpack.c.h.b16 %v728
    %v3162 = vunpack.c.l.b16 %v729
    %v3163 = vunpack.c.h.b16 %v729
    %v3164 = vunpack.c.l.b16 %v730
    %v3165 = vunpack.c.h.b16 %v730
    %v3166 = vunpack.c.l.b16 %v731
    %v3167 = vunpack.c.h.b16 %v731
    %v3168 = vunpack.c.l.b16 %v732
    %v3169 = vunpack.c.h.b16 %v732
    %v3170 = vunpack.c.l.b16 %v733
    %v3171 = vunpack.c.h.b16 %v733
    %v3172 = vunpack.c.l.b16 %v734
    %v3173 = vunpack.c.h.b16 %v734
    %v3174 = vunpack.c.l.b16 %v735
    %v3175 = vunpack.c.h.b16 %v735
    %v3176 = vunpack.c.l.b16 %v736
    %v3177 = vunpack.c.h.b16 %v736
    %v3178 = vunpack.c.l.b16 %v737
    %v3179 = vunpack.c.h.b16 %v737
    %v3180 = vunpack.c.l.b16 %v738
    %v3181 = vunpack.c.h.b16 %v738
    %v3182 = vunpack.c.l.b16 %v739
    %v3183 = vunpack.c.h.b16 %v739
    %v3184 = vunpack.c.l.b16 %v740
    %v3185 = vunpack.c.h.b16 %v740
    %v3186 = vunpack.c.l.b16 %v741
    %v3187 = vunpack.c.h.b16 %v741
    %v3188 = vunpack.c.l.b16 %v742
    %v3189 = vunpack.c.h.b16 %v742
    %v3190 = vunpack.c.l.b16 %v743
    %v3191 = vunpack.c.h.b16 %v743
    %v3192 = vunpack.c.l.b16 %v744
    %v3193 = vunpack.c.h.b16 %v744
    %v3194 = vunpack.c.l.b16 %v745
    %v3195 = vunpack.c.h.b16 %v745
    %v3196 = vunpack.c.l.b16 %v746
    %v3197 = vunpack.c.h.b16 %v746
    %v3198 = vunpack.c.l.b16 %v747
    %v3199 = vunpack.c.h.b16 %v747
    %v3200 = vunpack.c.l.b16 %v748
    %v3201 = vunpack.c.h.b16 %v748
    %v3202 = vunpack.c.l.b16 %v749
    %v3203 = vunpack.c.h.b16 %v749
    %v3204 = vunpack.c.l.b16 %v750
    %v3205 = vunpack.c.h.b16 %v750
    %v3206 = vunpack.c.l.b16 %v751
    %v3207 = vunpack.c.h.b16 %v751
    %v3208 = vunpack.c.l.b16 %v752
    %v3209 = vunpack.c.h.b16 %v752
    %v3210 = vunpack.c.l.b16 %v753
    %v3211 = vunpack.c.h.b16 %v753
    %v3212 = vunpack.c.l.b16 %v754
    %v3213 = vunpack.c.h.b16 %v754
    %v3214 = vunpack.c.l.b16 %v755
    %v3215 = vunpack.c.h.b16 %v755
    %v3216 = vunpack.c.l.b16 %v756
    %v3217 = vunpack.c.h.b16 %v756
    %v3218 = vunpack.c.l.b16 %v757
    %v3219 = vunpack.c.h.b16 %v757
    %v3220 = vunpack.c.l.b16 %v758
    %v3221 = vunpack.c.h.b16 %v758
    %v3222 = vunpack.c.l.b16 %v759
    %v3223 = vunpack.c.h.b16 %v759
    %v3224 = vunpack.c.l.b16 %v760
    %v3225 = vunpack.c.h.b16 %v760
    %v3226 = vunpack.c.l.b16 %v761
    %v3227 = vunpack.c.h.b16 %v761
    %v3228 = vunpack.c.l.b16 %v762
    %v3229 = vunpack.c.h.b16 %v762
    %v3230 = vunpack.c.l.b16 %v763
    %v3231 = vunpack.c.h.b16 %v763
    %v3232 = vunpack.c.l.b16 %v764
    %v3233 = vunpack.c.h.b16 %v764
    %v3234 = vunpack.c.l.b16 %v765
    %v3235 = vunpack.c.h.b16 %v765
    %v3236 = vunpack.c.l.b16 %v766
    %v3237 = vunpack.c.h.b16 %v766
    %v3238 = vunpack.c.l.b16 %v767
    %v3239 = vunpack.c.h.b16 %v767
    %v3240 = vunpack.c.l.b16 %v768
    %v3241 = vunpack.c.h.b16 %v768
    %v3242 = vunpack.c.l.b16 %v769
    %v3243 = vunpack.c.h.b16 %v769
    %v3244 = vunpack.c.l.b16 %v770
    %v3245 = vunpack.c.h.b16 %v770
    %v3246 = vunpack.c.l.b16 %v771
    %v3247 = vunpack.c.h.b16 %v771
    %v3248 = vunpack.c.l.b16 %v772
    %v3249 = vunpack.c.h.b16 %v772
    %v3250 = vunpack.c.l.b16 %v773
    %v3251 = vunpack.c.h.b16 %v773
    %v3252 = vunpack.c.l.b16 %v774
    %v3253 = vunpack.c.h.b16 %v774
    %v3254 = vunpack.c.l.b16 %v775
    %v3255 = vunpack.c.h.b16 %v775
    %v3256 = vunpack.c.l.b16 %v776
    %v3257 = vunpack.c.h.b16 %v776
    %v3258 = vunpack.c.l.b16 %v777
    %v3259 = vunpack.c.h.b16 %v777
    %v3260 = vunpack.c.l.b16 %v778
    %v3261 = vunpack.c.h.b16 %v778
    %v3262 = vunpack.c.l.b16 %v779
    %v3263 = vunpack.c.h.b16 %v779
    %v3264 = vunpack.c.l.b16 %v780
    %v3265 = vunpack.c.h.b16 %v780
    %v3266 = vunpack.c.l.b16 %v781
    %v3267 = vunpack.c.h.b16 %v781
    %v3268 = vunpack.c.l.b16 %v782
    %v3269 = vunpack.c.h.b16 %v782
    %v3270 = vunpack.c.l.b16 %v783
    %v3271 = vunpack.c.h.b16 %v783
    %v3272 = vunpack.c.l.b16 %v784
    %v3273 = vunpack.c.h.b16 %v784
    %v3274 = vunpack.c.l.b16 %v785
    %v3275 = vunpack.c.h.b16 %v785
    %v3276 = vunpack.c.l.b16 %v786
    %v3277 = vunpack.c.h.b16 %v786
    %v3278 = vunpack.c.l.b16 %v787
    %v3279 = vunpack.c.h.b16 %v787
    %v3280 = vunpack.c.l.b16 %v788
    %v3281 = vunpack.c.h.b16 %v788
    %v3282 = vunpack.c.l.b16 %v789
    %v3283 = vunpack.c.h.b16 %v789
    %v3284 = vunpack.c.l.b16 %v790
    %v3285 = vunpack.c.h.b16 %v790
    %v3286 = vunpack.c.l.b16 %v791
    %v3287 = vunpack.c.h.b16 %v791
    %v3288 = vunpack.c.l.b16 %v792
    %v3289 = vunpack.c.h.b16 %v792
    %v3290 = vunpack.c.l.b16 %v793
    %v3291 = vunpack.c.h.b16 %v793
    %v3292 = vunpack.c.l.b16 %v794
    %v3293 = vunpack.c.h.b16 %v794
    %v3294 = vunpack.c.l.b16 %v795
    %v3295 = vunpack.c.h.b16 %v795
    %v3296 = vunpack.c.l.b16 %v796
    %v3297 = vunpack.c.h.b16 %v796
    %v3298 = vunpack.c.l.b16 %v797
    %v3299 = vunpack.c.h.b16 %v797
    %v3300 = vunpack.c.l.b16 %v798
    %v3301 = vunpack.c.h.b16 %v798
    %v3302 = vunpack.c.l.b16 %v799
    %v3303 = vunpack.c.h.b16 %v799
    %v3304 = vunpack.c.l.b16 %v800
    %v3305 = vunpack.c.h.b16 %v800
    %v3306 = vunpack.c.l.b16 %v801
    %v3307 = vunpack.c.h.b16 %v801
    %v3308 = vunpack.c.l.b16 %v802
    %v3309 = vunpack.c.h.b16 %v802
    %v3310 = vunpack.c.l.b16 %v803
    %v3311 = vunpack.c.h.b16 %v803
    %v3312 = vunpack.c.l.b16 %v804
    %v3313 = vunpack.c.h.b16 %v804
    %v3314 = vunpack.c.l.b16 %v805
    %v3315 = vunpack.c.h.b16 %v805
    %v3316 = vunpack.c.l.b16 %v806
    %v3317 = vunpack.c.h.b16 %v806
    %v3318 = vunpack.c.l.b16 %v807
    %v3319 = vunpack.c.h.b16 %v807
    %v3320 = vunpack.c.l.b16 %v808
    %v3321 = vunpack.c.h.b16 %v808
    %v3322 = vunpack.c.l.b16 %v809
    %v3323 = vunpack.c.h.b16 %v809
    %v3324 = vunpack.c.l.b16 %v810
    %v3325 = vunpack.c.h.b16 %v810
    %v3326 = vunpack.c.l.b16 %v811
    %v3327 = vunpack.c.h.b16 %v811
    %v3328 = vunpack.c.l.b16 %v812
    %v3329 = vunpack.c.h.b16 %v812
    %v3330 = vunpack.c.l.b16 %v813
    %v3331 = vunpack.c.h.b16 %v813
    %v3332 = vunpack.c.l.b16 %v814
    %v3333 = vunpack.c.h.b16 %v814
    %v3334 = vunpack.c.l.b16 %v815
    %v3335 = vunpack.c.h.b16 %v815
    %v3336 = vunpack.c.l.b16 %v816
    %v3337 = vunpack.c.h.b16 %v816
    %v3338 = vunpack.c.l.b16 %v817
    %v3339 = vunpack.c.h.b16 %v817
    %v3340 = vunpack.c.l.b16 %v818
    %v3341 = vunpack.c.h.b16 %v818
    %v3342 = vunpack.c.l.b16 %v819
    %v3343 = vunpack.c.h.b16 %v819
    %v3344 = vunpack.c.l.b16 %v820
    %v3345 = vunpack.c.h.b16 %v820
    %v3346 = vunpack.c.l.b16 %v821
    %v3347 = vunpack.c.h.b16 %v821
    %v3348 = vunpack.c.l.b16 %v822
    %v3349 = vunpack.c.h.b16 %v822
    %v3350 = vunpack.c.l.b16 %v823
    %v3351 = vunpack.c.h.b16 %v823
    %v3352 = vunpack.c.l.b16 %v824
    %v3353 = vunpack.c.h.b16 %v824
    %v3354 = vunpack.c.l.b16 %v825
    %v3355 = vunpack.c.h.b16 %v825
    %v3356 = vunpack.c.l.b16 %v826
    %v3357 = vunpack.c.h.b16 %v826
    %v3358 = vunpack.c.l.b16 %v827
    %v3359 = vunpack.c.h.b16 %v827
    %v3360 = vunpack.c.l.b16 %v828
    %v3361 = vunpack.c.h.b16 %v828
    %v3362 = vunpack.c.l.b16 %v829
    %v3363 = vunpack.c.h.b16 %v829
    %v3364 = vunpack.c.l.b16 %v830
    %v3365 = vunpack.c.h.b16 %v830
    %v3366 = vunpack.c.l.b16 %v831
    %v3367 = vunpack.c.h.b16 %v831
    %v3368 = vunpack.c.l.b16 %v832
    %v3369 = vunpack.c.h.b16 %v832
    %v3370 = vunpack.c.l.b16 %v833
    %v3371 = vunpack.c.h.b16 %v833
    %v3372 = vunpack.c.l.b16 %v834
    %v3373 = vunpack.c.h.b16 %v834
    %v3374 = vpack.c.b16 %v1790, %v1774
    %v3375 = vpack.c.b16 %v1791, %v1775
    %v3376 = vpack.c.b16 %v1792, %v1776
    %v3377 = vpack.c.b16 %v1793, %v1777
    %v3378 = vpack.c.b16 %v1794, %v1778
    %v3379 = vpack.c.b16 %v1795, %v1779
    %v3380 = vpack.c.b16 %v1796, %v1780
    %v3381 = vpack.c.b16 %v1797, %v1781
    %v3382 = vpack.c.b16 %v1798, %v1782
    %v3383 = vpack.c.b16 %v1799, %v1783
    %v3384 = vpack.c.b16 %v1800, %v1784
    %v3385 = vpack.c.b16 %v1801, %v1785
    %v3386 = vpack.c.b16 %v1802, %v1786
    %v3387 = vpack.c.b16 %v1803, %v1787
    %v3388 = vpack.c.b16 %v1804, %v1788
    %v3389 = vpack.c.b16 %v1805, %v1789
    %v3390 = vpack.c.b16 %v1822, %v1806
    %v3391 = vpack.c.b16 %v1823, %v1807
    %v3392 = vpack.c.b16 %v1824, %v1808
    %v3393 = vpack.c.b16 %v1825, %v1809
    %v3394 = vpack.c.b16 %v1826, %v1810
    %v3395 = vpack.c.b16 %v1827, %v1811
    %v3396 = vpack.c.b16 %v1828, %v1812
    %v3397 = vpack.c.b16 %v1829, %v1813
    %v3398 = vpack.c.b16 %v1830, %v1814
    %v3399 = vpack.c.b16 %v1831, %v1815
    %v3400 = vpack.c.b16 %v1832, %v1816
    %v3401 = vpack.c.b16 %v1833, %v1817
    %v3402 = vpack.c.b16 %v1834, %v1818
    %v3403 = vpack.c.b16 %v1835, %v1819
    %v3404 = vpack.c.b16 %v1836, %v1820
    %v3405 = vpack.c.b16 %v1837, %v1821
    %v3406 = vpack.c.b16 %v1854, %v1838
    %v3407 = vpack.c.b16 %v1855, %v1839
    %v3408 = vpack.c.b16 %v1856, %v1840
    %v3409 = vpack.c.b16 %v1857, %v1841
    %v3410 = vpack.c.b16 %v1858, %v1842
    %v3411 = vpack.c.b16 %v1859, %v1843
    %v3412 = vpack.c.b16 %v1860, %v1844
    %v3413 = vpack.c.b16 %v1861, %v1845
    %v3414 = vpack.c.b16 %v1862, %v1846
    %v3415 = vpack.c.b16 %v1863, %v1847
    %v3416 = vpack.c.b16 %v1864, %v1848
    %v3417 = vpack.c.b16 %v1865, %v1849
    %v3418 = vpack.c.b16 %v1866, %v1850
    %v3419 = vpack.c.b16 %v1867, %v1851
    %v3420 = vpack.c.b16 %v1868, %v1852
    %v3421 = vpack.c.b16 %v1869, %v1853
    %v3422 = vpack.c.b16 %v1886, %v1870
    %v3423 = vpack.c.b16 %v1887, %v1871
    %v3424 = vpack.c.b16 %v1888, %v1872
    %v3425 = vpack.c.b16 %v1889, %v1873
    %v3426 = vpack.c.b16 %v1890, %v1874
    %v3427 = vpack.c.b16 %v1891, %v1875
    %v3428 = vpack.c.b16 %v1892, %v1876
    %v3429 = vpack.c.b16 %v1893, %v1877
    %v3430 = vpack.c.b16 %v1894, %v1878
    %v3431 = vpack.c.b16 %v1895, %v1879
    %v3432 = vpack.c.b16 %v1896, %v1880
    %v3433 = vpack.c.b16 %v1897, %v1881
    %v3434 = vpack.c.b16 %v1898, %v1882
    %v3435 = vpack.c.b16 %v1899, %v1883
    %v3436 = vpack.c.b16 %v1900, %v1884
    %v3437 = vpack.c.b16 %v1901, %v1885
    %v3438 = vpack.c.b16 %v1918, %v1902
    %v3439 = vpack.c.b16 %v1919, %v1903
    %v3440 = vpack.c.b16 %v1920, %v1904
    %v3441 = vpack.c.b16 %v1921, %v1905
    %v3442 = vpack.c.b16 %v1922, %v1906
    %v3443 = vpack.c.b16 %v1923, %v1907
    %v3444 = vpack.c.b16 %v1924, %v1908
    %v3445 = vpack.c.b16 %v1925, %v1909
    %v3446 = vpack.c.b16 %v1926, %v1910
    %v3447 = vpack.c.b16 %v1927, %v1911
    %v3448 = vpack.c.b16 %v1928, %v1912
    %v3449 = vpack.c.b16 %v1929, %v1913
    %v3450 = vpack.c.b16 %v1930, %v1914
    %v3451 = vpack.c.b16 %v1931, %v1915
    %v3452 = vpack.c.b16 %v1932, %v1916
    %v3453 = vpack.c.b16 %v1933, %v1917
    %v3454 = vpack.c.b16 %v1950, %v1934
    %v3455 = vpack.c.b16 %v1951, %v1935
    %v3456 = vpack.c.b16 %v1952, %v1936
    %v3457 = vpack.c.b16 %v1953, %v1937
    %v3458 = vpack.c.b16 %v1954, %v1938
    %v3459 = vpack.c.b16 %v1955, %v1939
    %v3460 = vpack.c.b16 %v1956, %v1940
    %v3461 = vpack.c.b16 %v1957, %v1941
    %v3462 = vpack.c.b16 %v1958, %v1942
    %v3463 = vpack.c.b16 %v1959, %v1943
    %v3464 = vpack.c.b16 %v1960, %v1944
    %v3465 = vpack.c.b16 %v1961, %v1945
    %v3466 = vpack.c.b16 %v1962, %v1946
    %v3467 = vpack.c.b16 %v1963, %v1947
    %v3468 = vpack.c.b16 %v1964, %v1948
    %v3469 = vpack.c.b16 %v1965, %v1949
    %v3470 = vpack.c.b16 %v1982, %v1966
    %v3471 = vpack.c.b16 %v1983, %v1967
    %v3472 = vpack.c.b16 %v1984, %v1968
    %v3473 = vpack.c.b16 %v1985, %v1969
    %v3474 = vpack.c.b16 %v1986, %v1970
    %v3475 = vpack.c.b16 %v1987, %v1971
    %v3476 = vpack.c.b16 %v1988, %v1972
    %v3477 = vpack.c.b16 %v1989, %v1973
    %v3478 = vpack.c.b16 %v1990, %v1974
    %v3479 = vpack.c.b16 %v1991, %v1975
    %v3480 = vpack.c.b16 %v1992, %v1976
    %v3481 = vpack.c.b16 %v1993, %v1977
    %v3482 = vpack.c.b16 %v1994, %v1978
    %v3483 = vpack.c.b16 %v1995, %v1979
    %v3484 = vpack.c.b16 %v1996, %v1980
    %v3485 = vpack.c.b16 %v1997, %v1981
    %v3486 = vpack.c.b16 %v2014, %v1998
    %v3487 = vpack.c.b16 %v2015, %v1999
    %v3488 = vpack.c.b16 %v2016, %v2000
    %v3489 = vpack.c.b16 %v2017, %v2001
    %v3490 = vpack.c.b16 %v2018, %v2002
    %v3491 = vpack.c.b16 %v2019, %v2003
    %v3492 = vpack.c.b16 %v2020, %v2004
    %v3493 = vpack.c.b16 %v2021, %v2005
    %v3494 = vpack.c.b16 %v2022, %v2006
    %v3495 = vpack.c.b16 %v2023, %v2007
    %v3496 = vpack.c.b16 %v2024, %v2008
    %v3497 = vpack.c.b16 %v2025, %v2009
    %v3498 = vpack.c.b16 %v2026, %v2010
    %v3499 = vpack.c.b16 %v2027, %v2011
    %v3500 = vpack.c.b16 %v2028, %v2012
    %v3501 = vpack.c.b16 %v2029, %v2013
    %v3502 = vpack.c.b16 %v2046, %v2030
    %v3503 = vpack.c.b16 %v2047, %v2031
    %v3504 = vpack.c.b16 %v2048, %v2032
    %v3505 = vpack.c.b16 %v2049, %v2033
    %v3506 = vpack.c.b16 %v2050, %v2034
    %v3507 = vpack.c.b16 %v2051, %v2035
    %v3508 = vpack.c.b16 %v2052, %v2036
    %v3509 = vpack.c.b16 %v2053, %v2037
    %v3510 = vpack.c.b16 %v2054, %v2038
    %v3511 = vpack.c.b16 %v2055, %v2039
    %v3512 = vpack.c.b16 %v2056, %v2040
    %v3513 = vpack.c.b16 %v2057, %v2041
    %v3514 = vpack.c.b16 %v2058, %v2042
    %v3515 = vpack.c.b16 %v2059, %v2043
    %v3516 = vpack.c.b16 %v2060, %v2044
    %v3517 = vpack.c.b16 %v2061, %v2045
    %v3518 = vpack.c.b16 %v2078, %v2062
    %v3519 = vpack.c.b16 %v2079, %v2063
    %v3520 = vpack.c.b16 %v2080, %v2064
    %v3521 = vpack.c.b16 %v2081, %v2065
    %v3522 = vpack.c.b16 %v2082, %v2066
    %v3523 = vpack.c.b16 %v2083, %v2067
    %v3524 = vpack.c.b16 %v2084, %v2068
    %v3525 = vpack.c.b16 %v2085, %v2069
    %v3526 = vpack.c.b16 %v2086, %v2070
    %v3527 = vpack.c.b16 %v2087, %v2071
    %v3528 = vpack.c.b16 %v2088, %v2072
    %v3529 = vpack.c.b16 %v2089, %v2073
    %v3530 = vpack.c.b16 %v2090, %v2074
    %v3531 = vpack.c.b16 %v2091, %v2075
    %v3532 = vpack.c.b16 %v2092, %v2076
    %v3533 = vpack.c.b16 %v2093, %v2077
    %v3534 = vpack.c.b16 %v2110, %v2094
    %v3535 = vpack.c.b16 %v2111, %v2095
    %v3536 = vpack.c.b16 %v2112, %v2096
    %v3537 = vpack.c.b16 %v2113, %v2097
    %v3538 = vpack.c.b16 %v2114, %v2098
    %v3539 = vpack.c.b16 %v2115, %v2099
    %v3540 = vpack.c.b16 %v2116, %v2100
    %v3541 = vpack.c.b16 %v2117, %v2101
    %v3542 = vpack.c.b16 %v2118, %v2102
    %v3543 = vpack.c.b16 %v2119, %v2103
    %v3544 = vpack.c.b16 %v2120, %v2104
    %v3545 = vpack.c.b16 %v2121, %v2105
    %v3546 = vpack.c.b16 %v2122, %v2106
    %v3547 = vpack.c.b16 %v2123, %v2107
    %v3548 = vpack.c.b16 %v2124, %v2108
    %v3549 = vpack.c.b16 %v2125, %v2109
    %v3550 = vpack.c.b16 %v2142, %v2126
    %v3551 = vpack.c.b16 %v2143, %v2127
    %v3552 = vpack.c.b16 %v2144, %v2128
    %v3553 = vpack.c.b16 %v2145, %v2129
    %v3554 = vpack.c.b16 %v2146, %v2130
    %v3555 = vpack.c.b16 %v2147, %v2131
    %v3556 = vpack.c.b16 %v2148, %v2132
    %v3557 = vpack.c.b16 %v2149, %v2133
    %v3558 = vpack.c.b16 %v2150, %v2134
    %v3559 = vpack.c.b16 %v2151, %v2135
    %v3560 = vpack.c.b16 %v2152, %v2136
    %v3561 = vpack.c.b16 %v2153, %v2137
    %v3562 = vpack.c.b16 %v2154, %v2138
    %v3563 = vpack.c.b16 %v2155, %v2139
    %v3564 = vpack.c.b16 %v2156, %v2140
    %v3565 = vpack.c.b16 %v2157, %v2141
    %v3566 = vpack.c.b16 %v2174, %v2158
    %v3567 = vpack.c.b16 %v2175, %v2159
    %v3568 = vpack.c.b16 %v2176, %v2160
    %v3569 = vpack.c.b16 %v2177, %v2161
    %v3570 = vpack.c.b16 %v2178, %v2162
    %v3571 = vpack.c.b16 %v2179, %v2163
    %v3572 = vpack.c.b16 %v2180, %v2164
    %v3573 = vpack.c.b16 %v2181, %v2165
    %v3574 = vpack.c.b16 %v2182, %v2166
    %v3575 = vpack.c.b16 %v2183, %v2167
    %v3576 = vpack.c.b16 %v2184, %v2168
    %v3577 = vpack.c.b16 %v2185, %v2169
    %v3578 = vpack.c.b16 %v2186, %v2170
    %v3579 = vpack.c.b16 %v2187, %v2171
    %v3580 = vpack.c.b16 %v2188, %v2172
    %v3581 = vpack.c.b16 %v2189, %v2173
    %v3582 = vpack.c.b16 %v2206, %v2190
    %v3583 = vpack.c.b16 %v2207, %v2191
    %v3584 = vpack.c.b16 %v2208, %v2192
    %v3585 = vpack.c.b16 %v2209, %v2193
    %v3586 = vpack.c.b16 %v2210, %v2194
    %v3587 = vpack.c.b16 %v2211, %v2195
    %v3588 = vpack.c.b16 %v2212, %v2196
    %v3589 = vpack.c.b16 %v2213, %v2197
    %v3590 = vpack.c.b16 %v2214, %v2198
    %v3591 = vpack.c.b16 %v2215, %v2199
    %v3592 = vpack.c.b16 %v2216, %v2200
    %v3593 = vpack.c.b16 %v2217, %v2201
    %v3594 = vpack.c.b16 %v2218, %v2202
    %v3595 = vpack.c.b16 %v2219, %v2203
    %v3596 = vpack.c.b16 %v2220, %v2204
    %v3597 = vpack.c.b16 %v2221, %v2205
    %v3598 = vpack.c.b16 %v2238, %v2222
    %v3599 = vpack.c.b16 %v2239, %v2223
    %v3600 = vpack.c.b16 %v2240, %v2224
    %v3601 = vpack.c.b16 %v2241, %v2225
    %v3602 = vpack.c.b16 %v2242, %v2226
    %v3603 = vpack.c.b16 %v2243, %v2227
    %v3604 = vpack.c.b16 %v2244, %v2228
    %v3605 = vpack.c.b16 %v2245, %v2229
    %v3606 = vpack.c.b16 %v2246, %v2230
    %v3607 = vpack.c.b16 %v2247, %v2231
    %v3608 = vpack.c.b16 %v2248, %v2232
    %v3609 = vpack.c.b16 %v2249, %v2233
    %v3610 = vpack.c.b16 %v2250, %v2234
    %v3611 = vpack.c.b16 %v2251, %v2235
    %v3612 = vpack.c.b16 %v2252, %v2236
    %v3613 = vpack.c.b16 %v2253, %v2237
    %v3614 = vpack.c.b16 %v2270, %v2254
    %v3615 = vpack.c.b16 %v2271, %v2255
    %v3616 = vpack.c.b16 %v2272, %v2256
    %v3617 = vpack.c.b16 %v2273, %v2257
    %v3618 = vpack.c.b16 %v2274, %v2258
    %v3619 = vpack.c.b16 %v2275, %v2259
    %v3620 = vpack.c.b16 %v2276, %v2260
    %v3621 = vpack.c.b16 %v2277, %v2261
    %v3622 = vpack.c.b16 %v2278, %v2262
    %v3623 = vpack.c.b16 %v2279, %v2263
    %v3624 = vpack.c.b16 %v2280, %v2264
    %v3625 = vpack.c.b16 %v2281, %v2265
    %v3626 = vpack.c.b16 %v2282, %v2266
    %v3627 = vpack.c.b16 %v2283, %v2267
    %v3628 = vpack.c.b16 %v2284, %v2268
    %v3629 = vpack.c.b16 %v2285, %v2269
    %v3630 = vpack.c.b16 %v2302, %v2286
    %v3631 = vpack.c.b16 %v2303, %v2287
    %v3632 = vpack.c.b16 %v2304, %v2288
    %v3633 = vpack.c.b16 %v2305, %v2289
    %v3634 = vpack.c.b16 %v2306, %v2290
    %v3635 = vpack.c.b16 %v2307, %v2291
    %v3636 = vpack.c.b16 %v2308, %v2292
    %v3637 = vpack.c.b16 %v2309, %v2293
    %v3638 = vpack.c.b16 %v2310, %v2294
    %v3639 = vpack.c.b16 %v2311, %v2295
    %v3640 = vpack.c.b16 %v2312, %v2296
    %v3641 = vpack.c.b16 %v2313, %v2297
    %v3642 = vpack.c.b16 %v2314, %v2298
    %v3643 = vpack.c.b16 %v2315, %v2299
    %v3644 = vpack.c.b16 %v2316, %v2300
    %v3645 = vpack.c.b16 %v2317, %v2301
    %v3646 = vpack.c.b16 %v2334, %v2318
    %v3647 = vpack.c.b16 %v2335, %v2319
    %v3648 = vpack.c.b16 %v2336, %v2320
    %v3649 = vpack.c.b16 %v2337, %v2321
    %v3650 = vpack.c.b16 %v2338, %v2322
    %v3651 = vpack.c.b16 %v2339, %v2323
    %v3652 = vpack.c.b16 %v2340, %v2324
    %v3653 = vpack.c.b16 %v2341, %v2325
    %v3654 = vpack.c.b16 %v2342, %v2326
    %v3655 = vpack.c.b16 %v2343, %v2327
    %v3656 = vpack.c.b16 %v2344, %v2328
    %v3657 = vpack.c.b16 %v2345, %v2329
    %v3658 = vpack.c.b16 %v2346, %v2330
    %v3659 = vpack.c.b16 %v2347, %v2331
    %v3660 = vpack.c.b16 %v2348, %v2332
    %v3661 = vpack.c.b16 %v2349, %v2333
    %v3662 = vpack.c.b16 %v2366, %v2350
    %v3663 = vpack.c.b16 %v2367, %v2351
    %v3664 = vpack.c.b16 %v2368, %v2352
    %v3665 = vpack.c.b16 %v2369, %v2353
    %v3666 = vpack.c.b16 %v2370, %v2354
    %v3667 = vpack.c.b16 %v2371, %v2355
    %v3668 = vpack.c.b16 %v2372, %v2356
    %v3669 = vpack.c.b16 %v2373, %v2357
    %v3670 = vpack.c.b16 %v2374, %v2358
    %v3671 = vpack.c.b16 %v2375, %v2359
    %v3672 = vpack.c.b16 %v2376, %v2360
    %v3673 = vpack.c.b16 %v2377, %v2361
    %v3674 = vpack.c.b16 %v2378, %v2362
    %v3675 = vpack.c.b16 %v2379, %v2363
    %v3676 = vpack.c.b16 %v2380, %v2364
    %v3677 = vpack.c.b16 %v2381, %v2365
    %v3678 = vpack.c.b16 %v2398, %v2382
    %v3679 = vpack.c.b16 %v2399, %v2383
    %v3680 = vpack.c.b16 %v2400, %v2384
    %v3681 = vpack.c.b16 %v2401, %v2385
    %v3682 = vpack.c.b16 %v2402, %v2386
    %v3683 = vpack.c.b16 %v2403, %v2387
    %v3684 = vpack.c.b16 %v2404, %v2388
    %v3685 = vpack.c.b16 %v2405, %v2389
    %v3686 = vpack.c.b16 %v2406, %v2390
    %v3687 = vpack.c.b16 %v2407, %v2391
    %v3688 = vpack.c.b16 %v2408, %v2392
    %v3689 = vpack.c.b16 %v2409, %v2393
    %v3690 = vpack.c.b16 %v2410, %v2394
    %v3691 = vpack.c.b16 %v2411, %v2395
    %v3692 = vpack.c.b16 %v2412, %v2396
    %v3693 = vpack.c.b16 %v2413, %v2397
    %v3694 = vpack.c.b16 %v2430, %v2414
    %v3695 = vpack.c.b16 %v2431, %v2415
    %v3696 = vpack.c.b16 %v2432, %v2416
    %v3697 = vpack.c.b16 %v2433, %v2417
    %v3698 = vpack.c.b16 %v2434, %v2418
    %v3699 = vpack.c.b16 %v2435, %v2419
    %v3700 = vpack.c.b16 %v2436, %v2420
    %v3701 = vpack.c.b16 %v2437, %v2421
    %v3702 = vpack.c.b16 %v2438, %v2422
    %v3703 = vpack.c.b16 %v2439, %v2423
    %v3704 = vpack.c.b16 %v2440, %v2424
    %v3705 = vpack.c.b16 %v2441, %v2425
    %v3706 = vpack.c.b16 %v2442, %v2426
    %v3707 = vpack.c.b16 %v2443, %v2427
    %v3708 = vpack.c.b16 %v2444, %v2428
    %v3709 = vpack.c.b16 %v2445, %v2429
    %v3710 = vpack.c.b16 %v2462, %v2446
    %v3711 = vpack.c.b16 %v2463, %v2447
    %v3712 = vpack.c.b16 %v2464, %v2448
    %v3713 = vpack.c.b16 %v2465, %v2449
    %v3714 = vpack.c.b16 %v2466, %v2450
    %v3715 = vpack.c.b16 %v2467, %v2451
    %v3716 = vpack.c.b16 %v2468, %v2452
    %v3717 = vpack.c.b16 %v2469, %v2453
    %v3718 = vpack.c.b16 %v2470, %v2454
    %v3719 = vpack.c.b16 %v2471, %v2455
    %v3720 = vpack.c.b16 %v2472, %v2456
    %v3721 = vpack.c.b16 %v2473, %v2457
    %v3722 = vpack.c.b16 %v2474, %v2458
    %v3723 = vpack.c.b16 %v2475, %v2459
    %v3724 = vpack.c.b16 %v2476, %v2460
    %v3725 = vpack.c.b16 %v2477, %v2461
    %v3726 = vpack.c.b16 %v2494, %v2478
    %v3727 = vpack.c.b16 %v2495, %v2479
    %v3728 = vpack.c.b16 %v2496, %v2480
    %v3729 = vpack.c.b16 %v2497, %v2481
    %v3730 = vpack.c.b16 %v2498, %v2482
    %v3731 = vpack.c.b16 %v2499, %v2483
    %v3732 = vpack.c.b16 %v2500, %v2484
    %v3733 = vpack.c.b16 %v2501, %v2485
    %v3734 = vpack.c.b16 %v2502, %v2486
    %v3735 = vpack.c.b16 %v2503, %v2487
    %v3736 = vpack.c.b16 %v2504, %v2488
    %v3737 = vpack.c.b16 %v2505, %v2489
    %v3738 = vpack.c.b16 %v2506, %v2490
    %v3739 = vpack.c.b16 %v2507, %v2491
    %v3740 = vpack.c.b16 %v2508, %v2492
    %v3741 = vpack.c.b16 %v2509, %v2493
    %v3742 = vpack.c.b16 %v2526, %v2510
    %v3743 = vpack.c.b16 %v2527, %v2511
    %v3744 = vpack.c.b16 %v2528, %v2512
    %v3745 = vpack.c.b16 %v2529, %v2513
    %v3746 = vpack.c.b16 %v2530, %v2514
    %v3747 = vpack.c.b16 %v2531, %v2515
    %v3748 = vpack.c.b16 %v2532, %v2516
    %v3749 = vpack.c.b16 %v2533, %v2517
    %v3750 = vpack.c.b16 %v2534, %v2518
    %v3751 = vpack.c.b16 %v2535, %v2519
    %v3752 = vpack.c.b16 %v2536, %v2520
    %v3753 = vpack.c.b16 %v2537, %v2521
    %v3754 = vpack.c.b16 %v2538, %v2522
    %v3755 = vpack.c.b16 %v2539, %v2523
    %v3756 = vpack.c.b16 %v2540, %v2524
    %v3757 = vpack.c.b16 %v2541, %v2525
    %v3758 = vpack.c.b16 %v2558, %v2542
    %v3759 = vpack.c.b16 %v2559, %v2543
    %v3760 = vpack.c.b16 %v2560, %v2544
    %v3761 = vpack.c.b16 %v2561, %v2545
    %v3762 = vpack.c.b16 %v2562, %v2546
    %v3763 = vpack.c.b16 %v2563, %v2547
    %v3764 = vpack.c.b16 %v2564, %v2548
    %v3765 = vpack.c.b16 %v2565, %v2549
    %v3766 = vpack.c.b16 %v2566, %v2550
    %v3767 = vpack.c.b16 %v2567, %v2551
    %v3768 = vpack.c.b16 %v2568, %v2552
    %v3769 = vpack.c.b16 %v2569, %v2553
    %v3770 = vpack.c.b16 %v2570, %v2554
    %v3771 = vpack.c.b16 %v2571, %v2555
    %v3772 = vpack.c.b16 %v2572, %v2556
    %v3773 = vpack.c.b16 %v2573, %v2557
    %v3774 = vpack.c.b16 %v2590, %v2574
    %v3775 = vpack.c.b16 %v2591, %v2575
    %v3776 = vpack.c.b16 %v2592, %v2576
    %v3777 = vpack.c.b16 %v2593, %v2577
    %v3778 = vpack.c.b16 %v2594, %v2578
    %v3779 = vpack.c.b16 %v2595, %v2579
    %v3780 = vpack.c.b16 %v2596, %v2580
    %v3781 = vpack.c.b16 %v2597, %v2581
    %v3782 = vpack.c.b16 %v2598, %v2582
    %v3783 = vpack.c.b16 %v2599, %v2583
    %v3784 = vpack.c.b16 %v2600, %v2584
    %v3785 = vpack.c.b16 %v2601, %v2585
    %v3786 = vpack.c.b16 %v2602, %v2586
    %v3787 = vpack.c.b16 %v2603, %v2587
    %v3788 = vpack.c.b16 %v2604, %v2588
    %v3789 = vpack.c.b16 %v2605, %v2589
    %v3790 = vpack.c.b16 %v2622, %v2606
    %v3791 = vpack.c.b16 %v2623, %v2607
    %v3792 = vpack.c.b16 %v2624, %v2608
    %v3793 = vpack.c.b16 %v2625, %v2609
    %v3794 = vpack.c.b16 %v2626, %v2610
    %v3795 = vpack.c.b16 %v2627, %v2611
    %v3796 = vpack.c.b16 %v2628, %v2612
    %v3797 = vpack.c.b16 %v2629, %v2613
    %v3798 = vpack.c.b16 %v2630, %v2614
    %v3799 = vpack.c.b16 %v2631, %v2615
    %v3800 = vpack.c.b16 %v2632, %v2616
    %v3801 = vpack.c.b16 %v2633, %v2617
    %v3802 = vpack.c.b16 %v2634, %v2618
    %v3803 = vpack.c.b16 %v2635, %v2619
    %v3804 = vpack.c.b16 %v2636, %v2620
    %v3805 = vpack.c.b16 %v2637, %v2621
    %v3806 = vpack.c.b16 %v2654, %v2638
    %v3807 = vpack.c.b16 %v2655, %v2639
    %v3808 = vpack.c.b16 %v2656, %v2640
    %v3809 = vpack.c.b16 %v2657, %v2641
    %v3810 = vpack.c.b16 %v2658, %v2642
    %v3811 = vpack.c.b16 %v2659, %v2643
    %v3812 = vpack.c.b16 %v2660, %v2644
    %v3813 = vpack.c.b16 %v2661, %v2645
    %v3814 = vpack.c.b16 %v2662, %v2646
    %v3815 = vpack.c.b16 %v2663, %v2647
    %v3816 = vpack.c.b16 %v2664, %v2648
    %v3817 = vpack.c.b16 %v2665, %v2649
    %v3818 = vpack.c.b16 %v2666, %v2650
    %v3819 = vpack.c.b16 %v2667, %v2651
    %v3820 = vpack.c.b16 %v2668, %v2652
    %v3821 = vpack.c.b16 %v2669, %v2653
    %v3822 = vpack.c.b16 %v2686, %v2670
    %v3823 = vpack.c.b16 %v2687, %v2671
    %v3824 = vpack.c.b16 %v2688, %v2672
    %v3825 = vpack.c.b16 %v2689, %v2673
    %v3826 = vpack.c.b16 %v2690, %v2674
    %v3827 = vpack.c.b16 %v2691, %v2675
    %v3828 = vpack.c.b16 %v2692, %v2676
    %v3829 = vpack.c.b16 %v2693, %v2677
    %v3830 = vpack.c.b16 %v2694, %v2678
    %v3831 = vpack.c.b16 %v2695, %v2679
    %v3832 = vpack.c.b16 %v2696, %v2680
    %v3833 = vpack.c.b16 %v2697, %v2681
    %v3834 = vpack.c.b16 %v2698, %v2682
    %v3835 = vpack.c.b16 %v2699, %v2683
    %v3836 = vpack.c.b16 %v2700, %v2684
    %v3837 = vpack.c.b16 %v2701, %v2685
    %v3838 = vpack.c.b16 %v2718, %v2702
    %v3839 = vpack.c.b16 %v2719, %v2703
    %v3840 = vpack.c.b16 %v2720, %v2704
    %v3841 = vpack.c.b16 %v2721, %v2705
    %v3842 = vpack.c.b16 %v2722, %v2706
    %v3843 = vpack.c.b16 %v2723, %v2707
    %v3844 = vpack.c.b16 %v2724, %v2708
    %v3845 = vpack.c.b16 %v2725, %v2709
    %v3846 = vpack.c.b16 %v2726, %v2710
    %v3847 = vpack.c.b16 %v2727, %v2711
    %v3848 = vpack.c.b16 %v2728, %v2712
    %v3849 = vpack.c.b16 %v2729, %v2713
    %v3850 = vpack.c.b16 %v2730, %v2714
    %v3851 = vpack.c.b16 %v2731, %v2715
    %v3852 = vpack.c.b16 %v2732, %v2716
    %v3853 = vpack.c.b16 %v2733, %v2717
    %v3854 = vpack.c.b16 %v2750, %v2734
    %v3855 = vpack.c.b16 %v2751, %v2735
    %v3856 = vpack.c.b16 %v2752, %v2736
    %v3857 = vpack.c.b16 %v2753, %v2737
    %v3858 = vpack.c.b16 %v2754, %v2738
    %v3859 = vpack.c.b16 %v2755, %v2739
    %v3860 = vpack.c.b16 %v2756, %v2740
    %v3861 = vpack.c.b16 %v2757, %v2741
    %v3862 = vpack.c.b16 %v2758, %v2742
    %v3863 = vpack.c.b16 %v2759, %v2743
    %v3864 = vpack.c.b16 %v2760, %v2744
    %v3865 = vpack.c.b16 %v2761, %v2745
    %v3866 = vpack.c.b16 %v2762, %v2746
    %v3867 = vpack.c.b16 %v2763, %v2747
    %v3868 = vpack.c.b16 %v2764, %v2748
    %v3869 = vpack.c.b16 %v2765, %v2749
    %v3870 = vpack.c.b16 %v2782, %v2766
    %v3871 = vpack.c.b16 %v2783, %v2767
    %v3872 = vpack.c.b16 %v2784, %v2768
    %v3873 = vpack.c.b16 %v2785, %v2769
    %v3874 = vpack.c.b16 %v2786, %v2770
    %v3875 = vpack.c.b16 %v2787, %v2771
    %v3876 = vpack.c.b16 %v2788, %v2772
    %v3877 = vpack.c.b16 %v2789, %v2773
    %v3878 = vpack.c.b16 %v2790, %v2774
    %v3879 = vpack.c.b16 %v2791, %v2775
    %v3880 = vpack.c.b16 %v2792, %v2776
    %v3881 = vpack.c.b16 %v2793, %v2777
    %v3882 = vpack.c.b16 %v2794, %v2778
    %v3883 = vpack.c.b16 %v2795, %v2779
    %v3884 = vpack.c.b16 %v2796, %v2780
    %v3885 = vpack.c.b16 %v2797, %v2781
    %v3886 = vpack.c.b16 %v2814, %v2798
    %v3887 = vpack.c.b16 %v2815, %v2799
    %v3888 = vpack.c.b16 %v2816, %v2800
    %v3889 = vpack.c.b16 %v2817, %v2801
    %v3890 = vpack.c.b16 %v2818, %v2802
    %v3891 = vpack.c.b16 %v2819, %v2803
    %v3892 = vpack.c.b16 %v2820, %v2804
    %v3893 = vpack.c.b16 %v2821, %v2805
    %v3894 = vpack.c.b16 %v2822, %v2806
    %v3895 = vpack.c.b16 %v2823, %v2807
    %v3896 = vpack.c.b16 %v2824, %v2808
    %v3897 = vpack.c.b16 %v2825, %v2809
    %v3898 = vpack.c.b16 %v2826, %v2810
    %v3899 = vpack.c.b16 %v2827, %v2811
    %v3900 = vpack.c.b16 %v2828, %v2812
    %v3901 = vpack.c.b16 %v2829, %v2813
    %v3902 = vpack.c.b16 %v2846, %v2830
    %v3903 = vpack.c.b16 %v2847, %v2831
    %v3904 = vpack.c.b16 %v2848, %v2832
    %v3905 = vpack.c.b16 %v2849, %v2833
    %v3906 = vpack.c.b16 %v2850, %v2834
    %v3907 = vpack.c.b16 %v2851, %v2835
    %v3908 = vpack.c.b16 %v2852, %v2836
    %v3909 = vpack.c.b16 %v2853, %v2837
    %v3910 = vpack.c.b16 %v2854, %v2838
    %v3911 = vpack.c.b16 %v2855, %v2839
    %v3912 = vpack.c.b16 %v2856, %v2840
    %v3913 = vpack.c.b16 %v2857, %v2841
    %v3914 = vpack.c.b16 %v2858, %v2842
    %v3915 = vpack.c.b16 %v2859, %v2843
    %v3916 = vpack.c.b16 %v2860, %v2844
    %v3917 = vpack.c.b16 %v2861, %v2845
    %v3918 = vpack.c.b16 %v2878, %v2862
    %v3919 = vpack.c.b16 %v2879, %v2863
    %v3920 = vpack.c.b16 %v2880, %v2864
    %v3921 = vpack.c.b16 %v2881, %v2865
    %v3922 = vpack.c.b16 %v2882, %v2866
    %v3923 = vpack.c.b16 %v2883, %v2867
    %v3924 = vpack.c.b16 %v2884, %v2868
    %v3925 = vpack.c.b16 %v2885, %v2869
    %v3926 = vpack.c.b16 %v2886, %v2870
    %v3927 = vpack.c.b16 %v2887, %v2871
    %v3928 = vpack.c.b16 %v2888, %v2872
    %v3929 = vpack.c.b16 %v2889, %v2873
    %v3930 = vpack.c.b16 %v2890, %v2874
    %v3931 = vpack.c.b16 %v2891, %v2875
    %v3932 = vpack.c.b16 %v2892, %v2876
    %v3933 = vpack.c.b16 %v2893, %v2877
    %v3934 = vpack.c.b16 %v2910, %v2894
    %v3935 = vpack.c.b16 %v2911, %v2895
    %v3936 = vpack.c.b16 %v2912, %v2896
    %v3937 = vpack.c.b16 %v2913, %v2897
    %v3938 = vpack.c.b16 %v2914, %v2898
    %v3939 = vpack.c.b16 %v2915, %v2899
    %v3940 = vpack.c.b16 %v2916, %v2900
    %v3941 = vpack.c.b16 %v2917, %v2901
    %v3942 = vpack.c.b16 %v2918, %v2902
    %v3943 = vpack.c.b16 %v2919, %v2903
    %v3944 = vpack.c.b16 %v2920, %v2904
    %v3945 = vpack.c.b16 %v2921, %v2905
    %v3946 = vpack.c.b16 %v2922, %v2906
    %v3947 = vpack.c.b16 %v2923, %v2907
    %v3948 = vpack.c.b16 %v2924, %v2908
    %v3949 = vpack.c.b16 %v2925, %v2909
    %v3950 = vpack.c.b16 %v2942, %v2926
    %v3951 = vpack.c.b16 %v2943, %v2927
    %v3952 = vpack.c.b16 %v2944, %v2928
    %v3953 = vpack.c.b16 %v2945, %v2929
    %v3954 = vpack.c.b16 %v2946, %v2930
    %v3955 = vpack.c.b16 %v2947, %v2931
    %v3956 = vpack.c.b16 %v2948, %v2932
    %v3957 = vpack.c.b16 %v2949, %v2933
    %v3958 = vpack.c.b16 %v2950, %v2934
    %v3959 = vpack.c.b16 %v2951, %v2935
    %v3960 = vpack.c.b16 %v2952, %v2936
    %v3961 = vpack.c.b16 %v2953, %v2937
    %v3962 = vpack.c.b16 %v2954, %v2938
    %v3963 = vpack.c.b16 %v2955, %v2939
    %v3964 = vpack.c.b16 %v2956, %v2940
    %v3965 = vpack.c.b16 %v2957, %v2941
    %v3966 = vpack.c.b16 %v2974, %v2958
    %v3967 = vpack.c.b16 %v2975, %v2959
    %v3968 = vpack.c.b16 %v2976, %v2960
    %v3969 = vpack.c.b16 %v2977, %v2961
    %v3970 = vpack.c.b16 %v2978, %v2962
    %v3971 = vpack.c.b16 %v2979, %v2963
    %v3972 = vpack.c.b16 %v2980, %v2964
    %v3973 = vpack.c.b16 %v2981, %v2965
    %v3974 = vpack.c.b16 %v2982, %v2966
    %v3975 = vpack.c.b16 %v2983, %v2967
    %v3976 = vpack.c.b16 %v2984, %v2968
    %v3977 = vpack.c.b16 %v2985, %v2969
    %v3978 = vpack.c.b16 %v2986, %v2970
    %v3979 = vpack.c.b16 %v2987, %v2971
    %v3980 = vpack.c.b16 %v2988, %v2972
    %v3981 = vpack.c.b16 %v2989, %v2973
    %v3982 = vpack.c.b16 %v3006, %v2990
    %v3983 = vpack.c.b16 %v3007, %v2991
    %v3984 = vpack.c.b16 %v3008, %v2992
    %v3985 = vpack.c.b16 %v3009, %v2993
    %v3986 = vpack.c.b16 %v3010, %v2994
    %v3987 = vpack.c.b16 %v3011, %v2995
    %v3988 = vpack.c.b16 %v3012, %v2996
    %v3989 = vpack.c.b16 %v3013, %v2997
    %v3990 = vpack.c.b16 %v3014, %v2998
    %v3991 = vpack.c.b16 %v3015, %v2999
    %v3992 = vpack.c.b16 %v3016, %v3000
    %v3993 = vpack.c.b16 %v3017, %v3001
    %v3994 = vpack.c.b16 %v3018, %v3002
    %v3995 = vpack.c.b16 %v3019, %v3003
    %v3996 = vpack.c.b16 %v3020, %v3004
    %v3997 = vpack.c.b16 %v3021, %v3005
    %v3998 = vpack.c.b16 %v3038, %v3022
    %v3999 = vpack.c.b16 %v3039, %v3023
    %v4000 = vpack.c.b16 %v3040, %v3024
    %v4001 = vpack.c.b16 %v3041, %v3025
    %v4002 = vpack.c.b16 %v3042, %v3026
    %v4003 = vpack.c.b16 %v3043, %v3027
    %v4004 = vpack.c.b16 %v3044, %v3028
    %v4005 = vpack.c.b16 %v3045, %v3029
    %v4006 = vpack.c.b16 %v3046, %v3030
    %v4007 = vpack.c.b16 %v3047, %v3031
    %v4008 = vpack.c.b16 %v3048, %v3032
    %v4009 = vpack.c.b16 %v3049, %v3033
    %v4010 = vpack.c.b16 %v3050, %v3034
    %v4011 = vpack.c.b16 %v3051, %v3035
    %v4012 = vpack.c.b16 %v3052, %v3036
    %v4013 = vpack.c.b16 %v3053, %v3037
    %v4014 = vpack.c.b16 %v3070, %v3054
    %v4015 = vpack.c.b16 %v3071, %v3055
    %v4016 = vpack.c.b16 %v3072, %v3056
    %v4017 = vpack.c.b16 %v3073, %v3057
    %v4018 = vpack.c.b16 %v3074, %v3058
    %v4019 = vpack.c.b16 %v3075, %v3059
    %v4020 = vpack.c.b16 %v3076, %v3060
    %v4021 = vpack.c.b16 %v3077, %v3061
    %v4022 = vpack.c.b16 %v3078, %v3062
    %v4023 = vpack.c.b16 %v3079, %v3063
    %v4024 = vpack.c.b16 %v3080, %v3064
    %v4025 = vpack.c.b16 %v3081, %v3065
    %v4026 = vpack.c.b16 %v3082, %v3066
    %v4027 = vpack.c.b16 %v3083, %v3067
    %v4028 = vpack.c.b16 %v3084, %v3068
    %v4029 = vpack.c.b16 %v3085, %v3069
    %v4030 = vpack.c.b16 %v3102, %v3086
    %v4031 = vpack.c.b16 %v3103, %v3087
    %v4032 = vpack.c.b16 %v3104, %v3088
    %v4033 = vpack.c.b16 %v3105, %v3089
    %v4034 = vpack.c.b16 %v3106, %v3090
    %v4035 = vpack.c.b16 %v3107, %v3091
    %v4036 = vpack.c.b16 %v3108, %v3092
    %v4037 = vpack.c.b16 %v3109, %v3093
    %v4038 = vpack.c.b16 %v3110, %v3094
    %v4039 = vpack.c.b16 %v3111, %v3095
    %v4040 = vpack.c.b16 %v3112, %v3096
    %v4041 = vpack.c.b16 %v3113, %v3097
    %v4042 = vpack.c.b16 %v3114, %v3098
    %v4043 = vpack.c.b16 %v3115, %v3099
    %v4044 = vpack.c.b16 %v3116, %v3100
    %v4045 = vpack.c.b16 %v3117, %v3101
    %v4046 = vpack.c.b16 %v3134, %v3118
    %v4047 = vpack.c.b16 %v3135, %v3119
    %v4048 = vpack.c.b16 %v3136, %v3120
    %v4049 = vpack.c.b16 %v3137, %v3121
    %v4050 = vpack.c.b16 %v3138, %v3122
    %v4051 = vpack.c.b16 %v3139, %v3123
    %v4052 = vpack.c.b16 %v3140, %v3124
    %v4053 = vpack.c.b16 %v3141, %v3125
    %v4054 = vpack.c.b16 %v3142, %v3126
    %v4055 = vpack.c.b16 %v3143, %v3127
    %v4056 = vpack.c.b16 %v3144, %v3128
    %v4057 = vpack.c.b16 %v3145, %v3129
    %v4058 = vpack.c.b16 %v3146, %v3130
    %v4059 = vpack.c.b16 %v3147, %v3131
    %v4060 = vpack.c.b16 %v3148, %v3132
    %v4061 = vpack.c.b16 %v3149, %v3133
    %v4062 = vpack.c.b16 %v3166, %v3150
    %v4063 = vpack.c.b16 %v3167, %v3151
    %v4064 = vpack.c.b16 %v3168, %v3152
    %v4065 = vpack.c.b16 %v3169, %v3153
    %v4066 = vpack.c.b16 %v3170, %v3154
    %v4067 = vpack.c.b16 %v3171, %v3155
    %v4068 = vpack.c.b16 %v3172, %v3156
    %v4069 = vpack.c.b16 %v3173, %v3157
    %v4070 = vpack.c.b16 %v3174, %v3158
    %v4071 = vpack.c.b16 %v3175, %v3159
    %v4072 = vpack.c.b16 %v3176, %v3160
    %v4073 = vpack.c.b16 %v3177, %v3161
    %v4074 = vpack.c.b16 %v3178, %v3162
    %v4075 = vpack.c.b16 %v3179, %v3163
    %v4076 = vpack.c.b16 %v3180, %v3164
    %v4077 = vpack.c.b16 %v3181, %v3165
    %v4078 = vpack.c.b16 %v3198, %v3182
    %v4079 = vpack.c.b16 %v3199, %v3183
    %v4080 = vpack.c.b16 %v3200, %v3184
    %v4081 = vpack.c.b16 %v3201, %v3185
    %v4082 = vpack.c.b16 %v3202, %v3186
    %v4083 = vpack.c.b16 %v3203, %v3187
    %v4084 = vpack.c.b16 %v3204, %v3188
    %v4085 = vpack.c.b16 %v3205, %v3189
    %v4086 = vpack.c.b16 %v3206, %v3190
    %v4087 = vpack.c.b16 %v3207, %v3191
    %v4088 = vpack.c.b16 %v3208, %v3192
    %v4089 = vpack.c.b16 %v3209, %v3193
    %v4090 = vpack.c.b16 %v3210, %v3194
    %v4091 = vpack.c.b16 %v3211, %v3195
    %v4092 = vpack.c.b16 %v3212, %v3196
    %v4093 = vpack.c.b16 %v3213, %v3197
    %v4094 = vpack.c.b16 %v3230, %v3214
    %v4095 = vpack.c.b16 %v3231, %v3215
    %v4096 = vpack.c.b16 %v3232, %v3216
    %v4097 = vpack.c.b16 %v3233, %v3217
    %v4098 = vpack.c.b16 %v3234, %v3218
    %v4099 = vpack.c.b16 %v3235, %v3219
    %v4100 = vpack.c.b16 %v3236, %v3220
    %v4101 = vpack.c.b16 %v3237, %v3221
    %v4102 = vpack.c.b16 %v3238, %v3222
    %v4103 = vpack.c.b16 %v3239, %v3223
    %v4104 = vpack.c.b16 %v3240, %v3224
    %v4105 = vpack.c.b16 %v3241, %v3225
    %v4106 = vpack.c.b16 %v3242, %v3226
    %v4107 = vpack.c.b16 %v3243, %v3227
    %v4108 = vpack.c.b16 %v3244, %v3228
    %v4109 = vpack.c.b16 %v3245, %v3229
    %v4110 = vpack.c.b16 %v3262, %v3246
    %v4111 = vpack.c.b16 %v3263, %v3247
    %v4112 = vpack.c.b16 %v3264, %v3248
    %v4113 = vpack.c.b16 %v3265, %v3249
    %v4114 = vpack.c.b16 %v3266, %v3250
    %v4115 = vpack.c.b16 %v3267, %v3251
    %v4116 = vpack.c.b16 %v3268, %v3252
    %v4117 = vpack.c.b16 %v3269, %v3253
    %v4118 = vpack.c.b16 %v3270, %v3254
    %v4119 = vpack.c.b16 %v3271, %v3255
    %v4120 = vpack.c.b16 %v3272, %v3256
    %v4121 = vpack.c.b16 %v3273, %v3257
    %v4122 = vpack.c.b16 %v3274, %v3258
    %v4123 = vpack.c.b16 %v3275, %v3259
    %v4124 = vpack.c.b16 %v3276, %v3260
    %v4125 = vpack.c.b16 %v3277, %v3261
    %v4126 = vpack.c.b16 %v3294, %v3278
    %v4127 = vpack.c.b16 %v3295, %v3279
    %v4128 = vpack.c.b16 %v3296, %v3280
    %v4129 = vpack.c.b16 %v3297, %v3281
    %v4130 = vpack.c.b16 %v3298, %v3282
    %v4131 = vpack.c.b16 %v3299, %v3283
    %v4132 = vpack.c.b16 %v3300, %v3284
    %v4133 = vpack.c.b16 %v3301, %v3285
    %v4134 = vpack.c.b16 %v3302, %v3286
    %v4135 = vpack.c.b16 %v3303, %v3287
    %v4136 = vpack.c.b16 %v3304, %v3288
    %v4137 = vpack.c.b16 %v3305, %v3289
    %v4138 = vpack.c.b16 %v3306, %v3290
    %v4139 = vpack.c.b16 %v3307, %v3291
    %v4140 = vpack.c.b16 %v3308, %v3292
    %v4141 = vpack.c.b16 %v3309, %v3293
    %v4142 = vpack.c.b16 %v3326, %v3310
    %v4143 = vpack.c.b16 %v3327, %v3311
    %v4144 = vpack.c.b16 %v3328, %v3312
    %v4145 = vpack.c.b16 %v3329, %v3313
    %v4146 = vpack.c.b16 %v3330, %v3314
    %v4147 = vpack.c.b16 %v3331, %v3315
    %v4148 = vpack.c.b16 %v3332, %v3316
    %v4149 = vpack.c.b16 %v3333, %v3317
    %v4150 = vpack.c.b16 %v3334, %v3318
    %v4151 = vpack.c.b16 %v3335, %v3319
    %v4152 = vpack.c.b16 %v3336, %v3320
    %v4153 = vpack.c.b16 %v3337, %v3321
    %v4154 = vpack.c.b16 %v3338, %v3322
    %v4155 = vpack.c.b16 %v3339, %v3323
    %v4156 = vpack.c.b16 %v3340, %v3324
    %v4157 = vpack.c.b16 %v3341, %v3325
    %v4158 = vpack.c.b16 %v3358, %v3342
    %v4159 = vpack.c.b16 %v3359, %v3343
    %v4160 = vpack.c.b16 %v3360, %v3344
    %v4161 = vpack.c.b16 %v3361, %v3345
    %v4162 = vpack.c.b16 %v3362, %v3346
    %v4163 = vpack.c.b16 %v3363, %v3347
    %v4164 = vpack.c.b16 %v3364, %v3348
    %v4165 = vpack.c.b16 %v3365, %v3349
    %v4166 = vpack.c.b16 %v3366, %v3350
    %v4167 = vpack.c.b16 %v3367, %v3351
    %v4168 = vpack.c.b16 %v3368, %v3352
    %v4169 = vpack.c.b16 %v3369, %v3353
    %v4170 = vpack.c.b16 %v3370, %v3354
    %v4171 = vpack.c.b16 %v3371, %v3355
    %v4172 = vpack.c.b16 %v3372, %v3356
    %v4173 = vpack.c.b16 %v3373, %v3357
    %vm4974 = vcmask 261120
    %v4976 = vsel %vm4974, %v966, 0
    %4978 = vmatprep.subr.bf16.mxu0 %v3375
    %4979 = vmatpush1.bf16.msra.mxu0 %v3374
    %4980 = vmatprep.subr.bf16.mxu0 %v3391
    %4981 = vmatpush1.bf16.msra.mxu0 %v3390
    %4982 = vmatprep.subr.bf16.mxu0 %v3407
    %4983 = vmatpush1.bf16.msra.mxu0 %v3406
    %4984 = vmatprep.subr.bf16.mxu0 %v3423
    %4985 = vmatpush1.bf16.msra.mxu0 %v3422
    %4986 = vmatprep.subr.bf16.mxu0 %v3439
    %4987 = vmatpush1.bf16.msra.mxu0 %v3438
    %4988 = vmatprep.subr.bf16.mxu0 %v3455
    %4989 = vmatpush1.bf16.msra.mxu0 %v3454
    %4990 = vmatprep.subr.bf16.mxu0 %v3471
    %4991 = vmatpush1.bf16.msra.mxu0 %v3470
    %4992 = vmatprep.subr.bf16.mxu0 %v3487
    %4993 = vmatpush1.bf16.msra.mxu0 %v3486
    %4994 = vmatprep.subr.bf16.mxu0 %v3503
    %4995 = vmatpush1.bf16.msra.mxu0 %v3502
    %4996 = vmatprep.subr.bf16.mxu0 %v3519
    %4997 = vmatpush1.bf16.msra.mxu0 %v3518
    %4998 = vmatprep.subr.bf16.mxu0 %v3535
    %4999 = vmatpush1.bf16.msra.mxu0 %v3534
    %5000 = vmatprep.subr.bf16.mxu0 %v3551
    %5001 = vmatpush1.bf16.msra.mxu0 %v3550
    %5002 = vmatprep.subr.bf16.mxu0 %v3567
    %5003 = vmatpush1.bf16.msra.mxu0 %v3566
    %5004 = vmatprep.subr.bf16.mxu0 %v3583
    %5005 = vmatpush1.bf16.msra.mxu0 %v3582
    %5006 = vmatprep.subr.bf16.mxu0 %v3599
    %5007 = vmatpush1.bf16.msra.mxu0 %v3598
    %5008 = vmatprep.subr.bf16.mxu0 %v3615
    %5009 = vmatpush1.bf16.msra.mxu0 %v3614
    %5010 = vmatprep.mubr.bf16.mxu0 %v957
    %5011 = vmatmul.mubr.bf16.gmra.mrb[0].mxu0 %v943
    %v5012 = vpop.f32.mrb[0].mxu0
    %v5013 = vadd.f32 %v842, %v5012
    %v5014 = vpop.f32.mrb[0].mxu0
    %v5015 = vadd.f32 %v846, %v5014
    %v5016 = vpop.f32.mrb[0].mxu0
    %v5017 = vpop.f32.mrb[0].mxu0
    %5018 = vdwg.mxu0
    %5019 = vmatprep.subr.bf16.mxu0 %v3631
    %5020 = vmatpush1.bf16.msra.mxu0 %v3630
    %5021 = vmatprep.subr.bf16.mxu0 %v3647
    %5022 = vmatpush1.bf16.msra.mxu0 %v3646
    %5023 = vmatprep.subr.bf16.mxu0 %v3663
    %5024 = vmatpush1.bf16.msra.mxu0 %v3662
    %5025 = vmatprep.subr.bf16.mxu0 %v3679
    %5026 = vmatpush1.bf16.msra.mxu0 %v3678
    %5027 = vmatprep.subr.bf16.mxu0 %v3695
    %5028 = vmatpush1.bf16.msra.mxu0 %v3694
    %5029 = vmatprep.subr.bf16.mxu0 %v3711
    %5030 = vmatpush1.bf16.msra.mxu0 %v3710
    %5031 = vmatprep.subr.bf16.mxu0 %v3727
    %5032 = vmatpush1.bf16.msra.mxu0 %v3726
    %5033 = vmatprep.subr.bf16.mxu0 %v3743
    %5034 = vmatpush1.bf16.msra.mxu0 %v3742
    %5035 = vmatprep.subr.bf16.mxu0 %v3759
    %5036 = vmatpush1.bf16.msra.mxu0 %v3758
    %5037 = vmatprep.subr.bf16.mxu0 %v3775
    %5038 = vmatpush1.bf16.msra.mxu0 %v3774
    %5039 = vmatprep.subr.bf16.mxu0 %v3791
    %5040 = vmatpush1.bf16.msra.mxu0 %v3790
    %5041 = vmatprep.subr.bf16.mxu0 %v3807
    %5042 = vmatpush1.bf16.msra.mxu0 %v3806
    %5043 = vmatprep.subr.bf16.mxu0 %v3823
    %5044 = vmatpush1.bf16.msra.mxu0 %v3822
    %5045 = vmatprep.subr.bf16.mxu0 %v3839
    %5046 = vmatpush1.bf16.msra.mxu0 %v3838
    %5047 = vmatprep.subr.bf16.mxu0 %v3855
    %5048 = vmatpush1.bf16.msra.mxu0 %v3854
    %5049 = vmatprep.subr.bf16.mxu0 %v3871
    %5050 = vmatpush1.bf16.msra.mxu0 %v3870
    %5051 = vmatprep.mubr.bf16.mxu0 %v967
    %5052 = vmatmul.mubr.bf16.gmra.mrb[0].mxu0 %v965
    %v5053 = vpop.f32.mrb[0].mxu0
    %v5054 = vadd.f32 %v5013, %v5053
    %v5055 = vpop.f32.mrb[0].mxu0
    %v5056 = vadd.f32 %v5015, %v5055
    %v5057 = vpop.f32.mrb[0].mxu0
    %v5058 = vpop.f32.mrb[0].mxu0
    %5059 = vdwg.mxu0
    %5060 = vmatprep.subr.bf16.mxu0 %v3887
    %5061 = vmatpush1.bf16.msra.mxu0 %v3886
    %5062 = vmatprep.subr.bf16.mxu0 %v3903
    %5063 = vmatpush1.bf16.msra.mxu0 %v3902
    %5064 = vmatprep.subr.bf16.mxu0 %v3919
    %5065 = vmatpush1.bf16.msra.mxu0 %v3918
    %5066 = vmatprep.subr.bf16.mxu0 %v3935
    %5067 = vmatpush1.bf16.msra.mxu0 %v3934
    %5068 = vmatprep.subr.bf16.mxu0 %v3951
    %5069 = vmatpush1.bf16.msra.mxu0 %v3950
    %5070 = vmatprep.subr.bf16.mxu0 %v3967
    %5071 = vmatpush1.bf16.msra.mxu0 %v3966
    %5072 = vmatprep.subr.bf16.mxu0 %v3983
    %5073 = vmatpush1.bf16.msra.mxu0 %v3982
    %5074 = vmatprep.subr.bf16.mxu0 %v3999
    %5075 = vmatpush1.bf16.msra.mxu0 %v3998
    %5076 = vmatprep.subr.bf16.mxu0 %v4015
    %5077 = vmatpush1.bf16.msra.mxu0 %v4014
    %5078 = vmatprep.subr.bf16.mxu0 %v4031
    %5079 = vmatpush1.bf16.msra.mxu0 %v4030
    %5080 = vmatprep.subr.bf16.mxu0 %v4047
    %5081 = vmatpush1.bf16.msra.mxu0 %v4046
    %5082 = vmatprep.subr.bf16.mxu0 %v4063
    %5083 = vmatpush1.bf16.msra.mxu0 %v4062
    %5084 = vmatprep.subr.bf16.mxu0 %v4079
    %5085 = vmatpush1.bf16.msra.mxu0 %v4078
    %5086 = vmatprep.subr.bf16.mxu0 %v4095
    %5087 = vmatpush1.bf16.msra.mxu0 %v4094
    %5088 = vmatprep.subr.bf16.mxu0 %v4111
    %5089 = vmatpush1.bf16.msra.mxu0 %v4110
    %5090 = vmatprep.subr.bf16.mxu0 %v4127
    %5091 = vmatpush1.bf16.msra.mxu0 %v4126
    %5092 = vmatprep.mubr.bf16.mxu0 %v964
    %5093 = vmatmul.mubr.bf16.gmra.mrb[0].mxu0 %v950
    %v5094 = vpop.f32.mrb[0].mxu0
    %v5095 = vadd.f32 %v5054, %v5094
    %v5096 = vpop.f32.mrb[0].mxu0
    %v5097 = vadd.f32 %v5056, %v5096
    %v5098 = vpop.f32.mrb[0].mxu0
    %v5099 = vpop.f32.mrb[0].mxu0
    %5100 = vdwg.mxu0
    %5101 = vmatprep.subr.bf16.mxu0 %v4143
    %5102 = vmatpush1.bf16.msra.mxu0 %v4142
    %5103 = vmatprep.subr.bf16.mxu0 %v4159
    %5104 = vmatpush1.bf16.msra.mxu0 %v4158
    %5105 = vmatprep.subr.bf16.mxu0 0
    %5106 = vmatpush1.bf16.msra.mxu0 0
    %5107 = vmatprep.subr.bf16.mxu0 0
    %5108 = vmatpush1.bf16.msra.mxu0 0
    %5109 = vmatprep.subr.bf16.mxu0 0
    %5110 = vmatpush1.bf16.msra.mxu0 0
    %5111 = vmatprep.subr.bf16.mxu0 0
    %5112 = vmatpush1.bf16.msra.mxu0 0
    %5113 = vmatprep.subr.bf16.mxu0 0
    %5114 = vmatpush1.bf16.msra.mxu0 0
    %5115 = vmatprep.subr.bf16.mxu0 0
    %5116 = vmatpush1.bf16.msra.mxu0 0
    %5117 = vmatprep.subr.bf16.mxu0 0
    %5118 = vmatpush1.bf16.msra.mxu0 0
    %5119 = vmatprep.subr.bf16.mxu0 0
    %5120 = vmatpush1.bf16.msra.mxu0 0
    %5121 = vmatprep.subr.bf16.mxu0 0
    %5122 = vmatpush1.bf16.msra.mxu0 0
    %5123 = vmatprep.subr.bf16.mxu0 0
    %5124 = vmatpush1.bf16.msra.mxu0 0
    %5125 = vmatprep.subr.bf16.mxu0 0
    %5126 = vmatpush1.bf16.msra.mxu0 0
    %5127 = vmatprep.subr.bf16.mxu0 0
    %5128 = vmatpush1.bf16.msra.mxu0 0
    %5129 = vmatprep.subr.bf16.mxu0 0
    %5130 = vmatpush1.bf16.msra.mxu0 0
    %5131 = vmatprep.subr.bf16.mxu0 0
    %5132 = vmatpush1.bf16.msra.mxu0 0
    %5133 = vmatprep.mubr.bf16.mxu0 0
    %5134 = vmatmul.mubr.bf16.gmra.mrb[0].mxu0 %v4976
    %v5135 = vpop.f32.mrb[0].mxu0
    %v5136 = vadd.f32 %v5095, %v5135
    %v5137 = vpop.f32.mrb[0].mxu0
    %v5138 = vadd.f32 %v5097, %v5137
    %v5139 = vpop.f32.mrb[0].mxu0
    %v5140 = vpop.f32.mrb[0].mxu0
    %5141 = vdwg.mxu0
    %5142 = vmatprep.subr.bf16.mxu0 %v3377
    %5143 = vmatpush1.bf16.msra.mxu0 %v3376
    %5144 = vmatprep.subr.bf16.mxu0 %v3393
    %5145 = vmatpush1.bf16.msra.mxu0 %v3392
    %5146 = vmatprep.subr.bf16.mxu0 %v3409
    %5147 = vmatpush1.bf16.msra.mxu0 %v3408
    %5148 = vmatprep.subr.bf16.mxu0 %v3425
    %5149 = vmatpush1.bf16.msra.mxu0 %v3424
    %5150 = vmatprep.subr.bf16.mxu0 %v3441
    %5151 = vmatpush1.bf16.msra.mxu0 %v3440
    %5152 = vmatprep.subr.bf16.mxu0 %v3457
    %5153 = vmatpush1.bf16.msra.mxu0 %v3456
    %5154 = vmatprep.subr.bf16.mxu0 %v3473
    %5155 = vmatpush1.bf16.msra.mxu0 %v3472
    %5156 = vmatprep.subr.bf16.mxu0 %v3489
    %5157 = vmatpush1.bf16.msra.mxu0 %v3488
    %5158 = vmatprep.subr.bf16.mxu0 %v3505
    %5159 = vmatpush1.bf16.msra.mxu0 %v3504
    %5160 = vmatprep.subr.bf16.mxu0 %v3521
    %5161 = vmatpush1.bf16.msra.mxu0 %v3520
    %5162 = vmatprep.subr.bf16.mxu0 %v3537
    %5163 = vmatpush1.bf16.msra.mxu0 %v3536
    %5164 = vmatprep.subr.bf16.mxu0 %v3553
    %5165 = vmatpush1.bf16.msra.mxu0 %v3552
    %5166 = vmatprep.subr.bf16.mxu0 %v3569
    %5167 = vmatpush1.bf16.msra.mxu0 %v3568
    %5168 = vmatprep.subr.bf16.mxu0 %v3585
    %5169 = vmatpush1.bf16.msra.mxu0 %v3584
    %5170 = vmatprep.subr.bf16.mxu0 %v3601
    %5171 = vmatpush1.bf16.msra.mxu0 %v3600
    %5172 = vmatprep.subr.bf16.mxu0 %v3617
    %5173 = vmatpush1.bf16.msra.mxu0 %v3616
    %5174 = vmatprep.mubr.bf16.mxu0 %v957
    %5175 = vmatmul.mubr.bf16.gmra.mrb[0].mxu0 %v943
    %v5176 = vpop.f32.mrb[0].mxu0
    %v5177 = vadd.f32 %v850, %v5176
    %v5178 = vpop.f32.mrb[0].mxu0
    %v5179 = vadd.f32 %v854, %v5178
    %v5180 = vpop.f32.mrb[0].mxu0
    %v5181 = vpop.f32.mrb[0].mxu0
    %5182 = vdwg.mxu0
    %5183 = vmatprep.subr.bf16.mxu0 %v3633
    %5184 = vmatpush1.bf16.msra.mxu0 %v3632
    %5185 = vmatprep.subr.bf16.mxu0 %v3649
    %5186 = vmatpush1.bf16.msra.mxu0 %v3648
    %5187 = vmatprep.subr.bf16.mxu0 %v3665
    %5188 = vmatpush1.bf16.msra.mxu0 %v3664
    %5189 = vmatprep.subr.bf16.mxu0 %v3681
    %5190 = vmatpush1.bf16.msra.mxu0 %v3680
    %5191 = vmatprep.subr.bf16.mxu0 %v3697
    %5192 = vmatpush1.bf16.msra.mxu0 %v3696
    %5193 = vmatprep.subr.bf16.mxu0 %v3713
    %5194 = vmatpush1.bf16.msra.mxu0 %v3712
    %5195 = vmatprep.subr.bf16.mxu0 %v3729
    %5196 = vmatpush1.bf16.msra.mxu0 %v3728
    %5197 = vmatprep.subr.bf16.mxu0 %v3745
    %5198 = vmatpush1.bf16.msra.mxu0 %v3744
    %5199 = vmatprep.subr.bf16.mxu0 %v3761
    %5200 = vmatpush1.bf16.msra.mxu0 %v3760
    %5201 = vmatprep.subr.bf16.mxu0 %v3777
    %5202 = vmatpush1.bf16.msra.mxu0 %v3776
    %5203 = vmatprep.subr.bf16.mxu0 %v3793
    %5204 = vmatpush1.bf16.msra.mxu0 %v3792
    %5205 = vmatprep.subr.bf16.mxu0 %v3809
    %5206 = vmatpush1.bf16.msra.mxu0 %v3808
    %5207 = vmatprep.subr.bf16.mxu0 %v3825
    %5208 = vmatpush1.bf16.msra.mxu0 %v3824
    %5209 = vmatprep.subr.bf16.mxu0 %v3841
    %5210 = vmatpush1.bf16.msra.mxu0 %v3840
    %5211 = vmatprep.subr.bf16.mxu0 %v3857
    %5212 = vmatpush1.bf16.msra.mxu0 %v3856
    %5213 = vmatprep.subr.bf16.mxu0 %v3873
    %5214 = vmatpush1.bf16.msra.mxu0 %v3872
    %5215 = vmatprep.mubr.bf16.mxu0 %v967
    %5216 = vmatmul.mubr.bf16.gmra.mrb[0].mxu0 %v965
    %v5217 = vpop.f32.mrb[0].mxu0
    %v5218 = vadd.f32 %v5177, %v5217
    %v5219 = vpop.f32.mrb[0].mxu0
    %v5220 = vadd.f32 %v5179, %v5219
    %v5221 = vpop.f32.mrb[0].mxu0
    %v5222 = vpop.f32.mrb[0].mxu0
    %5223 = vdwg.mxu0
    %5224 = vmatprep.subr.bf16.mxu0 %v3889
    %5225 = vmatpush1.bf16.msra.mxu0 %v3888
    %5226 = vmatprep.subr.bf16.mxu0 %v3905
    %5227 = vmatpush1.bf16.msra.mxu0 %v3904
    %5228 = vmatprep.subr.bf16.mxu0 %v3921
    %5229 = vmatpush1.bf16.msra.mxu0 %v3920
    %5230 = vmatprep.subr.bf16.mxu0 %v3937
    %5231 = vmatpush1.bf16.msra.mxu0 %v3936
    %5232 = vmatprep.subr.bf16.mxu0 %v3953
    %5233 = vmatpush1.bf16.msra.mxu0 %v3952
    %5234 = vmatprep.subr.bf16.mxu0 %v3969
    %5235 = vmatpush1.bf16.msra.mxu0 %v3968
    %5236 = vmatprep.subr.bf16.mxu0 %v3985
    %5237 = vmatpush1.bf16.msra.mxu0 %v3984
    %5238 = vmatprep.subr.bf16.mxu0 %v4001
    %5239 = vmatpush1.bf16.msra.mxu0 %v4000
    %5240 = vmatprep.subr.bf16.mxu0 %v4017
    %5241 = vmatpush1.bf16.msra.mxu0 %v4016
    %5242 = vmatprep.subr.bf16.mxu0 %v4033
    %5243 = vmatpush1.bf16.msra.mxu0 %v4032
    %5244 = vmatprep.subr.bf16.mxu0 %v4049
    %5245 = vmatpush1.bf16.msra.mxu0 %v4048
    %5246 = vmatprep.subr.bf16.mxu0 %v4065
    %5247 = vmatpush1.bf16.msra.mxu0 %v4064
    %5248 = vmatprep.subr.bf16.mxu0 %v4081
    %5249 = vmatpush1.bf16.msra.mxu0 %v4080
    %5250 = vmatprep.subr.bf16.mxu0 %v4097
    %5251 = vmatpush1.bf16.msra.mxu0 %v4096
    %5252 = vmatprep.subr.bf16.mxu0 %v4113
    %5253 = vmatpush1.bf16.msra.mxu0 %v4112
    %5254 = vmatprep.subr.bf16.mxu0 %v4129
    %5255 = vmatpush1.bf16.msra.mxu0 %v4128
    %5256 = vmatprep.mubr.bf16.mxu0 %v964
    %5257 = vmatmul.mubr.bf16.gmra.mrb[0].mxu0 %v950
    %v5258 = vpop.f32.mrb[0].mxu0
    %v5259 = vadd.f32 %v5218, %v5258
    %v5260 = vpop.f32.mrb[0].mxu0
    %v5261 = vadd.f32 %v5220, %v5260
    %v5262 = vpop.f32.mrb[0].mxu0
    %v5263 = vpop.f32.mrb[0].mxu0
    %5264 = vdwg.mxu0
    %5265 = vmatprep.subr.bf16.mxu0 %v4145
    %5266 = vmatpush1.bf16.msra.mxu0 %v4144
    %5267 = vmatprep.subr.bf16.mxu0 %v4161
    %5268 = vmatpush1.bf16.msra.mxu0 %v4160
    %5269 = vmatprep.subr.bf16.mxu0 0
    %5270 = vmatpush1.bf16.msra.mxu0 0
    %5271 = vmatprep.subr.bf16.mxu0 0
    %5272 = vmatpush1.bf16.msra.mxu0 0
    %5273 = vmatprep.subr.bf16.mxu0 0
    %5274 = vmatpush1.bf16.msra.mxu0 0
    %5275 = vmatprep.subr.bf16.mxu0 0
    %5276 = vmatpush1.bf16.msra.mxu0 0
    %5277 = vmatprep.subr.bf16.mxu0 0
    %5278 = vmatpush1.bf16.msra.mxu0 0
    %5279 = vmatprep.subr.bf16.mxu0 0
    %5280 = vmatpush1.bf16.msra.mxu0 0
    %5281 = vmatprep.subr.bf16.mxu0 0
    %5282 = vmatpush1.bf16.msra.mxu0 0
    %5283 = vmatprep.subr.bf16.mxu0 0
    %5284 = vmatpush1.bf16.msra.mxu0 0
    %5285 = vmatprep.subr.bf16.mxu0 0
    %5286 = vmatpush1.bf16.msra.mxu0 0
    %5287 = vmatprep.subr.bf16.mxu0 0
    %5288 = vmatpush1.bf16.msra.mxu0 0
    %5289 = vmatprep.subr.bf16.mxu0 0
    %5290 = vmatpush1.bf16.msra.mxu0 0
    %5291 = vmatprep.subr.bf16.mxu0 0
    %5292 = vmatpush1.bf16.msra.mxu0 0
    %5293 = vmatprep.subr.bf16.mxu0 0
    %5294 = vmatpush1.bf16.msra.mxu0 0
    %5295 = vmatprep.subr.bf16.mxu0 0
    %5296 = vmatpush1.bf16.msra.mxu0 0
    %5297 = vmatprep.mubr.bf16.mxu0 0
    %5298 = vmatmul.mubr.bf16.gmra.mrb[0].mxu0 %v4976
    %v5299 = vpop.f32.mrb[0].mxu0
    %v5300 = vadd.f32 %v5259, %v5299
    %v5301 = vpop.f32.mrb[0].mxu0
    %v5302 = vadd.f32 %v5261, %v5301
    %v5303 = vpop.f32.mrb[0].mxu0
    %v5304 = vpop.f32.mrb[0].mxu0
    %5305 = vdwg.mxu0
    %5306 = vmatprep.subr.bf16.mxu0 %v3379
    %5307 = vmatpush1.bf16.msra.mxu0 %v3378
    %5308 = vmatprep.subr.bf16.mxu0 %v3395
    %5309 = vmatpush1.bf16.msra.mxu0 %v3394
    %5310 = vmatprep.subr.bf16.mxu0 %v3411
    %5311 = vmatpush1.bf16.msra.mxu0 %v3410
    %5312 = vmatprep.subr.bf16.mxu0 %v3427
    %5313 = vmatpush1.bf16.msra.mxu0 %v3426
    %5314 = vmatprep.subr.bf16.mxu0 %v3443
    %5315 = vmatpush1.bf16.msra.mxu0 %v3442
    %5316 = vmatprep.subr.bf16.mxu0 %v3459
    %5317 = vmatpush1.bf16.msra.mxu0 %v3458
    %5318 = vmatprep.subr.bf16.mxu0 %v3475
    %5319 = vmatpush1.bf16.msra.mxu0 %v3474
    %5320 = vmatprep.subr.bf16.mxu0 %v3491
    %5321 = vmatpush1.bf16.msra.mxu0 %v3490
    %5322 = vmatprep.subr.bf16.mxu0 %v3507
    %5323 = vmatpush1.bf16.msra.mxu0 %v3506
    %5324 = vmatprep.subr.bf16.mxu0 %v3523
    %5325 = vmatpush1.bf16.msra.mxu0 %v3522
    %5326 = vmatprep.subr.bf16.mxu0 %v3539
    %5327 = vmatpush1.bf16.msra.mxu0 %v3538
    %5328 = vmatprep.subr.bf16.mxu0 %v3555
    %5329 = vmatpush1.bf16.msra.mxu0 %v3554
    %5330 = vmatprep.subr.bf16.mxu0 %v3571
    %5331 = vmatpush1.bf16.msra.mxu0 %v3570
    %5332 = vmatprep.subr.bf16.mxu0 %v3587
    %5333 = vmatpush1.bf16.msra.mxu0 %v3586
    %5334 = vmatprep.subr.bf16.mxu0 %v3603
    %5335 = vmatpush1.bf16.msra.mxu0 %v3602
    %5336 = vmatprep.subr.bf16.mxu0 %v3619
    %5337 = vmatpush1.bf16.msra.mxu0 %v3618
    %5338 = vmatprep.mubr.bf16.mxu0 %v957
    %5339 = vmatmul.mubr.bf16.gmra.mrb[0].mxu0 %v943
    %v5340 = vpop.f32.mrb[0].mxu0
    %v5341 = vadd.f32 %v858, %v5340
    %v5342 = vpop.f32.mrb[0].mxu0
    %v5343 = vadd.f32 %v862, %v5342
    %v5344 = vpop.f32.mrb[0].mxu0
    %v5345 = vpop.f32.mrb[0].mxu0
    %5346 = vdwg.mxu0
    %5347 = vmatprep.subr.bf16.mxu0 %v3635
    %5348 = vmatpush1.bf16.msra.mxu0 %v3634
    %5349 = vmatprep.subr.bf16.mxu0 %v3651
    %5350 = vmatpush1.bf16.msra.mxu0 %v3650
    %5351 = vmatprep.subr.bf16.mxu0 %v3667
    %5352 = vmatpush1.bf16.msra.mxu0 %v3666
    %5353 = vmatprep.subr.bf16.mxu0 %v3683
    %5354 = vmatpush1.bf16.msra.mxu0 %v3682
    %5355 = vmatprep.subr.bf16.mxu0 %v3699
    %5356 = vmatpush1.bf16.msra.mxu0 %v3698
    %5357 = vmatprep.subr.bf16.mxu0 %v3715
    %5358 = vmatpush1.bf16.msra.mxu0 %v3714
    %5359 = vmatprep.subr.bf16.mxu0 %v3731
    %5360 = vmatpush1.bf16.msra.mxu0 %v3730
    %5361 = vmatprep.subr.bf16.mxu0 %v3747
    %5362 = vmatpush1.bf16.msra.mxu0 %v3746
    %5363 = vmatprep.subr.bf16.mxu0 %v3763
    %5364 = vmatpush1.bf16.msra.mxu0 %v3762
    %5365 = vmatprep.subr.bf16.mxu0 %v3779
    %5366 = vmatpush1.bf16.msra.mxu0 %v3778
    %5367 = vmatprep.subr.bf16.mxu0 %v3795
    %5368 = vmatpush1.bf16.msra.mxu0 %v3794
    %5369 = vmatprep.subr.bf16.mxu0 %v3811
    %5370 = vmatpush1.bf16.msra.mxu0 %v3810
    %5371 = vmatprep.subr.bf16.mxu0 %v3827
    %5372 = vmatpush1.bf16.msra.mxu0 %v3826
    %5373 = vmatprep.subr.bf16.mxu0 %v3843
    %5374 = vmatpush1.bf16.msra.mxu0 %v3842
    %5375 = vmatprep.subr.bf16.mxu0 %v3859
    %5376 = vmatpush1.bf16.msra.mxu0 %v3858
    %5377 = vmatprep.subr.bf16.mxu0 %v3875
    %5378 = vmatpush1.bf16.msra.mxu0 %v3874
    %5379 = vmatprep.mubr.bf16.mxu0 %v967
    %5380 = vmatmul.mubr.bf16.gmra.mrb[0].mxu0 %v965
    %v5381 = vpop.f32.mrb[0].mxu0
    %v5382 = vadd.f32 %v5341, %v5381
    %v5383 = vpop.f32.mrb[0].mxu0
    %v5384 = vadd.f32 %v5343, %v5383
    %v5385 = vpop.f32.mrb[0].mxu0
    %v5386 = vpop.f32.mrb[0].mxu0
    %5387 = vdwg.mxu0
    %5388 = vmatprep.subr.bf16.mxu0 %v3891
    %5389 = vmatpush1.bf16.msra.mxu0 %v3890
    %5390 = vmatprep.subr.bf16.mxu0 %v3907
    %5391 = vmatpush1.bf16.msra.mxu0 %v3906
    %5392 = vmatprep.subr.bf16.mxu0 %v3923
    %5393 = vmatpush1.bf16.msra.mxu0 %v3922
    %5394 = vmatprep.subr.bf16.mxu0 %v3939
    %5395 = vmatpush1.bf16.msra.mxu0 %v3938
    %5396 = vmatprep.subr.bf16.mxu0 %v3955
    %5397 = vmatpush1.bf16.msra.mxu0 %v3954
    %5398 = vmatprep.subr.bf16.mxu0 %v3971
    %5399 = vmatpush1.bf16.msra.mxu0 %v3970
    %5400 = vmatprep.subr.bf16.mxu0 %v3987
    %5401 = vmatpush1.bf16.msra.mxu0 %v3986
    %5402 = vmatprep.subr.bf16.mxu0 %v4003
    %5403 = vmatpush1.bf16.msra.mxu0 %v4002
    %5404 = vmatprep.subr.bf16.mxu0 %v4019
    %5405 = vmatpush1.bf16.msra.mxu0 %v4018
    %5406 = vmatprep.subr.bf16.mxu0 %v4035
    %5407 = vmatpush1.bf16.msra.mxu0 %v4034
    %5408 = vmatprep.subr.bf16.mxu0 %v4051
    %5409 = vmatpush1.bf16.msra.mxu0 %v4050
    %5410 = vmatprep.subr.bf16.mxu0 %v4067
    %5411 = vmatpush1.bf16.msra.mxu0 %v4066
    %5412 = vmatprep.subr.bf16.mxu0 %v4083
    %5413 = vmatpush1.bf16.msra.mxu0 %v4082
    %5414 = vmatprep.subr.bf16.mxu0 %v4099
    %5415 = vmatpush1.bf16.msra.mxu0 %v4098
    %5416 = vmatprep.subr.bf16.mxu0 %v4115
    %5417 = vmatpush1.bf16.msra.mxu0 %v4114
    %5418 = vmatprep.subr.bf16.mxu0 %v4131
    %5419 = vmatpush1.bf16.msra.mxu0 %v4130
    %5420 = vmatprep.mubr.bf16.mxu0 %v964
    %5421 = vmatmul.mubr.bf16.gmra.mrb[0].mxu0 %v950
    %v5422 = vpop.f32.mrb[0].mxu0
    %v5423 = vadd.f32 %v5382, %v5422
    %v5424 = vpop.f32.mrb[0].mxu0
    %v5425 = vadd.f32 %v5384, %v5424
    %v5426 = vpop.f32.mrb[0].mxu0
    %v5427 = vpop.f32.mrb[0].mxu0
    %5428 = vdwg.mxu0
    %5429 = vmatprep.subr.bf16.mxu0 %v4147
    %5430 = vmatpush1.bf16.msra.mxu0 %v4146
    %5431 = vmatprep.subr.bf16.mxu0 %v4163
    %5432 = vmatpush1.bf16.msra.mxu0 %v4162
    %5433 = vmatprep.subr.bf16.mxu0 0
    %5434 = vmatpush1.bf16.msra.mxu0 0
    %5435 = vmatprep.subr.bf16.mxu0 0
    %5436 = vmatpush1.bf16.msra.mxu0 0
    %5437 = vmatprep.subr.bf16.mxu0 0
    %5438 = vmatpush1.bf16.msra.mxu0 0
    %5439 = vmatprep.subr.bf16.mxu0 0
    %5440 = vmatpush1.bf16.msra.mxu0 0
    %5441 = vmatprep.subr.bf16.mxu0 0
    %5442 = vmatpush1.bf16.msra.mxu0 0
    %5443 = vmatprep.subr.bf16.mxu0 0
    %5444 = vmatpush1.bf16.msra.mxu0 0
    %5445 = vmatprep.subr.bf16.mxu0 0
    %5446 = vmatpush1.bf16.msra.mxu0 0
    %5447 = vmatprep.subr.bf16.mxu0 0
    %5448 = vmatpush1.bf16.msra.mxu0 0
    %5449 = vmatprep.subr.bf16.mxu0 0
    %5450 = vmatpush1.bf16.msra.mxu0 0
    %5451 = vmatprep.subr.bf16.mxu0 0
    %5452 = vmatpush1.bf16.msra.mxu0 0
    %5453 = vmatprep.subr.bf16.mxu0 0
    %5454 = vmatpush1.bf16.msra.mxu0 0
    %5455 = vmatprep.subr.bf16.mxu0 0
    %5456 = vmatpush1.bf16.msra.mxu0 0
    %5457 = vmatprep.subr.bf16.mxu0 0
    %5458 = vmatpush1.bf16.msra.mxu0 0
    %5459 = vmatprep.subr.bf16.mxu0 0
    %5460 = vmatpush1.bf16.msra.mxu0 0
    %5461 = vmatprep.mubr.bf16.mxu0 0
    %5462 = vmatmul.mubr.bf16.gmra.mrb[0].mxu0 %v4976
    %v5463 = vpop.f32.mrb[0].mxu0
    %v5464 = vadd.f32 %v5423, %v5463
    %v5465 = vpop.f32.mrb[0].mxu0
    %v5466 = vadd.f32 %v5425, %v5465
    %v5467 = vpop.f32.mrb[0].mxu0
    %v5468 = vpop.f32.mrb[0].mxu0
    %5469 = vdwg.mxu0
    %5470 = vmatprep.subr.bf16.mxu0 %v3381
    %5471 = vmatpush1.bf16.msra.mxu0 %v3380
    %5472 = vmatprep.subr.bf16.mxu0 %v3397
    %5473 = vmatpush1.bf16.msra.mxu0 %v3396
    %5474 = vmatprep.subr.bf16.mxu0 %v3413
    %5475 = vmatpush1.bf16.msra.mxu0 %v3412
    %5476 = vmatprep.subr.bf16.mxu0 %v3429
    %5477 = vmatpush1.bf16.msra.mxu0 %v3428
    %5478 = vmatprep.subr.bf16.mxu0 %v3445
    %5479 = vmatpush1.bf16.msra.mxu0 %v3444
    %5480 = vmatprep.subr.bf16.mxu0 %v3461
    %5481 = vmatpush1.bf16.msra.mxu0 %v3460
    %5482 = vmatprep.subr.bf16.mxu0 %v3477
    %5483 = vmatpush1.bf16.msra.mxu0 %v3476
    %5484 = vmatprep.subr.bf16.mxu0 %v3493
    %5485 = vmatpush1.bf16.msra.mxu0 %v3492
    %5486 = vmatprep.subr.bf16.mxu0 %v3509
    %5487 = vmatpush1.bf16.msra.mxu0 %v3508
    %5488 = vmatprep.subr.bf16.mxu0 %v3525
    %5489 = vmatpush1.bf16.msra.mxu0 %v3524
    %5490 = vmatprep.subr.bf16.mxu0 %v3541
    %5491 = vmatpush1.bf16.msra.mxu0 %v3540
    %5492 = vmatprep.subr.bf16.mxu0 %v3557
    %5493 = vmatpush1.bf16.msra.mxu0 %v3556
    %5494 = vmatprep.subr.bf16.mxu0 %v3573
    %5495 = vmatpush1.bf16.msra.mxu0 %v3572
    %5496 = vmatprep.subr.bf16.mxu0 %v3589
    %5497 = vmatpush1.bf16.msra.mxu0 %v3588
    %5498 = vmatprep.subr.bf16.mxu0 %v3605
    %5499 = vmatpush1.bf16.msra.mxu0 %v3604
    %5500 = vmatprep.subr.bf16.mxu0 %v3621
    %5501 = vmatpush1.bf16.msra.mxu0 %v3620
    %5502 = vmatprep.mubr.bf16.mxu0 %v957
    %5503 = vmatmul.mubr.bf16.gmra.mrb[0].mxu0 %v943
    %v5504 = vpop.f32.mrb[0].mxu0
    %v5505 = vadd.f32 %v866, %v5504
    %v5506 = vpop.f32.mrb[0].mxu0
    %v5507 = vadd.f32 %v870, %v5506
    %v5508 = vpop.f32.mrb[0].mxu0
    %v5509 = vpop.f32.mrb[0].mxu0
    %5510 = vdwg.mxu0
    %5511 = vmatprep.subr.bf16.mxu0 %v3637
    %5512 = vmatpush1.bf16.msra.mxu0 %v3636
    %5513 = vmatprep.subr.bf16.mxu0 %v3653
    %5514 = vmatpush1.bf16.msra.mxu0 %v3652
    %5515 = vmatprep.subr.bf16.mxu0 %v3669
    %5516 = vmatpush1.bf16.msra.mxu0 %v3668
    %5517 = vmatprep.subr.bf16.mxu0 %v3685
    %5518 = vmatpush1.bf16.msra.mxu0 %v3684
    %5519 = vmatprep.subr.bf16.mxu0 %v3701
    %5520 = vmatpush1.bf16.msra.mxu0 %v3700
    %5521 = vmatprep.subr.bf16.mxu0 %v3717
    %5522 = vmatpush1.bf16.msra.mxu0 %v3716
    %5523 = vmatprep.subr.bf16.mxu0 %v3733
    %5524 = vmatpush1.bf16.msra.mxu0 %v3732
    %5525 = vmatprep.subr.bf16.mxu0 %v3749
    %5526 = vmatpush1.bf16.msra.mxu0 %v3748
    %5527 = vmatprep.subr.bf16.mxu0 %v3765
    %5528 = vmatpush1.bf16.msra.mxu0 %v3764
    %5529 = vmatprep.subr.bf16.mxu0 %v3781
    %5530 = vmatpush1.bf16.msra.mxu0 %v3780
    %5531 = vmatprep.subr.bf16.mxu0 %v3797
    %5532 = vmatpush1.bf16.msra.mxu0 %v3796
    %5533 = vmatprep.subr.bf16.mxu0 %v3813
    %5534 = vmatpush1.bf16.msra.mxu0 %v3812
    %5535 = vmatprep.subr.bf16.mxu0 %v3829
    %5536 = vmatpush1.bf16.msra.mxu0 %v3828
    %5537 = vmatprep.subr.bf16.mxu0 %v3845
    %5538 = vmatpush1.bf16.msra.mxu0 %v3844
    %5539 = vmatprep.subr.bf16.mxu0 %v3861
    %5540 = vmatpush1.bf16.msra.mxu0 %v3860
    %5541 = vmatprep.subr.bf16.mxu0 %v3877
    %5542 = vmatpush1.bf16.msra.mxu0 %v3876
    %5543 = vmatprep.mubr.bf16.mxu0 %v967
    %5544 = vmatmul.mubr.bf16.gmra.mrb[0].mxu0 %v965
    %v5545 = vpop.f32.mrb[0].mxu0
    %v5546 = vadd.f32 %v5505, %v5545
    %v5547 = vpop.f32.mrb[0].mxu0
    %v5548 = vadd.f32 %v5507, %v5547
    %v5549 = vpop.f32.mrb[0].mxu0
    %v5550 = vpop.f32.mrb[0].mxu0
    %5551 = vdwg.mxu0
    %5552 = vmatprep.subr.bf16.mxu0 %v3893
    %5553 = vmatpush1.bf16.msra.mxu0 %v3892
    %5554 = vmatprep.subr.bf16.mxu0 %v3909
    %5555 = vmatpush1.bf16.msra.mxu0 %v3908
    %5556 = vmatprep.subr.bf16.mxu0 %v3925
    %5557 = vmatpush1.bf16.msra.mxu0 %v3924
    %5558 = vmatprep.subr.bf16.mxu0 %v3941
    %5559 = vmatpush1.bf16.msra.mxu0 %v3940
    %5560 = vmatprep.subr.bf16.mxu0 %v3957
    %5561 = vmatpush1.bf16.msra.mxu0 %v3956
    %5562 = vmatprep.subr.bf16.mxu0 %v3973
    %5563 = vmatpush1.bf16.msra.mxu0 %v3972
    %5564 = vmatprep.subr.bf16.mxu0 %v3989
    %5565 = vmatpush1.bf16.msra.mxu0 %v3988
    %5566 = vmatprep.subr.bf16.mxu0 %v4005
    %5567 = vmatpush1.bf16.msra.mxu0 %v4004
    %5568 = vmatprep.subr.bf16.mxu0 %v4021
    %5569 = vmatpush1.bf16.msra.mxu0 %v4020
    %5570 = vmatprep.subr.bf16.mxu0 %v4037
    %5571 = vmatpush1.bf16.msra.mxu0 %v4036
    %5572 = vmatprep.subr.bf16.mxu0 %v4053
    %5573 = vmatpush1.bf16.msra.mxu0 %v4052
    %5574 = vmatprep.subr.bf16.mxu0 %v4069
    %5575 = vmatpush1.bf16.msra.mxu0 %v4068
    %5576 = vmatprep.subr.bf16.mxu0 %v4085
    %5577 = vmatpush1.bf16.msra.mxu0 %v4084
    %5578 = vmatprep.subr.bf16.mxu0 %v4101
    %5579 = vmatpush1.bf16.msra.mxu0 %v4100
    %5580 = vmatprep.subr.bf16.mxu0 %v4117
    %5581 = vmatpush1.bf16.msra.mxu0 %v4116
    %5582 = vmatprep.subr.bf16.mxu0 %v4133
    %5583 = vmatpush1.bf16.msra.mxu0 %v4132
    %5584 = vmatprep.mubr.bf16.mxu0 %v964
    %5585 = vmatmul.mubr.bf16.gmra.mrb[0].mxu0 %v950
    %v5586 = vpop.f32.mrb[0].mxu0
    %v5587 = vadd.f32 %v5546, %v5586
    %v5588 = vpop.f32.mrb[0].mxu0
    %v5589 = vadd.f32 %v5548, %v5588
    %v5590 = vpop.f32.mrb[0].mxu0
    %v5591 = vpop.f32.mrb[0].mxu0
    %5592 = vdwg.mxu0
    %5593 = vmatprep.subr.bf16.mxu0 %v4149
    %5594 = vmatpush1.bf16.msra.mxu0 %v4148
    %5595 = vmatprep.subr.bf16.mxu0 %v4165
    %5596 = vmatpush1.bf16.msra.mxu0 %v4164
    %5597 = vmatprep.subr.bf16.mxu0 0
    %5598 = vmatpush1.bf16.msra.mxu0 0
    %5599 = vmatprep.subr.bf16.mxu0 0
    %5600 = vmatpush1.bf16.msra.mxu0 0
    %5601 = vmatprep.subr.bf16.mxu0 0
    %5602 = vmatpush1.bf16.msra.mxu0 0
    %5603 = vmatprep.subr.bf16.mxu0 0
    %5604 = vmatpush1.bf16.msra.mxu0 0
    %5605 = vmatprep.subr.bf16.mxu0 0
    %5606 = vmatpush1.bf16.msra.mxu0 0
    %5607 = vmatprep.subr.bf16.mxu0 0
    %5608 = vmatpush1.bf16.msra.mxu0 0
    %5609 = vmatprep.subr.bf16.mxu0 0
    %5610 = vmatpush1.bf16.msra.mxu0 0
    %5611 = vmatprep.subr.bf16.mxu0 0
    %5612 = vmatpush1.bf16.msra.mxu0 0
    %5613 = vmatprep.subr.bf16.mxu0 0
    %5614 = vmatpush1.bf16.msra.mxu0 0
    %5615 = vmatprep.subr.bf16.mxu0 0
    %5616 = vmatpush1.bf16.msra.mxu0 0
    %5617 = vmatprep.subr.bf16.mxu0 0
    %5618 = vmatpush1.bf16.msra.mxu0 0
    %5619 = vmatprep.subr.bf16.mxu0 0
    %5620 = vmatpush1.bf16.msra.mxu0 0
    %5621 = vmatprep.subr.bf16.mxu0 0
    %5622 = vmatpush1.bf16.msra.mxu0 0
    %5623 = vmatprep.subr.bf16.mxu0 0
    %5624 = vmatpush1.bf16.msra.mxu0 0
    %5625 = vmatprep.mubr.bf16.mxu0 0
    %5626 = vmatmul.mubr.bf16.gmra.mrb[0].mxu0 %v4976
    %v5627 = vpop.f32.mrb[0].mxu0
    %v5628 = vadd.f32 %v5587, %v5627
    %v5629 = vpop.f32.mrb[0].mxu0
    %v5630 = vadd.f32 %v5589, %v5629
    %v5631 = vpop.f32.mrb[0].mxu0
    %v5632 = vpop.f32.mrb[0].mxu0
    %5633 = vdwg.mxu0
    %5634 = vmatprep.subr.bf16.mxu0 %v3383
    %5635 = vmatpush1.bf16.msra.mxu0 %v3382
    %5636 = vmatprep.subr.bf16.mxu0 %v3399
    %5637 = vmatpush1.bf16.msra.mxu0 %v3398
    %5638 = vmatprep.subr.bf16.mxu0 %v3415
    %5639 = vmatpush1.bf16.msra.mxu0 %v3414
    %5640 = vmatprep.subr.bf16.mxu0 %v3431
    %5641 = vmatpush1.bf16.msra.mxu0 %v3430
    %5642 = vmatprep.subr.bf16.mxu0 %v3447
    %5643 = vmatpush1.bf16.msra.mxu0 %v3446
    %5644 = vmatprep.subr.bf16.mxu0 %v3463
    %5645 = vmatpush1.bf16.msra.mxu0 %v3462
    %5646 = vmatprep.subr.bf16.mxu0 %v3479
    %5647 = vmatpush1.bf16.msra.mxu0 %v3478
    %5648 = vmatprep.subr.bf16.mxu0 %v3495
    %5649 = vmatpush1.bf16.msra.mxu0 %v3494
    %5650 = vmatprep.subr.bf16.mxu0 %v3511
    %5651 = vmatpush1.bf16.msra.mxu0 %v3510
    %5652 = vmatprep.subr.bf16.mxu0 %v3527
    %5653 = vmatpush1.bf16.msra.mxu0 %v3526
    %5654 = vmatprep.subr.bf16.mxu0 %v3543
    %5655 = vmatpush1.bf16.msra.mxu0 %v3542
    %5656 = vmatprep.subr.bf16.mxu0 %v3559
    %5657 = vmatpush1.bf16.msra.mxu0 %v3558
    %5658 = vmatprep.subr.bf16.mxu0 %v3575
    %5659 = vmatpush1.bf16.msra.mxu0 %v3574
    %5660 = vmatprep.subr.bf16.mxu0 %v3591
    %5661 = vmatpush1.bf16.msra.mxu0 %v3590
    %5662 = vmatprep.subr.bf16.mxu0 %v3607
    %5663 = vmatpush1.bf16.msra.mxu0 %v3606
    %5664 = vmatprep.subr.bf16.mxu0 %v3623
    %5665 = vmatpush1.bf16.msra.mxu0 %v3622
    %5666 = vmatprep.mubr.bf16.mxu0 %v957
    %5667 = vmatmul.mubr.bf16.gmra.mrb[0].mxu0 %v943
    %v5668 = vpop.f32.mrb[0].mxu0
    %v5669 = vadd.f32 %v874, %v5668
    %v5670 = vpop.f32.mrb[0].mxu0
    %v5671 = vadd.f32 %v878, %v5670
    %v5672 = vpop.f32.mrb[0].mxu0
    %v5673 = vpop.f32.mrb[0].mxu0
    %5674 = vdwg.mxu0
    %5675 = vmatprep.subr.bf16.mxu0 %v3639
    %5676 = vmatpush1.bf16.msra.mxu0 %v3638
    %5677 = vmatprep.subr.bf16.mxu0 %v3655
    %5678 = vmatpush1.bf16.msra.mxu0 %v3654
    %5679 = vmatprep.subr.bf16.mxu0 %v3671
    %5680 = vmatpush1.bf16.msra.mxu0 %v3670
    %5681 = vmatprep.subr.bf16.mxu0 %v3687
    %5682 = vmatpush1.bf16.msra.mxu0 %v3686
    %5683 = vmatprep.subr.bf16.mxu0 %v3703
    %5684 = vmatpush1.bf16.msra.mxu0 %v3702
    %5685 = vmatprep.subr.bf16.mxu0 %v3719
    %5686 = vmatpush1.bf16.msra.mxu0 %v3718
    %5687 = vmatprep.subr.bf16.mxu0 %v3735
    %5688 = vmatpush1.bf16.msra.mxu0 %v3734
    %5689 = vmatprep.subr.bf16.mxu0 %v3751
    %5690 = vmatpush1.bf16.msra.mxu0 %v3750
    %5691 = vmatprep.subr.bf16.mxu0 %v3767
    %5692 = vmatpush1.bf16.msra.mxu0 %v3766
    %5693 = vmatprep.subr.bf16.mxu0 %v3783
    %5694 = vmatpush1.bf16.msra.mxu0 %v3782
    %5695 = vmatprep.subr.bf16.mxu0 %v3799
    %5696 = vmatpush1.bf16.msra.mxu0 %v3798
    %5697 = vmatprep.subr.bf16.mxu0 %v3815
    %5698 = vmatpush1.bf16.msra.mxu0 %v3814
    %5699 = vmatprep.subr.bf16.mxu0 %v3831
    %5700 = vmatpush1.bf16.msra.mxu0 %v3830
    %5701 = vmatprep.subr.bf16.mxu0 %v3847
    %5702 = vmatpush1.bf16.msra.mxu0 %v3846
    %5703 = vmatprep.subr.bf16.mxu0 %v3863
    %5704 = vmatpush1.bf16.msra.mxu0 %v3862
    %5705 = vmatprep.subr.bf16.mxu0 %v3879
    %5706 = vmatpush1.bf16.msra.mxu0 %v3878
    %5707 = vmatprep.mubr.bf16.mxu0 %v967
    %5708 = vmatmul.mubr.bf16.gmra.mrb[0].mxu0 %v965
    %v5709 = vpop.f32.mrb[0].mxu0
    %v5710 = vadd.f32 %v5669, %v5709
    %v5711 = vpop.f32.mrb[0].mxu0
    %v5712 = vadd.f32 %v5671, %v5711
    %v5713 = vpop.f32.mrb[0].mxu0
    %v5714 = vpop.f32.mrb[0].mxu0
    %5715 = vdwg.mxu0
    %5716 = vmatprep.subr.bf16.mxu0 %v3895
    %5717 = vmatpush1.bf16.msra.mxu0 %v3894
    %5718 = vmatprep.subr.bf16.mxu0 %v3911
    %5719 = vmatpush1.bf16.msra.mxu0 %v3910
    %5720 = vmatprep.subr.bf16.mxu0 %v3927
    %5721 = vmatpush1.bf16.msra.mxu0 %v3926
    %5722 = vmatprep.subr.bf16.mxu0 %v3943
    %5723 = vmatpush1.bf16.msra.mxu0 %v3942
    %5724 = vmatprep.subr.bf16.mxu0 %v3959
    %5725 = vmatpush1.bf16.msra.mxu0 %v3958
    %5726 = vmatprep.subr.bf16.mxu0 %v3975
    %5727 = vmatpush1.bf16.msra.mxu0 %v3974
    %5728 = vmatprep.subr.bf16.mxu0 %v3991
    %5729 = vmatpush1.bf16.msra.mxu0 %v3990
    %5730 = vmatprep.subr.bf16.mxu0 %v4007
    %5731 = vmatpush1.bf16.msra.mxu0 %v4006
    %5732 = vmatprep.subr.bf16.mxu0 %v4023
    %5733 = vmatpush1.bf16.msra.mxu0 %v4022
    %5734 = vmatprep.subr.bf16.mxu0 %v4039
    %5735 = vmatpush1.bf16.msra.mxu0 %v4038
    %5736 = vmatprep.subr.bf16.mxu0 %v4055
    %5737 = vmatpush1.bf16.msra.mxu0 %v4054
    %5738 = vmatprep.subr.bf16.mxu0 %v4071
    %5739 = vmatpush1.bf16.msra.mxu0 %v4070
    %5740 = vmatprep.subr.bf16.mxu0 %v4087
    %5741 = vmatpush1.bf16.msra.mxu0 %v4086
    %5742 = vmatprep.subr.bf16.mxu0 %v4103
    %5743 = vmatpush1.bf16.msra.mxu0 %v4102
    %5744 = vmatprep.subr.bf16.mxu0 %v4119
    %5745 = vmatpush1.bf16.msra.mxu0 %v4118
    %5746 = vmatprep.subr.bf16.mxu0 %v4135
    %5747 = vmatpush1.bf16.msra.mxu0 %v4134
    %5748 = vmatprep.mubr.bf16.mxu0 %v964
    %5749 = vmatmul.mubr.bf16.gmra.mrb[0].mxu0 %v950
    %v5750 = vpop.f32.mrb[0].mxu0
    %v5751 = vadd.f32 %v5710, %v5750
    %v5752 = vpop.f32.mrb[0].mxu0
    %v5753 = vadd.f32 %v5712, %v5752
    %v5754 = vpop.f32.mrb[0].mxu0
    %v5755 = vpop.f32.mrb[0].mxu0
    %5756 = vdwg.mxu0
    %5757 = vmatprep.subr.bf16.mxu0 %v4151
    %5758 = vmatpush1.bf16.msra.mxu0 %v4150
    %5759 = vmatprep.subr.bf16.mxu0 %v4167
    %5760 = vmatpush1.bf16.msra.mxu0 %v4166
    %5761 = vmatprep.subr.bf16.mxu0 0
    %5762 = vmatpush1.bf16.msra.mxu0 0
    %5763 = vmatprep.subr.bf16.mxu0 0
    %5764 = vmatpush1.bf16.msra.mxu0 0
    %5765 = vmatprep.subr.bf16.mxu0 0
    %5766 = vmatpush1.bf16.msra.mxu0 0
    %5767 = vmatprep.subr.bf16.mxu0 0
    %5768 = vmatpush1.bf16.msra.mxu0 0
    %5769 = vmatprep.subr.bf16.mxu0 0
    %5770 = vmatpush1.bf16.msra.mxu0 0
    %5771 = vmatprep.subr.bf16.mxu0 0
    %5772 = vmatpush1.bf16.msra.mxu0 0
    %5773 = vmatprep.subr.bf16.mxu0 0
    %5774 = vmatpush1.bf16.msra.mxu0 0
    %5775 = vmatprep.subr.bf16.mxu0 0
    %5776 = vmatpush1.bf16.msra.mxu0 0
    %5777 = vmatprep.subr.bf16.mxu0 0
    %5778 = vmatpush1.bf16.msra.mxu0 0
    %5779 = vmatprep.subr.bf16.mxu0 0
    %5780 = vmatpush1.bf16.msra.mxu0 0
    %5781 = vmatprep.subr.bf16.mxu0 0
    %5782 = vmatpush1.bf16.msra.mxu0 0
    %5783 = vmatprep.subr.bf16.mxu0 0
    %5784 = vmatpush1.bf16.msra.mxu0 0
    %5785 = vmatprep.subr.bf16.mxu0 0
    %5786 = vmatpush1.bf16.msra.mxu0 0
    %5787 = vmatprep.subr.bf16.mxu0 0
    %5788 = vmatpush1.bf16.msra.mxu0 0
    %5789 = vmatprep.mubr.bf16.mxu0 0
    %5790 = vmatmul.mubr.bf16.gmra.mrb[0].mxu0 %v4976
    %v5791 = vpop.f32.mrb[0].mxu0
    %v5792 = vadd.f32 %v5751, %v5791
    %v5793 = vpop.f32.mrb[0].mxu0
    %v5794 = vadd.f32 %v5753, %v5793
    %v5795 = vpop.f32.mrb[0].mxu0
    %v5796 = vpop.f32.mrb[0].mxu0
    %5797 = vdwg.mxu0
    %5798 = vmatprep.subr.bf16.mxu0 %v3385
    %5799 = vmatpush1.bf16.msra.mxu0 %v3384
    %5800 = vmatprep.subr.bf16.mxu0 %v3401
    %5801 = vmatpush1.bf16.msra.mxu0 %v3400
    %5802 = vmatprep.subr.bf16.mxu0 %v3417
    %5803 = vmatpush1.bf16.msra.mxu0 %v3416
    %5804 = vmatprep.subr.bf16.mxu0 %v3433
    %5805 = vmatpush1.bf16.msra.mxu0 %v3432
    %5806 = vmatprep.subr.bf16.mxu0 %v3449
    %5807 = vmatpush1.bf16.msra.mxu0 %v3448
    %5808 = vmatprep.subr.bf16.mxu0 %v3465
    %5809 = vmatpush1.bf16.msra.mxu0 %v3464
    %5810 = vmatprep.subr.bf16.mxu0 %v3481
    %5811 = vmatpush1.bf16.msra.mxu0 %v3480
    %5812 = vmatprep.subr.bf16.mxu0 %v3497
    %5813 = vmatpush1.bf16.msra.mxu0 %v3496
    %5814 = vmatprep.subr.bf16.mxu0 %v3513
    %5815 = vmatpush1.bf16.msra.mxu0 %v3512
    %5816 = vmatprep.subr.bf16.mxu0 %v3529
    %5817 = vmatpush1.bf16.msra.mxu0 %v3528
    %5818 = vmatprep.subr.bf16.mxu0 %v3545
    %5819 = vmatpush1.bf16.msra.mxu0 %v3544
    %5820 = vmatprep.subr.bf16.mxu0 %v3561
    %5821 = vmatpush1.bf16.msra.mxu0 %v3560
    %5822 = vmatprep.subr.bf16.mxu0 %v3577
    %5823 = vmatpush1.bf16.msra.mxu0 %v3576
    %5824 = vmatprep.subr.bf16.mxu0 %v3593
    %5825 = vmatpush1.bf16.msra.mxu0 %v3592
    %5826 = vmatprep.subr.bf16.mxu0 %v3609
    %5827 = vmatpush1.bf16.msra.mxu0 %v3608
    %5828 = vmatprep.subr.bf16.mxu0 %v3625
    %5829 = vmatpush1.bf16.msra.mxu0 %v3624
    %5830 = vmatprep.mubr.bf16.mxu0 %v957
    %5831 = vmatmul.mubr.bf16.gmra.mrb[0].mxu0 %v943
    %v5832 = vpop.f32.mrb[0].mxu0
    %v5833 = vadd.f32 %v882, %v5832
    %v5834 = vpop.f32.mrb[0].mxu0
    %v5835 = vadd.f32 %v886, %v5834
    %v5836 = vpop.f32.mrb[0].mxu0
    %v5837 = vpop.f32.mrb[0].mxu0
    %5838 = vdwg.mxu0
    %5839 = vmatprep.subr.bf16.mxu0 %v3641
    %5840 = vmatpush1.bf16.msra.mxu0 %v3640
    %5841 = vmatprep.subr.bf16.mxu0 %v3657
    %5842 = vmatpush1.bf16.msra.mxu0 %v3656
    %5843 = vmatprep.subr.bf16.mxu0 %v3673
    %5844 = vmatpush1.bf16.msra.mxu0 %v3672
    %5845 = vmatprep.subr.bf16.mxu0 %v3689
    %5846 = vmatpush1.bf16.msra.mxu0 %v3688
    %5847 = vmatprep.subr.bf16.mxu0 %v3705
    %5848 = vmatpush1.bf16.msra.mxu0 %v3704
    %5849 = vmatprep.subr.bf16.mxu0 %v3721
    %5850 = vmatpush1.bf16.msra.mxu0 %v3720
    %5851 = vmatprep.subr.bf16.mxu0 %v3737
    %5852 = vmatpush1.bf16.msra.mxu0 %v3736
    %5853 = vmatprep.subr.bf16.mxu0 %v3753
    %5854 = vmatpush1.bf16.msra.mxu0 %v3752
    %5855 = vmatprep.subr.bf16.mxu0 %v3769
    %5856 = vmatpush1.bf16.msra.mxu0 %v3768
    %5857 = vmatprep.subr.bf16.mxu0 %v3785
    %5858 = vmatpush1.bf16.msra.mxu0 %v3784
    %5859 = vmatprep.subr.bf16.mxu0 %v3801
    %5860 = vmatpush1.bf16.msra.mxu0 %v3800
    %5861 = vmatprep.subr.bf16.mxu0 %v3817
    %5862 = vmatpush1.bf16.msra.mxu0 %v3816
    %5863 = vmatprep.subr.bf16.mxu0 %v3833
    %5864 = vmatpush1.bf16.msra.mxu0 %v3832
    %5865 = vmatprep.subr.bf16.mxu0 %v3849
    %5866 = vmatpush1.bf16.msra.mxu0 %v3848
    %5867 = vmatprep.subr.bf16.mxu0 %v3865
    %5868 = vmatpush1.bf16.msra.mxu0 %v3864
    %5869 = vmatprep.subr.bf16.mxu0 %v3881
    %5870 = vmatpush1.bf16.msra.mxu0 %v3880
    %5871 = vmatprep.mubr.bf16.mxu0 %v967
    %5872 = vmatmul.mubr.bf16.gmra.mrb[0].mxu0 %v965
    %v5873 = vpop.f32.mrb[0].mxu0
    %v5874 = vadd.f32 %v5833, %v5873
    %v5875 = vpop.f32.mrb[0].mxu0
    %v5876 = vadd.f32 %v5835, %v5875
    %v5877 = vpop.f32.mrb[0].mxu0
    %v5878 = vpop.f32.mrb[0].mxu0
    %5879 = vdwg.mxu0
    %5880 = vmatprep.subr.bf16.mxu0 %v3897
    %5881 = vmatpush1.bf16.msra.mxu0 %v3896
    %5882 = vmatprep.subr.bf16.mxu0 %v3913
    %5883 = vmatpush1.bf16.msra.mxu0 %v3912
    %5884 = vmatprep.subr.bf16.mxu0 %v3929
    %5885 = vmatpush1.bf16.msra.mxu0 %v3928
    %5886 = vmatprep.subr.bf16.mxu0 %v3945
    %5887 = vmatpush1.bf16.msra.mxu0 %v3944
    %5888 = vmatprep.subr.bf16.mxu0 %v3961
    %5889 = vmatpush1.bf16.msra.mxu0 %v3960
    %5890 = vmatprep.subr.bf16.mxu0 %v3977
    %5891 = vmatpush1.bf16.msra.mxu0 %v3976
    %5892 = vmatprep.subr.bf16.mxu0 %v3993
    %5893 = vmatpush1.bf16.msra.mxu0 %v3992
    %5894 = vmatprep.subr.bf16.mxu0 %v4009
    %5895 = vmatpush1.bf16.msra.mxu0 %v4008
    %5896 = vmatprep.subr.bf16.mxu0 %v4025
    %5897 = vmatpush1.bf16.msra.mxu0 %v4024
    %5898 = vmatprep.subr.bf16.mxu0 %v4041
    %5899 = vmatpush1.bf16.msra.mxu0 %v4040
    %5900 = vmatprep.subr.bf16.mxu0 %v4057
    %5901 = vmatpush1.bf16.msra.mxu0 %v4056
    %5902 = vmatprep.subr.bf16.mxu0 %v4073
    %5903 = vmatpush1.bf16.msra.mxu0 %v4072
    %5904 = vmatprep.subr.bf16.mxu0 %v4089
    %5905 = vmatpush1.bf16.msra.mxu0 %v4088
    %5906 = vmatprep.subr.bf16.mxu0 %v4105
    %5907 = vmatpush1.bf16.msra.mxu0 %v4104
    %5908 = vmatprep.subr.bf16.mxu0 %v4121
    %5909 = vmatpush1.bf16.msra.mxu0 %v4120
    %5910 = vmatprep.subr.bf16.mxu0 %v4137
    %5911 = vmatpush1.bf16.msra.mxu0 %v4136
    %5912 = vmatprep.mubr.bf16.mxu0 %v964
    %5913 = vmatmul.mubr.bf16.gmra.mrb[0].mxu0 %v950
    %v5914 = vpop.f32.mrb[0].mxu0
    %v5915 = vadd.f32 %v5874, %v5914
    %v5916 = vpop.f32.mrb[0].mxu0
    %v5917 = vadd.f32 %v5876, %v5916
    %v5918 = vpop.f32.mrb[0].mxu0
    %v5919 = vpop.f32.mrb[0].mxu0
    %5920 = vdwg.mxu0
    %5921 = vmatprep.subr.bf16.mxu0 %v4153
    %5922 = vmatpush1.bf16.msra.mxu0 %v4152
    %5923 = vmatprep.subr.bf16.mxu0 %v4169
    %5924 = vmatpush1.bf16.msra.mxu0 %v4168
    %5925 = vmatprep.subr.bf16.mxu0 0
    %5926 = vmatpush1.bf16.msra.mxu0 0
    %5927 = vmatprep.subr.bf16.mxu0 0
    %5928 = vmatpush1.bf16.msra.mxu0 0
    %5929 = vmatprep.subr.bf16.mxu0 0
    %5930 = vmatpush1.bf16.msra.mxu0 0
    %5931 = vmatprep.subr.bf16.mxu0 0
    %5932 = vmatpush1.bf16.msra.mxu0 0
    %5933 = vmatprep.subr.bf16.mxu0 0
    %5934 = vmatpush1.bf16.msra.mxu0 0
    %5935 = vmatprep.subr.bf16.mxu0 0
    %5936 = vmatpush1.bf16.msra.mxu0 0
    %5937 = vmatprep.subr.bf16.mxu0 0
    %5938 = vmatpush1.bf16.msra.mxu0 0
    %5939 = vmatprep.subr.bf16.mxu0 0
    %5940 = vmatpush1.bf16.msra.mxu0 0
    %5941 = vmatprep.subr.bf16.mxu0 0
    %5942 = vmatpush1.bf16.msra.mxu0 0
    %5943 = vmatprep.subr.bf16.mxu0 0
    %5944 = vmatpush1.bf16.msra.mxu0 0
    %5945 = vmatprep.subr.bf16.mxu0 0
    %5946 = vmatpush1.bf16.msra.mxu0 0
    %5947 = vmatprep.subr.bf16.mxu0 0
    %5948 = vmatpush1.bf16.msra.mxu0 0
    %5949 = vmatprep.subr.bf16.mxu0 0
    %5950 = vmatpush1.bf16.msra.mxu0 0
    %5951 = vmatprep.subr.bf16.mxu0 0
    %5952 = vmatpush1.bf16.msra.mxu0 0
    %5953 = vmatprep.mubr.bf16.mxu0 0
    %5954 = vmatmul.mubr.bf16.gmra.mrb[0].mxu0 %v4976
    %v5955 = vpop.f32.mrb[0].mxu0
    %v5956 = vadd.f32 %v5915, %v5955
    %v5957 = vpop.f32.mrb[0].mxu0
    %v5958 = vadd.f32 %v5917, %v5957
    %v5959 = vpop.f32.mrb[0].mxu0
    %v5960 = vpop.f32.mrb[0].mxu0
    %5961 = vdwg.mxu0
    %5962 = vmatprep.subr.bf16.mxu0 %v3387
    %5963 = vmatpush1.bf16.msra.mxu0 %v3386
    %5964 = vmatprep.subr.bf16.mxu0 %v3403
    %5965 = vmatpush1.bf16.msra.mxu0 %v3402
    %5966 = vmatprep.subr.bf16.mxu0 %v3419
    %5967 = vmatpush1.bf16.msra.mxu0 %v3418
    %5968 = vmatprep.subr.bf16.mxu0 %v3435
    %5969 = vmatpush1.bf16.msra.mxu0 %v3434
    %5970 = vmatprep.subr.bf16.mxu0 %v3451
    %5971 = vmatpush1.bf16.msra.mxu0 %v3450
    %5972 = vmatprep.subr.bf16.mxu0 %v3467
    %5973 = vmatpush1.bf16.msra.mxu0 %v3466
    %5974 = vmatprep.subr.bf16.mxu0 %v3483
    %5975 = vmatpush1.bf16.msra.mxu0 %v3482
    %5976 = vmatprep.subr.bf16.mxu0 %v3499
    %5977 = vmatpush1.bf16.msra.mxu0 %v3498
    %5978 = vmatprep.subr.bf16.mxu0 %v3515
    %5979 = vmatpush1.bf16.msra.mxu0 %v3514
    %5980 = vmatprep.subr.bf16.mxu0 %v3531
    %5981 = vmatpush1.bf16.msra.mxu0 %v3530
    %5982 = vmatprep.subr.bf16.mxu0 %v3547
    %5983 = vmatpush1.bf16.msra.mxu0 %v3546
    %5984 = vmatprep.subr.bf16.mxu0 %v3563
    %5985 = vmatpush1.bf16.msra.mxu0 %v3562
    %5986 = vmatprep.subr.bf16.mxu0 %v3579
    %5987 = vmatpush1.bf16.msra.mxu0 %v3578
    %5988 = vmatprep.subr.bf16.mxu0 %v3595
    %5989 = vmatpush1.bf16.msra.mxu0 %v3594
    %5990 = vmatprep.subr.bf16.mxu0 %v3611
    %5991 = vmatpush1.bf16.msra.mxu0 %v3610
    %5992 = vmatprep.subr.bf16.mxu0 %v3627
    %5993 = vmatpush1.bf16.msra.mxu0 %v3626
    %5994 = vmatprep.mubr.bf16.mxu0 %v957
    %5995 = vmatmul.mubr.bf16.gmra.mrb[0].mxu0 %v943
    %v5996 = vpop.f32.mrb[0].mxu0
    %v5997 = vadd.f32 %v890, %v5996
    %v5998 = vpop.f32.mrb[0].mxu0
    %v5999 = vadd.f32 %v894, %v5998
    %v6000 = vpop.f32.mrb[0].mxu0
    %v6001 = vpop.f32.mrb[0].mxu0
    %6002 = vdwg.mxu0
    %6003 = vmatprep.subr.bf16.mxu0 %v3643
    %6004 = vmatpush1.bf16.msra.mxu0 %v3642
    %6005 = vmatprep.subr.bf16.mxu0 %v3659
    %6006 = vmatpush1.bf16.msra.mxu0 %v3658
    %6007 = vmatprep.subr.bf16.mxu0 %v3675
    %6008 = vmatpush1.bf16.msra.mxu0 %v3674
    %6009 = vmatprep.subr.bf16.mxu0 %v3691
    %6010 = vmatpush1.bf16.msra.mxu0 %v3690
    %6011 = vmatprep.subr.bf16.mxu0 %v3707
    %6012 = vmatpush1.bf16.msra.mxu0 %v3706
    %6013 = vmatprep.subr.bf16.mxu0 %v3723
    %6014 = vmatpush1.bf16.msra.mxu0 %v3722
    %6015 = vmatprep.subr.bf16.mxu0 %v3739
    %6016 = vmatpush1.bf16.msra.mxu0 %v3738
    %6017 = vmatprep.subr.bf16.mxu0 %v3755
    %6018 = vmatpush1.bf16.msra.mxu0 %v3754
    %6019 = vmatprep.subr.bf16.mxu0 %v3771
    %6020 = vmatpush1.bf16.msra.mxu0 %v3770
    %6021 = vmatprep.subr.bf16.mxu0 %v3787
    %6022 = vmatpush1.bf16.msra.mxu0 %v3786
    %6023 = vmatprep.subr.bf16.mxu0 %v3803
    %6024 = vmatpush1.bf16.msra.mxu0 %v3802
    %6025 = vmatprep.subr.bf16.mxu0 %v3819
    %6026 = vmatpush1.bf16.msra.mxu0 %v3818
    %6027 = vmatprep.subr.bf16.mxu0 %v3835
    %6028 = vmatpush1.bf16.msra.mxu0 %v3834
    %6029 = vmatprep.subr.bf16.mxu0 %v3851
    %6030 = vmatpush1.bf16.msra.mxu0 %v3850
    %6031 = vmatprep.subr.bf16.mxu0 %v3867
    %6032 = vmatpush1.bf16.msra.mxu0 %v3866
    %6033 = vmatprep.subr.bf16.mxu0 %v3883
    %6034 = vmatpush1.bf16.msra.mxu0 %v3882
    %6035 = vmatprep.mubr.bf16.mxu0 %v967
    %6036 = vmatmul.mubr.bf16.gmra.mrb[0].mxu0 %v965
    %v6037 = vpop.f32.mrb[0].mxu0
    %v6038 = vadd.f32 %v5997, %v6037
    %v6039 = vpop.f32.mrb[0].mxu0
    %v6040 = vadd.f32 %v5999, %v6039
    %v6041 = vpop.f32.mrb[0].mxu0
    %v6042 = vpop.f32.mrb[0].mxu0
    %6043 = vdwg.mxu0
    %6044 = vmatprep.subr.bf16.mxu0 %v3899
    %6045 = vmatpush1.bf16.msra.mxu0 %v3898
    %6046 = vmatprep.subr.bf16.mxu0 %v3915
    %6047 = vmatpush1.bf16.msra.mxu0 %v3914
    %6048 = vmatprep.subr.bf16.mxu0 %v3931
    %6049 = vmatpush1.bf16.msra.mxu0 %v3930
    %6050 = vmatprep.subr.bf16.mxu0 %v3947
    %6051 = vmatpush1.bf16.msra.mxu0 %v3946
    %6052 = vmatprep.subr.bf16.mxu0 %v3963
    %6053 = vmatpush1.bf16.msra.mxu0 %v3962
    %6054 = vmatprep.subr.bf16.mxu0 %v3979
    %6055 = vmatpush1.bf16.msra.mxu0 %v3978
    %6056 = vmatprep.subr.bf16.mxu0 %v3995
    %6057 = vmatpush1.bf16.msra.mxu0 %v3994
    %6058 = vmatprep.subr.bf16.mxu0 %v4011
    %6059 = vmatpush1.bf16.msra.mxu0 %v4010
    %6060 = vmatprep.subr.bf16.mxu0 %v4027
    %6061 = vmatpush1.bf16.msra.mxu0 %v4026
    %6062 = vmatprep.subr.bf16.mxu0 %v4043
    %6063 = vmatpush1.bf16.msra.mxu0 %v4042
    %6064 = vmatprep.subr.bf16.mxu0 %v4059
    %6065 = vmatpush1.bf16.msra.mxu0 %v4058
    %6066 = vmatprep.subr.bf16.mxu0 %v4075
    %6067 = vmatpush1.bf16.msra.mxu0 %v4074
    %6068 = vmatprep.subr.bf16.mxu0 %v4091
    %6069 = vmatpush1.bf16.msra.mxu0 %v4090
    %6070 = vmatprep.subr.bf16.mxu0 %v4107
    %6071 = vmatpush1.bf16.msra.mxu0 %v4106
    %6072 = vmatprep.subr.bf16.mxu0 %v4123
    %6073 = vmatpush1.bf16.msra.mxu0 %v4122
    %6074 = vmatprep.subr.bf16.mxu0 %v4139
    %6075 = vmatpush1.bf16.msra.mxu0 %v4138
    %6076 = vmatprep.mubr.bf16.mxu0 %v964
    %6077 = vmatmul.mubr.bf16.gmra.mrb[0].mxu0 %v950
    %v6078 = vpop.f32.mrb[0].mxu0
    %v6079 = vadd.f32 %v6038, %v6078
    %v6080 = vpop.f32.mrb[0].mxu0
    %v6081 = vadd.f32 %v6040, %v6080
    %v6082 = vpop.f32.mrb[0].mxu0
    %v6083 = vpop.f32.mrb[0].mxu0
    %6084 = vdwg.mxu0
    %6085 = vmatprep.subr.bf16.mxu0 %v4155
    %6086 = vmatpush1.bf16.msra.mxu0 %v4154
    %6087 = vmatprep.subr.bf16.mxu0 %v4171
    %6088 = vmatpush1.bf16.msra.mxu0 %v4170
    %6089 = vmatprep.subr.bf16.mxu0 0
    %6090 = vmatpush1.bf16.msra.mxu0 0
    %6091 = vmatprep.subr.bf16.mxu0 0
    %6092 = vmatpush1.bf16.msra.mxu0 0
    %6093 = vmatprep.subr.bf16.mxu0 0
    %6094 = vmatpush1.bf16.msra.mxu0 0
    %6095 = vmatprep.subr.bf16.mxu0 0
    %6096 = vmatpush1.bf16.msra.mxu0 0
    %6097 = vmatprep.subr.bf16.mxu0 0
    %6098 = vmatpush1.bf16.msra.mxu0 0
    %6099 = vmatprep.subr.bf16.mxu0 0
    %6100 = vmatpush1.bf16.msra.mxu0 0
    %6101 = vmatprep.subr.bf16.mxu0 0
    %6102 = vmatpush1.bf16.msra.mxu0 0
    %6103 = vmatprep.subr.bf16.mxu0 0
    %6104 = vmatpush1.bf16.msra.mxu0 0
    %6105 = vmatprep.subr.bf16.mxu0 0
    %6106 = vmatpush1.bf16.msra.mxu0 0
    %6107 = vmatprep.subr.bf16.mxu0 0
    %6108 = vmatpush1.bf16.msra.mxu0 0
    %6109 = vmatprep.subr.bf16.mxu0 0
    %6110 = vmatpush1.bf16.msra.mxu0 0
    %6111 = vmatprep.subr.bf16.mxu0 0
    %6112 = vmatpush1.bf16.msra.mxu0 0
    %6113 = vmatprep.subr.bf16.mxu0 0
    %6114 = vmatpush1.bf16.msra.mxu0 0
    %6115 = vmatprep.subr.bf16.mxu0 0
    %6116 = vmatpush1.bf16.msra.mxu0 0
    %6117 = vmatprep.mubr.bf16.mxu0 0
    %6118 = vmatmul.mubr.bf16.gmra.mrb[0].mxu0 %v4976
    %v6119 = vpop.f32.mrb[0].mxu0
    %v6120 = vadd.f32 %v6079, %v6119
    %v6121 = vpop.f32.mrb[0].mxu0
    %v6122 = vadd.f32 %v6081, %v6121
    %v6123 = vpop.f32.mrb[0].mxu0
    %v6124 = vpop.f32.mrb[0].mxu0
    %6125 = vdwg.mxu0
    %6126 = vmatprep.subr.bf16.mxu0 %v3389
    %6127 = vmatpush1.bf16.msra.mxu0 %v3388
    %6128 = vmatprep.subr.bf16.mxu0 %v3405
    %6129 = vmatpush1.bf16.msra.mxu0 %v3404
    %6130 = vmatprep.subr.bf16.mxu0 %v3421
    %6131 = vmatpush1.bf16.msra.mxu0 %v3420
    %6132 = vmatprep.subr.bf16.mxu0 %v3437
    %6133 = vmatpush1.bf16.msra.mxu0 %v3436
    %6134 = vmatprep.subr.bf16.mxu0 %v3453
    %6135 = vmatpush1.bf16.msra.mxu0 %v3452
    %6136 = vmatprep.subr.bf16.mxu0 %v3469
    %6137 = vmatpush1.bf16.msra.mxu0 %v3468
    %6138 = vmatprep.subr.bf16.mxu0 %v3485
    %6139 = vmatpush1.bf16.msra.mxu0 %v3484
    %6140 = vmatprep.subr.bf16.mxu0 %v3501
    %6141 = vmatpush1.bf16.msra.mxu0 %v3500
    %6142 = vmatprep.subr.bf16.mxu0 %v3517
    %6143 = vmatpush1.bf16.msra.mxu0 %v3516
    %6144 = vmatprep.subr.bf16.mxu0 %v3533
    %6145 = vmatpush1.bf16.msra.mxu0 %v3532
    %6146 = vmatprep.subr.bf16.mxu0 %v3549
    %6147 = vmatpush1.bf16.msra.mxu0 %v3548
    %6148 = vmatprep.subr.bf16.mxu0 %v3565
    %6149 = vmatpush1.bf16.msra.mxu0 %v3564
    %6150 = vmatprep.subr.bf16.mxu0 %v3581
    %6151 = vmatpush1.bf16.msra.mxu0 %v3580
    %6152 = vmatprep.subr.bf16.mxu0 %v3597
    %6153 = vmatpush1.bf16.msra.mxu0 %v3596
    %6154 = vmatprep.subr.bf16.mxu0 %v3613
    %6155 = vmatpush1.bf16.msra.mxu0 %v3612
    %6156 = vmatprep.subr.bf16.mxu0 %v3629
    %6157 = vmatpush1.bf16.msra.mxu0 %v3628
    %6158 = vmatprep.mubr.bf16.mxu0 %v957
    %6159 = vmatmul.mubr.bf16.gmra.mrb[0].mxu0 %v943
    %v6160 = vpop.f32.mrb[0].mxu0
    %v6161 = vadd.f32 %v898, %v6160
    %v6162 = vpop.f32.mrb[0].mxu0
    %v6163 = vadd.f32 %v902, %v6162
    %v6164 = vpop.f32.mrb[0].mxu0
    %v6165 = vpop.f32.mrb[0].mxu0
    %6166 = vdwg.mxu0
    %6167 = vmatprep.subr.bf16.mxu0 %v3645
    %6168 = vmatpush1.bf16.msra.mxu0 %v3644
    %6169 = vmatprep.subr.bf16.mxu0 %v3661
    %6170 = vmatpush1.bf16.msra.mxu0 %v3660
    %6171 = vmatprep.subr.bf16.mxu0 %v3677
    %6172 = vmatpush1.bf16.msra.mxu0 %v3676
    %6173 = vmatprep.subr.bf16.mxu0 %v3693
    %6174 = vmatpush1.bf16.msra.mxu0 %v3692
    %6175 = vmatprep.subr.bf16.mxu0 %v3709
    %6176 = vmatpush1.bf16.msra.mxu0 %v3708
    %6177 = vmatprep.subr.bf16.mxu0 %v3725
    %6178 = vmatpush1.bf16.msra.mxu0 %v3724
    %6179 = vmatprep.subr.bf16.mxu0 %v3741
    %6180 = vmatpush1.bf16.msra.mxu0 %v3740
    %6181 = vmatprep.subr.bf16.mxu0 %v3757
    %6182 = vmatpush1.bf16.msra.mxu0 %v3756
    %6183 = vmatprep.subr.bf16.mxu0 %v3773
    %6184 = vmatpush1.bf16.msra.mxu0 %v3772
    %6185 = vmatprep.subr.bf16.mxu0 %v3789
    %6186 = vmatpush1.bf16.msra.mxu0 %v3788
    %6187 = vmatprep.subr.bf16.mxu0 %v3805
    %6188 = vmatpush1.bf16.msra.mxu0 %v3804
    %6189 = vmatprep.subr.bf16.mxu0 %v3821
    %6190 = vmatpush1.bf16.msra.mxu0 %v3820
    %6191 = vmatprep.subr.bf16.mxu0 %v3837
    %6192 = vmatpush1.bf16.msra.mxu0 %v3836
    %6193 = vmatprep.subr.bf16.mxu0 %v3853
    %6194 = vmatpush1.bf16.msra.mxu0 %v3852
    %6195 = vmatprep.subr.bf16.mxu0 %v3869
    %6196 = vmatpush1.bf16.msra.mxu0 %v3868
    %6197 = vmatprep.subr.bf16.mxu0 %v3885
    %6198 = vmatpush1.bf16.msra.mxu0 %v3884
    %6199 = vmatprep.mubr.bf16.mxu0 %v967
    %6200 = vmatmul.mubr.bf16.gmra.mrb[0].mxu0 %v965
    %v6201 = vpop.f32.mrb[0].mxu0
    %v6202 = vadd.f32 %v6161, %v6201
    %v6203 = vpop.f32.mrb[0].mxu0
    %v6204 = vadd.f32 %v6163, %v6203
    %v6205 = vpop.f32.mrb[0].mxu0
    %v6206 = vpop.f32.mrb[0].mxu0
    %6207 = vdwg.mxu0
    %6208 = vmatprep.subr.bf16.mxu0 %v3901
    %6209 = vmatpush1.bf16.msra.mxu0 %v3900
    %6210 = vmatprep.subr.bf16.mxu0 %v3917
    %6211 = vmatpush1.bf16.msra.mxu0 %v3916
    %6212 = vmatprep.subr.bf16.mxu0 %v3933
    %6213 = vmatpush1.bf16.msra.mxu0 %v3932
    %6214 = vmatprep.subr.bf16.mxu0 %v3949
    %6215 = vmatpush1.bf16.msra.mxu0 %v3948
    %6216 = vmatprep.subr.bf16.mxu0 %v3965
    %6217 = vmatpush1.bf16.msra.mxu0 %v3964
    %6218 = vmatprep.subr.bf16.mxu0 %v3981
    %6219 = vmatpush1.bf16.msra.mxu0 %v3980
    %6220 = vmatprep.subr.bf16.mxu0 %v3997
    %6221 = vmatpush1.bf16.msra.mxu0 %v3996
    %6222 = vmatprep.subr.bf16.mxu0 %v4013
    %6223 = vmatpush1.bf16.msra.mxu0 %v4012
    %6224 = vmatprep.subr.bf16.mxu0 %v4029
    %6225 = vmatpush1.bf16.msra.mxu0 %v4028
    %6226 = vmatprep.subr.bf16.mxu0 %v4045
    %6227 = vmatpush1.bf16.msra.mxu0 %v4044
    %6228 = vmatprep.subr.bf16.mxu0 %v4061
    %6229 = vmatpush1.bf16.msra.mxu0 %v4060
    %6230 = vmatprep.subr.bf16.mxu0 %v4077
    %6231 = vmatpush1.bf16.msra.mxu0 %v4076
    %6232 = vmatprep.subr.bf16.mxu0 %v4093
    %6233 = vmatpush1.bf16.msra.mxu0 %v4092
    %6234 = vmatprep.subr.bf16.mxu0 %v4109
    %6235 = vmatpush1.bf16.msra.mxu0 %v4108
    %6236 = vmatprep.subr.bf16.mxu0 %v4125
    %6237 = vmatpush1.bf16.msra.mxu0 %v4124
    %6238 = vmatprep.subr.bf16.mxu0 %v4141
    %6239 = vmatpush1.bf16.msra.mxu0 %v4140
    %6240 = vmatprep.mubr.bf16.mxu0 %v964
    %6241 = vmatmul.mubr.bf16.gmra.mrb[0].mxu0 %v950
    %v6242 = vpop.f32.mrb[0].mxu0
    %v6243 = vadd.f32 %v6202, %v6242
    %v6244 = vpop.f32.mrb[0].mxu0
    %v6245 = vadd.f32 %v6204, %v6244
    %v6246 = vpop.f32.mrb[0].mxu0
    %v6247 = vpop.f32.mrb[0].mxu0
    %6248 = vdwg.mxu0
    %6249 = vmatprep.subr.bf16.mxu0 %v4157
    %6250 = vmatpush1.bf16.msra.mxu0 %v4156
    %6251 = vmatprep.subr.bf16.mxu0 %v4173
    %6252 = vmatpush1.bf16.msra.mxu0 %v4172
    %6253 = vmatprep.subr.bf16.mxu0 0
    %6254 = vmatpush1.bf16.msra.mxu0 0
    %6255 = vmatprep.subr.bf16.mxu0 0
    %6256 = vmatpush1.bf16.msra.mxu0 0
    %6257 = vmatprep.subr.bf16.mxu0 0
    %6258 = vmatpush1.bf16.msra.mxu0 0
    %6259 = vmatprep.subr.bf16.mxu0 0
    %6260 = vmatpush1.bf16.msra.mxu0 0
    %6261 = vmatprep.subr.bf16.mxu0 0
    %6262 = vmatpush1.bf16.msra.mxu0 0
    %6263 = vmatprep.subr.bf16.mxu0 0
    %6264 = vmatpush1.bf16.msra.mxu0 0
    %6265 = vmatprep.subr.bf16.mxu0 0
    %6266 = vmatpush1.bf16.msra.mxu0 0
    %6267 = vmatprep.subr.bf16.mxu0 0
    %6268 = vmatpush1.bf16.msra.mxu0 0
    %6269 = vmatprep.subr.bf16.mxu0 0
    %6270 = vmatpush1.bf16.msra.mxu0 0
    %6271 = vmatprep.subr.bf16.mxu0 0
    %6272 = vmatpush1.bf16.msra.mxu0 0
    %6273 = vmatprep.subr.bf16.mxu0 0
    %6274 = vmatpush1.bf16.msra.mxu0 0
    %6275 = vmatprep.subr.bf16.mxu0 0
    %6276 = vmatpush1.bf16.msra.mxu0 0
    %6277 = vmatprep.subr.bf16.mxu0 0
    %6278 = vmatpush1.bf16.msra.mxu0 0
    %6279 = vmatprep.subr.bf16.mxu0 0
    %6280 = vmatpush1.bf16.msra.mxu0 0
    %6281 = vmatprep.mubr.bf16.mxu0 0
    %6282 = vmatmul.mubr.bf16.gmra.mrb[0].mxu0 %v4976
    %v6283 = vpop.f32.mrb[0].mxu0
    %v6284 = vadd.f32 %v6243, %v6283
    %v6285 = vpop.f32.mrb[0].mxu0
    %v6286 = vadd.f32 %v6245, %v6285
    %v6287 = vpop.f32.mrb[0].mxu0
    %v6288 = vpop.f32.mrb[0].mxu0
    %6289 = vdwg.mxu0
    %v6290 = vmax.f32 %v5136, 0.0
    %v6291 = vmax.f32 %v5138, 0.0
    %v6292 = vmax.f32 %v5300, 0.0
    %v6293 = vmax.f32 %v5302, 0.0
    %v6294 = vmax.f32 %v5464, 0.0
    %v6295 = vmax.f32 %v5466, 0.0
    %v6296 = vmax.f32 %v5628, 0.0
    %v6297 = vmax.f32 %v5630, 0.0
    %v6298 = vmax.f32 %v5792, 0.0
    %v6299 = vmax.f32 %v5794, 0.0
    %v6300 = vmax.f32 %v5956, 0.0
    %v6301 = vmax.f32 %v5958, 0.0
    %v6302 = vmax.f32 %v6120, 0.0
    %v6303 = vmax.f32 %v6122, 0.0
    %v6304 = vmax.f32 %v6284, 0.0
    %v6305 = vmax.f32 %v6286, 0.0
    %v6306 = vpack.c.bf16 %v6290, %v6290
    %v6307 = vpack.c.bf16 %v6291, %v6291
    %v6308 = vpack.c.bf16 %v6292, %v6292
    %v6309 = vpack.c.bf16 %v6293, %v6293
    %v6310 = vpack.c.bf16 %v6294, %v6294
    %v6311 = vpack.c.bf16 %v6295, %v6295
    %v6312 = vpack.c.bf16 %v6296, %v6296
    %v6313 = vpack.c.bf16 %v6297, %v6297
    %v6314 = vpack.c.bf16 %v6298, %v6298
    %v6315 = vpack.c.bf16 %v6299, %v6299
    %v6316 = vpack.c.bf16 %v6300, %v6300
    %v6317 = vpack.c.bf16 %v6301, %v6301
    %v6318 = vpack.c.bf16 %v6302, %v6302
    %v6319 = vpack.c.bf16 %v6303, %v6303
    %v6320 = vpack.c.bf16 %v6304, %v6304
    %v6321 = vpack.c.bf16 %v6305, %v6305
    %v6322 = vld [vmem:[%s4] sm:$0xff]
    %v6323 = vld [vmem:[%s4 + $0x8] sm:$0xff]
    %v6324 = vld [vmem:[%s4 + $0x10] sm:$0xff]
    %v6325 = vld [vmem:[%s4 + $0x18] sm:$0xff]
    %v6326 = vld [vmem:[%s4 + $0x20] sm:$0xff]
    %v6327 = vld [vmem:[%s4 + $0x28] sm:$0xff]
    %v6328 = vld [vmem:[%s4 + $0x30] sm:$0xff]
    %v6329 = vld [vmem:[%s4 + $0x38] sm:$0xff]
    %v6330 = vld [vmem:[%s4 + $0x40] sm:$0xff]
    %v6331 = vld [vmem:[%s4 + $0x48] sm:$0xff]
    %v6332 = vld [vmem:[%s4 + $0x50] sm:$0xff]
    %v6333 = vld [vmem:[%s4 + $0x58] sm:$0xff]
    %v6334 = vld [vmem:[%s4 + $0x60] sm:$0xff]
    %v6335 = vld [vmem:[%s4 + $0x68] sm:$0xff]
    %v6336 = vld [vmem:[%s4 + $0x70] sm:$0xff]
    %v6337 = vld [vmem:[%s4 + $0x78] sm:$0xff]
    %v6338 = vld [vmem:[%s4 + $0x80] sm:$0xff]
    %v6339 = vld [vmem:[%s4 + $0x88] sm:$0xff]
    %v6340 = vld [vmem:[%s4 + $0x90] sm:$0xff]
    %v6341 = vld [vmem:[%s4 + $0x98] sm:$0xff]
    %v6342 = vld [vmem:[%s4 + $0xa0] sm:$0xff]
    %v6343 = vld [vmem:[%s4 + $0xa8] sm:$0xff]
    %v6344 = vld [vmem:[%s4 + $0xb0] sm:$0xff]
    %v6345 = vld [vmem:[%s4 + $0xb8] sm:$0xff]
    %v6346 = vld [vmem:[%s4 + $0xc0] sm:$0xff]
    %v6347 = vld [vmem:[%s4 + $0xc8] sm:$0xff]
    %v6348 = vld [vmem:[%s4 + $0xd0] sm:$0xff]
    %v6349 = vld [vmem:[%s4 + $0xd8] sm:$0xff]
    %v6350 = vld [vmem:[%s4 + $0xe0] sm:$0xff]
    %v6351 = vld [vmem:[%s4 + $0xe8] sm:$0xff]
    %v6352 = vld [vmem:[%s4 + $0xf0] sm:$0xff]
    %v6353 = vld [vmem:[%s4 + $0xf8] sm:$0xff]
    %v6354 = vld [vmem:[%s4 + $0x100] sm:$0xff]
    %v6355 = vld [vmem:[%s4 + $0x108] sm:$0xff]
    %v6356 = vld [vmem:[%s4 + $0x110] sm:$0xff]
    %v6357 = vld [vmem:[%s4 + $0x118] sm:$0xff]
    %v6358 = vld [vmem:[%s4 + $0x120] sm:$0xff]
    %v6359 = vld [vmem:[%s4 + $0x128] sm:$0xff]
    %v6360 = vld [vmem:[%s4 + $0x130] sm:$0xff]
    %v6361 = vld [vmem:[%s4 + $0x138] sm:$0xff]
    %v6362 = vld [vmem:[%s4 + $0x140] sm:$0xff]
    %v6363 = vld [vmem:[%s4 + $0x148] sm:$0xff]
    %v6364 = vld [vmem:[%s4 + $0x150] sm:$0xff]
    %v6365 = vld [vmem:[%s4 + $0x158] sm:$0xff]
    %v6366 = vld [vmem:[%s4 + $0x160] sm:$0xff]
    %v6367 = vld [vmem:[%s4 + $0x168] sm:$0xff]
    %v6368 = vld [vmem:[%s4 + $0x170] sm:$0xff]
    %v6369 = vld [vmem:[%s4 + $0x178] sm:$0xff]
    %v6370 = vld [vmem:[%s4 + $0x180] sm:$0xff]
    %v6371 = vld [vmem:[%s4 + $0x188] sm:$0xff]
    %v6372 = vld [vmem:[%s4 + $0x190] sm:$0xff]
    %v6373 = vld [vmem:[%s4 + $0x198] sm:$0xff]
    %v6374 = vld [vmem:[%s4 + $0x1a0] sm:$0xff]
    %v6375 = vld [vmem:[%s4 + $0x1a8] sm:$0xff]
    %v6376 = vld [vmem:[%s4 + $0x1b0] sm:$0xff]
    %v6377 = vld [vmem:[%s4 + $0x1b8] sm:$0xff]
    %v6378 = vld [vmem:[%s4 + $0x1c0] sm:$0xff]
    %v6379 = vld [vmem:[%s4 + $0x1c8] sm:$0xff]
    %v6380 = vld [vmem:[%s4 + $0x1d0] sm:$0xff]
    %v6381 = vld [vmem:[%s4 + $0x1d8] sm:$0xff]
    %v6382 = vld [vmem:[%s4 + $0x1e0] sm:$0xff]
    %v6383 = vld [vmem:[%s4 + $0x1e8] sm:$0xff]
    %v6384 = vld [vmem:[%s4 + $0x1f0] sm:$0xff]
    %v6385 = vld [vmem:[%s4 + $0x1f8] sm:$0xff]
    %v6386 = vld [vmem:[%s4 + $0x200] sm:$0xff]
    %v6387 = vld [vmem:[%s4 + $0x208] sm:$0xff]
    %v6388 = vld [vmem:[%s4 + $0x210] sm:$0xff]
    %v6389 = vld [vmem:[%s4 + $0x218] sm:$0xff]
    %v6390 = vld [vmem:[%s4 + $0x220] sm:$0xff]
    %v6391 = vld [vmem:[%s4 + $0x228] sm:$0xff]
    %v6392 = vld [vmem:[%s4 + $0x230] sm:$0xff]
    %v6393 = vld [vmem:[%s4 + $0x238] sm:$0xff]
    %v6394 = vld [vmem:[%s4 + $0x240] sm:$0xff]
    %v6395 = vld [vmem:[%s4 + $0x248] sm:$0xff]
    %v6396 = vld [vmem:[%s4 + $0x250] sm:$0xff]
    %v6397 = vld [vmem:[%s4 + $0x258] sm:$0xff]
    %v6398 = vld [vmem:[%s4 + $0x260] sm:$0xff]
    %v6399 = vld [vmem:[%s4 + $0x268] sm:$0xff]
    %v6400 = vld [vmem:[%s4 + $0x270] sm:$0xff]
    %v6401 = vld [vmem:[%s4 + $0x278] sm:$0xff]
    %v6402 = vld [vmem:[%s4 + $0x280] sm:$0xff]
    %v6403 = vld [vmem:[%s4 + $0x288] sm:$0xff]
    %v6404 = vld [vmem:[%s4 + $0x290] sm:$0xff]
    %v6405 = vld [vmem:[%s4 + $0x298] sm:$0xff]
    %v6406 = vld [vmem:[%s4 + $0x2a0] sm:$0xff]
    %v6407 = vld [vmem:[%s4 + $0x2a8] sm:$0xff]
    %v6408 = vld [vmem:[%s4 + $0x2b0] sm:$0xff]
    %v6409 = vld [vmem:[%s4 + $0x2b8] sm:$0xff]
    %v6410 = vld [vmem:[%s4 + $0x2c0] sm:$0xff]
    %v6411 = vld [vmem:[%s4 + $0x2c8] sm:$0xff]
    %v6412 = vld [vmem:[%s4 + $0x2d0] sm:$0xff]
    %v6413 = vld [vmem:[%s4 + $0x2d8] sm:$0xff]
    %v6414 = vld [vmem:[%s4 + $0x2e0] sm:$0xff]
    %v6415 = vld [vmem:[%s4 + $0x2e8] sm:$0xff]
    %v6416 = vld [vmem:[%s4 + $0x2f0] sm:$0xff]
    %v6417 = vld [vmem:[%s4 + $0x2f8] sm:$0xff]
    %v6418 = vld [vmem:[%s4 + $0x300] sm:$0xff]
    %v6419 = vld [vmem:[%s4 + $0x308] sm:$0xff]
    %v6420 = vld [vmem:[%s4 + $0x310] sm:$0xff]
    %v6421 = vld [vmem:[%s4 + $0x318] sm:$0xff]
    %v6422 = vld [vmem:[%s4 + $0x320] sm:$0xff]
    %v6423 = vld [vmem:[%s4 + $0x328] sm:$0xff]
    %v6424 = vld [vmem:[%s4 + $0x330] sm:$0xff]
    %v6425 = vld [vmem:[%s4 + $0x338] sm:$0xff]
    %v6426 = vld [vmem:[%s4 + $0x340] sm:$0xff]
    %v6427 = vld [vmem:[%s4 + $0x348] sm:$0xff]
    %v6428 = vld [vmem:[%s4 + $0x350] sm:$0xff]
    %v6429 = vld [vmem:[%s4 + $0x358] sm:$0xff]
    %v6430 = vld [vmem:[%s4 + $0x360] sm:$0xff]
    %v6431 = vld [vmem:[%s4 + $0x368] sm:$0xff]
    %v6432 = vld [vmem:[%s4 + $0x370] sm:$0xff]
    %v6433 = vld [vmem:[%s4 + $0x378] sm:$0xff]
    %v6434 = vld [vmem:[%s4 + $0x380] sm:$0xff]
    %v6435 = vld [vmem:[%s4 + $0x388] sm:$0xff]
    %v6436 = vld [vmem:[%s4 + $0x390] sm:$0xff]
    %v6437 = vld [vmem:[%s4 + $0x398] sm:$0xff]
    %v6438 = vld [vmem:[%s4 + $0x3a0] sm:$0xff]
    %v6439 = vld [vmem:[%s4 + $0x3a8] sm:$0xff]
    %v6440 = vld [vmem:[%s4 + $0x3b0] sm:$0xff]
    %v6441 = vld [vmem:[%s4 + $0x3b8] sm:$0xff]
    %v6442 = vld [vmem:[%s4 + $0x3c0] sm:$0xff]
    %v6443 = vld [vmem:[%s4 + $0x3c8] sm:$0xff]
    %v6444 = vld [vmem:[%s4 + $0x3d0] sm:$0xff]
    %v6445 = vld [vmem:[%s4 + $0x3d8] sm:$0xff]
    %v6446 = vld [vmem:[%s4 + $0x3e0] sm:$0xff]
    %v6447 = vld [vmem:[%s4 + $0x3e8] sm:$0xff]
    %v6448 = vld [vmem:[%s4 + $0x3f0] sm:$0xff]
    %v6449 = vld [vmem:[%s4 + $0x3f8] sm:$0xff]
    %v6450 = vld [vmem:[%s4 + $0x400] sm:$0xff]
    %v6451 = vld [vmem:[%s4 + $0x408] sm:$0xff]
    %v6452 = vld [vmem:[%s4 + $0x410] sm:$0xff]
    %v6453 = vld [vmem:[%s4 + $0x418] sm:$0xff]
    %v6454 = vld [vmem:[%s4 + $0x420] sm:$0xff]
    %v6455 = vld [vmem:[%s4 + $0x428] sm:$0xff]
    %v6456 = vld [vmem:[%s4 + $0x430] sm:$0xff]
    %v6457 = vld [vmem:[%s4 + $0x438] sm:$0xff]
    %v6458 = vld [vmem:[%s4 + $0x440] sm:$0xff]
    %v6459 = vld [vmem:[%s4 + $0x448] sm:$0xff]
    %v6460 = vld [vmem:[%s4 + $0x450] sm:$0xff]
    %v6461 = vld [vmem:[%s4 + $0x458] sm:$0xff]
    %v6462 = vld [vmem:[%s4 + $0x460] sm:$0xff]
    %v6463 = vld [vmem:[%s4 + $0x468] sm:$0xff]
    %v6464 = vld [vmem:[%s4 + $0x470] sm:$0xff]
    %v6465 = vld [vmem:[%s4 + $0x478] sm:$0xff]
    %v6466 = vld [vmem:[%s4 + $0x480] sm:$0xff]
    %v6467 = vld [vmem:[%s4 + $0x488] sm:$0xff]
    %v6468 = vld [vmem:[%s4 + $0x490] sm:$0xff]
    %v6469 = vld [vmem:[%s4 + $0x498] sm:$0xff]
    %v6470 = vld [vmem:[%s4 + $0x4a0] sm:$0xff]
    %v6471 = vld [vmem:[%s4 + $0x4a8] sm:$0xff]
    %v6472 = vld [vmem:[%s4 + $0x4b0] sm:$0xff]
    %v6473 = vld [vmem:[%s4 + $0x4b8] sm:$0xff]
    %v6474 = vld [vmem:[%s4 + $0x4c0] sm:$0xff]
    %v6475 = vld [vmem:[%s4 + $0x4c8] sm:$0xff]
    %v6476 = vld [vmem:[%s4 + $0x4d0] sm:$0xff]
    %v6477 = vld [vmem:[%s4 + $0x4d8] sm:$0xff]
    %v6478 = vld [vmem:[%s4 + $0x4e0] sm:$0xff]
    %v6479 = vld [vmem:[%s4 + $0x4e8] sm:$0xff]
    %v6480 = vld [vmem:[%s4 + $0x4f0] sm:$0xff]
    %v6481 = vld [vmem:[%s4 + $0x4f8] sm:$0xff]
    %v6482 = vld [vmem:[%s4 + $0x500] sm:$0xff]
    %v6483 = vld [vmem:[%s4 + $0x508] sm:$0xff]
    %v6484 = vld [vmem:[%s4 + $0x510] sm:$0xff]
    %v6485 = vld [vmem:[%s4 + $0x518] sm:$0xff]
    %v6486 = vld [vmem:[%s4 + $0x520] sm:$0xff]
    %v6487 = vld [vmem:[%s4 + $0x528] sm:$0xff]
    %v6488 = vld [vmem:[%s4 + $0x530] sm:$0xff]
    %v6489 = vld [vmem:[%s4 + $0x538] sm:$0xff]
    %v6490 = vld [vmem:[%s4 + $0x540] sm:$0xff]
    %v6491 = vld [vmem:[%s4 + $0x548] sm:$0xff]
    %v6492 = vld [vmem:[%s4 + $0x550] sm:$0xff]
    %v6493 = vld [vmem:[%s4 + $0x558] sm:$0xff]
    %v6494 = vld [vmem:[%s4 + $0x560] sm:$0xff]
    %v6495 = vld [vmem:[%s4 + $0x568] sm:$0xff]
    %v6496 = vld [vmem:[%s4 + $0x570] sm:$0xff]
    %v6497 = vld [vmem:[%s4 + $0x578] sm:$0xff]
    %v6498 = vld [vmem:[%s4 + $0x580] sm:$0xff]
    %v6499 = vld [vmem:[%s4 + $0x588] sm:$0xff]
    %v6500 = vld [vmem:[%s4 + $0x590] sm:$0xff]
    %v6501 = vld [vmem:[%s4 + $0x598] sm:$0xff]
    %v6502 = vld [vmem:[%s4 + $0x5a0] sm:$0xff]
    %v6503 = vld [vmem:[%s4 + $0x5a8] sm:$0xff]
    %v6504 = vld [vmem:[%s4 + $0x5b0] sm:$0xff]
    %v6505 = vld [vmem:[%s4 + $0x5b8] sm:$0xff]
    %v6506 = vld [vmem:[%s4 + $0x5c0] sm:$0xff]
    %v6507 = vld [vmem:[%s4 + $0x5c8] sm:$0xff]
    %v6508 = vld [vmem:[%s4 + $0x5d0] sm:$0xff]
    %v6509 = vld [vmem:[%s4 + $0x5d8] sm:$0xff]
    %v6510 = vld [vmem:[%s4 + $0x5e0] sm:$0xff]
    %v6511 = vld [vmem:[%s4 + $0x5e8] sm:$0xff]
    %v6512 = vld [vmem:[%s4 + $0x5f0] sm:$0xff]
    %v6513 = vld [vmem:[%s4 + $0x5f8] sm:$0xff]
    %v6514 = vld [vmem:[%s4 + $0x600] sm:$0xff]
    %v6515 = vld [vmem:[%s4 + $0x608] sm:$0xff]
    %v6516 = vld [vmem:[%s4 + $0x610] sm:$0xff]
    %v6517 = vld [vmem:[%s4 + $0x618] sm:$0xff]
    %v6518 = vld [vmem:[%s4 + $0x620] sm:$0xff]
    %v6519 = vld [vmem:[%s4 + $0x628] sm:$0xff]
    %v6520 = vld [vmem:[%s4 + $0x630] sm:$0xff]
    %v6521 = vld [vmem:[%s4 + $0x638] sm:$0xff]
    %v6522 = vld [vmem:[%s4 + $0x640] sm:$0xff]
    %v6523 = vld [vmem:[%s4 + $0x648] sm:$0xff]
    %v6524 = vld [vmem:[%s4 + $0x650] sm:$0xff]
    %v6525 = vld [vmem:[%s4 + $0x658] sm:$0xff]
    %v6526 = vld [vmem:[%s4 + $0x660] sm:$0xff]
    %v6527 = vld [vmem:[%s4 + $0x668] sm:$0xff]
    %v6528 = vld [vmem:[%s4 + $0x670] sm:$0xff]
    %v6529 = vld [vmem:[%s4 + $0x678] sm:$0xff]
    %v6530 = vld [vmem:[%s4 + $0x680] sm:$0xff]
    %v6531 = vld [vmem:[%s4 + $0x688] sm:$0xff]
    %v6532 = vld [vmem:[%s4 + $0x690] sm:$0xff]
    %v6533 = vld [vmem:[%s4 + $0x698] sm:$0xff]
    %v6534 = vld [vmem:[%s4 + $0x6a0] sm:$0xff]
    %v6535 = vld [vmem:[%s4 + $0x6a8] sm:$0xff]
    %v6536 = vld [vmem:[%s4 + $0x6b0] sm:$0xff]
    %v6537 = vld [vmem:[%s4 + $0x6b8] sm:$0xff]
    %v6538 = vld [vmem:[%s4 + $0x6c0] sm:$0xff]
    %v6539 = vld [vmem:[%s4 + $0x6c8] sm:$0xff]
    %v6540 = vld [vmem:[%s4 + $0x6d0] sm:$0xff]
    %v6541 = vld [vmem:[%s4 + $0x6d8] sm:$0xff]
    %v6542 = vld [vmem:[%s4 + $0x6e0] sm:$0xff]
    %v6543 = vld [vmem:[%s4 + $0x6e8] sm:$0xff]
    %v6544 = vld [vmem:[%s4 + $0x6f0] sm:$0xff]
    %v6545 = vld [vmem:[%s4 + $0x6f8] sm:$0xff]
    %v6546 = vld [vmem:[%s4 + $0x700] sm:$0xff]
    %v6547 = vld [vmem:[%s4 + $0x708] sm:$0xff]
    %v6548 = vld [vmem:[%s4 + $0x710] sm:$0xff]
    %v6549 = vld [vmem:[%s4 + $0x718] sm:$0xff]
    %v6550 = vld [vmem:[%s4 + $0x720] sm:$0xff]
    %v6551 = vld [vmem:[%s4 + $0x728] sm:$0xff]
    %v6552 = vld [vmem:[%s4 + $0x730] sm:$0xff]
    %v6553 = vld [vmem:[%s4 + $0x738] sm:$0xff]
    %v6554 = vld [vmem:[%s4 + $0x740] sm:$0xff]
    %v6555 = vld [vmem:[%s4 + $0x748] sm:$0xff]
    %v6556 = vld [vmem:[%s4 + $0x750] sm:$0xff]
    %v6557 = vld [vmem:[%s4 + $0x758] sm:$0xff]
    %v6558 = vld [vmem:[%s4 + $0x760] sm:$0xff]
    %v6559 = vld [vmem:[%s4 + $0x768] sm:$0xff]
    %v6560 = vld [vmem:[%s4 + $0x770] sm:$0xff]
    %v6561 = vld [vmem:[%s4 + $0x778] sm:$0xff]
    %v6562 = vld [vmem:[%s4 + $0x780] sm:$0xff]
    %v6563 = vld [vmem:[%s4 + $0x788] sm:$0xff]
    %v6564 = vld [vmem:[%s4 + $0x790] sm:$0xff]
    %v6565 = vld [vmem:[%s4 + $0x798] sm:$0xff]
    %v6566 = vld [vmem:[%s4 + $0x7a0] sm:$0xff]
    %v6567 = vld [vmem:[%s4 + $0x7a8] sm:$0xff]
    %v6568 = vld [vmem:[%s4 + $0x7b0] sm:$0xff]
    %v6569 = vld [vmem:[%s4 + $0x7b8] sm:$0xff]
    %v6570 = vld [vmem:[%s4 + $0x7c0] sm:$0xff]
    %v6571 = vld [vmem:[%s4 + $0x7c8] sm:$0xff]
    %v6572 = vld [vmem:[%s5] sm:$0x3]
    %v6574 = vlaneseq
    %v6575 = vshrl.u32 %v6574, 7
    %v6576 = vsub.s32 0, %v6575
    %v6577 = vrot.slane %v6572, %v6576
    %v6578 = vlaneseq
    %v6579 = vshrl.u32 %v6578, 7
    %v6580 = vsub.s32 1, %v6579
    %v6581 = vrot.slane %v6572, %v6580
    %v6834 = vunpack.c.l.b16 %v6322
    %v6835 = vunpack.c.h.b16 %v6322
    %v6836 = vunpack.c.l.b16 %v6323
    %v6837 = vunpack.c.h.b16 %v6323
    %v6838 = vunpack.c.l.b16 %v6324
    %v6839 = vunpack.c.h.b16 %v6324
    %v6840 = vunpack.c.l.b16 %v6325
    %v6841 = vunpack.c.h.b16 %v6325
    %v6842 = vunpack.c.l.b16 %v6326
    %v6843 = vunpack.c.h.b16 %v6326
    %v6844 = vunpack.c.l.b16 %v6327
    %v6845 = vunpack.c.h.b16 %v6327
    %v6846 = vunpack.c.l.b16 %v6328
    %v6847 = vunpack.c.h.b16 %v6328
    %v6848 = vunpack.c.l.b16 %v6329
    %v6849 = vunpack.c.h.b16 %v6329
    %v6850 = vunpack.c.l.b16 %v6330
    %v6851 = vunpack.c.h.b16 %v6330
    %v6852 = vunpack.c.l.b16 %v6331
    %v6853 = vunpack.c.h.b16 %v6331
    %v6854 = vunpack.c.l.b16 %v6332
    %v6855 = vunpack.c.h.b16 %v6332
    %v6856 = vunpack.c.l.b16 %v6333
    %v6857 = vunpack.c.h.b16 %v6333
    %v6858 = vunpack.c.l.b16 %v6334
    %v6859 = vunpack.c.h.b16 %v6334
    %v6860 = vunpack.c.l.b16 %v6335
    %v6861 = vunpack.c.h.b16 %v6335
    %v6862 = vunpack.c.l.b16 %v6336
    %v6863 = vunpack.c.h.b16 %v6336
    %v6864 = vunpack.c.l.b16 %v6337
    %v6865 = vunpack.c.h.b16 %v6337
    %v6866 = vunpack.c.l.b16 %v6338
    %v6867 = vunpack.c.h.b16 %v6338
    %v6868 = vunpack.c.l.b16 %v6339
    %v6869 = vunpack.c.h.b16 %v6339
    %v6870 = vunpack.c.l.b16 %v6340
    %v6871 = vunpack.c.h.b16 %v6340
    %v6872 = vunpack.c.l.b16 %v6341
    %v6873 = vunpack.c.h.b16 %v6341
    %v6874 = vunpack.c.l.b16 %v6342
    %v6875 = vunpack.c.h.b16 %v6342
    %v6876 = vunpack.c.l.b16 %v6343
    %v6877 = vunpack.c.h.b16 %v6343
    %v6878 = vunpack.c.l.b16 %v6344
    %v6879 = vunpack.c.h.b16 %v6344
    %v6880 = vunpack.c.l.b16 %v6345
    %v6881 = vunpack.c.h.b16 %v6345
    %v6882 = vunpack.c.l.b16 %v6346
    %v6883 = vunpack.c.h.b16 %v6346
    %v6884 = vunpack.c.l.b16 %v6347
    %v6885 = vunpack.c.h.b16 %v6347
    %v6886 = vunpack.c.l.b16 %v6348
    %v6887 = vunpack.c.h.b16 %v6348
    %v6888 = vunpack.c.l.b16 %v6349
    %v6889 = vunpack.c.h.b16 %v6349
    %v6890 = vunpack.c.l.b16 %v6350
    %v6891 = vunpack.c.h.b16 %v6350
    %v6892 = vunpack.c.l.b16 %v6351
    %v6893 = vunpack.c.h.b16 %v6351
    %v6894 = vunpack.c.l.b16 %v6352
    %v6895 = vunpack.c.h.b16 %v6352
    %v6896 = vunpack.c.l.b16 %v6353
    %v6897 = vunpack.c.h.b16 %v6353
    %v6898 = vunpack.c.l.b16 %v6354
    %v6899 = vunpack.c.h.b16 %v6354
    %v6900 = vunpack.c.l.b16 %v6355
    %v6901 = vunpack.c.h.b16 %v6355
    %v6902 = vunpack.c.l.b16 %v6356
    %v6903 = vunpack.c.h.b16 %v6356
    %v6904 = vunpack.c.l.b16 %v6357
    %v6905 = vunpack.c.h.b16 %v6357
    %v6906 = vunpack.c.l.b16 %v6358
    %v6907 = vunpack.c.h.b16 %v6358
    %v6908 = vunpack.c.l.b16 %v6359
    %v6909 = vunpack.c.h.b16 %v6359
    %v6910 = vunpack.c.l.b16 %v6360
    %v6911 = vunpack.c.h.b16 %v6360
    %v6912 = vunpack.c.l.b16 %v6361
    %v6913 = vunpack.c.h.b16 %v6361
    %v6914 = vunpack.c.l.b16 %v6362
    %v6915 = vunpack.c.h.b16 %v6362
    %v6916 = vunpack.c.l.b16 %v6363
    %v6917 = vunpack.c.h.b16 %v6363
    %v6918 = vunpack.c.l.b16 %v6364
    %v6919 = vunpack.c.h.b16 %v6364
    %v6920 = vunpack.c.l.b16 %v6365
    %v6921 = vunpack.c.h.b16 %v6365
    %v6922 = vunpack.c.l.b16 %v6366
    %v6923 = vunpack.c.h.b16 %v6366
    %v6924 = vunpack.c.l.b16 %v6367
    %v6925 = vunpack.c.h.b16 %v6367
    %v6926 = vunpack.c.l.b16 %v6368
    %v6927 = vunpack.c.h.b16 %v6368
    %v6928 = vunpack.c.l.b16 %v6369
    %v6929 = vunpack.c.h.b16 %v6369
    %v6930 = vunpack.c.l.b16 %v6370
    %v6931 = vunpack.c.h.b16 %v6370
    %v6932 = vunpack.c.l.b16 %v6371
    %v6933 = vunpack.c.h.b16 %v6371
    %v6934 = vunpack.c.l.b16 %v6372
    %v6935 = vunpack.c.h.b16 %v6372
    %v6936 = vunpack.c.l.b16 %v6373
    %v6937 = vunpack.c.h.b16 %v6373
    %v6938 = vunpack.c.l.b16 %v6374
    %v6939 = vunpack.c.h.b16 %v6374
    %v6940 = vunpack.c.l.b16 %v6375
    %v6941 = vunpack.c.h.b16 %v6375
    %v6942 = vunpack.c.l.b16 %v6376
    %v6943 = vunpack.c.h.b16 %v6376
    %v6944 = vunpack.c.l.b16 %v6377
    %v6945 = vunpack.c.h.b16 %v6377
    %v6946 = vunpack.c.l.b16 %v6378
    %v6947 = vunpack.c.h.b16 %v6378
    %v6948 = vunpack.c.l.b16 %v6379
    %v6949 = vunpack.c.h.b16 %v6379
    %v6950 = vunpack.c.l.b16 %v6380
    %v6951 = vunpack.c.h.b16 %v6380
    %v6952 = vunpack.c.l.b16 %v6381
    %v6953 = vunpack.c.h.b16 %v6381
    %v6954 = vunpack.c.l.b16 %v6382
    %v6955 = vunpack.c.h.b16 %v6382
    %v6956 = vunpack.c.l.b16 %v6383
    %v6957 = vunpack.c.h.b16 %v6383
    %v6958 = vunpack.c.l.b16 %v6384
    %v6959 = vunpack.c.h.b16 %v6384
    %v6960 = vunpack.c.l.b16 %v6385
    %v6961 = vunpack.c.h.b16 %v6385
    %v6962 = vunpack.c.l.b16 %v6386
    %v6963 = vunpack.c.h.b16 %v6386
    %v6964 = vunpack.c.l.b16 %v6387
    %v6965 = vunpack.c.h.b16 %v6387
    %v6966 = vunpack.c.l.b16 %v6388
    %v6967 = vunpack.c.h.b16 %v6388
    %v6968 = vunpack.c.l.b16 %v6389
    %v6969 = vunpack.c.h.b16 %v6389
    %v6970 = vunpack.c.l.b16 %v6390
    %v6971 = vunpack.c.h.b16 %v6390
    %v6972 = vunpack.c.l.b16 %v6391
    %v6973 = vunpack.c.h.b16 %v6391
    %v6974 = vunpack.c.l.b16 %v6392
    %v6975 = vunpack.c.h.b16 %v6392
    %v6976 = vunpack.c.l.b16 %v6393
    %v6977 = vunpack.c.h.b16 %v6393
    %v6978 = vunpack.c.l.b16 %v6394
    %v6979 = vunpack.c.h.b16 %v6394
    %v6980 = vunpack.c.l.b16 %v6395
    %v6981 = vunpack.c.h.b16 %v6395
    %v6982 = vunpack.c.l.b16 %v6396
    %v6983 = vunpack.c.h.b16 %v6396
    %v6984 = vunpack.c.l.b16 %v6397
    %v6985 = vunpack.c.h.b16 %v6397
    %v6986 = vunpack.c.l.b16 %v6398
    %v6987 = vunpack.c.h.b16 %v6398
    %v6988 = vunpack.c.l.b16 %v6399
    %v6989 = vunpack.c.h.b16 %v6399
    %v6990 = vunpack.c.l.b16 %v6400
    %v6991 = vunpack.c.h.b16 %v6400
    %v6992 = vunpack.c.l.b16 %v6401
    %v6993 = vunpack.c.h.b16 %v6401
    %v6994 = vunpack.c.l.b16 %v6402
    %v6995 = vunpack.c.h.b16 %v6402
    %v6996 = vunpack.c.l.b16 %v6403
    %v6997 = vunpack.c.h.b16 %v6403
    %v6998 = vunpack.c.l.b16 %v6404
    %v6999 = vunpack.c.h.b16 %v6404
    %v7000 = vunpack.c.l.b16 %v6405
    %v7001 = vunpack.c.h.b16 %v6405
    %v7002 = vunpack.c.l.b16 %v6406
    %v7003 = vunpack.c.h.b16 %v6406
    %v7004 = vunpack.c.l.b16 %v6407
    %v7005 = vunpack.c.h.b16 %v6407
    %v7006 = vunpack.c.l.b16 %v6408
    %v7007 = vunpack.c.h.b16 %v6408
    %v7008 = vunpack.c.l.b16 %v6409
    %v7009 = vunpack.c.h.b16 %v6409
    %v7010 = vunpack.c.l.b16 %v6410
    %v7011 = vunpack.c.h.b16 %v6410
    %v7012 = vunpack.c.l.b16 %v6411
    %v7013 = vunpack.c.h.b16 %v6411
    %v7014 = vunpack.c.l.b16 %v6412
    %v7015 = vunpack.c.h.b16 %v6412
    %v7016 = vunpack.c.l.b16 %v6413
    %v7017 = vunpack.c.h.b16 %v6413
    %v7018 = vunpack.c.l.b16 %v6414
    %v7019 = vunpack.c.h.b16 %v6414
    %v7020 = vunpack.c.l.b16 %v6415
    %v7021 = vunpack.c.h.b16 %v6415
    %v7022 = vunpack.c.l.b16 %v6416
    %v7023 = vunpack.c.h.b16 %v6416
    %v7024 = vunpack.c.l.b16 %v6417
    %v7025 = vunpack.c.h.b16 %v6417
    %v7026 = vunpack.c.l.b16 %v6418
    %v7027 = vunpack.c.h.b16 %v6418
    %v7028 = vunpack.c.l.b16 %v6419
    %v7029 = vunpack.c.h.b16 %v6419
    %v7030 = vunpack.c.l.b16 %v6420
    %v7031 = vunpack.c.h.b16 %v6420
    %v7032 = vunpack.c.l.b16 %v6421
    %v7033 = vunpack.c.h.b16 %v6421
    %v7034 = vunpack.c.l.b16 %v6422
    %v7035 = vunpack.c.h.b16 %v6422
    %v7036 = vunpack.c.l.b16 %v6423
    %v7037 = vunpack.c.h.b16 %v6423
    %v7038 = vunpack.c.l.b16 %v6424
    %v7039 = vunpack.c.h.b16 %v6424
    %v7040 = vunpack.c.l.b16 %v6425
    %v7041 = vunpack.c.h.b16 %v6425
    %v7042 = vunpack.c.l.b16 %v6426
    %v7043 = vunpack.c.h.b16 %v6426
    %v7044 = vunpack.c.l.b16 %v6427
    %v7045 = vunpack.c.h.b16 %v6427
    %v7046 = vunpack.c.l.b16 %v6428
    %v7047 = vunpack.c.h.b16 %v6428
    %v7048 = vunpack.c.l.b16 %v6429
    %v7049 = vunpack.c.h.b16 %v6429
    %v7050 = vunpack.c.l.b16 %v6430
    %v7051 = vunpack.c.h.b16 %v6430
    %v7052 = vunpack.c.l.b16 %v6431
    %v7053 = vunpack.c.h.b16 %v6431
    %v7054 = vunpack.c.l.b16 %v6432
    %v7055 = vunpack.c.h.b16 %v6432
    %v7056 = vunpack.c.l.b16 %v6433
    %v7057 = vunpack.c.h.b16 %v6433
    %v7058 = vunpack.c.l.b16 %v6434
    %v7059 = vunpack.c.h.b16 %v6434
    %v7060 = vunpack.c.l.b16 %v6435
    %v7061 = vunpack.c.h.b16 %v6435
    %v7062 = vunpack.c.l.b16 %v6436
    %v7063 = vunpack.c.h.b16 %v6436
    %v7064 = vunpack.c.l.b16 %v6437
    %v7065 = vunpack.c.h.b16 %v6437
    %v7066 = vunpack.c.l.b16 %v6438
    %v7067 = vunpack.c.h.b16 %v6438
    %v7068 = vunpack.c.l.b16 %v6439
    %v7069 = vunpack.c.h.b16 %v6439
    %v7070 = vunpack.c.l.b16 %v6440
    %v7071 = vunpack.c.h.b16 %v6440
    %v7072 = vunpack.c.l.b16 %v6441
    %v7073 = vunpack.c.h.b16 %v6441
    %v7074 = vunpack.c.l.b16 %v6442
    %v7075 = vunpack.c.h.b16 %v6442
    %v7076 = vunpack.c.l.b16 %v6443
    %v7077 = vunpack.c.h.b16 %v6443
    %v7078 = vunpack.c.l.b16 %v6444
    %v7079 = vunpack.c.h.b16 %v6444
    %v7080 = vunpack.c.l.b16 %v6445
    %v7081 = vunpack.c.h.b16 %v6445
    %v7082 = vunpack.c.l.b16 %v6446
    %v7083 = vunpack.c.h.b16 %v6446
    %v7084 = vunpack.c.l.b16 %v6447
    %v7085 = vunpack.c.h.b16 %v6447
    %v7086 = vunpack.c.l.b16 %v6448
    %v7087 = vunpack.c.h.b16 %v6448
    %v7088 = vunpack.c.l.b16 %v6449
    %v7089 = vunpack.c.h.b16 %v6449
    %v7090 = vunpack.c.l.b16 %v6450
    %v7091 = vunpack.c.h.b16 %v6450
    %v7092 = vunpack.c.l.b16 %v6451
    %v7093 = vunpack.c.h.b16 %v6451
    %v7094 = vunpack.c.l.b16 %v6452
    %v7095 = vunpack.c.h.b16 %v6452
    %v7096 = vunpack.c.l.b16 %v6453
    %v7097 = vunpack.c.h.b16 %v6453
    %v7098 = vunpack.c.l.b16 %v6454
    %v7099 = vunpack.c.h.b16 %v6454
    %v7100 = vunpack.c.l.b16 %v6455
    %v7101 = vunpack.c.h.b16 %v6455
    %v7102 = vunpack.c.l.b16 %v6456
    %v7103 = vunpack.c.h.b16 %v6456
    %v7104 = vunpack.c.l.b16 %v6457
    %v7105 = vunpack.c.h.b16 %v6457
    %v7106 = vunpack.c.l.b16 %v6458
    %v7107 = vunpack.c.h.b16 %v6458
    %v7108 = vunpack.c.l.b16 %v6459
    %v7109 = vunpack.c.h.b16 %v6459
    %v7110 = vunpack.c.l.b16 %v6460
    %v7111 = vunpack.c.h.b16 %v6460
    %v7112 = vunpack.c.l.b16 %v6461
    %v7113 = vunpack.c.h.b16 %v6461
    %v7114 = vunpack.c.l.b16 %v6462
    %v7115 = vunpack.c.h.b16 %v6462
    %v7116 = vunpack.c.l.b16 %v6463
    %v7117 = vunpack.c.h.b16 %v6463
    %v7118 = vunpack.c.l.b16 %v6464
    %v7119 = vunpack.c.h.b16 %v6464
    %v7120 = vunpack.c.l.b16 %v6465
    %v7121 = vunpack.c.h.b16 %v6465
    %v7122 = vunpack.c.l.b16 %v6466
    %v7123 = vunpack.c.h.b16 %v6466
    %v7124 = vunpack.c.l.b16 %v6467
    %v7125 = vunpack.c.h.b16 %v6467
    %v7126 = vunpack.c.l.b16 %v6468
    %v7127 = vunpack.c.h.b16 %v6468
    %v7128 = vunpack.c.l.b16 %v6469
    %v7129 = vunpack.c.h.b16 %v6469
    %v7130 = vunpack.c.l.b16 %v6470
    %v7131 = vunpack.c.h.b16 %v6470
    %v7132 = vunpack.c.l.b16 %v6471
    %v7133 = vunpack.c.h.b16 %v6471
    %v7134 = vunpack.c.l.b16 %v6472
    %v7135 = vunpack.c.h.b16 %v6472
    %v7136 = vunpack.c.l.b16 %v6473
    %v7137 = vunpack.c.h.b16 %v6473
    %v7138 = vunpack.c.l.b16 %v6474
    %v7139 = vunpack.c.h.b16 %v6474
    %v7140 = vunpack.c.l.b16 %v6475
    %v7141 = vunpack.c.h.b16 %v6475
    %v7142 = vunpack.c.l.b16 %v6476
    %v7143 = vunpack.c.h.b16 %v6476
    %v7144 = vunpack.c.l.b16 %v6477
    %v7145 = vunpack.c.h.b16 %v6477
    %v7146 = vunpack.c.l.b16 %v6478
    %v7147 = vunpack.c.h.b16 %v6478
    %v7148 = vunpack.c.l.b16 %v6479
    %v7149 = vunpack.c.h.b16 %v6479
    %v7150 = vunpack.c.l.b16 %v6480
    %v7151 = vunpack.c.h.b16 %v6480
    %v7152 = vunpack.c.l.b16 %v6481
    %v7153 = vunpack.c.h.b16 %v6481
    %v7154 = vunpack.c.l.b16 %v6482
    %v7155 = vunpack.c.h.b16 %v6482
    %v7156 = vunpack.c.l.b16 %v6483
    %v7157 = vunpack.c.h.b16 %v6483
    %v7158 = vunpack.c.l.b16 %v6484
    %v7159 = vunpack.c.h.b16 %v6484
    %v7160 = vunpack.c.l.b16 %v6485
    %v7161 = vunpack.c.h.b16 %v6485
    %v7162 = vunpack.c.l.b16 %v6486
    %v7163 = vunpack.c.h.b16 %v6486
    %v7164 = vunpack.c.l.b16 %v6487
    %v7165 = vunpack.c.h.b16 %v6487
    %v7166 = vunpack.c.l.b16 %v6488
    %v7167 = vunpack.c.h.b16 %v6488
    %v7168 = vunpack.c.l.b16 %v6489
    %v7169 = vunpack.c.h.b16 %v6489
    %v7170 = vunpack.c.l.b16 %v6490
    %v7171 = vunpack.c.h.b16 %v6490
    %v7172 = vunpack.c.l.b16 %v6491
    %v7173 = vunpack.c.h.b16 %v6491
    %v7174 = vunpack.c.l.b16 %v6492
    %v7175 = vunpack.c.h.b16 %v6492
    %v7176 = vunpack.c.l.b16 %v6493
    %v7177 = vunpack.c.h.b16 %v6493
    %v7178 = vunpack.c.l.b16 %v6494
    %v7179 = vunpack.c.h.b16 %v6494
    %v7180 = vunpack.c.l.b16 %v6495
    %v7181 = vunpack.c.h.b16 %v6495
    %v7182 = vunpack.c.l.b16 %v6496
    %v7183 = vunpack.c.h.b16 %v6496
    %v7184 = vunpack.c.l.b16 %v6497
    %v7185 = vunpack.c.h.b16 %v6497
    %v7186 = vunpack.c.l.b16 %v6498
    %v7187 = vunpack.c.h.b16 %v6498
    %v7188 = vunpack.c.l.b16 %v6499
    %v7189 = vunpack.c.h.b16 %v6499
    %v7190 = vunpack.c.l.b16 %v6500
    %v7191 = vunpack.c.h.b16 %v6500
    %v7192 = vunpack.c.l.b16 %v6501
    %v7193 = vunpack.c.h.b16 %v6501
    %v7194 = vunpack.c.l.b16 %v6502
    %v7195 = vunpack.c.h.b16 %v6502
    %v7196 = vunpack.c.l.b16 %v6503
    %v7197 = vunpack.c.h.b16 %v6503
    %v7198 = vunpack.c.l.b16 %v6504
    %v7199 = vunpack.c.h.b16 %v6504
    %v7200 = vunpack.c.l.b16 %v6505
    %v7201 = vunpack.c.h.b16 %v6505
    %v7202 = vunpack.c.l.b16 %v6506
    %v7203 = vunpack.c.h.b16 %v6506
    %v7204 = vunpack.c.l.b16 %v6507
    %v7205 = vunpack.c.h.b16 %v6507
    %v7206 = vunpack.c.l.b16 %v6508
    %v7207 = vunpack.c.h.b16 %v6508
    %v7208 = vunpack.c.l.b16 %v6509
    %v7209 = vunpack.c.h.b16 %v6509
    %v7210 = vunpack.c.l.b16 %v6510
    %v7211 = vunpack.c.h.b16 %v6510
    %v7212 = vunpack.c.l.b16 %v6511
    %v7213 = vunpack.c.h.b16 %v6511
    %v7214 = vunpack.c.l.b16 %v6512
    %v7215 = vunpack.c.h.b16 %v6512
    %v7216 = vunpack.c.l.b16 %v6513
    %v7217 = vunpack.c.h.b16 %v6513
    %v7218 = vunpack.c.l.b16 %v6514
    %v7219 = vunpack.c.h.b16 %v6514
    %v7220 = vunpack.c.l.b16 %v6515
    %v7221 = vunpack.c.h.b16 %v6515
    %v7222 = vunpack.c.l.b16 %v6516
    %v7223 = vunpack.c.h.b16 %v6516
    %v7224 = vunpack.c.l.b16 %v6517
    %v7225 = vunpack.c.h.b16 %v6517
    %v7226 = vunpack.c.l.b16 %v6518
    %v7227 = vunpack.c.h.b16 %v6518
    %v7228 = vunpack.c.l.b16 %v6519
    %v7229 = vunpack.c.h.b16 %v6519
    %v7230 = vunpack.c.l.b16 %v6520
    %v7231 = vunpack.c.h.b16 %v6520
    %v7232 = vunpack.c.l.b16 %v6521
    %v7233 = vunpack.c.h.b16 %v6521
    %v7234 = vunpack.c.l.b16 %v6522
    %v7235 = vunpack.c.h.b16 %v6522
    %v7236 = vunpack.c.l.b16 %v6523
    %v7237 = vunpack.c.h.b16 %v6523
    %v7238 = vunpack.c.l.b16 %v6524
    %v7239 = vunpack.c.h.b16 %v6524
    %v7240 = vunpack.c.l.b16 %v6525
    %v7241 = vunpack.c.h.b16 %v6525
    %v7242 = vunpack.c.l.b16 %v6526
    %v7243 = vunpack.c.h.b16 %v6526
    %v7244 = vunpack.c.l.b16 %v6527
    %v7245 = vunpack.c.h.b16 %v6527
    %v7246 = vunpack.c.l.b16 %v6528
    %v7247 = vunpack.c.h.b16 %v6528
    %v7248 = vunpack.c.l.b16 %v6529
    %v7249 = vunpack.c.h.b16 %v6529
    %v7250 = vunpack.c.l.b16 %v6530
    %v7251 = vunpack.c.h.b16 %v6530
    %v7252 = vunpack.c.l.b16 %v6531
    %v7253 = vunpack.c.h.b16 %v6531
    %v7254 = vunpack.c.l.b16 %v6532
    %v7255 = vunpack.c.h.b16 %v6532
    %v7256 = vunpack.c.l.b16 %v6533
    %v7257 = vunpack.c.h.b16 %v6533
    %v7258 = vunpack.c.l.b16 %v6534
    %v7259 = vunpack.c.h.b16 %v6534
    %v7260 = vunpack.c.l.b16 %v6535
    %v7261 = vunpack.c.h.b16 %v6535
    %v7262 = vunpack.c.l.b16 %v6536
    %v7263 = vunpack.c.h.b16 %v6536
    %v7264 = vunpack.c.l.b16 %v6537
    %v7265 = vunpack.c.h.b16 %v6537
    %v7266 = vunpack.c.l.b16 %v6538
    %v7267 = vunpack.c.h.b16 %v6538
    %v7268 = vunpack.c.l.b16 %v6539
    %v7269 = vunpack.c.h.b16 %v6539
    %v7270 = vunpack.c.l.b16 %v6540
    %v7271 = vunpack.c.h.b16 %v6540
    %v7272 = vunpack.c.l.b16 %v6541
    %v7273 = vunpack.c.h.b16 %v6541
    %v7274 = vunpack.c.l.b16 %v6542
    %v7275 = vunpack.c.h.b16 %v6542
    %v7276 = vunpack.c.l.b16 %v6543
    %v7277 = vunpack.c.h.b16 %v6543
    %v7278 = vunpack.c.l.b16 %v6544
    %v7279 = vunpack.c.h.b16 %v6544
    %v7280 = vunpack.c.l.b16 %v6545
    %v7281 = vunpack.c.h.b16 %v6545
    %v7282 = vunpack.c.l.b16 %v6546
    %v7283 = vunpack.c.h.b16 %v6546
    %v7284 = vunpack.c.l.b16 %v6547
    %v7285 = vunpack.c.h.b16 %v6547
    %v7286 = vunpack.c.l.b16 %v6548
    %v7287 = vunpack.c.h.b16 %v6548
    %v7288 = vunpack.c.l.b16 %v6549
    %v7289 = vunpack.c.h.b16 %v6549
    %v7290 = vunpack.c.l.b16 %v6550
    %v7291 = vunpack.c.h.b16 %v6550
    %v7292 = vunpack.c.l.b16 %v6551
    %v7293 = vunpack.c.h.b16 %v6551
    %v7294 = vunpack.c.l.b16 %v6552
    %v7295 = vunpack.c.h.b16 %v6552
    %v7296 = vunpack.c.l.b16 %v6553
    %v7297 = vunpack.c.h.b16 %v6553
    %v7298 = vunpack.c.l.b16 %v6554
    %v7299 = vunpack.c.h.b16 %v6554
    %v7300 = vunpack.c.l.b16 %v6555
    %v7301 = vunpack.c.h.b16 %v6555
    %v7302 = vunpack.c.l.b16 %v6556
    %v7303 = vunpack.c.h.b16 %v6556
    %v7304 = vunpack.c.l.b16 %v6557
    %v7305 = vunpack.c.h.b16 %v6557
    %v7306 = vunpack.c.l.b16 %v6558
    %v7307 = vunpack.c.h.b16 %v6558
    %v7308 = vunpack.c.l.b16 %v6559
    %v7309 = vunpack.c.h.b16 %v6559
    %v7310 = vunpack.c.l.b16 %v6560
    %v7311 = vunpack.c.h.b16 %v6560
    %v7312 = vunpack.c.l.b16 %v6561
    %v7313 = vunpack.c.h.b16 %v6561
    %v7314 = vunpack.c.l.b16 %v6562
    %v7315 = vunpack.c.h.b16 %v6562
    %v7316 = vunpack.c.l.b16 %v6563
    %v7317 = vunpack.c.h.b16 %v6563
    %v7318 = vunpack.c.l.b16 %v6564
    %v7319 = vunpack.c.h.b16 %v6564
    %v7320 = vunpack.c.l.b16 %v6565
    %v7321 = vunpack.c.h.b16 %v6565
    %v7322 = vunpack.c.l.b16 %v6566
    %v7323 = vunpack.c.h.b16 %v6566
    %v7324 = vunpack.c.l.b16 %v6567
    %v7325 = vunpack.c.h.b16 %v6567
    %v7326 = vunpack.c.l.b16 %v6568
    %v7327 = vunpack.c.h.b16 %v6568
    %v7328 = vunpack.c.l.b16 %v6569
    %v7329 = vunpack.c.h.b16 %v6569
    %v7330 = vunpack.c.l.b16 %v6570
    %v7331 = vunpack.c.h.b16 %v6570
    %v7332 = vunpack.c.l.b16 %v6571
    %v7333 = vunpack.c.h.b16 %v6571
    %v7334 = vpack.c.b16 %v6836, %v6834
    %v7335 = vpack.c.b16 %v6837, %v6835
    %v7336 = vpack.c.b16 %v6840, %v6838
    %v7337 = vpack.c.b16 %v6841, %v6839
    %v7338 = vpack.c.b16 %v6844, %v6842
    %v7339 = vpack.c.b16 %v6845, %v6843
    %v7340 = vpack.c.b16 %v6848, %v6846
    %v7341 = vpack.c.b16 %v6849, %v6847
    %v7342 = vpack.c.b16 %v6852, %v6850
    %v7343 = vpack.c.b16 %v6853, %v6851
    %v7344 = vpack.c.b16 %v6856, %v6854
    %v7345 = vpack.c.b16 %v6857, %v6855
    %v7346 = vpack.c.b16 %v6860, %v6858
    %v7347 = vpack.c.b16 %v6861, %v6859
    %v7348 = vpack.c.b16 %v6864, %v6862
    %v7349 = vpack.c.b16 %v6865, %v6863
    %v7350 = vpack.c.b16 %v6868, %v6866
    %v7351 = vpack.c.b16 %v6869, %v6867
    %v7352 = vpack.c.b16 %v6872, %v6870
    %v7353 = vpack.c.b16 %v6873, %v6871
    %v7354 = vpack.c.b16 %v6876, %v6874
    %v7355 = vpack.c.b16 %v6877, %v6875
    %v7356 = vpack.c.b16 %v6880, %v6878
    %v7357 = vpack.c.b16 %v6881, %v6879
    %v7358 = vpack.c.b16 %v6884, %v6882
    %v7359 = vpack.c.b16 %v6885, %v6883
    %v7360 = vpack.c.b16 %v6888, %v6886
    %v7361 = vpack.c.b16 %v6889, %v6887
    %v7362 = vpack.c.b16 %v6892, %v6890
    %v7363 = vpack.c.b16 %v6893, %v6891
    %v7364 = vpack.c.b16 %v6896, %v6894
    %v7365 = vpack.c.b16 %v6897, %v6895
    %v7366 = vpack.c.b16 %v6900, %v6898
    %v7367 = vpack.c.b16 %v6901, %v6899
    %v7368 = vpack.c.b16 %v6904, %v6902
    %v7369 = vpack.c.b16 %v6905, %v6903
    %v7370 = vpack.c.b16 %v6908, %v6906
    %v7371 = vpack.c.b16 %v6909, %v6907
    %v7372 = vpack.c.b16 %v6912, %v6910
    %v7373 = vpack.c.b16 %v6913, %v6911
    %v7374 = vpack.c.b16 %v6916, %v6914
    %v7375 = vpack.c.b16 %v6917, %v6915
    %v7376 = vpack.c.b16 %v6920, %v6918
    %v7377 = vpack.c.b16 %v6921, %v6919
    %v7378 = vpack.c.b16 %v6924, %v6922
    %v7379 = vpack.c.b16 %v6925, %v6923
    %v7380 = vpack.c.b16 %v6928, %v6926
    %v7381 = vpack.c.b16 %v6929, %v6927
    %v7382 = vpack.c.b16 %v6932, %v6930
    %v7383 = vpack.c.b16 %v6933, %v6931
    %v7384 = vpack.c.b16 %v6936, %v6934
    %v7385 = vpack.c.b16 %v6937, %v6935
    %v7386 = vpack.c.b16 %v6940, %v6938
    %v7387 = vpack.c.b16 %v6941, %v6939
    %v7388 = vpack.c.b16 %v6944, %v6942
    %v7389 = vpack.c.b16 %v6945, %v6943
    %v7390 = vpack.c.b16 %v6948, %v6946
    %v7391 = vpack.c.b16 %v6949, %v6947
    %v7392 = vpack.c.b16 %v6952, %v6950
    %v7393 = vpack.c.b16 %v6953, %v6951
    %v7394 = vpack.c.b16 %v6956, %v6954
    %v7395 = vpack.c.b16 %v6957, %v6955
    %v7396 = vpack.c.b16 %v6960, %v6958
    %v7397 = vpack.c.b16 %v6961, %v6959
    %v7398 = vpack.c.b16 %v6964, %v6962
    %v7399 = vpack.c.b16 %v6965, %v6963
    %v7400 = vpack.c.b16 %v6968, %v6966
    %v7401 = vpack.c.b16 %v6969, %v6967
    %v7402 = vpack.c.b16 %v6972, %v6970
    %v7403 = vpack.c.b16 %v6973, %v6971
    %v7404 = vpack.c.b16 %v6976, %v6974
    %v7405 = vpack.c.b16 %v6977, %v6975
    %v7406 = vpack.c.b16 %v6980, %v6978
    %v7407 = vpack.c.b16 %v6981, %v6979
    %v7408 = vpack.c.b16 %v6984, %v6982
    %v7409 = vpack.c.b16 %v6985, %v6983
    %v7410 = vpack.c.b16 %v6988, %v6986
    %v7411 = vpack.c.b16 %v6989, %v6987
    %v7412 = vpack.c.b16 %v6992, %v6990
    %v7413 = vpack.c.b16 %v6993, %v6991
    %v7414 = vpack.c.b16 %v6996, %v6994
    %v7415 = vpack.c.b16 %v6997, %v6995
    %v7416 = vpack.c.b16 %v7000, %v6998
    %v7417 = vpack.c.b16 %v7001, %v6999
    %v7418 = vpack.c.b16 %v7004, %v7002
    %v7419 = vpack.c.b16 %v7005, %v7003
    %v7420 = vpack.c.b16 %v7008, %v7006
    %v7421 = vpack.c.b16 %v7009, %v7007
    %v7422 = vpack.c.b16 %v7012, %v7010
    %v7423 = vpack.c.b16 %v7013, %v7011
    %v7424 = vpack.c.b16 %v7016, %v7014
    %v7425 = vpack.c.b16 %v7017, %v7015
    %v7426 = vpack.c.b16 %v7020, %v7018
    %v7427 = vpack.c.b16 %v7021, %v7019
    %v7428 = vpack.c.b16 %v7024, %v7022
    %v7429 = vpack.c.b16 %v7025, %v7023
    %v7430 = vpack.c.b16 %v7028, %v7026
    %v7431 = vpack.c.b16 %v7029, %v7027
    %v7432 = vpack.c.b16 %v7032, %v7030
    %v7433 = vpack.c.b16 %v7033, %v7031
    %v7434 = vpack.c.b16 %v7036, %v7034
    %v7435 = vpack.c.b16 %v7037, %v7035
    %v7436 = vpack.c.b16 %v7040, %v7038
    %v7437 = vpack.c.b16 %v7041, %v7039
    %v7438 = vpack.c.b16 %v7044, %v7042
    %v7439 = vpack.c.b16 %v7045, %v7043
    %v7440 = vpack.c.b16 %v7048, %v7046
    %v7441 = vpack.c.b16 %v7049, %v7047
    %v7442 = vpack.c.b16 %v7052, %v7050
    %v7443 = vpack.c.b16 %v7053, %v7051
    %v7444 = vpack.c.b16 %v7056, %v7054
    %v7445 = vpack.c.b16 %v7057, %v7055
    %v7446 = vpack.c.b16 %v7060, %v7058
    %v7447 = vpack.c.b16 %v7061, %v7059
    %v7448 = vpack.c.b16 %v7064, %v7062
    %v7449 = vpack.c.b16 %v7065, %v7063
    %v7450 = vpack.c.b16 %v7068, %v7066
    %v7451 = vpack.c.b16 %v7069, %v7067
    %v7452 = vpack.c.b16 %v7072, %v7070
    %v7453 = vpack.c.b16 %v7073, %v7071
    %v7454 = vpack.c.b16 %v7076, %v7074
    %v7455 = vpack.c.b16 %v7077, %v7075
    %v7456 = vpack.c.b16 %v7080, %v7078
    %v7457 = vpack.c.b16 %v7081, %v7079
    %v7458 = vpack.c.b16 %v7084, %v7082
    %v7459 = vpack.c.b16 %v7085, %v7083
    %v7460 = vpack.c.b16 %v7088, %v7086
    %v7461 = vpack.c.b16 %v7089, %v7087
    %v7462 = vpack.c.b16 %v7092, %v7090
    %v7463 = vpack.c.b16 %v7093, %v7091
    %v7464 = vpack.c.b16 %v7096, %v7094
    %v7465 = vpack.c.b16 %v7097, %v7095
    %v7466 = vpack.c.b16 %v7100, %v7098
    %v7467 = vpack.c.b16 %v7101, %v7099
    %v7468 = vpack.c.b16 %v7104, %v7102
    %v7469 = vpack.c.b16 %v7105, %v7103
    %v7470 = vpack.c.b16 %v7108, %v7106
    %v7471 = vpack.c.b16 %v7109, %v7107
    %v7472 = vpack.c.b16 %v7112, %v7110
    %v7473 = vpack.c.b16 %v7113, %v7111
    %v7474 = vpack.c.b16 %v7116, %v7114
    %v7475 = vpack.c.b16 %v7117, %v7115
    %v7476 = vpack.c.b16 %v7120, %v7118
    %v7477 = vpack.c.b16 %v7121, %v7119
    %v7478 = vpack.c.b16 %v7124, %v7122
    %v7479 = vpack.c.b16 %v7125, %v7123
    %v7480 = vpack.c.b16 %v7128, %v7126
    %v7481 = vpack.c.b16 %v7129, %v7127
    %v7482 = vpack.c.b16 %v7132, %v7130
    %v7483 = vpack.c.b16 %v7133, %v7131
    %v7484 = vpack.c.b16 %v7136, %v7134
    %v7485 = vpack.c.b16 %v7137, %v7135
    %v7486 = vpack.c.b16 %v7140, %v7138
    %v7487 = vpack.c.b16 %v7141, %v7139
    %v7488 = vpack.c.b16 %v7144, %v7142
    %v7489 = vpack.c.b16 %v7145, %v7143
    %v7490 = vpack.c.b16 %v7148, %v7146
    %v7491 = vpack.c.b16 %v7149, %v7147
    %v7492 = vpack.c.b16 %v7152, %v7150
    %v7493 = vpack.c.b16 %v7153, %v7151
    %v7494 = vpack.c.b16 %v7156, %v7154
    %v7495 = vpack.c.b16 %v7157, %v7155
    %v7496 = vpack.c.b16 %v7160, %v7158
    %v7497 = vpack.c.b16 %v7161, %v7159
    %v7498 = vpack.c.b16 %v7164, %v7162
    %v7499 = vpack.c.b16 %v7165, %v7163
    %v7500 = vpack.c.b16 %v7168, %v7166
    %v7501 = vpack.c.b16 %v7169, %v7167
    %v7502 = vpack.c.b16 %v7172, %v7170
    %v7503 = vpack.c.b16 %v7173, %v7171
    %v7504 = vpack.c.b16 %v7176, %v7174
    %v7505 = vpack.c.b16 %v7177, %v7175
    %v7506 = vpack.c.b16 %v7180, %v7178
    %v7507 = vpack.c.b16 %v7181, %v7179
    %v7508 = vpack.c.b16 %v7184, %v7182
    %v7509 = vpack.c.b16 %v7185, %v7183
    %v7510 = vpack.c.b16 %v7188, %v7186
    %v7511 = vpack.c.b16 %v7189, %v7187
    %v7512 = vpack.c.b16 %v7192, %v7190
    %v7513 = vpack.c.b16 %v7193, %v7191
    %v7514 = vpack.c.b16 %v7196, %v7194
    %v7515 = vpack.c.b16 %v7197, %v7195
    %v7516 = vpack.c.b16 %v7200, %v7198
    %v7517 = vpack.c.b16 %v7201, %v7199
    %v7518 = vpack.c.b16 %v7204, %v7202
    %v7519 = vpack.c.b16 %v7205, %v7203
    %v7520 = vpack.c.b16 %v7208, %v7206
    %v7521 = vpack.c.b16 %v7209, %v7207
    %v7522 = vpack.c.b16 %v7212, %v7210
    %v7523 = vpack.c.b16 %v7213, %v7211
    %v7524 = vpack.c.b16 %v7216, %v7214
    %v7525 = vpack.c.b16 %v7217, %v7215
    %v7526 = vpack.c.b16 %v7220, %v7218
    %v7527 = vpack.c.b16 %v7221, %v7219
    %v7528 = vpack.c.b16 %v7224, %v7222
    %v7529 = vpack.c.b16 %v7225, %v7223
    %v7530 = vpack.c.b16 %v7228, %v7226
    %v7531 = vpack.c.b16 %v7229, %v7227
    %v7532 = vpack.c.b16 %v7232, %v7230
    %v7533 = vpack.c.b16 %v7233, %v7231
    %v7534 = vpack.c.b16 %v7236, %v7234
    %v7535 = vpack.c.b16 %v7237, %v7235
    %v7536 = vpack.c.b16 %v7240, %v7238
    %v7537 = vpack.c.b16 %v7241, %v7239
    %v7538 = vpack.c.b16 %v7244, %v7242
    %v7539 = vpack.c.b16 %v7245, %v7243
    %v7540 = vpack.c.b16 %v7248, %v7246
    %v7541 = vpack.c.b16 %v7249, %v7247
    %v7542 = vpack.c.b16 %v7252, %v7250
    %v7543 = vpack.c.b16 %v7253, %v7251
    %v7544 = vpack.c.b16 %v7256, %v7254
    %v7545 = vpack.c.b16 %v7257, %v7255
    %v7546 = vpack.c.b16 %v7260, %v7258
    %v7547 = vpack.c.b16 %v7261, %v7259
    %v7548 = vpack.c.b16 %v7264, %v7262
    %v7549 = vpack.c.b16 %v7265, %v7263
    %v7550 = vpack.c.b16 %v7268, %v7266
    %v7551 = vpack.c.b16 %v7269, %v7267
    %v7552 = vpack.c.b16 %v7272, %v7270
    %v7553 = vpack.c.b16 %v7273, %v7271
    %v7554 = vpack.c.b16 %v7276, %v7274
    %v7555 = vpack.c.b16 %v7277, %v7275
    %v7556 = vpack.c.b16 %v7280, %v7278
    %v7557 = vpack.c.b16 %v7281, %v7279
    %v7558 = vpack.c.b16 %v7284, %v7282
    %v7559 = vpack.c.b16 %v7285, %v7283
    %v7560 = vpack.c.b16 %v7288, %v7286
    %v7561 = vpack.c.b16 %v7289, %v7287
    %v7562 = vpack.c.b16 %v7292, %v7290
    %v7563 = vpack.c.b16 %v7293, %v7291
    %v7564 = vpack.c.b16 %v7296, %v7294
    %v7565 = vpack.c.b16 %v7297, %v7295
    %v7566 = vpack.c.b16 %v7300, %v7298
    %v7567 = vpack.c.b16 %v7301, %v7299
    %v7568 = vpack.c.b16 %v7304, %v7302
    %v7569 = vpack.c.b16 %v7305, %v7303
    %v7570 = vpack.c.b16 %v7308, %v7306
    %v7571 = vpack.c.b16 %v7309, %v7307
    %v7572 = vpack.c.b16 %v7312, %v7310
    %v7573 = vpack.c.b16 %v7313, %v7311
    %v7574 = vpack.c.b16 %v7316, %v7314
    %v7575 = vpack.c.b16 %v7317, %v7315
    %v7576 = vpack.c.b16 %v7320, %v7318
    %v7577 = vpack.c.b16 %v7321, %v7319
    %v7578 = vpack.c.b16 %v7324, %v7322
    %v7579 = vpack.c.b16 %v7325, %v7323
    %v7580 = vpack.c.b16 %v7328, %v7326
    %v7581 = vpack.c.b16 %v7329, %v7327
    %v7582 = vpack.c.b16 %v7332, %v7330
    %v7583 = vpack.c.b16 %v7333, %v7331
    %vm7834 = vcmask 654336
    %v7836 = vsel %vm7834, %v6321, 0
    %7838 = vmatprep.subr.bf16.mxu0 %v7335
    %7839 = vmatpush1.bf16.msra.mxu0 %v7334
    %7840 = vmatprep.subr.bf16.mxu0 %v7337
    %7841 = vmatpush1.bf16.msra.mxu0 %v7336
    %7842 = vmatprep.subr.bf16.mxu0 %v7339
    %7843 = vmatpush1.bf16.msra.mxu0 %v7338
    %7844 = vmatprep.subr.bf16.mxu0 %v7341
    %7845 = vmatpush1.bf16.msra.mxu0 %v7340
    %7846 = vmatprep.subr.bf16.mxu0 %v7343
    %7847 = vmatpush1.bf16.msra.mxu0 %v7342
    %7848 = vmatprep.subr.bf16.mxu0 %v7345
    %7849 = vmatpush1.bf16.msra.mxu0 %v7344
    %7850 = vmatprep.subr.bf16.mxu0 %v7347
    %7851 = vmatpush1.bf16.msra.mxu0 %v7346
    %7852 = vmatprep.subr.bf16.mxu0 %v7349
    %7853 = vmatpush1.bf16.msra.mxu0 %v7348
    %7854 = vmatprep.subr.bf16.mxu0 %v7351
    %7855 = vmatpush1.bf16.msra.mxu0 %v7350
    %7856 = vmatprep.subr.bf16.mxu0 %v7353
    %7857 = vmatpush1.bf16.msra.mxu0 %v7352
    %7858 = vmatprep.subr.bf16.mxu0 %v7355
    %7859 = vmatpush1.bf16.msra.mxu0 %v7354
    %7860 = vmatprep.subr.bf16.mxu0 %v7357
    %7861 = vmatpush1.bf16.msra.mxu0 %v7356
    %7862 = vmatprep.subr.bf16.mxu0 %v7359
    %7863 = vmatpush1.bf16.msra.mxu0 %v7358
    %7864 = vmatprep.subr.bf16.mxu0 %v7361
    %7865 = vmatpush1.bf16.msra.mxu0 %v7360
    %7866 = vmatprep.subr.bf16.mxu0 %v7363
    %7867 = vmatpush1.bf16.msra.mxu0 %v7362
    %7868 = vmatprep.subr.bf16.mxu0 %v7365
    %7869 = vmatpush1.bf16.msra.mxu0 %v7364
    %7870 = vmatprep.mubr.bf16.mxu0 %v6307
    %7871 = vmatmul.mubr.bf16.gmra.mrb[0].mxu0 %v6306
    %v7872 = vpop.f32.mrb[0].mxu0
    %v7873 = vadd.f32 %v6577, %v7872
    %v7874 = vpop.f32.mrb[0].mxu0
    %v7875 = vadd.f32 %v6581, %v7874
    %v7876 = vpop.f32.mrb[0].mxu0
    %v7877 = vpop.f32.mrb[0].mxu0
    %7878 = vdwg.mxu0
    %7879 = vmatprep.subr.bf16.mxu0 %v7367
    %7880 = vmatpush1.bf16.msra.mxu0 %v7366
    %7881 = vmatprep.subr.bf16.mxu0 %v7369
    %7882 = vmatpush1.bf16.msra.mxu0 %v7368
    %7883 = vmatprep.subr.bf16.mxu0 %v7371
    %7884 = vmatpush1.bf16.msra.mxu0 %v7370
    %7885 = vmatprep.subr.bf16.mxu0 %v7373
    %7886 = vmatpush1.bf16.msra.mxu0 %v7372
    %7887 = vmatprep.subr.bf16.mxu0 %v7375
    %7888 = vmatpush1.bf16.msra.mxu0 %v7374
    %7889 = vmatprep.subr.bf16.mxu0 %v7377
    %7890 = vmatpush1.bf16.msra.mxu0 %v7376
    %7891 = vmatprep.subr.bf16.mxu0 %v7379
    %7892 = vmatpush1.bf16.msra.mxu0 %v7378
    %7893 = vmatprep.subr.bf16.mxu0 %v7381
    %7894 = vmatpush1.bf16.msra.mxu0 %v7380
    %7895 = vmatprep.subr.bf16.mxu0 %v7383
    %7896 = vmatpush1.bf16.msra.mxu0 %v7382
    %7897 = vmatprep.subr.bf16.mxu0 %v7385
    %7898 = vmatpush1.bf16.msra.mxu0 %v7384
    %7899 = vmatprep.subr.bf16.mxu0 %v7387
    %7900 = vmatpush1.bf16.msra.mxu0 %v7386
    %7901 = vmatprep.subr.bf16.mxu0 %v7389
    %7902 = vmatpush1.bf16.msra.mxu0 %v7388
    %7903 = vmatprep.subr.bf16.mxu0 %v7391
    %7904 = vmatpush1.bf16.msra.mxu0 %v7390
    %7905 = vmatprep.subr.bf16.mxu0 %v7393
    %7906 = vmatpush1.bf16.msra.mxu0 %v7392
    %7907 = vmatprep.subr.bf16.mxu0 %v7395
    %7908 = vmatpush1.bf16.msra.mxu0 %v7394
    %7909 = vmatprep.subr.bf16.mxu0 %v7397
    %7910 = vmatpush1.bf16.msra.mxu0 %v7396
    %7911 = vmatprep.mubr.bf16.mxu0 %v6309
    %7912 = vmatmul.mubr.bf16.gmra.mrb[0].mxu0 %v6308
    %v7913 = vpop.f32.mrb[0].mxu0
    %v7914 = vadd.f32 %v7873, %v7913
    %v7915 = vpop.f32.mrb[0].mxu0
    %v7916 = vadd.f32 %v7875, %v7915
    %v7917 = vpop.f32.mrb[0].mxu0
    %v7918 = vpop.f32.mrb[0].mxu0
    %7919 = vdwg.mxu0
    %7920 = vmatprep.subr.bf16.mxu0 %v7399
    %7921 = vmatpush1.bf16.msra.mxu0 %v7398
    %7922 = vmatprep.subr.bf16.mxu0 %v7401
    %7923 = vmatpush1.bf16.msra.mxu0 %v7400
    %7924 = vmatprep.subr.bf16.mxu0 %v7403
    %7925 = vmatpush1.bf16.msra.mxu0 %v7402
    %7926 = vmatprep.subr.bf16.mxu0 %v7405
    %7927 = vmatpush1.bf16.msra.mxu0 %v7404
    %7928 = vmatprep.subr.bf16.mxu0 %v7407
    %7929 = vmatpush1.bf16.msra.mxu0 %v7406
    %7930 = vmatprep.subr.bf16.mxu0 %v7409
    %7931 = vmatpush1.bf16.msra.mxu0 %v7408
    %7932 = vmatprep.subr.bf16.mxu0 %v7411
    %7933 = vmatpush1.bf16.msra.mxu0 %v7410
    %7934 = vmatprep.subr.bf16.mxu0 %v7413
    %7935 = vmatpush1.bf16.msra.mxu0 %v7412
    %7936 = vmatprep.subr.bf16.mxu0 %v7415
    %7937 = vmatpush1.bf16.msra.mxu0 %v7414
    %7938 = vmatprep.subr.bf16.mxu0 %v7417
    %7939 = vmatpush1.bf16.msra.mxu0 %v7416
    %7940 = vmatprep.subr.bf16.mxu0 %v7419
    %7941 = vmatpush1.bf16.msra.mxu0 %v7418
    %7942 = vmatprep.subr.bf16.mxu0 %v7421
    %7943 = vmatpush1.bf16.msra.mxu0 %v7420
    %7944 = vmatprep.subr.bf16.mxu0 %v7423
    %7945 = vmatpush1.bf16.msra.mxu0 %v7422
    %7946 = vmatprep.subr.bf16.mxu0 %v7425
    %7947 = vmatpush1.bf16.msra.mxu0 %v7424
    %7948 = vmatprep.subr.bf16.mxu0 %v7427
    %7949 = vmatpush1.bf16.msra.mxu0 %v7426
    %7950 = vmatprep.subr.bf16.mxu0 %v7429
    %7951 = vmatpush1.bf16.msra.mxu0 %v7428
    %7952 = vmatprep.mubr.bf16.mxu0 %v6311
    %7953 = vmatmul.mubr.bf16.gmra.mrb[0].mxu0 %v6310
    %v7954 = vpop.f32.mrb[0].mxu0
    %v7955 = vadd.f32 %v7914, %v7954
    %v7956 = vpop.f32.mrb[0].mxu0
    %v7957 = vadd.f32 %v7916, %v7956
    %v7958 = vpop.f32.mrb[0].mxu0
    %v7959 = vpop.f32.mrb[0].mxu0
    %7960 = vdwg.mxu0
    %7961 = vmatprep.subr.bf16.mxu0 %v7431
    %7962 = vmatpush1.bf16.msra.mxu0 %v7430
    %7963 = vmatprep.subr.bf16.mxu0 %v7433
    %7964 = vmatpush1.bf16.msra.mxu0 %v7432
    %7965 = vmatprep.subr.bf16.mxu0 %v7435
    %7966 = vmatpush1.bf16.msra.mxu0 %v7434
    %7967 = vmatprep.subr.bf16.mxu0 %v7437
    %7968 = vmatpush1.bf16.msra.mxu0 %v7436
    %7969 = vmatprep.subr.bf16.mxu0 %v7439
    %7970 = vmatpush1.bf16.msra.mxu0 %v7438
    %7971 = vmatprep.subr.bf16.mxu0 %v7441
    %7972 = vmatpush1.bf16.msra.mxu0 %v7440
    %7973 = vmatprep.subr.bf16.mxu0 %v7443
    %7974 = vmatpush1.bf16.msra.mxu0 %v7442
    %7975 = vmatprep.subr.bf16.mxu0 %v7445
    %7976 = vmatpush1.bf16.msra.mxu0 %v7444
    %7977 = vmatprep.subr.bf16.mxu0 %v7447
    %7978 = vmatpush1.bf16.msra.mxu0 %v7446
    %7979 = vmatprep.subr.bf16.mxu0 %v7449
    %7980 = vmatpush1.bf16.msra.mxu0 %v7448
    %7981 = vmatprep.subr.bf16.mxu0 %v7451
    %7982 = vmatpush1.bf16.msra.mxu0 %v7450
    %7983 = vmatprep.subr.bf16.mxu0 %v7453
    %7984 = vmatpush1.bf16.msra.mxu0 %v7452
    %7985 = vmatprep.subr.bf16.mxu0 %v7455
    %7986 = vmatpush1.bf16.msra.mxu0 %v7454
    %7987 = vmatprep.subr.bf16.mxu0 %v7457
    %7988 = vmatpush1.bf16.msra.mxu0 %v7456
    %7989 = vmatprep.subr.bf16.mxu0 %v7459
    %7990 = vmatpush1.bf16.msra.mxu0 %v7458
    %7991 = vmatprep.subr.bf16.mxu0 %v7461
    %7992 = vmatpush1.bf16.msra.mxu0 %v7460
    %7993 = vmatprep.mubr.bf16.mxu0 %v6313
    %7994 = vmatmul.mubr.bf16.gmra.mrb[0].mxu0 %v6312
    %v7995 = vpop.f32.mrb[0].mxu0
    %v7996 = vadd.f32 %v7955, %v7995
    %v7997 = vpop.f32.mrb[0].mxu0
    %v7998 = vadd.f32 %v7957, %v7997
    %v7999 = vpop.f32.mrb[0].mxu0
    %v8000 = vpop.f32.mrb[0].mxu0
    %8001 = vdwg.mxu0
    %8002 = vmatprep.subr.bf16.mxu0 %v7463
    %8003 = vmatpush1.bf16.msra.mxu0 %v7462
    %8004 = vmatprep.subr.bf16.mxu0 %v7465
    %8005 = vmatpush1.bf16.msra.mxu0 %v7464
    %8006 = vmatprep.subr.bf16.mxu0 %v7467
    %8007 = vmatpush1.bf16.msra.mxu0 %v7466
    %8008 = vmatprep.subr.bf16.mxu0 %v7469
    %8009 = vmatpush1.bf16.msra.mxu0 %v7468
    %8010 = vmatprep.subr.bf16.mxu0 %v7471
    %8011 = vmatpush1.bf16.msra.mxu0 %v7470
    %8012 = vmatprep.subr.bf16.mxu0 %v7473
    %8013 = vmatpush1.bf16.msra.mxu0 %v7472
    %8014 = vmatprep.subr.bf16.mxu0 %v7475
    %8015 = vmatpush1.bf16.msra.mxu0 %v7474
    %8016 = vmatprep.subr.bf16.mxu0 %v7477
    %8017 = vmatpush1.bf16.msra.mxu0 %v7476
    %8018 = vmatprep.subr.bf16.mxu0 %v7479
    %8019 = vmatpush1.bf16.msra.mxu0 %v7478
    %8020 = vmatprep.subr.bf16.mxu0 %v7481
    %8021 = vmatpush1.bf16.msra.mxu0 %v7480
    %8022 = vmatprep.subr.bf16.mxu0 %v7483
    %8023 = vmatpush1.bf16.msra.mxu0 %v7482
    %8024 = vmatprep.subr.bf16.mxu0 %v7485
    %8025 = vmatpush1.bf16.msra.mxu0 %v7484
    %8026 = vmatprep.subr.bf16.mxu0 %v7487
    %8027 = vmatpush1.bf16.msra.mxu0 %v7486
    %8028 = vmatprep.subr.bf16.mxu0 %v7489
    %8029 = vmatpush1.bf16.msra.mxu0 %v7488
    %8030 = vmatprep.subr.bf16.mxu0 %v7491
    %8031 = vmatpush1.bf16.msra.mxu0 %v7490
    %8032 = vmatprep.subr.bf16.mxu0 %v7493
    %8033 = vmatpush1.bf16.msra.mxu0 %v7492
    %8034 = vmatprep.mubr.bf16.mxu0 %v6315
    %8035 = vmatmul.mubr.bf16.gmra.mrb[0].mxu0 %v6314
    %v8036 = vpop.f32.mrb[0].mxu0
    %v8037 = vadd.f32 %v7996, %v8036
    %v8038 = vpop.f32.mrb[0].mxu0
    %v8039 = vadd.f32 %v7998, %v8038
    %v8040 = vpop.f32.mrb[0].mxu0
    %v8041 = vpop.f32.mrb[0].mxu0
    %8042 = vdwg.mxu0
    %8043 = vmatprep.subr.bf16.mxu0 %v7495
    %8044 = vmatpush1.bf16.msra.mxu0 %v7494
    %8045 = vmatprep.subr.bf16.mxu0 %v7497
    %8046 = vmatpush1.bf16.msra.mxu0 %v7496
    %8047 = vmatprep.subr.bf16.mxu0 %v7499
    %8048 = vmatpush1.bf16.msra.mxu0 %v7498
    %8049 = vmatprep.subr.bf16.mxu0 %v7501
    %8050 = vmatpush1.bf16.msra.mxu0 %v7500
    %8051 = vmatprep.subr.bf16.mxu0 %v7503
    %8052 = vmatpush1.bf16.msra.mxu0 %v7502
    %8053 = vmatprep.subr.bf16.mxu0 %v7505
    %8054 = vmatpush1.bf16.msra.mxu0 %v7504
    %8055 = vmatprep.subr.bf16.mxu0 %v7507
    %8056 = vmatpush1.bf16.msra.mxu0 %v7506
    %8057 = vmatprep.subr.bf16.mxu0 %v7509
    %8058 = vmatpush1.bf16.msra.mxu0 %v7508
    %8059 = vmatprep.subr.bf16.mxu0 %v7511
    %8060 = vmatpush1.bf16.msra.mxu0 %v7510
    %8061 = vmatprep.subr.bf16.mxu0 %v7513
    %8062 = vmatpush1.bf16.msra.mxu0 %v7512
    %8063 = vmatprep.subr.bf16.mxu0 %v7515
    %8064 = vmatpush1.bf16.msra.mxu0 %v7514
    %8065 = vmatprep.subr.bf16.mxu0 %v7517
    %8066 = vmatpush1.bf16.msra.mxu0 %v7516
    %8067 = vmatprep.subr.bf16.mxu0 %v7519
    %8068 = vmatpush1.bf16.msra.mxu0 %v7518
    %8069 = vmatprep.subr.bf16.mxu0 %v7521
    %8070 = vmatpush1.bf16.msra.mxu0 %v7520
    %8071 = vmatprep.subr.bf16.mxu0 %v7523
    %8072 = vmatpush1.bf16.msra.mxu0 %v7522
    %8073 = vmatprep.subr.bf16.mxu0 %v7525
    %8074 = vmatpush1.bf16.msra.mxu0 %v7524
    %8075 = vmatprep.mubr.bf16.mxu0 %v6317
    %8076 = vmatmul.mubr.bf16.gmra.mrb[0].mxu0 %v6316
    %v8077 = vpop.f32.mrb[0].mxu0
    %v8078 = vadd.f32 %v8037, %v8077
    %v8079 = vpop.f32.mrb[0].mxu0
    %v8080 = vadd.f32 %v8039, %v8079
    %v8081 = vpop.f32.mrb[0].mxu0
    %v8082 = vpop.f32.mrb[0].mxu0
    %8083 = vdwg.mxu0
    %8084 = vmatprep.subr.bf16.mxu0 %v7527
    %8085 = vmatpush1.bf16.msra.mxu0 %v7526
    %8086 = vmatprep.subr.bf16.mxu0 %v7529
    %8087 = vmatpush1.bf16.msra.mxu0 %v7528
    %8088 = vmatprep.subr.bf16.mxu0 %v7531
    %8089 = vmatpush1.bf16.msra.mxu0 %v7530
    %8090 = vmatprep.subr.bf16.mxu0 %v7533
    %8091 = vmatpush1.bf16.msra.mxu0 %v7532
    %8092 = vmatprep.subr.bf16.mxu0 %v7535
    %8093 = vmatpush1.bf16.msra.mxu0 %v7534
    %8094 = vmatprep.subr.bf16.mxu0 %v7537
    %8095 = vmatpush1.bf16.msra.mxu0 %v7536
    %8096 = vmatprep.subr.bf16.mxu0 %v7539
    %8097 = vmatpush1.bf16.msra.mxu0 %v7538
    %8098 = vmatprep.subr.bf16.mxu0 %v7541
    %8099 = vmatpush1.bf16.msra.mxu0 %v7540
    %8100 = vmatprep.subr.bf16.mxu0 %v7543
    %8101 = vmatpush1.bf16.msra.mxu0 %v7542
    %8102 = vmatprep.subr.bf16.mxu0 %v7545
    %8103 = vmatpush1.bf16.msra.mxu0 %v7544
    %8104 = vmatprep.subr.bf16.mxu0 %v7547
    %8105 = vmatpush1.bf16.msra.mxu0 %v7546
    %8106 = vmatprep.subr.bf16.mxu0 %v7549
    %8107 = vmatpush1.bf16.msra.mxu0 %v7548
    %8108 = vmatprep.subr.bf16.mxu0 %v7551
    %8109 = vmatpush1.bf16.msra.mxu0 %v7550
    %8110 = vmatprep.subr.bf16.mxu0 %v7553
    %8111 = vmatpush1.bf16.msra.mxu0 %v7552
    %8112 = vmatprep.subr.bf16.mxu0 %v7555
    %8113 = vmatpush1.bf16.msra.mxu0 %v7554
    %8114 = vmatprep.subr.bf16.mxu0 %v7557
    %8115 = vmatpush1.bf16.msra.mxu0 %v7556
    %8116 = vmatprep.mubr.bf16.mxu0 %v6319
    %8117 = vmatmul.mubr.bf16.gmra.mrb[0].mxu0 %v6318
    %v8118 = vpop.f32.mrb[0].mxu0
    %v8119 = vadd.f32 %v8078, %v8118
    %v8120 = vpop.f32.mrb[0].mxu0
    %v8121 = vadd.f32 %v8080, %v8120
    %v8122 = vpop.f32.mrb[0].mxu0
    %v8123 = vpop.f32.mrb[0].mxu0
    %8124 = vdwg.mxu0
    %8125 = vmatprep.subr.bf16.mxu0 %v7559
    %8126 = vmatpush1.bf16.msra.mxu0 %v7558
    %8127 = vmatprep.subr.bf16.mxu0 %v7561
    %8128 = vmatpush1.bf16.msra.mxu0 %v7560
    %8129 = vmatprep.subr.bf16.mxu0 %v7563
    %8130 = vmatpush1.bf16.msra.mxu0 %v7562
    %8131 = vmatprep.subr.bf16.mxu0 %v7565
    %8132 = vmatpush1.bf16.msra.mxu0 %v7564
    %8133 = vmatprep.subr.bf16.mxu0 %v7567
    %8134 = vmatpush1.bf16.msra.mxu0 %v7566
    %8135 = vmatprep.subr.bf16.mxu0 %v7569
    %8136 = vmatpush1.bf16.msra.mxu0 %v7568
    %8137 = vmatprep.subr.bf16.mxu0 %v7571
    %8138 = vmatpush1.bf16.msra.mxu0 %v7570
    %8139 = vmatprep.subr.bf16.mxu0 %v7573
    %8140 = vmatpush1.bf16.msra.mxu0 %v7572
    %8141 = vmatprep.subr.bf16.mxu0 %v7575
    %8142 = vmatpush1.bf16.msra.mxu0 %v7574
    %8143 = vmatprep.subr.bf16.mxu0 %v7577
    %8144 = vmatpush1.bf16.msra.mxu0 %v7576
    %8145 = vmatprep.subr.bf16.mxu0 %v7579
    %8146 = vmatpush1.bf16.msra.mxu0 %v7578
    %8147 = vmatprep.subr.bf16.mxu0 %v7581
    %8148 = vmatpush1.bf16.msra.mxu0 %v7580
    %8149 = vmatprep.subr.bf16.mxu0 %v7583
    %8150 = vmatpush1.bf16.msra.mxu0 %v7582
    %8151 = vmatprep.subr.bf16.mxu0 0
    %8152 = vmatpush1.bf16.msra.mxu0 0
    %8153 = vmatprep.subr.bf16.mxu0 0
    %8154 = vmatpush1.bf16.msra.mxu0 0
    %8155 = vmatprep.subr.bf16.mxu0 0
    %8156 = vmatpush1.bf16.msra.mxu0 0
    %8157 = vmatprep.mubr.bf16.mxu0 %v7836
    %8158 = vmatmul.mubr.bf16.gmra.mrb[0].mxu0 %v6320
    %v8159 = vpop.f32.mrb[0].mxu0
    %v8160 = vadd.f32 %v8119, %v8159
    %v8161 = vpop.f32.mrb[0].mxu0
    %v8162 = vadd.f32 %v8121, %v8161
    %v8163 = vpop.f32.mrb[0].mxu0
    %v8164 = vpop.f32.mrb[0].mxu0
    %8165 = vdwg.mxu0
    %v8166 = vmax.f32 %v8160, 0.0
    %v8167 = vmax.f32 %v8162, 0.0
    %v8170 = vcombine.low %v8166, %v8167
    %v8172 = vunpack.c.l.s4 1983009808
    %v8173 = vunpack.c.0.s8 %v8172
    %v8174 = vlaneseq
    %v8175 = vshrl.u32 %v8174, 7
    %v8176 = vsub.s32 %v8173, %v8175
    %v8177 = vrot.slane %v8170, %v8176
    %vm8179 = vcmask 1041408
    %vm8180 = vcmask 994306
    %vm8181 = vmor %vm8180, %vm8179
    %8182 = vst.msk [vmem:[#allocation4] sm:$0xf] %vm8181, %v8177
    %v8183 = vld [vmem:[%s1] sm:$0x3]
    %v8184 = vld [vmem:[%s6] sm:$0xf]
    %v8185 = vld [vmem:[%s6 + $0x4] sm:$0xf]
    %v8186 = vld [vmem:[%s6 + $0x8] sm:$0xf]
    %v8187 = vld [vmem:[%s6 + $0xc] sm:$0xf]
    %v8188 = vld [vmem:[%s6 + $0x10] sm:$0xf]
    %v8189 = vld [vmem:[%s6 + $0x14] sm:$0xf]
    %v8190 = vld [vmem:[%s6 + $0x18] sm:$0xf]
    %v8191 = vld [vmem:[%s6 + $0x1c] sm:$0xf]
    %v8192 = vld [vmem:[%s6 + $0x20] sm:$0xf]
    %v8193 = vld [vmem:[%s6 + $0x24] sm:$0xf]
    %v8194 = vld [vmem:[%s6 + $0x28] sm:$0xf]
    %v8195 = vld [vmem:[%s6 + $0x2c] sm:$0xf]
    %v8196 = vld [vmem:[%s6 + $0x30] sm:$0xf]
    %v8197 = vld [vmem:[%s6 + $0x34] sm:$0xf]
    %v8198 = vld [vmem:[%s6 + $0x38] sm:$0xf]
    %v8199 = vld [vmem:[%s6 + $0x3c] sm:$0xf]
    %v8200 = vld [vmem:[%s6 + $0x40] sm:$0xf]
    %v8201 = vld [vmem:[%s6 + $0x44] sm:$0xf]
    %v8202 = vld [vmem:[%s6 + $0x48] sm:$0xf]
    %v8203 = vld [vmem:[%s6 + $0x4c] sm:$0xf]
    %v8204 = vld [vmem:[%s6 + $0x50] sm:$0xf]
    %v8205 = vld [vmem:[%s6 + $0x54] sm:$0xf]
    %v8206 = vld [vmem:[%s6 + $0x58] sm:$0xf]
    %v8207 = vld [vmem:[%s6 + $0x5c] sm:$0xf]
    %v8208 = vld [vmem:[%s6 + $0x60] sm:$0xf]
    %v8209 = vld [vmem:[%s6 + $0x64] sm:$0xf]
    %v8210 = vld [vmem:[%s6 + $0x68] sm:$0xf]
    %v8211 = vld [vmem:[%s6 + $0x6c] sm:$0xf]
    %v8212 = vld [vmem:[%s6 + $0x70] sm:$0xf]
    %v8213 = vld [vmem:[%s6 + $0x74] sm:$0xf]
    %v8214 = vld [vmem:[%s6 + $0x78] sm:$0xf]
    %v8215 = vld [vmem:[%s6 + $0x7c] sm:$0x1]
    %v8216 = vld [vmem:[%s7] sm:$0x1]
    %v8218 = vlaneseq
    %v8219 = vshrl.u32 %v8218, 7
    %v8220 = vsub.s32 0, %v8219
    %v8221 = vrot.slane %v8216, %v8220
    %v8225 = vunpack.c.l.s4 1966171168
    %v8226 = vunpack.c.0.s8 %v8225
    %v8227 = vlaneseq
    %v8228 = vshrl.u32 %v8227, 7
    %v8229 = vsub.s32 %v8226, %v8228
    %v8230 = vrot.slane %v8183, %v8229
    %v8231 = vcombine.high %v8230, %v8230
    %v8233 = vunpack.c.l.s4 1966171168
    %v8234 = vunpack.c.0.s8 %v8233
    %v8235 = vlaneseq
    %v8236 = vshrl.u32 %v8235, 7
    %v8237 = vsub.s32 %v8234, %v8236
    %v8238 = vrot.slane %v8230, %v8237
    %v8240 = vunpack.c.l.s4 1966171168
    %v8241 = vunpack.c.0.s8 %v8240
    %v8242 = vlaneseq
    %v8243 = vshrl.u32 %v8242, 7
    %v8244 = vsub.s32 %v8241, %v8243
    %v8245 = vrot.slane %v8231, %v8244
    %v8279 = vunpack.c.l.b16 %v8184
    %v8280 = vunpack.c.l.b16 %v8185
    %v8281 = vunpack.c.l.b16 %v8186
    %v8282 = vunpack.c.l.b16 %v8187
    %v8283 = vunpack.c.l.b16 %v8188
    %v8284 = vunpack.c.l.b16 %v8189
    %v8285 = vunpack.c.l.b16 %v8190
    %v8286 = vunpack.c.l.b16 %v8191
    %v8287 = vunpack.c.l.b16 %v8192
    %v8288 = vunpack.c.l.b16 %v8193
    %v8289 = vunpack.c.l.b16 %v8194
    %v8290 = vunpack.c.l.b16 %v8195
    %v8291 = vunpack.c.l.b16 %v8196
    %v8292 = vunpack.c.l.b16 %v8197
    %v8293 = vunpack.c.l.b16 %v8198
    %v8294 = vunpack.c.l.b16 %v8199
    %v8295 = vunpack.c.l.b16 %v8200
    %v8296 = vunpack.c.l.b16 %v8201
    %v8297 = vunpack.c.l.b16 %v8202
    %v8298 = vunpack.c.l.b16 %v8203
    %v8299 = vunpack.c.l.b16 %v8204
    %v8300 = vunpack.c.l.b16 %v8205
    %v8301 = vunpack.c.l.b16 %v8206
    %v8302 = vunpack.c.l.b16 %v8207
    %v8303 = vunpack.c.l.b16 %v8208
    %v8304 = vunpack.c.l.b16 %v8209
    %v8305 = vunpack.c.l.b16 %v8210
    %v8306 = vunpack.c.l.b16 %v8211
    %v8307 = vunpack.c.l.b16 %v8212
    %v8308 = vunpack.c.l.b16 %v8213
    %v8309 = vunpack.c.l.b16 %v8214
    %v8310 = vunpack.c.l.b16 %v8215
    %v8311 = vpack.c.b16 %v8280, %v8279
    %v8312 = vpack.c.b16 %v8282, %v8281
    %v8313 = vpack.c.b16 %v8284, %v8283
    %v8314 = vpack.c.b16 %v8286, %v8285
    %v8315 = vpack.c.b16 %v8288, %v8287
    %v8316 = vpack.c.b16 %v8290, %v8289
    %v8317 = vpack.c.b16 %v8292, %v8291
    %v8318 = vpack.c.b16 %v8294, %v8293
    %v8319 = vpack.c.b16 %v8296, %v8295
    %v8320 = vpack.c.b16 %v8298, %v8297
    %v8321 = vpack.c.b16 %v8300, %v8299
    %v8322 = vpack.c.b16 %v8302, %v8301
    %v8323 = vpack.c.b16 %v8304, %v8303
    %v8324 = vpack.c.b16 %v8306, %v8305
    %v8325 = vpack.c.b16 %v8308, %v8307
    %v8326 = vpack.c.b16 %v8310, %v8309
    %vm8342 = vcmask 998400
    %v8344 = vsel %vm8342, %v8245, 0
    %vm8346 = vcmask 1044480
    %v8348 = vsel %vm8346, %v8326, 0
    %8350 = vmatprep.subr.bf16.mxu0 0
    %8351 = vmatpush1.bf16.msra.mxu0 %v8311
    %8352 = vmatprep.subr.bf16.mxu0 0
    %8353 = vmatpush1.bf16.msra.mxu0 %v8312
    %8354 = vmatprep.subr.bf16.mxu0 0
    %8355 = vmatpush1.bf16.msra.mxu0 %v8313
    %8356 = vmatprep.subr.bf16.mxu0 0
    %8357 = vmatpush1.bf16.msra.mxu0 %v8314
    %8358 = vmatprep.subr.bf16.mxu0 0
    %8359 = vmatpush1.bf16.msra.mxu0 %v8315
    %8360 = vmatprep.subr.bf16.mxu0 0
    %8361 = vmatpush1.bf16.msra.mxu0 %v8316
    %8362 = vmatprep.subr.bf16.mxu0 0
    %8363 = vmatpush1.bf16.msra.mxu0 %v8317
    %8364 = vmatprep.subr.bf16.mxu0 0
    %8365 = vmatpush1.bf16.msra.mxu0 %v8318
    %8366 = vmatprep.subr.bf16.mxu0 0
    %8367 = vmatpush1.bf16.msra.mxu0 %v8319
    %8368 = vmatprep.subr.bf16.mxu0 0
    %8369 = vmatpush1.bf16.msra.mxu0 %v8320
    %8370 = vmatprep.subr.bf16.mxu0 0
    %8371 = vmatpush1.bf16.msra.mxu0 %v8321
    %8372 = vmatprep.subr.bf16.mxu0 0
    %8373 = vmatpush1.bf16.msra.mxu0 %v8322
    %8374 = vmatprep.subr.bf16.mxu0 0
    %8375 = vmatpush1.bf16.msra.mxu0 %v8323
    %8376 = vmatprep.subr.bf16.mxu0 0
    %8377 = vmatpush1.bf16.msra.mxu0 %v8324
    %8378 = vmatprep.subr.bf16.mxu0 0
    %8379 = vmatpush1.bf16.msra.mxu0 %v8325
    %8380 = vmatprep.subr.bf16.mxu0 0
    %8381 = vmatpush1.bf16.msra.mxu0 %v8348
    %8382 = vmatprep.mubr.bf16.mxu0 %v8344
    %8383 = vmatmul.mubr.bf16.gmra.mrb[0].mxu0 %v8238
    %v8384 = vpop.f32.mrb[0].mxu0
    %v8385 = vadd.f32 %v8221, %v8384
    %v8386 = vpop.f32.mrb[0].mxu0
    %v8387 = vpop.f32.mrb[0].mxu0
    %v8388 = vpop.f32.mrb[0].mxu0
    %8389 = vdwg.mxu0
    %vm8390 = vcmask 74752
    %8391 = vst.msk [vmem:[#allocation2] sm:$0x3] %vm8390, %v8385
    // Predicated region
    $region34: #{cnn1_small_forward.5} parent=1 // pred_check
      _
    $region35: #{cnn1_small_forward.5} parent=1 // pred_check_branch
      %8393 = sbr.rel (0) target = $region37
    $region36: #{cnn1_small_forward.5} parent=1 // pred_region
      %s8395 = ssub.s32 32, 32
      %8396 = vsyncadd [#allocation3], %s8395
      %s8398 = sshll.u32 [#allocation2], 4
      %s8399 = int_to_ptr.vmem [resolvable:$true] %s8398
      %8401 = dma.vmem_to_hbm [thread:$0]  %s8399, 32, %s8, [#allocation3]
    $region37: #{cnn1_small_forward.5} parent=1 // pred_fallthru
      _
    // Predicated region
    $region38: #{cnn1_small_forward.5} parent=1 // pred_check
      _
    $region39: #{cnn1_small_forward.5} parent=1 // pred_check_branch
      %8403 = sbr.rel (0) target = $region41
    $region40: #{cnn1_small_forward.5} parent=1 // pred_region
      %s8405 = ssub.s32 64, 64
      %8406 = vsyncadd [#allocation5], %s8405
      %s8408 = sshll.u32 [#allocation4], 4
      %s8409 = int_to_ptr.vmem [resolvable:$true] %s8408
      %8411 = dma.vmem_to_hbm [thread:$0]  %s8409, 64, %s9, [#allocation5]
    $region41: #{cnn1_small_forward.5} parent=1 // pred_fallthru
      _
    // Predicated region
    $region42: #{cnn1_small_forward.5} parent=1 // pred_check
      _
    $region43: #{cnn1_small_forward.5} parent=1 // pred_check_branch
      %8413 = sbr.rel (0) target = $region45
    $region44: #{cnn1_small_forward.5} parent=1 // pred_region
      %8414 = dma.done [#allocation3], 32
    $region45: #{cnn1_small_forward.5} parent=1 // pred_fallthru
      _
    // Predicated region
    $region46: #{cnn1_small_forward.5} parent=1 // pred_check
      _
    $region47: #{cnn1_small_forward.5} parent=1 // pred_check_branch
      %8416 = sbr.rel (0) target = $region49
    $region48: #{cnn1_small_forward.5} parent=1 // pred_region
      %8417 = dma.done [#allocation5], 64
    $region49: #{cnn1_small_forward.5} parent=1 // pred_fallthru
      _
    %8418 = vsyncpa [#allocation3], 1
    %8419 = vsyncpa [#allocation5], 1

</llo_original>
